<compile_context>
chip_gen: v7x
topology: tpu7x:2x2x1
jax: 0.10.0
libtpu: 0.0.40
codegen_flags: <defaults>
</compile_context>

<pallas_src>
import jax
import jax.numpy as jnp
from jax.experimental import pallas as pl
from jax.experimental.pallas import tpu as pltpu

N_H1 = 32    # fc1 output features
N_H2 = 16    # fc2 output features
LANES = 128  # vreg lane width
STRIP = 24   # rows per inner strip: (24, 128) f32 slab = 3 vregs


def _mlp_kernel(x_ref, w1_s, b1_s, w2_s, b2_s, w3_s, b3_s, o_ref):
    block_rows = x_ref.shape[0]
    n_strips = block_rows // STRIP

    # Hoist every SMEM scalar read (sld) out of the strip loop.
    w1 = [w1_s[f] for f in range(N_H1)]
    b1 = [b1_s[f] for f in range(N_H1)]
    w2 = [[w2_s[g * N_H1 + f] for f in range(N_H1)] for g in range(N_H2)]
    b2 = [b2_s[g] for g in range(N_H2)]
    w3 = [w3_s[g] for g in range(N_H2)]
    b3 = b3_s[0]

    @pl.loop(0, n_strips)
    def _(s):
        r0 = pl.multiple_of(s * STRIP, 8)
        x = x_ref[pl.ds(r0, STRIP), :]                        # (STRIP, 128)

        # fc1 + ReLU fused into an f-outer fc2 accumulation: only ONE h1 slab
        # is ever live; 16 f32 accumulators stay resident (~54 vregs total,
        # no VMEM spills).
        acc = [jnp.zeros((STRIP, LANES), jnp.float32) for _ in range(N_H2)]
        for f in range(N_H1):
            h1f = jnp.maximum(w1[f] * x + b1[f], 0.0)
            for g in range(N_H2):
                acc[g] = acc[g] + h1f * w2[g][f]

        # fc2 bias + ReLU, fc3 (16 -> 1) weighted sum, sigmoid (EUP slot) * 115.
        y = jnp.maximum(acc[0] + b2[0], 0.0) * w3[0]
        for g in range(1, N_H2):
            y = y + jnp.maximum(acc[g] + b2[g], 0.0) * w3[g]
        y = y + b3
        o_ref[pl.ds(r0, STRIP), :] = jax.nn.sigmoid(y) * 115.0


def _round_up(a, m):
    return ((a + m - 1) // m) * m


def net_forward(x, params, *, block_rows=1024):
    """x: (B, 1) float32.  params: torch-shaped weights with degenerate dims
    squeezed: w1=(32,), b1=(32,), w2=(16,32), b2=(16,), w3=(16,), b3=(1,)."""
    assert x.ndim == 2 and x.shape[1] == 1
    B = x.shape[0]
    x = x.astype(jnp.float32)

    # Lane-dense 2-D slab layout for the batch.
    rows = max(pl.cdiv(B, LANES), 1)

    # Block rows: a multiple of STRIP (hence of 8), capped so the grid has
    # >= 2 steps whenever the batch allows (v7x: 2 TensorCores; also enables
    # input/output double-buffering overlap on every generation).
    br = max(STRIP, (min(block_rows, rows) // STRIP) * STRIP)
    if rows >= 2 * STRIP:
        br = min(br, max(STRIP, (rows // (2 * STRIP)) * STRIP))
    rows_pad = _round_up(rows, br)
    b_pad = rows_pad * LANES

    # One small pad+reshape here and a final slice below; the kernel is
    # strongly VALU-bound, so this extra HBM pass is negligible.
    x2d = jnp.pad(x.reshape(B), (0, b_pad - B)).reshape(rows_pad, LANES)

    smem = pl.BlockSpec(memory_space=pltpu.MemorySpace.SMEM)
    xo_spec = pl.BlockSpec((br, LANES), lambda i: (i, 0))

    y2d = pl.pallas_call(
        _mlp_kernel,
        out_shape=jax.ShapeDtypeStruct((rows_pad, LANES), jnp.float32),
        grid=(rows_pad // br,),
        in_specs=[xo_spec, smem, smem, smem, smem, smem, smem],
        out_specs=xo_spec,
        compiler_params=pltpu.CompilerParams(
            dimension_semantics=("parallel",)),
    )(
        x2d,
        params["w1"].astype(jnp.float32),
        params["b1"].astype(jnp.float32),
        params["w2"].astype(jnp.float32).reshape(-1),   # flat (512,) in SMEM
        params["b2"].astype(jnp.float32),
        params["w3"].astype(jnp.float32),
        params["b3"].astype(jnp.float32),
    )

    return y2d.reshape(b_pad)[:B].reshape(B, 1)


def init_params(key):
    """Deterministic init matching the PyTorch layer shapes.
    PyTorch fc weight is (out, in); degenerate dims are squeezed:
    w1 == fc1.weight[:, 0], w2 == fc2.weight, w3 == fc3.weight[0, :]."""
    ks = jax.random.split(key, 6)

    def uinit(k, shape, fan_in):
        bound = 1.0 / jnp.sqrt(fan_in)
        return jax.random.uniform(k, shape, jnp.float32, -bound, bound)

    return {
        "w1": uinit(ks[0], (N_H1,), 1.0),
        "b1": uinit(ks[1], (N_H1,), 1.0),
        "w2": uinit(ks[2], (N_H2, N_H1), 32.0),
        "b2": uinit(ks[3], (N_H2,), 32.0),
        "w3": uinit(ks[4], (N_H2,), 16.0),
        "b3": uinit(ks[5], (1,), 16.0),
    }


def _reference(x, p):
    # Pure-JAX reference (same math as the torch forward).
    h1 = jnp.maximum(x * p["w1"][None, :] + p["b1"][None, :], 0.0)         # (B, 32)
    h2 = jnp.maximum(
        jnp.sum(h1[:, None, :] * p["w2"][None, :, :], axis=-1) + p["b2"][None, :],
        0.0,
    )                                                                       # (B, 16)
    y = jnp.sum(h2 * p["w3"][None, :], axis=-1, keepdims=True) + p["b3"][0]
    return jax.nn.sigmoid(y) * 115.0


if __name__ == "__main__":
    key = jax.random.PRNGKey(0)
    kx, kp = jax.random.split(key)

    B = 200                                  # not a multiple of 128 -> exercises padding
    x = jax.random.normal(kx, (B, 1), jnp.float32)
    params = init_params(kp)

    out = jax.block_until_ready(net_forward(x, params))

    ref = _reference(x, params)
    assert out.shape == (B, 1)
    assert jnp.allclose(out, ref, atol=2e-3, rtol=1e-3), "mismatch vs reference"

    print("KERNEL_OK")
</pallas_src>

<mosaic_0001>
module attributes {stable_mosaic.version = 11 : i64} {
  func.func @_mlp_kernel(%arg0: i32, %arg1: memref<24x128xf32, #tpu.memory_space<vmem>>, %arg2: memref<32xf32, #tpu.memory_space<smem>>, %arg3: memref<32xf32, #tpu.memory_space<smem>>, %arg4: memref<512xf32, #tpu.memory_space<smem>>, %arg5: memref<16xf32, #tpu.memory_space<smem>>, %arg6: memref<16xf32, #tpu.memory_space<smem>>, %arg7: memref<1xf32, #tpu.memory_space<smem>>, %arg8: memref<24x128xf32, #tpu.memory_space<vmem>>) attributes {dimension_semantics = [#tpu.dimension_semantics<parallel>], iteration_bounds = array<i64: 1>, scalar_prefetch = 0 : i64, scratch_operands = 0 : i64, tpu.core_type = #tpu.core_type<tc>, window_params = [{transform_indices = @transform_0, window_bounds = array<i64: 24, 128>}, {transform_indices = @transform_1, window_bounds = array<i64: 32>}, {transform_indices = @transform_2, window_bounds = array<i64: 32>}, {transform_indices = @transform_3, window_bounds = array<i64: 512>}, {transform_indices = @transform_4, window_bounds = array<i64: 16>}, {transform_indices = @transform_5, window_bounds = array<i64: 16>}, {transform_indices = @transform_6, window_bounds = array<i64: 1>}, {transform_indices = @transform_7, window_bounds = array<i64: 24, 128>}]} {
    %c0 = arith.constant 0 : index
    %0 = memref.load %arg2[%c0] : memref<32xf32, #tpu.memory_space<smem>>
    %c1 = arith.constant 1 : index
    %1 = memref.load %arg2[%c1] : memref<32xf32, #tpu.memory_space<smem>>
    %c2 = arith.constant 2 : index
    %2 = memref.load %arg2[%c2] : memref<32xf32, #tpu.memory_space<smem>>
    %c3 = arith.constant 3 : index
    %3 = memref.load %arg2[%c3] : memref<32xf32, #tpu.memory_space<smem>>
    %c4 = arith.constant 4 : index
    %4 = memref.load %arg2[%c4] : memref<32xf32, #tpu.memory_space<smem>>
    %c5 = arith.constant 5 : index
    %5 = memref.load %arg2[%c5] : memref<32xf32, #tpu.memory_space<smem>>
    %c6 = arith.constant 6 : index
    %6 = memref.load %arg2[%c6] : memref<32xf32, #tpu.memory_space<smem>>
    %c7 = arith.constant 7 : index
    %7 = memref.load %arg2[%c7] : memref<32xf32, #tpu.memory_space<smem>>
    %c8 = arith.constant 8 : index
    %8 = memref.load %arg2[%c8] : memref<32xf32, #tpu.memory_space<smem>>
    %c9 = arith.constant 9 : index
    %9 = memref.load %arg2[%c9] : memref<32xf32, #tpu.memory_space<smem>>
    %c10 = arith.constant 10 : index
    %10 = memref.load %arg2[%c10] : memref<32xf32, #tpu.memory_space<smem>>
    %c11 = arith.constant 11 : index
    %11 = memref.load %arg2[%c11] : memref<32xf32, #tpu.memory_space<smem>>
    %c12 = arith.constant 12 : index
    %12 = memref.load %arg2[%c12] : memref<32xf32, #tpu.memory_space<smem>>
    %c13 = arith.constant 13 : index
    %13 = memref.load %arg2[%c13] : memref<32xf32, #tpu.memory_space<smem>>
    %c14 = arith.constant 14 : index
    %14 = memref.load %arg2[%c14] : memref<32xf32, #tpu.memory_space<smem>>
    %c15 = arith.constant 15 : index
    %15 = memref.load %arg2[%c15] : memref<32xf32, #tpu.memory_space<smem>>
    %c16 = arith.constant 16 : index
    %16 = memref.load %arg2[%c16] : memref<32xf32, #tpu.memory_space<smem>>
    %c17 = arith.constant 17 : index
    %17 = memref.load %arg2[%c17] : memref<32xf32, #tpu.memory_space<smem>>
    %c18 = arith.constant 18 : index
    %18 = memref.load %arg2[%c18] : memref<32xf32, #tpu.memory_space<smem>>
    %c19 = arith.constant 19 : index
    %19 = memref.load %arg2[%c19] : memref<32xf32, #tpu.memory_space<smem>>
    %c20 = arith.constant 20 : index
    %20 = memref.load %arg2[%c20] : memref<32xf32, #tpu.memory_space<smem>>
    %c21 = arith.constant 21 : index
    %21 = memref.load %arg2[%c21] : memref<32xf32, #tpu.memory_space<smem>>
    %c22 = arith.constant 22 : index
    %22 = memref.load %arg2[%c22] : memref<32xf32, #tpu.memory_space<smem>>
    %c23 = arith.constant 23 : index
    %23 = memref.load %arg2[%c23] : memref<32xf32, #tpu.memory_space<smem>>
    %c24 = arith.constant 24 : index
    %24 = memref.load %arg2[%c24] : memref<32xf32, #tpu.memory_space<smem>>
    %c25 = arith.constant 25 : index
    %25 = memref.load %arg2[%c25] : memref<32xf32, #tpu.memory_space<smem>>
    %c26 = arith.constant 26 : index
    %26 = memref.load %arg2[%c26] : memref<32xf32, #tpu.memory_space<smem>>
    %c27 = arith.constant 27 : index
    %27 = memref.load %arg2[%c27] : memref<32xf32, #tpu.memory_space<smem>>
    %c28 = arith.constant 28 : index
    %28 = memref.load %arg2[%c28] : memref<32xf32, #tpu.memory_space<smem>>
    %c29 = arith.constant 29 : index
    %29 = memref.load %arg2[%c29] : memref<32xf32, #tpu.memory_space<smem>>
    %c30 = arith.constant 30 : index
    %30 = memref.load %arg2[%c30] : memref<32xf32, #tpu.memory_space<smem>>
    %c31 = arith.constant 31 : index
    %31 = memref.load %arg2[%c31] : memref<32xf32, #tpu.memory_space<smem>>
    %c0_0 = arith.constant 0 : index
    %32 = memref.load %arg3[%c0_0] : memref<32xf32, #tpu.memory_space<smem>>
    %c1_1 = arith.constant 1 : index
    %33 = memref.load %arg3[%c1_1] : memref<32xf32, #tpu.memory_space<smem>>
    %c2_2 = arith.constant 2 : index
    %34 = memref.load %arg3[%c2_2] : memref<32xf32, #tpu.memory_space<smem>>
    %c3_3 = arith.constant 3 : index
    %35 = memref.load %arg3[%c3_3] : memref<32xf32, #tpu.memory_space<smem>>
    %c4_4 = arith.constant 4 : index
    %36 = memref.load %arg3[%c4_4] : memref<32xf32, #tpu.memory_space<smem>>
    %c5_5 = arith.constant 5 : index
    %37 = memref.load %arg3[%c5_5] : memref<32xf32, #tpu.memory_space<smem>>
    %c6_6 = arith.constant 6 : index
    %38 = memref.load %arg3[%c6_6] : memref<32xf32, #tpu.memory_space<smem>>
    %c7_7 = arith.constant 7 : index
    %39 = memref.load %arg3[%c7_7] : memref<32xf32, #tpu.memory_space<smem>>
    %c8_8 = arith.constant 8 : index
    %40 = memref.load %arg3[%c8_8] : memref<32xf32, #tpu.memory_space<smem>>
    %c9_9 = arith.constant 9 : index
    %41 = memref.load %arg3[%c9_9] : memref<32xf32, #tpu.memory_space<smem>>
    %c10_10 = arith.constant 10 : index
    %42 = memref.load %arg3[%c10_10] : memref<32xf32, #tpu.memory_space<smem>>
    %c11_11 = arith.constant 11 : index
    %43 = memref.load %arg3[%c11_11] : memref<32xf32, #tpu.memory_space<smem>>
    %c12_12 = arith.constant 12 : index
    %44 = memref.load %arg3[%c12_12] : memref<32xf32, #tpu.memory_space<smem>>
    %c13_13 = arith.constant 13 : index
    %45 = memref.load %arg3[%c13_13] : memref<32xf32, #tpu.memory_space<smem>>
    %c14_14 = arith.constant 14 : index
    %46 = memref.load %arg3[%c14_14] : memref<32xf32, #tpu.memory_space<smem>>
    %c15_15 = arith.constant 15 : index
    %47 = memref.load %arg3[%c15_15] : memref<32xf32, #tpu.memory_space<smem>>
    %c16_16 = arith.constant 16 : index
    %48 = memref.load %arg3[%c16_16] : memref<32xf32, #tpu.memory_space<smem>>
    %c17_17 = arith.constant 17 : index
    %49 = memref.load %arg3[%c17_17] : memref<32xf32, #tpu.memory_space<smem>>
    %c18_18 = arith.constant 18 : index
    %50 = memref.load %arg3[%c18_18] : memref<32xf32, #tpu.memory_space<smem>>
    %c19_19 = arith.constant 19 : index
    %51 = memref.load %arg3[%c19_19] : memref<32xf32, #tpu.memory_space<smem>>
    %c20_20 = arith.constant 20 : index
    %52 = memref.load %arg3[%c20_20] : memref<32xf32, #tpu.memory_space<smem>>
    %c21_21 = arith.constant 21 : index
    %53 = memref.load %arg3[%c21_21] : memref<32xf32, #tpu.memory_space<smem>>
    %c22_22 = arith.constant 22 : index
    %54 = memref.load %arg3[%c22_22] : memref<32xf32, #tpu.memory_space<smem>>
    %c23_23 = arith.constant 23 : index
    %55 = memref.load %arg3[%c23_23] : memref<32xf32, #tpu.memory_space<smem>>
    %c24_24 = arith.constant 24 : index
    %56 = memref.load %arg3[%c24_24] : memref<32xf32, #tpu.memory_space<smem>>
    %c25_25 = arith.constant 25 : index
    %57 = memref.load %arg3[%c25_25] : memref<32xf32, #tpu.memory_space<smem>>
    %c26_26 = arith.constant 26 : index
    %58 = memref.load %arg3[%c26_26] : memref<32xf32, #tpu.memory_space<smem>>
    %c27_27 = arith.constant 27 : index
    %59 = memref.load %arg3[%c27_27] : memref<32xf32, #tpu.memory_space<smem>>
    %c28_28 = arith.constant 28 : index
    %60 = memref.load %arg3[%c28_28] : memref<32xf32, #tpu.memory_space<smem>>
    %c29_29 = arith.constant 29 : index
    %61 = memref.load %arg3[%c29_29] : memref<32xf32, #tpu.memory_space<smem>>
    %c30_30 = arith.constant 30 : index
    %62 = memref.load %arg3[%c30_30] : memref<32xf32, #tpu.memory_space<smem>>
    %c31_31 = arith.constant 31 : index
    %63 = memref.load %arg3[%c31_31] : memref<32xf32, #tpu.memory_space<smem>>
    %c0_32 = arith.constant 0 : index
    %64 = memref.load %arg4[%c0_32] : memref<512xf32, #tpu.memory_space<smem>>
    %c1_33 = arith.constant 1 : index
    %65 = memref.load %arg4[%c1_33] : memref<512xf32, #tpu.memory_space<smem>>
    %c2_34 = arith.constant 2 : index
    %66 = memref.load %arg4[%c2_34] : memref<512xf32, #tpu.memory_space<smem>>
    %c3_35 = arith.constant 3 : index
    %67 = memref.load %arg4[%c3_35] : memref<512xf32, #tpu.memory_space<smem>>
    %c4_36 = arith.constant 4 : index
    %68 = memref.load %arg4[%c4_36] : memref<512xf32, #tpu.memory_space<smem>>
    %c5_37 = arith.constant 5 : index
    %69 = memref.load %arg4[%c5_37] : memref<512xf32, #tpu.memory_space<smem>>
    %c6_38 = arith.constant 6 : index
    %70 = memref.load %arg4[%c6_38] : memref<512xf32, #tpu.memory_space<smem>>
    %c7_39 = arith.constant 7 : index
    %71 = memref.load %arg4[%c7_39] : memref<512xf32, #tpu.memory_space<smem>>
    %c8_40 = arith.constant 8 : index
    %72 = memref.load %arg4[%c8_40] : memref<512xf32, #tpu.memory_space<smem>>
    %c9_41 = arith.constant 9 : index
    %73 = memref.load %arg4[%c9_41] : memref<512xf32, #tpu.memory_space<smem>>
    %c10_42 = arith.constant 10 : index
    %74 = memref.load %arg4[%c10_42] : memref<512xf32, #tpu.memory_space<smem>>
    %c11_43 = arith.constant 11 : index
    %75 = memref.load %arg4[%c11_43] : memref<512xf32, #tpu.memory_space<smem>>
    %c12_44 = arith.constant 12 : index
    %76 = memref.load %arg4[%c12_44] : memref<512xf32, #tpu.memory_space<smem>>
    %c13_45 = arith.constant 13 : index
    %77 = memref.load %arg4[%c13_45] : memref<512xf32, #tpu.memory_space<smem>>
    %c14_46 = arith.constant 14 : index
    %78 = memref.load %arg4[%c14_46] : memref<512xf32, #tpu.memory_space<smem>>
    %c15_47 = arith.constant 15 : index
    %79 = memref.load %arg4[%c15_47] : memref<512xf32, #tpu.memory_space<smem>>
    %c16_48 = arith.constant 16 : index
    %80 = memref.load %arg4[%c16_48] : memref<512xf32, #tpu.memory_space<smem>>
    %c17_49 = arith.constant 17 : index
    %81 = memref.load %arg4[%c17_49] : memref<512xf32, #tpu.memory_space<smem>>
    %c18_50 = arith.constant 18 : index
    %82 = memref.load %arg4[%c18_50] : memref<512xf32, #tpu.memory_space<smem>>
    %c19_51 = arith.constant 19 : index
    %83 = memref.load %arg4[%c19_51] : memref<512xf32, #tpu.memory_space<smem>>
    %c20_52 = arith.constant 20 : index
    %84 = memref.load %arg4[%c20_52] : memref<512xf32, #tpu.memory_space<smem>>
    %c21_53 = arith.constant 21 : index
    %85 = memref.load %arg4[%c21_53] : memref<512xf32, #tpu.memory_space<smem>>
    %c22_54 = arith.constant 22 : index
    %86 = memref.load %arg4[%c22_54] : memref<512xf32, #tpu.memory_space<smem>>
    %c23_55 = arith.constant 23 : index
    %87 = memref.load %arg4[%c23_55] : memref<512xf32, #tpu.memory_space<smem>>
    %c24_56 = arith.constant 24 : index
    %88 = memref.load %arg4[%c24_56] : memref<512xf32, #tpu.memory_space<smem>>
    %c25_57 = arith.constant 25 : index
    %89 = memref.load %arg4[%c25_57] : memref<512xf32, #tpu.memory_space<smem>>
    %c26_58 = arith.constant 26 : index
    %90 = memref.load %arg4[%c26_58] : memref<512xf32, #tpu.memory_space<smem>>
    %c27_59 = arith.constant 27 : index
    %91 = memref.load %arg4[%c27_59] : memref<512xf32, #tpu.memory_space<smem>>
    %c28_60 = arith.constant 28 : index
    %92 = memref.load %arg4[%c28_60] : memref<512xf32, #tpu.memory_space<smem>>
    %c29_61 = arith.constant 29 : index
    %93 = memref.load %arg4[%c29_61] : memref<512xf32, #tpu.memory_space<smem>>
    %c30_62 = arith.constant 30 : index
    %94 = memref.load %arg4[%c30_62] : memref<512xf32, #tpu.memory_space<smem>>
    %c31_63 = arith.constant 31 : index
    %95 = memref.load %arg4[%c31_63] : memref<512xf32, #tpu.memory_space<smem>>
    %c32 = arith.constant 32 : index
    %96 = memref.load %arg4[%c32] : memref<512xf32, #tpu.memory_space<smem>>
    %c33 = arith.constant 33 : index
    %97 = memref.load %arg4[%c33] : memref<512xf32, #tpu.memory_space<smem>>
    %c34 = arith.constant 34 : index
    %98 = memref.load %arg4[%c34] : memref<512xf32, #tpu.memory_space<smem>>
    %c35 = arith.constant 35 : index
    %99 = memref.load %arg4[%c35] : memref<512xf32, #tpu.memory_space<smem>>
    %c36 = arith.constant 36 : index
    %100 = memref.load %arg4[%c36] : memref<512xf32, #tpu.memory_space<smem>>
    %c37 = arith.constant 37 : index
    %101 = memref.load %arg4[%c37] : memref<512xf32, #tpu.memory_space<smem>>
    %c38 = arith.constant 38 : index
    %102 = memref.load %arg4[%c38] : memref<512xf32, #tpu.memory_space<smem>>
    %c39 = arith.constant 39 : index
    %103 = memref.load %arg4[%c39] : memref<512xf32, #tpu.memory_space<smem>>
    %c40 = arith.constant 40 : index
    %104 = memref.load %arg4[%c40] : memref<512xf32, #tpu.memory_space<smem>>
    %c41 = arith.constant 41 : index
    %105 = memref.load %arg4[%c41] : memref<512xf32, #tpu.memory_space<smem>>
    %c42 = arith.constant 42 : index
    %106 = memref.load %arg4[%c42] : memref<512xf32, #tpu.memory_space<smem>>
    %c43 = arith.constant 43 : index
    %107 = memref.load %arg4[%c43] : memref<512xf32, #tpu.memory_space<smem>>
    %c44 = arith.constant 44 : index
    %108 = memref.load %arg4[%c44] : memref<512xf32, #tpu.memory_space<smem>>
    %c45 = arith.constant 45 : index
    %109 = memref.load %arg4[%c45] : memref<512xf32, #tpu.memory_space<smem>>
    %c46 = arith.constant 46 : index
    %110 = memref.load %arg4[%c46] : memref<512xf32, #tpu.memory_space<smem>>
    %c47 = arith.constant 47 : index
    %111 = memref.load %arg4[%c47] : memref<512xf32, #tpu.memory_space<smem>>
    %c48 = arith.constant 48 : index
    %112 = memref.load %arg4[%c48] : memref<512xf32, #tpu.memory_space<smem>>
    %c49 = arith.constant 49 : index
    %113 = memref.load %arg4[%c49] : memref<512xf32, #tpu.memory_space<smem>>
    %c50 = arith.constant 50 : index
    %114 = memref.load %arg4[%c50] : memref<512xf32, #tpu.memory_space<smem>>
    %c51 = arith.constant 51 : index
    %115 = memref.load %arg4[%c51] : memref<512xf32, #tpu.memory_space<smem>>
    %c52 = arith.constant 52 : index
    %116 = memref.load %arg4[%c52] : memref<512xf32, #tpu.memory_space<smem>>
    %c53 = arith.constant 53 : index
    %117 = memref.load %arg4[%c53] : memref<512xf32, #tpu.memory_space<smem>>
    %c54 = arith.constant 54 : index
    %118 = memref.load %arg4[%c54] : memref<512xf32, #tpu.memory_space<smem>>
    %c55 = arith.constant 55 : index
    %119 = memref.load %arg4[%c55] : memref<512xf32, #tpu.memory_space<smem>>
    %c56 = arith.constant 56 : index
    %120 = memref.load %arg4[%c56] : memref<512xf32, #tpu.memory_space<smem>>
    %c57 = arith.constant 57 : index
    %121 = memref.load %arg4[%c57] : memref<512xf32, #tpu.memory_space<smem>>
    %c58 = arith.constant 58 : index
    %122 = memref.load %arg4[%c58] : memref<512xf32, #tpu.memory_space<smem>>
    %c59 = arith.constant 59 : index
    %123 = memref.load %arg4[%c59] : memref<512xf32, #tpu.memory_space<smem>>
    %c60 = arith.constant 60 : index
    %124 = memref.load %arg4[%c60] : memref<512xf32, #tpu.memory_space<smem>>
    %c61 = arith.constant 61 : index
    %125 = memref.load %arg4[%c61] : memref<512xf32, #tpu.memory_space<smem>>
    %c62 = arith.constant 62 : index
    %126 = memref.load %arg4[%c62] : memref<512xf32, #tpu.memory_space<smem>>
    %c63 = arith.constant 63 : index
    %127 = memref.load %arg4[%c63] : memref<512xf32, #tpu.memory_space<smem>>
    %c64 = arith.constant 64 : index
    %128 = memref.load %arg4[%c64] : memref<512xf32, #tpu.memory_space<smem>>
    %c65 = arith.constant 65 : index
    %129 = memref.load %arg4[%c65] : memref<512xf32, #tpu.memory_space<smem>>
    %c66 = arith.constant 66 : index
    %130 = memref.load %arg4[%c66] : memref<512xf32, #tpu.memory_space<smem>>
    %c67 = arith.constant 67 : index
    %131 = memref.load %arg4[%c67] : memref<512xf32, #tpu.memory_space<smem>>
    %c68 = arith.constant 68 : index
    %132 = memref.load %arg4[%c68] : memref<512xf32, #tpu.memory_space<smem>>
    %c69 = arith.constant 69 : index
    %133 = memref.load %arg4[%c69] : memref<512xf32, #tpu.memory_space<smem>>
    %c70 = arith.constant 70 : index
    %134 = memref.load %arg4[%c70] : memref<512xf32, #tpu.memory_space<smem>>
    %c71 = arith.constant 71 : index
    %135 = memref.load %arg4[%c71] : memref<512xf32, #tpu.memory_space<smem>>
    %c72 = arith.constant 72 : index
    %136 = memref.load %arg4[%c72] : memref<512xf32, #tpu.memory_space<smem>>
    %c73 = arith.constant 73 : index
    %137 = memref.load %arg4[%c73] : memref<512xf32, #tpu.memory_space<smem>>
    %c74 = arith.constant 74 : index
    %138 = memref.load %arg4[%c74] : memref<512xf32, #tpu.memory_space<smem>>
    %c75 = arith.constant 75 : index
    %139 = memref.load %arg4[%c75] : memref<512xf32, #tpu.memory_space<smem>>
    %c76 = arith.constant 76 : index
    %140 = memref.load %arg4[%c76] : memref<512xf32, #tpu.memory_space<smem>>
    %c77 = arith.constant 77 : index
    %141 = memref.load %arg4[%c77] : memref<512xf32, #tpu.memory_space<smem>>
    %c78 = arith.constant 78 : index
    %142 = memref.load %arg4[%c78] : memref<512xf32, #tpu.memory_space<smem>>
    %c79 = arith.constant 79 : index
    %143 = memref.load %arg4[%c79] : memref<512xf32, #tpu.memory_space<smem>>
    %c80 = arith.constant 80 : index
    %144 = memref.load %arg4[%c80] : memref<512xf32, #tpu.memory_space<smem>>
    %c81 = arith.constant 81 : index
    %145 = memref.load %arg4[%c81] : memref<512xf32, #tpu.memory_space<smem>>
    %c82 = arith.constant 82 : index
    %146 = memref.load %arg4[%c82] : memref<512xf32, #tpu.memory_space<smem>>
    %c83 = arith.constant 83 : index
    %147 = memref.load %arg4[%c83] : memref<512xf32, #tpu.memory_space<smem>>
    %c84 = arith.constant 84 : index
    %148 = memref.load %arg4[%c84] : memref<512xf32, #tpu.memory_space<smem>>
    %c85 = arith.constant 85 : index
    %149 = memref.load %arg4[%c85] : memref<512xf32, #tpu.memory_space<smem>>
    %c86 = arith.constant 86 : index
    %150 = memref.load %arg4[%c86] : memref<512xf32, #tpu.memory_space<smem>>
    %c87 = arith.constant 87 : index
    %151 = memref.load %arg4[%c87] : memref<512xf32, #tpu.memory_space<smem>>
    %c88 = arith.constant 88 : index
    %152 = memref.load %arg4[%c88] : memref<512xf32, #tpu.memory_space<smem>>
    %c89 = arith.constant 89 : index
    %153 = memref.load %arg4[%c89] : memref<512xf32, #tpu.memory_space<smem>>
    %c90 = arith.constant 90 : index
    %154 = memref.load %arg4[%c90] : memref<512xf32, #tpu.memory_space<smem>>
    %c91 = arith.constant 91 : index
    %155 = memref.load %arg4[%c91] : memref<512xf32, #tpu.memory_space<smem>>
    %c92 = arith.constant 92 : index
    %156 = memref.load %arg4[%c92] : memref<512xf32, #tpu.memory_space<smem>>
    %c93 = arith.constant 93 : index
    %157 = memref.load %arg4[%c93] : memref<512xf32, #tpu.memory_space<smem>>
    %c94 = arith.constant 94 : index
    %158 = memref.load %arg4[%c94] : memref<512xf32, #tpu.memory_space<smem>>
    %c95 = arith.constant 95 : index
    %159 = memref.load %arg4[%c95] : memref<512xf32, #tpu.memory_space<smem>>
    %c96 = arith.constant 96 : index
    %160 = memref.load %arg4[%c96] : memref<512xf32, #tpu.memory_space<smem>>
    %c97 = arith.constant 97 : index
    %161 = memref.load %arg4[%c97] : memref<512xf32, #tpu.memory_space<smem>>
    %c98 = arith.constant 98 : index
    %162 = memref.load %arg4[%c98] : memref<512xf32, #tpu.memory_space<smem>>
    %c99 = arith.constant 99 : index
    %163 = memref.load %arg4[%c99] : memref<512xf32, #tpu.memory_space<smem>>
    %c100 = arith.constant 100 : index
    %164 = memref.load %arg4[%c100] : memref<512xf32, #tpu.memory_space<smem>>
    %c101 = arith.constant 101 : index
    %165 = memref.load %arg4[%c101] : memref<512xf32, #tpu.memory_space<smem>>
    %c102 = arith.constant 102 : index
    %166 = memref.load %arg4[%c102] : memref<512xf32, #tpu.memory_space<smem>>
    %c103 = arith.constant 103 : index
    %167 = memref.load %arg4[%c103] : memref<512xf32, #tpu.memory_space<smem>>
    %c104 = arith.constant 104 : index
    %168 = memref.load %arg4[%c104] : memref<512xf32, #tpu.memory_space<smem>>
    %c105 = arith.constant 105 : index
    %169 = memref.load %arg4[%c105] : memref<512xf32, #tpu.memory_space<smem>>
    %c106 = arith.constant 106 : index
    %170 = memref.load %arg4[%c106] : memref<512xf32, #tpu.memory_space<smem>>
    %c107 = arith.constant 107 : index
    %171 = memref.load %arg4[%c107] : memref<512xf32, #tpu.memory_space<smem>>
    %c108 = arith.constant 108 : index
    %172 = memref.load %arg4[%c108] : memref<512xf32, #tpu.memory_space<smem>>
    %c109 = arith.constant 109 : index
    %173 = memref.load %arg4[%c109] : memref<512xf32, #tpu.memory_space<smem>>
    %c110 = arith.constant 110 : index
    %174 = memref.load %arg4[%c110] : memref<512xf32, #tpu.memory_space<smem>>
    %c111 = arith.constant 111 : index
    %175 = memref.load %arg4[%c111] : memref<512xf32, #tpu.memory_space<smem>>
    %c112 = arith.constant 112 : index
    %176 = memref.load %arg4[%c112] : memref<512xf32, #tpu.memory_space<smem>>
    %c113 = arith.constant 113 : index
    %177 = memref.load %arg4[%c113] : memref<512xf32, #tpu.memory_space<smem>>
    %c114 = arith.constant 114 : index
    %178 = memref.load %arg4[%c114] : memref<512xf32, #tpu.memory_space<smem>>
    %c115 = arith.constant 115 : index
    %179 = memref.load %arg4[%c115] : memref<512xf32, #tpu.memory_space<smem>>
    %c116 = arith.constant 116 : index
    %180 = memref.load %arg4[%c116] : memref<512xf32, #tpu.memory_space<smem>>
    %c117 = arith.constant 117 : index
    %181 = memref.load %arg4[%c117] : memref<512xf32, #tpu.memory_space<smem>>
    %c118 = arith.constant 118 : index
    %182 = memref.load %arg4[%c118] : memref<512xf32, #tpu.memory_space<smem>>
    %c119 = arith.constant 119 : index
    %183 = memref.load %arg4[%c119] : memref<512xf32, #tpu.memory_space<smem>>
    %c120 = arith.constant 120 : index
    %184 = memref.load %arg4[%c120] : memref<512xf32, #tpu.memory_space<smem>>
    %c121 = arith.constant 121 : index
    %185 = memref.load %arg4[%c121] : memref<512xf32, #tpu.memory_space<smem>>
    %c122 = arith.constant 122 : index
    %186 = memref.load %arg4[%c122] : memref<512xf32, #tpu.memory_space<smem>>
    %c123 = arith.constant 123 : index
    %187 = memref.load %arg4[%c123] : memref<512xf32, #tpu.memory_space<smem>>
    %c124 = arith.constant 124 : index
    %188 = memref.load %arg4[%c124] : memref<512xf32, #tpu.memory_space<smem>>
    %c125 = arith.constant 125 : index
    %189 = memref.load %arg4[%c125] : memref<512xf32, #tpu.memory_space<smem>>
    %c126 = arith.constant 126 : index
    %190 = memref.load %arg4[%c126] : memref<512xf32, #tpu.memory_space<smem>>
    %c127 = arith.constant 127 : index
    %191 = memref.load %arg4[%c127] : memref<512xf32, #tpu.memory_space<smem>>
    %c128 = arith.constant 128 : index
    %192 = memref.load %arg4[%c128] : memref<512xf32, #tpu.memory_space<smem>>
    %c129 = arith.constant 129 : index
    %193 = memref.load %arg4[%c129] : memref<512xf32, #tpu.memory_space<smem>>
    %c130 = arith.constant 130 : index
    %194 = memref.load %arg4[%c130] : memref<512xf32, #tpu.memory_space<smem>>
    %c131 = arith.constant 131 : index
    %195 = memref.load %arg4[%c131] : memref<512xf32, #tpu.memory_space<smem>>
    %c132 = arith.constant 132 : index
    %196 = memref.load %arg4[%c132] : memref<512xf32, #tpu.memory_space<smem>>
    %c133 = arith.constant 133 : index
    %197 = memref.load %arg4[%c133] : memref<512xf32, #tpu.memory_space<smem>>
    %c134 = arith.constant 134 : index
    %198 = memref.load %arg4[%c134] : memref<512xf32, #tpu.memory_space<smem>>
    %c135 = arith.constant 135 : index
    %199 = memref.load %arg4[%c135] : memref<512xf32, #tpu.memory_space<smem>>
    %c136 = arith.constant 136 : index
    %200 = memref.load %arg4[%c136] : memref<512xf32, #tpu.memory_space<smem>>
    %c137 = arith.constant 137 : index
    %201 = memref.load %arg4[%c137] : memref<512xf32, #tpu.memory_space<smem>>
    %c138 = arith.constant 138 : index
    %202 = memref.load %arg4[%c138] : memref<512xf32, #tpu.memory_space<smem>>
    %c139 = arith.constant 139 : index
    %203 = memref.load %arg4[%c139] : memref<512xf32, #tpu.memory_space<smem>>
    %c140 = arith.constant 140 : index
    %204 = memref.load %arg4[%c140] : memref<512xf32, #tpu.memory_space<smem>>
    %c141 = arith.constant 141 : index
    %205 = memref.load %arg4[%c141] : memref<512xf32, #tpu.memory_space<smem>>
    %c142 = arith.constant 142 : index
    %206 = memref.load %arg4[%c142] : memref<512xf32, #tpu.memory_space<smem>>
    %c143 = arith.constant 143 : index
    %207 = memref.load %arg4[%c143] : memref<512xf32, #tpu.memory_space<smem>>
    %c144 = arith.constant 144 : index
    %208 = memref.load %arg4[%c144] : memref<512xf32, #tpu.memory_space<smem>>
    %c145 = arith.constant 145 : index
    %209 = memref.load %arg4[%c145] : memref<512xf32, #tpu.memory_space<smem>>
    %c146 = arith.constant 146 : index
    %210 = memref.load %arg4[%c146] : memref<512xf32, #tpu.memory_space<smem>>
    %c147 = arith.constant 147 : index
    %211 = memref.load %arg4[%c147] : memref<512xf32, #tpu.memory_space<smem>>
    %c148 = arith.constant 148 : index
    %212 = memref.load %arg4[%c148] : memref<512xf32, #tpu.memory_space<smem>>
    %c149 = arith.constant 149 : index
    %213 = memref.load %arg4[%c149] : memref<512xf32, #tpu.memory_space<smem>>
    %c150 = arith.constant 150 : index
    %214 = memref.load %arg4[%c150] : memref<512xf32, #tpu.memory_space<smem>>
    %c151 = arith.constant 151 : index
    %215 = memref.load %arg4[%c151] : memref<512xf32, #tpu.memory_space<smem>>
    %c152 = arith.constant 152 : index
    %216 = memref.load %arg4[%c152] : memref<512xf32, #tpu.memory_space<smem>>
    %c153 = arith.constant 153 : index
    %217 = memref.load %arg4[%c153] : memref<512xf32, #tpu.memory_space<smem>>
    %c154 = arith.constant 154 : index
    %218 = memref.load %arg4[%c154] : memref<512xf32, #tpu.memory_space<smem>>
    %c155 = arith.constant 155 : index
    %219 = memref.load %arg4[%c155] : memref<512xf32, #tpu.memory_space<smem>>
    %c156 = arith.constant 156 : index
    %220 = memref.load %arg4[%c156] : memref<512xf32, #tpu.memory_space<smem>>
    %c157 = arith.constant 157 : index
    %221 = memref.load %arg4[%c157] : memref<512xf32, #tpu.memory_space<smem>>
    %c158 = arith.constant 158 : index
    %222 = memref.load %arg4[%c158] : memref<512xf32, #tpu.memory_space<smem>>
    %c159 = arith.constant 159 : index
    %223 = memref.load %arg4[%c159] : memref<512xf32, #tpu.memory_space<smem>>
    %c160 = arith.constant 160 : index
    %224 = memref.load %arg4[%c160] : memref<512xf32, #tpu.memory_space<smem>>
    %c161 = arith.constant 161 : index
    %225 = memref.load %arg4[%c161] : memref<512xf32, #tpu.memory_space<smem>>
    %c162 = arith.constant 162 : index
    %226 = memref.load %arg4[%c162] : memref<512xf32, #tpu.memory_space<smem>>
    %c163 = arith.constant 163 : index
    %227 = memref.load %arg4[%c163] : memref<512xf32, #tpu.memory_space<smem>>
    %c164 = arith.constant 164 : index
    %228 = memref.load %arg4[%c164] : memref<512xf32, #tpu.memory_space<smem>>
    %c165 = arith.constant 165 : index
    %229 = memref.load %arg4[%c165] : memref<512xf32, #tpu.memory_space<smem>>
    %c166 = arith.constant 166 : index
    %230 = memref.load %arg4[%c166] : memref<512xf32, #tpu.memory_space<smem>>
    %c167 = arith.constant 167 : index
    %231 = memref.load %arg4[%c167] : memref<512xf32, #tpu.memory_space<smem>>
    %c168 = arith.constant 168 : index
    %232 = memref.load %arg4[%c168] : memref<512xf32, #tpu.memory_space<smem>>
    %c169 = arith.constant 169 : index
    %233 = memref.load %arg4[%c169] : memref<512xf32, #tpu.memory_space<smem>>
    %c170 = arith.constant 170 : index
    %234 = memref.load %arg4[%c170] : memref<512xf32, #tpu.memory_space<smem>>
    %c171 = arith.constant 171 : index
    %235 = memref.load %arg4[%c171] : memref<512xf32, #tpu.memory_space<smem>>
    %c172 = arith.constant 172 : index
    %236 = memref.load %arg4[%c172] : memref<512xf32, #tpu.memory_space<smem>>
    %c173 = arith.constant 173 : index
    %237 = memref.load %arg4[%c173] : memref<512xf32, #tpu.memory_space<smem>>
    %c174 = arith.constant 174 : index
    %238 = memref.load %arg4[%c174] : memref<512xf32, #tpu.memory_space<smem>>
    %c175 = arith.constant 175 : index
    %239 = memref.load %arg4[%c175] : memref<512xf32, #tpu.memory_space<smem>>
    %c176 = arith.constant 176 : index
    %240 = memref.load %arg4[%c176] : memref<512xf32, #tpu.memory_space<smem>>
    %c177 = arith.constant 177 : index
    %241 = memref.load %arg4[%c177] : memref<512xf32, #tpu.memory_space<smem>>
    %c178 = arith.constant 178 : index
    %242 = memref.load %arg4[%c178] : memref<512xf32, #tpu.memory_space<smem>>
    %c179 = arith.constant 179 : index
    %243 = memref.load %arg4[%c179] : memref<512xf32, #tpu.memory_space<smem>>
    %c180 = arith.constant 180 : index
    %244 = memref.load %arg4[%c180] : memref<512xf32, #tpu.memory_space<smem>>
    %c181 = arith.constant 181 : index
    %245 = memref.load %arg4[%c181] : memref<512xf32, #tpu.memory_space<smem>>
    %c182 = arith.constant 182 : index
    %246 = memref.load %arg4[%c182] : memref<512xf32, #tpu.memory_space<smem>>
    %c183 = arith.constant 183 : index
    %247 = memref.load %arg4[%c183] : memref<512xf32, #tpu.memory_space<smem>>
    %c184 = arith.constant 184 : index
    %248 = memref.load %arg4[%c184] : memref<512xf32, #tpu.memory_space<smem>>
    %c185 = arith.constant 185 : index
    %249 = memref.load %arg4[%c185] : memref<512xf32, #tpu.memory_space<smem>>
    %c186 = arith.constant 186 : index
    %250 = memref.load %arg4[%c186] : memref<512xf32, #tpu.memory_space<smem>>
    %c187 = arith.constant 187 : index
    %251 = memref.load %arg4[%c187] : memref<512xf32, #tpu.memory_space<smem>>
    %c188 = arith.constant 188 : index
    %252 = memref.load %arg4[%c188] : memref<512xf32, #tpu.memory_space<smem>>
    %c189 = arith.constant 189 : index
    %253 = memref.load %arg4[%c189] : memref<512xf32, #tpu.memory_space<smem>>
    %c190 = arith.constant 190 : index
    %254 = memref.load %arg4[%c190] : memref<512xf32, #tpu.memory_space<smem>>
    %c191 = arith.constant 191 : index
    %255 = memref.load %arg4[%c191] : memref<512xf32, #tpu.memory_space<smem>>
    %c192 = arith.constant 192 : index
    %256 = memref.load %arg4[%c192] : memref<512xf32, #tpu.memory_space<smem>>
    %c193 = arith.constant 193 : index
    %257 = memref.load %arg4[%c193] : memref<512xf32, #tpu.memory_space<smem>>
    %c194 = arith.constant 194 : index
    %258 = memref.load %arg4[%c194] : memref<512xf32, #tpu.memory_space<smem>>
    %c195 = arith.constant 195 : index
    %259 = memref.load %arg4[%c195] : memref<512xf32, #tpu.memory_space<smem>>
    %c196 = arith.constant 196 : index
    %260 = memref.load %arg4[%c196] : memref<512xf32, #tpu.memory_space<smem>>
    %c197 = arith.constant 197 : index
    %261 = memref.load %arg4[%c197] : memref<512xf32, #tpu.memory_space<smem>>
    %c198 = arith.constant 198 : index
    %262 = memref.load %arg4[%c198] : memref<512xf32, #tpu.memory_space<smem>>
    %c199 = arith.constant 199 : index
    %263 = memref.load %arg4[%c199] : memref<512xf32, #tpu.memory_space<smem>>
    %c200 = arith.constant 200 : index
    %264 = memref.load %arg4[%c200] : memref<512xf32, #tpu.memory_space<smem>>
    %c201 = arith.constant 201 : index
    %265 = memref.load %arg4[%c201] : memref<512xf32, #tpu.memory_space<smem>>
    %c202 = arith.constant 202 : index
    %266 = memref.load %arg4[%c202] : memref<512xf32, #tpu.memory_space<smem>>
    %c203 = arith.constant 203 : index
    %267 = memref.load %arg4[%c203] : memref<512xf32, #tpu.memory_space<smem>>
    %c204 = arith.constant 204 : index
    %268 = memref.load %arg4[%c204] : memref<512xf32, #tpu.memory_space<smem>>
    %c205 = arith.constant 205 : index
    %269 = memref.load %arg4[%c205] : memref<512xf32, #tpu.memory_space<smem>>
    %c206 = arith.constant 206 : index
    %270 = memref.load %arg4[%c206] : memref<512xf32, #tpu.memory_space<smem>>
    %c207 = arith.constant 207 : index
    %271 = memref.load %arg4[%c207] : memref<512xf32, #tpu.memory_space<smem>>
    %c208 = arith.constant 208 : index
    %272 = memref.load %arg4[%c208] : memref<512xf32, #tpu.memory_space<smem>>
    %c209 = arith.constant 209 : index
    %273 = memref.load %arg4[%c209] : memref<512xf32, #tpu.memory_space<smem>>
    %c210 = arith.constant 210 : index
    %274 = memref.load %arg4[%c210] : memref<512xf32, #tpu.memory_space<smem>>
    %c211 = arith.constant 211 : index
    %275 = memref.load %arg4[%c211] : memref<512xf32, #tpu.memory_space<smem>>
    %c212 = arith.constant 212 : index
    %276 = memref.load %arg4[%c212] : memref<512xf32, #tpu.memory_space<smem>>
    %c213 = arith.constant 213 : index
    %277 = memref.load %arg4[%c213] : memref<512xf32, #tpu.memory_space<smem>>
    %c214 = arith.constant 214 : index
    %278 = memref.load %arg4[%c214] : memref<512xf32, #tpu.memory_space<smem>>
    %c215 = arith.constant 215 : index
    %279 = memref.load %arg4[%c215] : memref<512xf32, #tpu.memory_space<smem>>
    %c216 = arith.constant 216 : index
    %280 = memref.load %arg4[%c216] : memref<512xf32, #tpu.memory_space<smem>>
    %c217 = arith.constant 217 : index
    %281 = memref.load %arg4[%c217] : memref<512xf32, #tpu.memory_space<smem>>
    %c218 = arith.constant 218 : index
    %282 = memref.load %arg4[%c218] : memref<512xf32, #tpu.memory_space<smem>>
    %c219 = arith.constant 219 : index
    %283 = memref.load %arg4[%c219] : memref<512xf32, #tpu.memory_space<smem>>
    %c220 = arith.constant 220 : index
    %284 = memref.load %arg4[%c220] : memref<512xf32, #tpu.memory_space<smem>>
    %c221 = arith.constant 221 : index
    %285 = memref.load %arg4[%c221] : memref<512xf32, #tpu.memory_space<smem>>
    %c222 = arith.constant 222 : index
    %286 = memref.load %arg4[%c222] : memref<512xf32, #tpu.memory_space<smem>>
    %c223 = arith.constant 223 : index
    %287 = memref.load %arg4[%c223] : memref<512xf32, #tpu.memory_space<smem>>
    %c224 = arith.constant 224 : index
    %288 = memref.load %arg4[%c224] : memref<512xf32, #tpu.memory_space<smem>>
    %c225 = arith.constant 225 : index
    %289 = memref.load %arg4[%c225] : memref<512xf32, #tpu.memory_space<smem>>
    %c226 = arith.constant 226 : index
    %290 = memref.load %arg4[%c226] : memref<512xf32, #tpu.memory_space<smem>>
    %c227 = arith.constant 227 : index
    %291 = memref.load %arg4[%c227] : memref<512xf32, #tpu.memory_space<smem>>
    %c228 = arith.constant 228 : index
    %292 = memref.load %arg4[%c228] : memref<512xf32, #tpu.memory_space<smem>>
    %c229 = arith.constant 229 : index
    %293 = memref.load %arg4[%c229] : memref<512xf32, #tpu.memory_space<smem>>
    %c230 = arith.constant 230 : index
    %294 = memref.load %arg4[%c230] : memref<512xf32, #tpu.memory_space<smem>>
    %c231 = arith.constant 231 : index
    %295 = memref.load %arg4[%c231] : memref<512xf32, #tpu.memory_space<smem>>
    %c232 = arith.constant 232 : index
    %296 = memref.load %arg4[%c232] : memref<512xf32, #tpu.memory_space<smem>>
    %c233 = arith.constant 233 : index
    %297 = memref.load %arg4[%c233] : memref<512xf32, #tpu.memory_space<smem>>
    %c234 = arith.constant 234 : index
    %298 = memref.load %arg4[%c234] : memref<512xf32, #tpu.memory_space<smem>>
    %c235 = arith.constant 235 : index
    %299 = memref.load %arg4[%c235] : memref<512xf32, #tpu.memory_space<smem>>
    %c236 = arith.constant 236 : index
    %300 = memref.load %arg4[%c236] : memref<512xf32, #tpu.memory_space<smem>>
    %c237 = arith.constant 237 : index
    %301 = memref.load %arg4[%c237] : memref<512xf32, #tpu.memory_space<smem>>
    %c238 = arith.constant 238 : index
    %302 = memref.load %arg4[%c238] : memref<512xf32, #tpu.memory_space<smem>>
    %c239 = arith.constant 239 : index
    %303 = memref.load %arg4[%c239] : memref<512xf32, #tpu.memory_space<smem>>
    %c240 = arith.constant 240 : index
    %304 = memref.load %arg4[%c240] : memref<512xf32, #tpu.memory_space<smem>>
    %c241 = arith.constant 241 : index
    %305 = memref.load %arg4[%c241] : memref<512xf32, #tpu.memory_space<smem>>
    %c242 = arith.constant 242 : index
    %306 = memref.load %arg4[%c242] : memref<512xf32, #tpu.memory_space<smem>>
    %c243 = arith.constant 243 : index
    %307 = memref.load %arg4[%c243] : memref<512xf32, #tpu.memory_space<smem>>
    %c244 = arith.constant 244 : index
    %308 = memref.load %arg4[%c244] : memref<512xf32, #tpu.memory_space<smem>>
    %c245 = arith.constant 245 : index
    %309 = memref.load %arg4[%c245] : memref<512xf32, #tpu.memory_space<smem>>
    %c246 = arith.constant 246 : index
    %310 = memref.load %arg4[%c246] : memref<512xf32, #tpu.memory_space<smem>>
    %c247 = arith.constant 247 : index
    %311 = memref.load %arg4[%c247] : memref<512xf32, #tpu.memory_space<smem>>
    %c248 = arith.constant 248 : index
    %312 = memref.load %arg4[%c248] : memref<512xf32, #tpu.memory_space<smem>>
    %c249 = arith.constant 249 : index
    %313 = memref.load %arg4[%c249] : memref<512xf32, #tpu.memory_space<smem>>
    %c250 = arith.constant 250 : index
    %314 = memref.load %arg4[%c250] : memref<512xf32, #tpu.memory_space<smem>>
    %c251 = arith.constant 251 : index
    %315 = memref.load %arg4[%c251] : memref<512xf32, #tpu.memory_space<smem>>
    %c252 = arith.constant 252 : index
    %316 = memref.load %arg4[%c252] : memref<512xf32, #tpu.memory_space<smem>>
    %c253 = arith.constant 253 : index
    %317 = memref.load %arg4[%c253] : memref<512xf32, #tpu.memory_space<smem>>
    %c254 = arith.constant 254 : index
    %318 = memref.load %arg4[%c254] : memref<512xf32, #tpu.memory_space<smem>>
    %c255 = arith.constant 255 : index
    %319 = memref.load %arg4[%c255] : memref<512xf32, #tpu.memory_space<smem>>
    %c256 = arith.constant 256 : index
    %320 = memref.load %arg4[%c256] : memref<512xf32, #tpu.memory_space<smem>>
    %c257 = arith.constant 257 : index
    %321 = memref.load %arg4[%c257] : memref<512xf32, #tpu.memory_space<smem>>
    %c258 = arith.constant 258 : index
    %322 = memref.load %arg4[%c258] : memref<512xf32, #tpu.memory_space<smem>>
    %c259 = arith.constant 259 : index
    %323 = memref.load %arg4[%c259] : memref<512xf32, #tpu.memory_space<smem>>
    %c260 = arith.constant 260 : index
    %324 = memref.load %arg4[%c260] : memref<512xf32, #tpu.memory_space<smem>>
    %c261 = arith.constant 261 : index
    %325 = memref.load %arg4[%c261] : memref<512xf32, #tpu.memory_space<smem>>
    %c262 = arith.constant 262 : index
    %326 = memref.load %arg4[%c262] : memref<512xf32, #tpu.memory_space<smem>>
    %c263 = arith.constant 263 : index
    %327 = memref.load %arg4[%c263] : memref<512xf32, #tpu.memory_space<smem>>
    %c264 = arith.constant 264 : index
    %328 = memref.load %arg4[%c264] : memref<512xf32, #tpu.memory_space<smem>>
    %c265 = arith.constant 265 : index
    %329 = memref.load %arg4[%c265] : memref<512xf32, #tpu.memory_space<smem>>
    %c266 = arith.constant 266 : index
    %330 = memref.load %arg4[%c266] : memref<512xf32, #tpu.memory_space<smem>>
    %c267 = arith.constant 267 : index
    %331 = memref.load %arg4[%c267] : memref<512xf32, #tpu.memory_space<smem>>
    %c268 = arith.constant 268 : index
    %332 = memref.load %arg4[%c268] : memref<512xf32, #tpu.memory_space<smem>>
    %c269 = arith.constant 269 : index
    %333 = memref.load %arg4[%c269] : memref<512xf32, #tpu.memory_space<smem>>
    %c270 = arith.constant 270 : index
    %334 = memref.load %arg4[%c270] : memref<512xf32, #tpu.memory_space<smem>>
    %c271 = arith.constant 271 : index
    %335 = memref.load %arg4[%c271] : memref<512xf32, #tpu.memory_space<smem>>
    %c272 = arith.constant 272 : index
    %336 = memref.load %arg4[%c272] : memref<512xf32, #tpu.memory_space<smem>>
    %c273 = arith.constant 273 : index
    %337 = memref.load %arg4[%c273] : memref<512xf32, #tpu.memory_space<smem>>
    %c274 = arith.constant 274 : index
    %338 = memref.load %arg4[%c274] : memref<512xf32, #tpu.memory_space<smem>>
    %c275 = arith.constant 275 : index
    %339 = memref.load %arg4[%c275] : memref<512xf32, #tpu.memory_space<smem>>
    %c276 = arith.constant 276 : index
    %340 = memref.load %arg4[%c276] : memref<512xf32, #tpu.memory_space<smem>>
    %c277 = arith.constant 277 : index
    %341 = memref.load %arg4[%c277] : memref<512xf32, #tpu.memory_space<smem>>
    %c278 = arith.constant 278 : index
    %342 = memref.load %arg4[%c278] : memref<512xf32, #tpu.memory_space<smem>>
    %c279 = arith.constant 279 : index
    %343 = memref.load %arg4[%c279] : memref<512xf32, #tpu.memory_space<smem>>
    %c280 = arith.constant 280 : index
    %344 = memref.load %arg4[%c280] : memref<512xf32, #tpu.memory_space<smem>>
    %c281 = arith.constant 281 : index
    %345 = memref.load %arg4[%c281] : memref<512xf32, #tpu.memory_space<smem>>
    %c282 = arith.constant 282 : index
    %346 = memref.load %arg4[%c282] : memref<512xf32, #tpu.memory_space<smem>>
    %c283 = arith.constant 283 : index
    %347 = memref.load %arg4[%c283] : memref<512xf32, #tpu.memory_space<smem>>
    %c284 = arith.constant 284 : index
    %348 = memref.load %arg4[%c284] : memref<512xf32, #tpu.memory_space<smem>>
    %c285 = arith.constant 285 : index
    %349 = memref.load %arg4[%c285] : memref<512xf32, #tpu.memory_space<smem>>
    %c286 = arith.constant 286 : index
    %350 = memref.load %arg4[%c286] : memref<512xf32, #tpu.memory_space<smem>>
    %c287 = arith.constant 287 : index
    %351 = memref.load %arg4[%c287] : memref<512xf32, #tpu.memory_space<smem>>
    %c288 = arith.constant 288 : index
    %352 = memref.load %arg4[%c288] : memref<512xf32, #tpu.memory_space<smem>>
    %c289 = arith.constant 289 : index
    %353 = memref.load %arg4[%c289] : memref<512xf32, #tpu.memory_space<smem>>
    %c290 = arith.constant 290 : index
    %354 = memref.load %arg4[%c290] : memref<512xf32, #tpu.memory_space<smem>>
    %c291 = arith.constant 291 : index
    %355 = memref.load %arg4[%c291] : memref<512xf32, #tpu.memory_space<smem>>
    %c292 = arith.constant 292 : index
    %356 = memref.load %arg4[%c292] : memref<512xf32, #tpu.memory_space<smem>>
    %c293 = arith.constant 293 : index
    %357 = memref.load %arg4[%c293] : memref<512xf32, #tpu.memory_space<smem>>
    %c294 = arith.constant 294 : index
    %358 = memref.load %arg4[%c294] : memref<512xf32, #tpu.memory_space<smem>>
    %c295 = arith.constant 295 : index
    %359 = memref.load %arg4[%c295] : memref<512xf32, #tpu.memory_space<smem>>
    %c296 = arith.constant 296 : index
    %360 = memref.load %arg4[%c296] : memref<512xf32, #tpu.memory_space<smem>>
    %c297 = arith.constant 297 : index
    %361 = memref.load %arg4[%c297] : memref<512xf32, #tpu.memory_space<smem>>
    %c298 = arith.constant 298 : index
    %362 = memref.load %arg4[%c298] : memref<512xf32, #tpu.memory_space<smem>>
    %c299 = arith.constant 299 : index
    %363 = memref.load %arg4[%c299] : memref<512xf32, #tpu.memory_space<smem>>
    %c300 = arith.constant 300 : index
    %364 = memref.load %arg4[%c300] : memref<512xf32, #tpu.memory_space<smem>>
    %c301 = arith.constant 301 : index
    %365 = memref.load %arg4[%c301] : memref<512xf32, #tpu.memory_space<smem>>
    %c302 = arith.constant 302 : index
    %366 = memref.load %arg4[%c302] : memref<512xf32, #tpu.memory_space<smem>>
    %c303 = arith.constant 303 : index
    %367 = memref.load %arg4[%c303] : memref<512xf32, #tpu.memory_space<smem>>
    %c304 = arith.constant 304 : index
    %368 = memref.load %arg4[%c304] : memref<512xf32, #tpu.memory_space<smem>>
    %c305 = arith.constant 305 : index
    %369 = memref.load %arg4[%c305] : memref<512xf32, #tpu.memory_space<smem>>
    %c306 = arith.constant 306 : index
    %370 = memref.load %arg4[%c306] : memref<512xf32, #tpu.memory_space<smem>>
    %c307 = arith.constant 307 : index
    %371 = memref.load %arg4[%c307] : memref<512xf32, #tpu.memory_space<smem>>
    %c308 = arith.constant 308 : index
    %372 = memref.load %arg4[%c308] : memref<512xf32, #tpu.memory_space<smem>>
    %c309 = arith.constant 309 : index
    %373 = memref.load %arg4[%c309] : memref<512xf32, #tpu.memory_space<smem>>
    %c310 = arith.constant 310 : index
    %374 = memref.load %arg4[%c310] : memref<512xf32, #tpu.memory_space<smem>>
    %c311 = arith.constant 311 : index
    %375 = memref.load %arg4[%c311] : memref<512xf32, #tpu.memory_space<smem>>
    %c312 = arith.constant 312 : index
    %376 = memref.load %arg4[%c312] : memref<512xf32, #tpu.memory_space<smem>>
    %c313 = arith.constant 313 : index
    %377 = memref.load %arg4[%c313] : memref<512xf32, #tpu.memory_space<smem>>
    %c314 = arith.constant 314 : index
    %378 = memref.load %arg4[%c314] : memref<512xf32, #tpu.memory_space<smem>>
    %c315 = arith.constant 315 : index
    %379 = memref.load %arg4[%c315] : memref<512xf32, #tpu.memory_space<smem>>
    %c316 = arith.constant 316 : index
    %380 = memref.load %arg4[%c316] : memref<512xf32, #tpu.memory_space<smem>>
    %c317 = arith.constant 317 : index
    %381 = memref.load %arg4[%c317] : memref<512xf32, #tpu.memory_space<smem>>
    %c318 = arith.constant 318 : index
    %382 = memref.load %arg4[%c318] : memref<512xf32, #tpu.memory_space<smem>>
    %c319 = arith.constant 319 : index
    %383 = memref.load %arg4[%c319] : memref<512xf32, #tpu.memory_space<smem>>
    %c320 = arith.constant 320 : index
    %384 = memref.load %arg4[%c320] : memref<512xf32, #tpu.memory_space<smem>>
    %c321 = arith.constant 321 : index
    %385 = memref.load %arg4[%c321] : memref<512xf32, #tpu.memory_space<smem>>
    %c322 = arith.constant 322 : index
    %386 = memref.load %arg4[%c322] : memref<512xf32, #tpu.memory_space<smem>>
    %c323 = arith.constant 323 : index
    %387 = memref.load %arg4[%c323] : memref<512xf32, #tpu.memory_space<smem>>
    %c324 = arith.constant 324 : index
    %388 = memref.load %arg4[%c324] : memref<512xf32, #tpu.memory_space<smem>>
    %c325 = arith.constant 325 : index
    %389 = memref.load %arg4[%c325] : memref<512xf32, #tpu.memory_space<smem>>
    %c326 = arith.constant 326 : index
    %390 = memref.load %arg4[%c326] : memref<512xf32, #tpu.memory_space<smem>>
    %c327 = arith.constant 327 : index
    %391 = memref.load %arg4[%c327] : memref<512xf32, #tpu.memory_space<smem>>
    %c328 = arith.constant 328 : index
    %392 = memref.load %arg4[%c328] : memref<512xf32, #tpu.memory_space<smem>>
    %c329 = arith.constant 329 : index
    %393 = memref.load %arg4[%c329] : memref<512xf32, #tpu.memory_space<smem>>
    %c330 = arith.constant 330 : index
    %394 = memref.load %arg4[%c330] : memref<512xf32, #tpu.memory_space<smem>>
    %c331 = arith.constant 331 : index
    %395 = memref.load %arg4[%c331] : memref<512xf32, #tpu.memory_space<smem>>
    %c332 = arith.constant 332 : index
    %396 = memref.load %arg4[%c332] : memref<512xf32, #tpu.memory_space<smem>>
    %c333 = arith.constant 333 : index
    %397 = memref.load %arg4[%c333] : memref<512xf32, #tpu.memory_space<smem>>
    %c334 = arith.constant 334 : index
    %398 = memref.load %arg4[%c334] : memref<512xf32, #tpu.memory_space<smem>>
    %c335 = arith.constant 335 : index
    %399 = memref.load %arg4[%c335] : memref<512xf32, #tpu.memory_space<smem>>
    %c336 = arith.constant 336 : index
    %400 = memref.load %arg4[%c336] : memref<512xf32, #tpu.memory_space<smem>>
    %c337 = arith.constant 337 : index
    %401 = memref.load %arg4[%c337] : memref<512xf32, #tpu.memory_space<smem>>
    %c338 = arith.constant 338 : index
    %402 = memref.load %arg4[%c338] : memref<512xf32, #tpu.memory_space<smem>>
    %c339 = arith.constant 339 : index
    %403 = memref.load %arg4[%c339] : memref<512xf32, #tpu.memory_space<smem>>
    %c340 = arith.constant 340 : index
    %404 = memref.load %arg4[%c340] : memref<512xf32, #tpu.memory_space<smem>>
    %c341 = arith.constant 341 : index
    %405 = memref.load %arg4[%c341] : memref<512xf32, #tpu.memory_space<smem>>
    %c342 = arith.constant 342 : index
    %406 = memref.load %arg4[%c342] : memref<512xf32, #tpu.memory_space<smem>>
    %c343 = arith.constant 343 : index
    %407 = memref.load %arg4[%c343] : memref<512xf32, #tpu.memory_space<smem>>
    %c344 = arith.constant 344 : index
    %408 = memref.load %arg4[%c344] : memref<512xf32, #tpu.memory_space<smem>>
    %c345 = arith.constant 345 : index
    %409 = memref.load %arg4[%c345] : memref<512xf32, #tpu.memory_space<smem>>
    %c346 = arith.constant 346 : index
    %410 = memref.load %arg4[%c346] : memref<512xf32, #tpu.memory_space<smem>>
    %c347 = arith.constant 347 : index
    %411 = memref.load %arg4[%c347] : memref<512xf32, #tpu.memory_space<smem>>
    %c348 = arith.constant 348 : index
    %412 = memref.load %arg4[%c348] : memref<512xf32, #tpu.memory_space<smem>>
    %c349 = arith.constant 349 : index
    %413 = memref.load %arg4[%c349] : memref<512xf32, #tpu.memory_space<smem>>
    %c350 = arith.constant 350 : index
    %414 = memref.load %arg4[%c350] : memref<512xf32, #tpu.memory_space<smem>>
    %c351 = arith.constant 351 : index
    %415 = memref.load %arg4[%c351] : memref<512xf32, #tpu.memory_space<smem>>
    %c352 = arith.constant 352 : index
    %416 = memref.load %arg4[%c352] : memref<512xf32, #tpu.memory_space<smem>>
    %c353 = arith.constant 353 : index
    %417 = memref.load %arg4[%c353] : memref<512xf32, #tpu.memory_space<smem>>
    %c354 = arith.constant 354 : index
    %418 = memref.load %arg4[%c354] : memref<512xf32, #tpu.memory_space<smem>>
    %c355 = arith.constant 355 : index
    %419 = memref.load %arg4[%c355] : memref<512xf32, #tpu.memory_space<smem>>
    %c356 = arith.constant 356 : index
    %420 = memref.load %arg4[%c356] : memref<512xf32, #tpu.memory_space<smem>>
    %c357 = arith.constant 357 : index
    %421 = memref.load %arg4[%c357] : memref<512xf32, #tpu.memory_space<smem>>
    %c358 = arith.constant 358 : index
    %422 = memref.load %arg4[%c358] : memref<512xf32, #tpu.memory_space<smem>>
    %c359 = arith.constant 359 : index
    %423 = memref.load %arg4[%c359] : memref<512xf32, #tpu.memory_space<smem>>
    %c360 = arith.constant 360 : index
    %424 = memref.load %arg4[%c360] : memref<512xf32, #tpu.memory_space<smem>>
    %c361 = arith.constant 361 : index
    %425 = memref.load %arg4[%c361] : memref<512xf32, #tpu.memory_space<smem>>
    %c362 = arith.constant 362 : index
    %426 = memref.load %arg4[%c362] : memref<512xf32, #tpu.memory_space<smem>>
    %c363 = arith.constant 363 : index
    %427 = memref.load %arg4[%c363] : memref<512xf32, #tpu.memory_space<smem>>
    %c364 = arith.constant 364 : index
    %428 = memref.load %arg4[%c364] : memref<512xf32, #tpu.memory_space<smem>>
    %c365 = arith.constant 365 : index
    %429 = memref.load %arg4[%c365] : memref<512xf32, #tpu.memory_space<smem>>
    %c366 = arith.constant 366 : index
    %430 = memref.load %arg4[%c366] : memref<512xf32, #tpu.memory_space<smem>>
    %c367 = arith.constant 367 : index
    %431 = memref.load %arg4[%c367] : memref<512xf32, #tpu.memory_space<smem>>
    %c368 = arith.constant 368 : index
    %432 = memref.load %arg4[%c368] : memref<512xf32, #tpu.memory_space<smem>>
    %c369 = arith.constant 369 : index
    %433 = memref.load %arg4[%c369] : memref<512xf32, #tpu.memory_space<smem>>
    %c370 = arith.constant 370 : index
    %434 = memref.load %arg4[%c370] : memref<512xf32, #tpu.memory_space<smem>>
    %c371 = arith.constant 371 : index
    %435 = memref.load %arg4[%c371] : memref<512xf32, #tpu.memory_space<smem>>
    %c372 = arith.constant 372 : index
    %436 = memref.load %arg4[%c372] : memref<512xf32, #tpu.memory_space<smem>>
    %c373 = arith.constant 373 : index
    %437 = memref.load %arg4[%c373] : memref<512xf32, #tpu.memory_space<smem>>
    %c374 = arith.constant 374 : index
    %438 = memref.load %arg4[%c374] : memref<512xf32, #tpu.memory_space<smem>>
    %c375 = arith.constant 375 : index
    %439 = memref.load %arg4[%c375] : memref<512xf32, #tpu.memory_space<smem>>
    %c376 = arith.constant 376 : index
    %440 = memref.load %arg4[%c376] : memref<512xf32, #tpu.memory_space<smem>>
    %c377 = arith.constant 377 : index
    %441 = memref.load %arg4[%c377] : memref<512xf32, #tpu.memory_space<smem>>
    %c378 = arith.constant 378 : index
    %442 = memref.load %arg4[%c378] : memref<512xf32, #tpu.memory_space<smem>>
    %c379 = arith.constant 379 : index
    %443 = memref.load %arg4[%c379] : memref<512xf32, #tpu.memory_space<smem>>
    %c380 = arith.constant 380 : index
    %444 = memref.load %arg4[%c380] : memref<512xf32, #tpu.memory_space<smem>>
    %c381 = arith.constant 381 : index
    %445 = memref.load %arg4[%c381] : memref<512xf32, #tpu.memory_space<smem>>
    %c382 = arith.constant 382 : index
    %446 = memref.load %arg4[%c382] : memref<512xf32, #tpu.memory_space<smem>>
    %c383 = arith.constant 383 : index
    %447 = memref.load %arg4[%c383] : memref<512xf32, #tpu.memory_space<smem>>
    %c384 = arith.constant 384 : index
    %448 = memref.load %arg4[%c384] : memref<512xf32, #tpu.memory_space<smem>>
    %c385 = arith.constant 385 : index
    %449 = memref.load %arg4[%c385] : memref<512xf32, #tpu.memory_space<smem>>
    %c386 = arith.constant 386 : index
    %450 = memref.load %arg4[%c386] : memref<512xf32, #tpu.memory_space<smem>>
    %c387 = arith.constant 387 : index
    %451 = memref.load %arg4[%c387] : memref<512xf32, #tpu.memory_space<smem>>
    %c388 = arith.constant 388 : index
    %452 = memref.load %arg4[%c388] : memref<512xf32, #tpu.memory_space<smem>>
    %c389 = arith.constant 389 : index
    %453 = memref.load %arg4[%c389] : memref<512xf32, #tpu.memory_space<smem>>
    %c390 = arith.constant 390 : index
    %454 = memref.load %arg4[%c390] : memref<512xf32, #tpu.memory_space<smem>>
    %c391 = arith.constant 391 : index
    %455 = memref.load %arg4[%c391] : memref<512xf32, #tpu.memory_space<smem>>
    %c392 = arith.constant 392 : index
    %456 = memref.load %arg4[%c392] : memref<512xf32, #tpu.memory_space<smem>>
    %c393 = arith.constant 393 : index
    %457 = memref.load %arg4[%c393] : memref<512xf32, #tpu.memory_space<smem>>
    %c394 = arith.constant 394 : index
    %458 = memref.load %arg4[%c394] : memref<512xf32, #tpu.memory_space<smem>>
    %c395 = arith.constant 395 : index
    %459 = memref.load %arg4[%c395] : memref<512xf32, #tpu.memory_space<smem>>
    %c396 = arith.constant 396 : index
    %460 = memref.load %arg4[%c396] : memref<512xf32, #tpu.memory_space<smem>>
    %c397 = arith.constant 397 : index
    %461 = memref.load %arg4[%c397] : memref<512xf32, #tpu.memory_space<smem>>
    %c398 = arith.constant 398 : index
    %462 = memref.load %arg4[%c398] : memref<512xf32, #tpu.memory_space<smem>>
    %c399 = arith.constant 399 : index
    %463 = memref.load %arg4[%c399] : memref<512xf32, #tpu.memory_space<smem>>
    %c400 = arith.constant 400 : index
    %464 = memref.load %arg4[%c400] : memref<512xf32, #tpu.memory_space<smem>>
    %c401 = arith.constant 401 : index
    %465 = memref.load %arg4[%c401] : memref<512xf32, #tpu.memory_space<smem>>
    %c402 = arith.constant 402 : index
    %466 = memref.load %arg4[%c402] : memref<512xf32, #tpu.memory_space<smem>>
    %c403 = arith.constant 403 : index
    %467 = memref.load %arg4[%c403] : memref<512xf32, #tpu.memory_space<smem>>
    %c404 = arith.constant 404 : index
    %468 = memref.load %arg4[%c404] : memref<512xf32, #tpu.memory_space<smem>>
    %c405 = arith.constant 405 : index
    %469 = memref.load %arg4[%c405] : memref<512xf32, #tpu.memory_space<smem>>
    %c406 = arith.constant 406 : index
    %470 = memref.load %arg4[%c406] : memref<512xf32, #tpu.memory_space<smem>>
    %c407 = arith.constant 407 : index
    %471 = memref.load %arg4[%c407] : memref<512xf32, #tpu.memory_space<smem>>
    %c408 = arith.constant 408 : index
    %472 = memref.load %arg4[%c408] : memref<512xf32, #tpu.memory_space<smem>>
    %c409 = arith.constant 409 : index
    %473 = memref.load %arg4[%c409] : memref<512xf32, #tpu.memory_space<smem>>
    %c410 = arith.constant 410 : index
    %474 = memref.load %arg4[%c410] : memref<512xf32, #tpu.memory_space<smem>>
    %c411 = arith.constant 411 : index
    %475 = memref.load %arg4[%c411] : memref<512xf32, #tpu.memory_space<smem>>
    %c412 = arith.constant 412 : index
    %476 = memref.load %arg4[%c412] : memref<512xf32, #tpu.memory_space<smem>>
    %c413 = arith.constant 413 : index
    %477 = memref.load %arg4[%c413] : memref<512xf32, #tpu.memory_space<smem>>
    %c414 = arith.constant 414 : index
    %478 = memref.load %arg4[%c414] : memref<512xf32, #tpu.memory_space<smem>>
    %c415 = arith.constant 415 : index
    %479 = memref.load %arg4[%c415] : memref<512xf32, #tpu.memory_space<smem>>
    %c416 = arith.constant 416 : index
    %480 = memref.load %arg4[%c416] : memref<512xf32, #tpu.memory_space<smem>>
    %c417 = arith.constant 417 : index
    %481 = memref.load %arg4[%c417] : memref<512xf32, #tpu.memory_space<smem>>
    %c418 = arith.constant 418 : index
    %482 = memref.load %arg4[%c418] : memref<512xf32, #tpu.memory_space<smem>>
    %c419 = arith.constant 419 : index
    %483 = memref.load %arg4[%c419] : memref<512xf32, #tpu.memory_space<smem>>
    %c420 = arith.constant 420 : index
    %484 = memref.load %arg4[%c420] : memref<512xf32, #tpu.memory_space<smem>>
    %c421 = arith.constant 421 : index
    %485 = memref.load %arg4[%c421] : memref<512xf32, #tpu.memory_space<smem>>
    %c422 = arith.constant 422 : index
    %486 = memref.load %arg4[%c422] : memref<512xf32, #tpu.memory_space<smem>>
    %c423 = arith.constant 423 : index
    %487 = memref.load %arg4[%c423] : memref<512xf32, #tpu.memory_space<smem>>
    %c424 = arith.constant 424 : index
    %488 = memref.load %arg4[%c424] : memref<512xf32, #tpu.memory_space<smem>>
    %c425 = arith.constant 425 : index
    %489 = memref.load %arg4[%c425] : memref<512xf32, #tpu.memory_space<smem>>
    %c426 = arith.constant 426 : index
    %490 = memref.load %arg4[%c426] : memref<512xf32, #tpu.memory_space<smem>>
    %c427 = arith.constant 427 : index
    %491 = memref.load %arg4[%c427] : memref<512xf32, #tpu.memory_space<smem>>
    %c428 = arith.constant 428 : index
    %492 = memref.load %arg4[%c428] : memref<512xf32, #tpu.memory_space<smem>>
    %c429 = arith.constant 429 : index
    %493 = memref.load %arg4[%c429] : memref<512xf32, #tpu.memory_space<smem>>
    %c430 = arith.constant 430 : index
    %494 = memref.load %arg4[%c430] : memref<512xf32, #tpu.memory_space<smem>>
    %c431 = arith.constant 431 : index
    %495 = memref.load %arg4[%c431] : memref<512xf32, #tpu.memory_space<smem>>
    %c432 = arith.constant 432 : index
    %496 = memref.load %arg4[%c432] : memref<512xf32, #tpu.memory_space<smem>>
    %c433 = arith.constant 433 : index
    %497 = memref.load %arg4[%c433] : memref<512xf32, #tpu.memory_space<smem>>
    %c434 = arith.constant 434 : index
    %498 = memref.load %arg4[%c434] : memref<512xf32, #tpu.memory_space<smem>>
    %c435 = arith.constant 435 : index
    %499 = memref.load %arg4[%c435] : memref<512xf32, #tpu.memory_space<smem>>
    %c436 = arith.constant 436 : index
    %500 = memref.load %arg4[%c436] : memref<512xf32, #tpu.memory_space<smem>>
    %c437 = arith.constant 437 : index
    %501 = memref.load %arg4[%c437] : memref<512xf32, #tpu.memory_space<smem>>
    %c438 = arith.constant 438 : index
    %502 = memref.load %arg4[%c438] : memref<512xf32, #tpu.memory_space<smem>>
    %c439 = arith.constant 439 : index
    %503 = memref.load %arg4[%c439] : memref<512xf32, #tpu.memory_space<smem>>
    %c440 = arith.constant 440 : index
    %504 = memref.load %arg4[%c440] : memref<512xf32, #tpu.memory_space<smem>>
    %c441 = arith.constant 441 : index
    %505 = memref.load %arg4[%c441] : memref<512xf32, #tpu.memory_space<smem>>
    %c442 = arith.constant 442 : index
    %506 = memref.load %arg4[%c442] : memref<512xf32, #tpu.memory_space<smem>>
    %c443 = arith.constant 443 : index
    %507 = memref.load %arg4[%c443] : memref<512xf32, #tpu.memory_space<smem>>
    %c444 = arith.constant 444 : index
    %508 = memref.load %arg4[%c444] : memref<512xf32, #tpu.memory_space<smem>>
    %c445 = arith.constant 445 : index
    %509 = memref.load %arg4[%c445] : memref<512xf32, #tpu.memory_space<smem>>
    %c446 = arith.constant 446 : index
    %510 = memref.load %arg4[%c446] : memref<512xf32, #tpu.memory_space<smem>>
    %c447 = arith.constant 447 : index
    %511 = memref.load %arg4[%c447] : memref<512xf32, #tpu.memory_space<smem>>
    %c448 = arith.constant 448 : index
    %512 = memref.load %arg4[%c448] : memref<512xf32, #tpu.memory_space<smem>>
    %c449 = arith.constant 449 : index
    %513 = memref.load %arg4[%c449] : memref<512xf32, #tpu.memory_space<smem>>
    %c450 = arith.constant 450 : index
    %514 = memref.load %arg4[%c450] : memref<512xf32, #tpu.memory_space<smem>>
    %c451 = arith.constant 451 : index
    %515 = memref.load %arg4[%c451] : memref<512xf32, #tpu.memory_space<smem>>
    %c452 = arith.constant 452 : index
    %516 = memref.load %arg4[%c452] : memref<512xf32, #tpu.memory_space<smem>>
    %c453 = arith.constant 453 : index
    %517 = memref.load %arg4[%c453] : memref<512xf32, #tpu.memory_space<smem>>
    %c454 = arith.constant 454 : index
    %518 = memref.load %arg4[%c454] : memref<512xf32, #tpu.memory_space<smem>>
    %c455 = arith.constant 455 : index
    %519 = memref.load %arg4[%c455] : memref<512xf32, #tpu.memory_space<smem>>
    %c456 = arith.constant 456 : index
    %520 = memref.load %arg4[%c456] : memref<512xf32, #tpu.memory_space<smem>>
    %c457 = arith.constant 457 : index
    %521 = memref.load %arg4[%c457] : memref<512xf32, #tpu.memory_space<smem>>
    %c458 = arith.constant 458 : index
    %522 = memref.load %arg4[%c458] : memref<512xf32, #tpu.memory_space<smem>>
    %c459 = arith.constant 459 : index
    %523 = memref.load %arg4[%c459] : memref<512xf32, #tpu.memory_space<smem>>
    %c460 = arith.constant 460 : index
    %524 = memref.load %arg4[%c460] : memref<512xf32, #tpu.memory_space<smem>>
    %c461 = arith.constant 461 : index
    %525 = memref.load %arg4[%c461] : memref<512xf32, #tpu.memory_space<smem>>
    %c462 = arith.constant 462 : index
    %526 = memref.load %arg4[%c462] : memref<512xf32, #tpu.memory_space<smem>>
    %c463 = arith.constant 463 : index
    %527 = memref.load %arg4[%c463] : memref<512xf32, #tpu.memory_space<smem>>
    %c464 = arith.constant 464 : index
    %528 = memref.load %arg4[%c464] : memref<512xf32, #tpu.memory_space<smem>>
    %c465 = arith.constant 465 : index
    %529 = memref.load %arg4[%c465] : memref<512xf32, #tpu.memory_space<smem>>
    %c466 = arith.constant 466 : index
    %530 = memref.load %arg4[%c466] : memref<512xf32, #tpu.memory_space<smem>>
    %c467 = arith.constant 467 : index
    %531 = memref.load %arg4[%c467] : memref<512xf32, #tpu.memory_space<smem>>
    %c468 = arith.constant 468 : index
    %532 = memref.load %arg4[%c468] : memref<512xf32, #tpu.memory_space<smem>>
    %c469 = arith.constant 469 : index
    %533 = memref.load %arg4[%c469] : memref<512xf32, #tpu.memory_space<smem>>
    %c470 = arith.constant 470 : index
    %534 = memref.load %arg4[%c470] : memref<512xf32, #tpu.memory_space<smem>>
    %c471 = arith.constant 471 : index
    %535 = memref.load %arg4[%c471] : memref<512xf32, #tpu.memory_space<smem>>
    %c472 = arith.constant 472 : index
    %536 = memref.load %arg4[%c472] : memref<512xf32, #tpu.memory_space<smem>>
    %c473 = arith.constant 473 : index
    %537 = memref.load %arg4[%c473] : memref<512xf32, #tpu.memory_space<smem>>
    %c474 = arith.constant 474 : index
    %538 = memref.load %arg4[%c474] : memref<512xf32, #tpu.memory_space<smem>>
    %c475 = arith.constant 475 : index
    %539 = memref.load %arg4[%c475] : memref<512xf32, #tpu.memory_space<smem>>
    %c476 = arith.constant 476 : index
    %540 = memref.load %arg4[%c476] : memref<512xf32, #tpu.memory_space<smem>>
    %c477 = arith.constant 477 : index
    %541 = memref.load %arg4[%c477] : memref<512xf32, #tpu.memory_space<smem>>
    %c478 = arith.constant 478 : index
    %542 = memref.load %arg4[%c478] : memref<512xf32, #tpu.memory_space<smem>>
    %c479 = arith.constant 479 : index
    %543 = memref.load %arg4[%c479] : memref<512xf32, #tpu.memory_space<smem>>
    %c480 = arith.constant 480 : index
    %544 = memref.load %arg4[%c480] : memref<512xf32, #tpu.memory_space<smem>>
    %c481 = arith.constant 481 : index
    %545 = memref.load %arg4[%c481] : memref<512xf32, #tpu.memory_space<smem>>
    %c482 = arith.constant 482 : index
    %546 = memref.load %arg4[%c482] : memref<512xf32, #tpu.memory_space<smem>>
    %c483 = arith.constant 483 : index
    %547 = memref.load %arg4[%c483] : memref<512xf32, #tpu.memory_space<smem>>
    %c484 = arith.constant 484 : index
    %548 = memref.load %arg4[%c484] : memref<512xf32, #tpu.memory_space<smem>>
    %c485 = arith.constant 485 : index
    %549 = memref.load %arg4[%c485] : memref<512xf32, #tpu.memory_space<smem>>
    %c486 = arith.constant 486 : index
    %550 = memref.load %arg4[%c486] : memref<512xf32, #tpu.memory_space<smem>>
    %c487 = arith.constant 487 : index
    %551 = memref.load %arg4[%c487] : memref<512xf32, #tpu.memory_space<smem>>
    %c488 = arith.constant 488 : index
    %552 = memref.load %arg4[%c488] : memref<512xf32, #tpu.memory_space<smem>>
    %c489 = arith.constant 489 : index
    %553 = memref.load %arg4[%c489] : memref<512xf32, #tpu.memory_space<smem>>
    %c490 = arith.constant 490 : index
    %554 = memref.load %arg4[%c490] : memref<512xf32, #tpu.memory_space<smem>>
    %c491 = arith.constant 491 : index
    %555 = memref.load %arg4[%c491] : memref<512xf32, #tpu.memory_space<smem>>
    %c492 = arith.constant 492 : index
    %556 = memref.load %arg4[%c492] : memref<512xf32, #tpu.memory_space<smem>>
    %c493 = arith.constant 493 : index
    %557 = memref.load %arg4[%c493] : memref<512xf32, #tpu.memory_space<smem>>
    %c494 = arith.constant 494 : index
    %558 = memref.load %arg4[%c494] : memref<512xf32, #tpu.memory_space<smem>>
    %c495 = arith.constant 495 : index
    %559 = memref.load %arg4[%c495] : memref<512xf32, #tpu.memory_space<smem>>
    %c496 = arith.constant 496 : index
    %560 = memref.load %arg4[%c496] : memref<512xf32, #tpu.memory_space<smem>>
    %c497 = arith.constant 497 : index
    %561 = memref.load %arg4[%c497] : memref<512xf32, #tpu.memory_space<smem>>
    %c498 = arith.constant 498 : index
    %562 = memref.load %arg4[%c498] : memref<512xf32, #tpu.memory_space<smem>>
    %c499 = arith.constant 499 : index
    %563 = memref.load %arg4[%c499] : memref<512xf32, #tpu.memory_space<smem>>
    %c500 = arith.constant 500 : index
    %564 = memref.load %arg4[%c500] : memref<512xf32, #tpu.memory_space<smem>>
    %c501 = arith.constant 501 : index
    %565 = memref.load %arg4[%c501] : memref<512xf32, #tpu.memory_space<smem>>
    %c502 = arith.constant 502 : index
    %566 = memref.load %arg4[%c502] : memref<512xf32, #tpu.memory_space<smem>>
    %c503 = arith.constant 503 : index
    %567 = memref.load %arg4[%c503] : memref<512xf32, #tpu.memory_space<smem>>
    %c504 = arith.constant 504 : index
    %568 = memref.load %arg4[%c504] : memref<512xf32, #tpu.memory_space<smem>>
    %c505 = arith.constant 505 : index
    %569 = memref.load %arg4[%c505] : memref<512xf32, #tpu.memory_space<smem>>
    %c506 = arith.constant 506 : index
    %570 = memref.load %arg4[%c506] : memref<512xf32, #tpu.memory_space<smem>>
    %c507 = arith.constant 507 : index
    %571 = memref.load %arg4[%c507] : memref<512xf32, #tpu.memory_space<smem>>
    %c508 = arith.constant 508 : index
    %572 = memref.load %arg4[%c508] : memref<512xf32, #tpu.memory_space<smem>>
    %c509 = arith.constant 509 : index
    %573 = memref.load %arg4[%c509] : memref<512xf32, #tpu.memory_space<smem>>
    %c510 = arith.constant 510 : index
    %574 = memref.load %arg4[%c510] : memref<512xf32, #tpu.memory_space<smem>>
    %c511 = arith.constant 511 : index
    %575 = memref.load %arg4[%c511] : memref<512xf32, #tpu.memory_space<smem>>
    %c0_64 = arith.constant 0 : index
    %576 = memref.load %arg5[%c0_64] : memref<16xf32, #tpu.memory_space<smem>>
    %c1_65 = arith.constant 1 : index
    %577 = memref.load %arg5[%c1_65] : memref<16xf32, #tpu.memory_space<smem>>
    %c2_66 = arith.constant 2 : index
    %578 = memref.load %arg5[%c2_66] : memref<16xf32, #tpu.memory_space<smem>>
    %c3_67 = arith.constant 3 : index
    %579 = memref.load %arg5[%c3_67] : memref<16xf32, #tpu.memory_space<smem>>
    %c4_68 = arith.constant 4 : index
    %580 = memref.load %arg5[%c4_68] : memref<16xf32, #tpu.memory_space<smem>>
    %c5_69 = arith.constant 5 : index
    %581 = memref.load %arg5[%c5_69] : memref<16xf32, #tpu.memory_space<smem>>
    %c6_70 = arith.constant 6 : index
    %582 = memref.load %arg5[%c6_70] : memref<16xf32, #tpu.memory_space<smem>>
    %c7_71 = arith.constant 7 : index
    %583 = memref.load %arg5[%c7_71] : memref<16xf32, #tpu.memory_space<smem>>
    %c8_72 = arith.constant 8 : index
    %584 = memref.load %arg5[%c8_72] : memref<16xf32, #tpu.memory_space<smem>>
    %c9_73 = arith.constant 9 : index
    %585 = memref.load %arg5[%c9_73] : memref<16xf32, #tpu.memory_space<smem>>
    %c10_74 = arith.constant 10 : index
    %586 = memref.load %arg5[%c10_74] : memref<16xf32, #tpu.memory_space<smem>>
    %c11_75 = arith.constant 11 : index
    %587 = memref.load %arg5[%c11_75] : memref<16xf32, #tpu.memory_space<smem>>
    %c12_76 = arith.constant 12 : index
    %588 = memref.load %arg5[%c12_76] : memref<16xf32, #tpu.memory_space<smem>>
    %c13_77 = arith.constant 13 : index
    %589 = memref.load %arg5[%c13_77] : memref<16xf32, #tpu.memory_space<smem>>
    %c14_78 = arith.constant 14 : index
    %590 = memref.load %arg5[%c14_78] : memref<16xf32, #tpu.memory_space<smem>>
    %c15_79 = arith.constant 15 : index
    %591 = memref.load %arg5[%c15_79] : memref<16xf32, #tpu.memory_space<smem>>
    %c0_80 = arith.constant 0 : index
    %592 = memref.load %arg6[%c0_80] : memref<16xf32, #tpu.memory_space<smem>>
    %c1_81 = arith.constant 1 : index
    %593 = memref.load %arg6[%c1_81] : memref<16xf32, #tpu.memory_space<smem>>
    %c2_82 = arith.constant 2 : index
    %594 = memref.load %arg6[%c2_82] : memref<16xf32, #tpu.memory_space<smem>>
    %c3_83 = arith.constant 3 : index
    %595 = memref.load %arg6[%c3_83] : memref<16xf32, #tpu.memory_space<smem>>
    %c4_84 = arith.constant 4 : index
    %596 = memref.load %arg6[%c4_84] : memref<16xf32, #tpu.memory_space<smem>>
    %c5_85 = arith.constant 5 : index
    %597 = memref.load %arg6[%c5_85] : memref<16xf32, #tpu.memory_space<smem>>
    %c6_86 = arith.constant 6 : index
    %598 = memref.load %arg6[%c6_86] : memref<16xf32, #tpu.memory_space<smem>>
    %c7_87 = arith.constant 7 : index
    %599 = memref.load %arg6[%c7_87] : memref<16xf32, #tpu.memory_space<smem>>
    %c8_88 = arith.constant 8 : index
    %600 = memref.load %arg6[%c8_88] : memref<16xf32, #tpu.memory_space<smem>>
    %c9_89 = arith.constant 9 : index
    %601 = memref.load %arg6[%c9_89] : memref<16xf32, #tpu.memory_space<smem>>
    %c10_90 = arith.constant 10 : index
    %602 = memref.load %arg6[%c10_90] : memref<16xf32, #tpu.memory_space<smem>>
    %c11_91 = arith.constant 11 : index
    %603 = memref.load %arg6[%c11_91] : memref<16xf32, #tpu.memory_space<smem>>
    %c12_92 = arith.constant 12 : index
    %604 = memref.load %arg6[%c12_92] : memref<16xf32, #tpu.memory_space<smem>>
    %c13_93 = arith.constant 13 : index
    %605 = memref.load %arg6[%c13_93] : memref<16xf32, #tpu.memory_space<smem>>
    %c14_94 = arith.constant 14 : index
    %606 = memref.load %arg6[%c14_94] : memref<16xf32, #tpu.memory_space<smem>>
    %c15_95 = arith.constant 15 : index
    %607 = memref.load %arg6[%c15_95] : memref<16xf32, #tpu.memory_space<smem>>
    %c0_96 = arith.constant 0 : index
    %608 = memref.load %arg7[%c0_96] : memref<1xf32, #tpu.memory_space<smem>>
    %c0_i32 = arith.constant 0 : i32
    %c1_i32 = arith.constant 1 : i32
    %609 = arith.muli %c0_i32, %c1_i32 : i32
    %c0_i32_97 = arith.constant 0 : i32
    %610 = arith.addi %c0_i32_97, %609 : i32
    %c24_i32 = arith.constant 24 : i32
    %611 = arith.muli %610, %c24_i32 : i32
    %612 = tpu.assume_multiple %611, 8 : i32
    %613 = arith.index_cast %612 : i32 to index
    %c0_98 = arith.constant 0 : index
    %614 = vector.load %arg1[%613, %c0_98] : memref<24x128xf32, #tpu.memory_space<vmem>>, vector<24x128xf32>
    %cst = arith.constant 0.000000e+00 : f32
    %615 = vector.broadcast %cst : f32 to vector<24x128xf32>
    %cst_99 = arith.constant 0.000000e+00 : f32
    %616 = vector.broadcast %cst_99 : f32 to vector<24x128xf32>
    %cst_100 = arith.constant 0.000000e+00 : f32
    %617 = vector.broadcast %cst_100 : f32 to vector<24x128xf32>
    %cst_101 = arith.constant 0.000000e+00 : f32
    %618 = vector.broadcast %cst_101 : f32 to vector<24x128xf32>
    %cst_102 = arith.constant 0.000000e+00 : f32
    %619 = vector.broadcast %cst_102 : f32 to vector<24x128xf32>
    %cst_103 = arith.constant 0.000000e+00 : f32
    %620 = vector.broadcast %cst_103 : f32 to vector<24x128xf32>
    %cst_104 = arith.constant 0.000000e+00 : f32
    %621 = vector.broadcast %cst_104 : f32 to vector<24x128xf32>
    %cst_105 = arith.constant 0.000000e+00 : f32
    %622 = vector.broadcast %cst_105 : f32 to vector<24x128xf32>
    %cst_106 = arith.constant 0.000000e+00 : f32
    %623 = vector.broadcast %cst_106 : f32 to vector<24x128xf32>
    %cst_107 = arith.constant 0.000000e+00 : f32
    %624 = vector.broadcast %cst_107 : f32 to vector<24x128xf32>
    %cst_108 = arith.constant 0.000000e+00 : f32
    %625 = vector.broadcast %cst_108 : f32 to vector<24x128xf32>
    %cst_109 = arith.constant 0.000000e+00 : f32
    %626 = vector.broadcast %cst_109 : f32 to vector<24x128xf32>
    %cst_110 = arith.constant 0.000000e+00 : f32
    %627 = vector.broadcast %cst_110 : f32 to vector<24x128xf32>
    %cst_111 = arith.constant 0.000000e+00 : f32
    %628 = vector.broadcast %cst_111 : f32 to vector<24x128xf32>
    %cst_112 = arith.constant 0.000000e+00 : f32
    %629 = vector.broadcast %cst_112 : f32 to vector<24x128xf32>
    %cst_113 = arith.constant 0.000000e+00 : f32
    %630 = vector.broadcast %cst_113 : f32 to vector<24x128xf32>
    %631 = vector.broadcast %0 : f32 to vector<24x128xf32>
    %632 = arith.mulf %631, %614 : vector<24x128xf32>
    %633 = vector.broadcast %32 : f32 to vector<24x128xf32>
    %634 = arith.addf %632, %633 : vector<24x128xf32>
    %cst_114 = arith.constant 0.000000e+00 : f32
    %635 = vector.broadcast %cst_114 : f32 to vector<24x128xf32>
    %636 = arith.maximumf %634, %635 : vector<24x128xf32>
    %637 = vector.broadcast %64 : f32 to vector<24x128xf32>
    %638 = arith.mulf %636, %637 : vector<24x128xf32>
    %639 = arith.addf %615, %638 : vector<24x128xf32>
    %640 = vector.broadcast %96 : f32 to vector<24x128xf32>
    %641 = arith.mulf %636, %640 : vector<24x128xf32>
    %642 = arith.addf %616, %641 : vector<24x128xf32>
    %643 = vector.broadcast %128 : f32 to vector<24x128xf32>
    %644 = arith.mulf %636, %643 : vector<24x128xf32>
    %645 = arith.addf %617, %644 : vector<24x128xf32>
    %646 = vector.broadcast %160 : f32 to vector<24x128xf32>
    %647 = arith.mulf %636, %646 : vector<24x128xf32>
    %648 = arith.addf %618, %647 : vector<24x128xf32>
    %649 = vector.broadcast %192 : f32 to vector<24x128xf32>
    %650 = arith.mulf %636, %649 : vector<24x128xf32>
    %651 = arith.addf %619, %650 : vector<24x128xf32>
    %652 = vector.broadcast %224 : f32 to vector<24x128xf32>
    %653 = arith.mulf %636, %652 : vector<24x128xf32>
    %654 = arith.addf %620, %653 : vector<24x128xf32>
    %655 = vector.broadcast %256 : f32 to vector<24x128xf32>
    %656 = arith.mulf %636, %655 : vector<24x128xf32>
    %657 = arith.addf %621, %656 : vector<24x128xf32>
    %658 = vector.broadcast %288 : f32 to vector<24x128xf32>
    %659 = arith.mulf %636, %658 : vector<24x128xf32>
    %660 = arith.addf %622, %659 : vector<24x128xf32>
    %661 = vector.broadcast %320 : f32 to vector<24x128xf32>
    %662 = arith.mulf %636, %661 : vector<24x128xf32>
    %663 = arith.addf %623, %662 : vector<24x128xf32>
    %664 = vector.broadcast %352 : f32 to vector<24x128xf32>
    %665 = arith.mulf %636, %664 : vector<24x128xf32>
    %666 = arith.addf %624, %665 : vector<24x128xf32>
    %667 = vector.broadcast %384 : f32 to vector<24x128xf32>
    %668 = arith.mulf %636, %667 : vector<24x128xf32>
    %669 = arith.addf %625, %668 : vector<24x128xf32>
    %670 = vector.broadcast %416 : f32 to vector<24x128xf32>
    %671 = arith.mulf %636, %670 : vector<24x128xf32>
    %672 = arith.addf %626, %671 : vector<24x128xf32>
    %673 = vector.broadcast %448 : f32 to vector<24x128xf32>
    %674 = arith.mulf %636, %673 : vector<24x128xf32>
    %675 = arith.addf %627, %674 : vector<24x128xf32>
    %676 = vector.broadcast %480 : f32 to vector<24x128xf32>
    %677 = arith.mulf %636, %676 : vector<24x128xf32>
    %678 = arith.addf %628, %677 : vector<24x128xf32>
    %679 = vector.broadcast %512 : f32 to vector<24x128xf32>
    %680 = arith.mulf %636, %679 : vector<24x128xf32>
    %681 = arith.addf %629, %680 : vector<24x128xf32>
    %682 = vector.broadcast %544 : f32 to vector<24x128xf32>
    %683 = arith.mulf %636, %682 : vector<24x128xf32>
    %684 = arith.addf %630, %683 : vector<24x128xf32>
    %685 = vector.broadcast %1 : f32 to vector<24x128xf32>
    %686 = arith.mulf %685, %614 : vector<24x128xf32>
    %687 = vector.broadcast %33 : f32 to vector<24x128xf32>
    %688 = arith.addf %686, %687 : vector<24x128xf32>
    %cst_115 = arith.constant 0.000000e+00 : f32
    %689 = vector.broadcast %cst_115 : f32 to vector<24x128xf32>
    %690 = arith.maximumf %688, %689 : vector<24x128xf32>
    %691 = vector.broadcast %65 : f32 to vector<24x128xf32>
    %692 = arith.mulf %690, %691 : vector<24x128xf32>
    %693 = arith.addf %639, %692 : vector<24x128xf32>
    %694 = vector.broadcast %97 : f32 to vector<24x128xf32>
    %695 = arith.mulf %690, %694 : vector<24x128xf32>
    %696 = arith.addf %642, %695 : vector<24x128xf32>
    %697 = vector.broadcast %129 : f32 to vector<24x128xf32>
    %698 = arith.mulf %690, %697 : vector<24x128xf32>
    %699 = arith.addf %645, %698 : vector<24x128xf32>
    %700 = vector.broadcast %161 : f32 to vector<24x128xf32>
    %701 = arith.mulf %690, %700 : vector<24x128xf32>
    %702 = arith.addf %648, %701 : vector<24x128xf32>
    %703 = vector.broadcast %193 : f32 to vector<24x128xf32>
    %704 = arith.mulf %690, %703 : vector<24x128xf32>
    %705 = arith.addf %651, %704 : vector<24x128xf32>
    %706 = vector.broadcast %225 : f32 to vector<24x128xf32>
    %707 = arith.mulf %690, %706 : vector<24x128xf32>
    %708 = arith.addf %654, %707 : vector<24x128xf32>
    %709 = vector.broadcast %257 : f32 to vector<24x128xf32>
    %710 = arith.mulf %690, %709 : vector<24x128xf32>
    %711 = arith.addf %657, %710 : vector<24x128xf32>
    %712 = vector.broadcast %289 : f32 to vector<24x128xf32>
    %713 = arith.mulf %690, %712 : vector<24x128xf32>
    %714 = arith.addf %660, %713 : vector<24x128xf32>
    %715 = vector.broadcast %321 : f32 to vector<24x128xf32>
    %716 = arith.mulf %690, %715 : vector<24x128xf32>
    %717 = arith.addf %663, %716 : vector<24x128xf32>
    %718 = vector.broadcast %353 : f32 to vector<24x128xf32>
    %719 = arith.mulf %690, %718 : vector<24x128xf32>
    %720 = arith.addf %666, %719 : vector<24x128xf32>
    %721 = vector.broadcast %385 : f32 to vector<24x128xf32>
    %722 = arith.mulf %690, %721 : vector<24x128xf32>
    %723 = arith.addf %669, %722 : vector<24x128xf32>
    %724 = vector.broadcast %417 : f32 to vector<24x128xf32>
    %725 = arith.mulf %690, %724 : vector<24x128xf32>
    %726 = arith.addf %672, %725 : vector<24x128xf32>
    %727 = vector.broadcast %449 : f32 to vector<24x128xf32>
    %728 = arith.mulf %690, %727 : vector<24x128xf32>
    %729 = arith.addf %675, %728 : vector<24x128xf32>
    %730 = vector.broadcast %481 : f32 to vector<24x128xf32>
    %731 = arith.mulf %690, %730 : vector<24x128xf32>
    %732 = arith.addf %678, %731 : vector<24x128xf32>
    %733 = vector.broadcast %513 : f32 to vector<24x128xf32>
    %734 = arith.mulf %690, %733 : vector<24x128xf32>
    %735 = arith.addf %681, %734 : vector<24x128xf32>
    %736 = vector.broadcast %545 : f32 to vector<24x128xf32>
    %737 = arith.mulf %690, %736 : vector<24x128xf32>
    %738 = arith.addf %684, %737 : vector<24x128xf32>
    %739 = vector.broadcast %2 : f32 to vector<24x128xf32>
    %740 = arith.mulf %739, %614 : vector<24x128xf32>
    %741 = vector.broadcast %34 : f32 to vector<24x128xf32>
    %742 = arith.addf %740, %741 : vector<24x128xf32>
    %cst_116 = arith.constant 0.000000e+00 : f32
    %743 = vector.broadcast %cst_116 : f32 to vector<24x128xf32>
    %744 = arith.maximumf %742, %743 : vector<24x128xf32>
    %745 = vector.broadcast %66 : f32 to vector<24x128xf32>
    %746 = arith.mulf %744, %745 : vector<24x128xf32>
    %747 = arith.addf %693, %746 : vector<24x128xf32>
    %748 = vector.broadcast %98 : f32 to vector<24x128xf32>
    %749 = arith.mulf %744, %748 : vector<24x128xf32>
    %750 = arith.addf %696, %749 : vector<24x128xf32>
    %751 = vector.broadcast %130 : f32 to vector<24x128xf32>
    %752 = arith.mulf %744, %751 : vector<24x128xf32>
    %753 = arith.addf %699, %752 : vector<24x128xf32>
    %754 = vector.broadcast %162 : f32 to vector<24x128xf32>
    %755 = arith.mulf %744, %754 : vector<24x128xf32>
    %756 = arith.addf %702, %755 : vector<24x128xf32>
    %757 = vector.broadcast %194 : f32 to vector<24x128xf32>
    %758 = arith.mulf %744, %757 : vector<24x128xf32>
    %759 = arith.addf %705, %758 : vector<24x128xf32>
    %760 = vector.broadcast %226 : f32 to vector<24x128xf32>
    %761 = arith.mulf %744, %760 : vector<24x128xf32>
    %762 = arith.addf %708, %761 : vector<24x128xf32>
    %763 = vector.broadcast %258 : f32 to vector<24x128xf32>
    %764 = arith.mulf %744, %763 : vector<24x128xf32>
    %765 = arith.addf %711, %764 : vector<24x128xf32>
    %766 = vector.broadcast %290 : f32 to vector<24x128xf32>
    %767 = arith.mulf %744, %766 : vector<24x128xf32>
    %768 = arith.addf %714, %767 : vector<24x128xf32>
    %769 = vector.broadcast %322 : f32 to vector<24x128xf32>
    %770 = arith.mulf %744, %769 : vector<24x128xf32>
    %771 = arith.addf %717, %770 : vector<24x128xf32>
    %772 = vector.broadcast %354 : f32 to vector<24x128xf32>
    %773 = arith.mulf %744, %772 : vector<24x128xf32>
    %774 = arith.addf %720, %773 : vector<24x128xf32>
    %775 = vector.broadcast %386 : f32 to vector<24x128xf32>
    %776 = arith.mulf %744, %775 : vector<24x128xf32>
    %777 = arith.addf %723, %776 : vector<24x128xf32>
    %778 = vector.broadcast %418 : f32 to vector<24x128xf32>
    %779 = arith.mulf %744, %778 : vector<24x128xf32>
    %780 = arith.addf %726, %779 : vector<24x128xf32>
    %781 = vector.broadcast %450 : f32 to vector<24x128xf32>
    %782 = arith.mulf %744, %781 : vector<24x128xf32>
    %783 = arith.addf %729, %782 : vector<24x128xf32>
    %784 = vector.broadcast %482 : f32 to vector<24x128xf32>
    %785 = arith.mulf %744, %784 : vector<24x128xf32>
    %786 = arith.addf %732, %785 : vector<24x128xf32>
    %787 = vector.broadcast %514 : f32 to vector<24x128xf32>
    %788 = arith.mulf %744, %787 : vector<24x128xf32>
    %789 = arith.addf %735, %788 : vector<24x128xf32>
    %790 = vector.broadcast %546 : f32 to vector<24x128xf32>
    %791 = arith.mulf %744, %790 : vector<24x128xf32>
    %792 = arith.addf %738, %791 : vector<24x128xf32>
    %793 = vector.broadcast %3 : f32 to vector<24x128xf32>
    %794 = arith.mulf %793, %614 : vector<24x128xf32>
    %795 = vector.broadcast %35 : f32 to vector<24x128xf32>
    %796 = arith.addf %794, %795 : vector<24x128xf32>
    %cst_117 = arith.constant 0.000000e+00 : f32
    %797 = vector.broadcast %cst_117 : f32 to vector<24x128xf32>
    %798 = arith.maximumf %796, %797 : vector<24x128xf32>
    %799 = vector.broadcast %67 : f32 to vector<24x128xf32>
    %800 = arith.mulf %798, %799 : vector<24x128xf32>
    %801 = arith.addf %747, %800 : vector<24x128xf32>
    %802 = vector.broadcast %99 : f32 to vector<24x128xf32>
    %803 = arith.mulf %798, %802 : vector<24x128xf32>
    %804 = arith.addf %750, %803 : vector<24x128xf32>
    %805 = vector.broadcast %131 : f32 to vector<24x128xf32>
    %806 = arith.mulf %798, %805 : vector<24x128xf32>
    %807 = arith.addf %753, %806 : vector<24x128xf32>
    %808 = vector.broadcast %163 : f32 to vector<24x128xf32>
    %809 = arith.mulf %798, %808 : vector<24x128xf32>
    %810 = arith.addf %756, %809 : vector<24x128xf32>
    %811 = vector.broadcast %195 : f32 to vector<24x128xf32>
    %812 = arith.mulf %798, %811 : vector<24x128xf32>
    %813 = arith.addf %759, %812 : vector<24x128xf32>
    %814 = vector.broadcast %227 : f32 to vector<24x128xf32>
    %815 = arith.mulf %798, %814 : vector<24x128xf32>
    %816 = arith.addf %762, %815 : vector<24x128xf32>
    %817 = vector.broadcast %259 : f32 to vector<24x128xf32>
    %818 = arith.mulf %798, %817 : vector<24x128xf32>
    %819 = arith.addf %765, %818 : vector<24x128xf32>
    %820 = vector.broadcast %291 : f32 to vector<24x128xf32>
    %821 = arith.mulf %798, %820 : vector<24x128xf32>
    %822 = arith.addf %768, %821 : vector<24x128xf32>
    %823 = vector.broadcast %323 : f32 to vector<24x128xf32>
    %824 = arith.mulf %798, %823 : vector<24x128xf32>
    %825 = arith.addf %771, %824 : vector<24x128xf32>
    %826 = vector.broadcast %355 : f32 to vector<24x128xf32>
    %827 = arith.mulf %798, %826 : vector<24x128xf32>
    %828 = arith.addf %774, %827 : vector<24x128xf32>
    %829 = vector.broadcast %387 : f32 to vector<24x128xf32>
    %830 = arith.mulf %798, %829 : vector<24x128xf32>
    %831 = arith.addf %777, %830 : vector<24x128xf32>
    %832 = vector.broadcast %419 : f32 to vector<24x128xf32>
    %833 = arith.mulf %798, %832 : vector<24x128xf32>
    %834 = arith.addf %780, %833 : vector<24x128xf32>
    %835 = vector.broadcast %451 : f32 to vector<24x128xf32>
    %836 = arith.mulf %798, %835 : vector<24x128xf32>
    %837 = arith.addf %783, %836 : vector<24x128xf32>
    %838 = vector.broadcast %483 : f32 to vector<24x128xf32>
    %839 = arith.mulf %798, %838 : vector<24x128xf32>
    %840 = arith.addf %786, %839 : vector<24x128xf32>
    %841 = vector.broadcast %515 : f32 to vector<24x128xf32>
    %842 = arith.mulf %798, %841 : vector<24x128xf32>
    %843 = arith.addf %789, %842 : vector<24x128xf32>
    %844 = vector.broadcast %547 : f32 to vector<24x128xf32>
    %845 = arith.mulf %798, %844 : vector<24x128xf32>
    %846 = arith.addf %792, %845 : vector<24x128xf32>
    %847 = vector.broadcast %4 : f32 to vector<24x128xf32>
    %848 = arith.mulf %847, %614 : vector<24x128xf32>
    %849 = vector.broadcast %36 : f32 to vector<24x128xf32>
    %850 = arith.addf %848, %849 : vector<24x128xf32>
    %cst_118 = arith.constant 0.000000e+00 : f32
    %851 = vector.broadcast %cst_118 : f32 to vector<24x128xf32>
    %852 = arith.maximumf %850, %851 : vector<24x128xf32>
    %853 = vector.broadcast %68 : f32 to vector<24x128xf32>
    %854 = arith.mulf %852, %853 : vector<24x128xf32>
    %855 = arith.addf %801, %854 : vector<24x128xf32>
    %856 = vector.broadcast %100 : f32 to vector<24x128xf32>
    %857 = arith.mulf %852, %856 : vector<24x128xf32>
    %858 = arith.addf %804, %857 : vector<24x128xf32>
    %859 = vector.broadcast %132 : f32 to vector<24x128xf32>
    %860 = arith.mulf %852, %859 : vector<24x128xf32>
    %861 = arith.addf %807, %860 : vector<24x128xf32>
    %862 = vector.broadcast %164 : f32 to vector<24x128xf32>
    %863 = arith.mulf %852, %862 : vector<24x128xf32>
    %864 = arith.addf %810, %863 : vector<24x128xf32>
    %865 = vector.broadcast %196 : f32 to vector<24x128xf32>
    %866 = arith.mulf %852, %865 : vector<24x128xf32>
    %867 = arith.addf %813, %866 : vector<24x128xf32>
    %868 = vector.broadcast %228 : f32 to vector<24x128xf32>
    %869 = arith.mulf %852, %868 : vector<24x128xf32>
    %870 = arith.addf %816, %869 : vector<24x128xf32>
    %871 = vector.broadcast %260 : f32 to vector<24x128xf32>
    %872 = arith.mulf %852, %871 : vector<24x128xf32>
    %873 = arith.addf %819, %872 : vector<24x128xf32>
    %874 = vector.broadcast %292 : f32 to vector<24x128xf32>
    %875 = arith.mulf %852, %874 : vector<24x128xf32>
    %876 = arith.addf %822, %875 : vector<24x128xf32>
    %877 = vector.broadcast %324 : f32 to vector<24x128xf32>
    %878 = arith.mulf %852, %877 : vector<24x128xf32>
    %879 = arith.addf %825, %878 : vector<24x128xf32>
    %880 = vector.broadcast %356 : f32 to vector<24x128xf32>
    %881 = arith.mulf %852, %880 : vector<24x128xf32>
    %882 = arith.addf %828, %881 : vector<24x128xf32>
    %883 = vector.broadcast %388 : f32 to vector<24x128xf32>
    %884 = arith.mulf %852, %883 : vector<24x128xf32>
    %885 = arith.addf %831, %884 : vector<24x128xf32>
    %886 = vector.broadcast %420 : f32 to vector<24x128xf32>
    %887 = arith.mulf %852, %886 : vector<24x128xf32>
    %888 = arith.addf %834, %887 : vector<24x128xf32>
    %889 = vector.broadcast %452 : f32 to vector<24x128xf32>
    %890 = arith.mulf %852, %889 : vector<24x128xf32>
    %891 = arith.addf %837, %890 : vector<24x128xf32>
    %892 = vector.broadcast %484 : f32 to vector<24x128xf32>
    %893 = arith.mulf %852, %892 : vector<24x128xf32>
    %894 = arith.addf %840, %893 : vector<24x128xf32>
    %895 = vector.broadcast %516 : f32 to vector<24x128xf32>
    %896 = arith.mulf %852, %895 : vector<24x128xf32>
    %897 = arith.addf %843, %896 : vector<24x128xf32>
    %898 = vector.broadcast %548 : f32 to vector<24x128xf32>
    %899 = arith.mulf %852, %898 : vector<24x128xf32>
    %900 = arith.addf %846, %899 : vector<24x128xf32>
    %901 = vector.broadcast %5 : f32 to vector<24x128xf32>
    %902 = arith.mulf %901, %614 : vector<24x128xf32>
    %903 = vector.broadcast %37 : f32 to vector<24x128xf32>
    %904 = arith.addf %902, %903 : vector<24x128xf32>
    %cst_119 = arith.constant 0.000000e+00 : f32
    %905 = vector.broadcast %cst_119 : f32 to vector<24x128xf32>
    %906 = arith.maximumf %904, %905 : vector<24x128xf32>
    %907 = vector.broadcast %69 : f32 to vector<24x128xf32>
    %908 = arith.mulf %906, %907 : vector<24x128xf32>
    %909 = arith.addf %855, %908 : vector<24x128xf32>
    %910 = vector.broadcast %101 : f32 to vector<24x128xf32>
    %911 = arith.mulf %906, %910 : vector<24x128xf32>
    %912 = arith.addf %858, %911 : vector<24x128xf32>
    %913 = vector.broadcast %133 : f32 to vector<24x128xf32>
    %914 = arith.mulf %906, %913 : vector<24x128xf32>
    %915 = arith.addf %861, %914 : vector<24x128xf32>
    %916 = vector.broadcast %165 : f32 to vector<24x128xf32>
    %917 = arith.mulf %906, %916 : vector<24x128xf32>
    %918 = arith.addf %864, %917 : vector<24x128xf32>
    %919 = vector.broadcast %197 : f32 to vector<24x128xf32>
    %920 = arith.mulf %906, %919 : vector<24x128xf32>
    %921 = arith.addf %867, %920 : vector<24x128xf32>
    %922 = vector.broadcast %229 : f32 to vector<24x128xf32>
    %923 = arith.mulf %906, %922 : vector<24x128xf32>
    %924 = arith.addf %870, %923 : vector<24x128xf32>
    %925 = vector.broadcast %261 : f32 to vector<24x128xf32>
    %926 = arith.mulf %906, %925 : vector<24x128xf32>
    %927 = arith.addf %873, %926 : vector<24x128xf32>
    %928 = vector.broadcast %293 : f32 to vector<24x128xf32>
    %929 = arith.mulf %906, %928 : vector<24x128xf32>
    %930 = arith.addf %876, %929 : vector<24x128xf32>
    %931 = vector.broadcast %325 : f32 to vector<24x128xf32>
    %932 = arith.mulf %906, %931 : vector<24x128xf32>
    %933 = arith.addf %879, %932 : vector<24x128xf32>
    %934 = vector.broadcast %357 : f32 to vector<24x128xf32>
    %935 = arith.mulf %906, %934 : vector<24x128xf32>
    %936 = arith.addf %882, %935 : vector<24x128xf32>
    %937 = vector.broadcast %389 : f32 to vector<24x128xf32>
    %938 = arith.mulf %906, %937 : vector<24x128xf32>
    %939 = arith.addf %885, %938 : vector<24x128xf32>
    %940 = vector.broadcast %421 : f32 to vector<24x128xf32>
    %941 = arith.mulf %906, %940 : vector<24x128xf32>
    %942 = arith.addf %888, %941 : vector<24x128xf32>
    %943 = vector.broadcast %453 : f32 to vector<24x128xf32>
    %944 = arith.mulf %906, %943 : vector<24x128xf32>
    %945 = arith.addf %891, %944 : vector<24x128xf32>
    %946 = vector.broadcast %485 : f32 to vector<24x128xf32>
    %947 = arith.mulf %906, %946 : vector<24x128xf32>
    %948 = arith.addf %894, %947 : vector<24x128xf32>
    %949 = vector.broadcast %517 : f32 to vector<24x128xf32>
    %950 = arith.mulf %906, %949 : vector<24x128xf32>
    %951 = arith.addf %897, %950 : vector<24x128xf32>
    %952 = vector.broadcast %549 : f32 to vector<24x128xf32>
    %953 = arith.mulf %906, %952 : vector<24x128xf32>
    %954 = arith.addf %900, %953 : vector<24x128xf32>
    %955 = vector.broadcast %6 : f32 to vector<24x128xf32>
    %956 = arith.mulf %955, %614 : vector<24x128xf32>
    %957 = vector.broadcast %38 : f32 to vector<24x128xf32>
    %958 = arith.addf %956, %957 : vector<24x128xf32>
    %cst_120 = arith.constant 0.000000e+00 : f32
    %959 = vector.broadcast %cst_120 : f32 to vector<24x128xf32>
    %960 = arith.maximumf %958, %959 : vector<24x128xf32>
    %961 = vector.broadcast %70 : f32 to vector<24x128xf32>
    %962 = arith.mulf %960, %961 : vector<24x128xf32>
    %963 = arith.addf %909, %962 : vector<24x128xf32>
    %964 = vector.broadcast %102 : f32 to vector<24x128xf32>
    %965 = arith.mulf %960, %964 : vector<24x128xf32>
    %966 = arith.addf %912, %965 : vector<24x128xf32>
    %967 = vector.broadcast %134 : f32 to vector<24x128xf32>
    %968 = arith.mulf %960, %967 : vector<24x128xf32>
    %969 = arith.addf %915, %968 : vector<24x128xf32>
    %970 = vector.broadcast %166 : f32 to vector<24x128xf32>
    %971 = arith.mulf %960, %970 : vector<24x128xf32>
    %972 = arith.addf %918, %971 : vector<24x128xf32>
    %973 = vector.broadcast %198 : f32 to vector<24x128xf32>
    %974 = arith.mulf %960, %973 : vector<24x128xf32>
    %975 = arith.addf %921, %974 : vector<24x128xf32>
    %976 = vector.broadcast %230 : f32 to vector<24x128xf32>
    %977 = arith.mulf %960, %976 : vector<24x128xf32>
    %978 = arith.addf %924, %977 : vector<24x128xf32>
    %979 = vector.broadcast %262 : f32 to vector<24x128xf32>
    %980 = arith.mulf %960, %979 : vector<24x128xf32>
    %981 = arith.addf %927, %980 : vector<24x128xf32>
    %982 = vector.broadcast %294 : f32 to vector<24x128xf32>
    %983 = arith.mulf %960, %982 : vector<24x128xf32>
    %984 = arith.addf %930, %983 : vector<24x128xf32>
    %985 = vector.broadcast %326 : f32 to vector<24x128xf32>
    %986 = arith.mulf %960, %985 : vector<24x128xf32>
    %987 = arith.addf %933, %986 : vector<24x128xf32>
    %988 = vector.broadcast %358 : f32 to vector<24x128xf32>
    %989 = arith.mulf %960, %988 : vector<24x128xf32>
    %990 = arith.addf %936, %989 : vector<24x128xf32>
    %991 = vector.broadcast %390 : f32 to vector<24x128xf32>
    %992 = arith.mulf %960, %991 : vector<24x128xf32>
    %993 = arith.addf %939, %992 : vector<24x128xf32>
    %994 = vector.broadcast %422 : f32 to vector<24x128xf32>
    %995 = arith.mulf %960, %994 : vector<24x128xf32>
    %996 = arith.addf %942, %995 : vector<24x128xf32>
    %997 = vector.broadcast %454 : f32 to vector<24x128xf32>
    %998 = arith.mulf %960, %997 : vector<24x128xf32>
    %999 = arith.addf %945, %998 : vector<24x128xf32>
    %1000 = vector.broadcast %486 : f32 to vector<24x128xf32>
    %1001 = arith.mulf %960, %1000 : vector<24x128xf32>
    %1002 = arith.addf %948, %1001 : vector<24x128xf32>
    %1003 = vector.broadcast %518 : f32 to vector<24x128xf32>
    %1004 = arith.mulf %960, %1003 : vector<24x128xf32>
    %1005 = arith.addf %951, %1004 : vector<24x128xf32>
    %1006 = vector.broadcast %550 : f32 to vector<24x128xf32>
    %1007 = arith.mulf %960, %1006 : vector<24x128xf32>
    %1008 = arith.addf %954, %1007 : vector<24x128xf32>
    %1009 = vector.broadcast %7 : f32 to vector<24x128xf32>
    %1010 = arith.mulf %1009, %614 : vector<24x128xf32>
    %1011 = vector.broadcast %39 : f32 to vector<24x128xf32>
    %1012 = arith.addf %1010, %1011 : vector<24x128xf32>
    %cst_121 = arith.constant 0.000000e+00 : f32
    %1013 = vector.broadcast %cst_121 : f32 to vector<24x128xf32>
    %1014 = arith.maximumf %1012, %1013 : vector<24x128xf32>
    %1015 = vector.broadcast %71 : f32 to vector<24x128xf32>
    %1016 = arith.mulf %1014, %1015 : vector<24x128xf32>
    %1017 = arith.addf %963, %1016 : vector<24x128xf32>
    %1018 = vector.broadcast %103 : f32 to vector<24x128xf32>
    %1019 = arith.mulf %1014, %1018 : vector<24x128xf32>
    %1020 = arith.addf %966, %1019 : vector<24x128xf32>
    %1021 = vector.broadcast %135 : f32 to vector<24x128xf32>
    %1022 = arith.mulf %1014, %1021 : vector<24x128xf32>
    %1023 = arith.addf %969, %1022 : vector<24x128xf32>
    %1024 = vector.broadcast %167 : f32 to vector<24x128xf32>
    %1025 = arith.mulf %1014, %1024 : vector<24x128xf32>
    %1026 = arith.addf %972, %1025 : vector<24x128xf32>
    %1027 = vector.broadcast %199 : f32 to vector<24x128xf32>
    %1028 = arith.mulf %1014, %1027 : vector<24x128xf32>
    %1029 = arith.addf %975, %1028 : vector<24x128xf32>
    %1030 = vector.broadcast %231 : f32 to vector<24x128xf32>
    %1031 = arith.mulf %1014, %1030 : vector<24x128xf32>
    %1032 = arith.addf %978, %1031 : vector<24x128xf32>
    %1033 = vector.broadcast %263 : f32 to vector<24x128xf32>
    %1034 = arith.mulf %1014, %1033 : vector<24x128xf32>
    %1035 = arith.addf %981, %1034 : vector<24x128xf32>
    %1036 = vector.broadcast %295 : f32 to vector<24x128xf32>
    %1037 = arith.mulf %1014, %1036 : vector<24x128xf32>
    %1038 = arith.addf %984, %1037 : vector<24x128xf32>
    %1039 = vector.broadcast %327 : f32 to vector<24x128xf32>
    %1040 = arith.mulf %1014, %1039 : vector<24x128xf32>
    %1041 = arith.addf %987, %1040 : vector<24x128xf32>
    %1042 = vector.broadcast %359 : f32 to vector<24x128xf32>
    %1043 = arith.mulf %1014, %1042 : vector<24x128xf32>
    %1044 = arith.addf %990, %1043 : vector<24x128xf32>
    %1045 = vector.broadcast %391 : f32 to vector<24x128xf32>
    %1046 = arith.mulf %1014, %1045 : vector<24x128xf32>
    %1047 = arith.addf %993, %1046 : vector<24x128xf32>
    %1048 = vector.broadcast %423 : f32 to vector<24x128xf32>
    %1049 = arith.mulf %1014, %1048 : vector<24x128xf32>
    %1050 = arith.addf %996, %1049 : vector<24x128xf32>
    %1051 = vector.broadcast %455 : f32 to vector<24x128xf32>
    %1052 = arith.mulf %1014, %1051 : vector<24x128xf32>
    %1053 = arith.addf %999, %1052 : vector<24x128xf32>
    %1054 = vector.broadcast %487 : f32 to vector<24x128xf32>
    %1055 = arith.mulf %1014, %1054 : vector<24x128xf32>
    %1056 = arith.addf %1002, %1055 : vector<24x128xf32>
    %1057 = vector.broadcast %519 : f32 to vector<24x128xf32>
    %1058 = arith.mulf %1014, %1057 : vector<24x128xf32>
    %1059 = arith.addf %1005, %1058 : vector<24x128xf32>
    %1060 = vector.broadcast %551 : f32 to vector<24x128xf32>
    %1061 = arith.mulf %1014, %1060 : vector<24x128xf32>
    %1062 = arith.addf %1008, %1061 : vector<24x128xf32>
    %1063 = vector.broadcast %8 : f32 to vector<24x128xf32>
    %1064 = arith.mulf %1063, %614 : vector<24x128xf32>
    %1065 = vector.broadcast %40 : f32 to vector<24x128xf32>
    %1066 = arith.addf %1064, %1065 : vector<24x128xf32>
    %cst_122 = arith.constant 0.000000e+00 : f32
    %1067 = vector.broadcast %cst_122 : f32 to vector<24x128xf32>
    %1068 = arith.maximumf %1066, %1067 : vector<24x128xf32>
    %1069 = vector.broadcast %72 : f32 to vector<24x128xf32>
    %1070 = arith.mulf %1068, %1069 : vector<24x128xf32>
    %1071 = arith.addf %1017, %1070 : vector<24x128xf32>
    %1072 = vector.broadcast %104 : f32 to vector<24x128xf32>
    %1073 = arith.mulf %1068, %1072 : vector<24x128xf32>
    %1074 = arith.addf %1020, %1073 : vector<24x128xf32>
    %1075 = vector.broadcast %136 : f32 to vector<24x128xf32>
    %1076 = arith.mulf %1068, %1075 : vector<24x128xf32>
    %1077 = arith.addf %1023, %1076 : vector<24x128xf32>
    %1078 = vector.broadcast %168 : f32 to vector<24x128xf32>
    %1079 = arith.mulf %1068, %1078 : vector<24x128xf32>
    %1080 = arith.addf %1026, %1079 : vector<24x128xf32>
    %1081 = vector.broadcast %200 : f32 to vector<24x128xf32>
    %1082 = arith.mulf %1068, %1081 : vector<24x128xf32>
    %1083 = arith.addf %1029, %1082 : vector<24x128xf32>
    %1084 = vector.broadcast %232 : f32 to vector<24x128xf32>
    %1085 = arith.mulf %1068, %1084 : vector<24x128xf32>
    %1086 = arith.addf %1032, %1085 : vector<24x128xf32>
    %1087 = vector.broadcast %264 : f32 to vector<24x128xf32>
    %1088 = arith.mulf %1068, %1087 : vector<24x128xf32>
    %1089 = arith.addf %1035, %1088 : vector<24x128xf32>
    %1090 = vector.broadcast %296 : f32 to vector<24x128xf32>
    %1091 = arith.mulf %1068, %1090 : vector<24x128xf32>
    %1092 = arith.addf %1038, %1091 : vector<24x128xf32>
    %1093 = vector.broadcast %328 : f32 to vector<24x128xf32>
    %1094 = arith.mulf %1068, %1093 : vector<24x128xf32>
    %1095 = arith.addf %1041, %1094 : vector<24x128xf32>
    %1096 = vector.broadcast %360 : f32 to vector<24x128xf32>
    %1097 = arith.mulf %1068, %1096 : vector<24x128xf32>
    %1098 = arith.addf %1044, %1097 : vector<24x128xf32>
    %1099 = vector.broadcast %392 : f32 to vector<24x128xf32>
    %1100 = arith.mulf %1068, %1099 : vector<24x128xf32>
    %1101 = arith.addf %1047, %1100 : vector<24x128xf32>
    %1102 = vector.broadcast %424 : f32 to vector<24x128xf32>
    %1103 = arith.mulf %1068, %1102 : vector<24x128xf32>
    %1104 = arith.addf %1050, %1103 : vector<24x128xf32>
    %1105 = vector.broadcast %456 : f32 to vector<24x128xf32>
    %1106 = arith.mulf %1068, %1105 : vector<24x128xf32>
    %1107 = arith.addf %1053, %1106 : vector<24x128xf32>
    %1108 = vector.broadcast %488 : f32 to vector<24x128xf32>
    %1109 = arith.mulf %1068, %1108 : vector<24x128xf32>
    %1110 = arith.addf %1056, %1109 : vector<24x128xf32>
    %1111 = vector.broadcast %520 : f32 to vector<24x128xf32>
    %1112 = arith.mulf %1068, %1111 : vector<24x128xf32>
    %1113 = arith.addf %1059, %1112 : vector<24x128xf32>
    %1114 = vector.broadcast %552 : f32 to vector<24x128xf32>
    %1115 = arith.mulf %1068, %1114 : vector<24x128xf32>
    %1116 = arith.addf %1062, %1115 : vector<24x128xf32>
    %1117 = vector.broadcast %9 : f32 to vector<24x128xf32>
    %1118 = arith.mulf %1117, %614 : vector<24x128xf32>
    %1119 = vector.broadcast %41 : f32 to vector<24x128xf32>
    %1120 = arith.addf %1118, %1119 : vector<24x128xf32>
    %cst_123 = arith.constant 0.000000e+00 : f32
    %1121 = vector.broadcast %cst_123 : f32 to vector<24x128xf32>
    %1122 = arith.maximumf %1120, %1121 : vector<24x128xf32>
    %1123 = vector.broadcast %73 : f32 to vector<24x128xf32>
    %1124 = arith.mulf %1122, %1123 : vector<24x128xf32>
    %1125 = arith.addf %1071, %1124 : vector<24x128xf32>
    %1126 = vector.broadcast %105 : f32 to vector<24x128xf32>
    %1127 = arith.mulf %1122, %1126 : vector<24x128xf32>
    %1128 = arith.addf %1074, %1127 : vector<24x128xf32>
    %1129 = vector.broadcast %137 : f32 to vector<24x128xf32>
    %1130 = arith.mulf %1122, %1129 : vector<24x128xf32>
    %1131 = arith.addf %1077, %1130 : vector<24x128xf32>
    %1132 = vector.broadcast %169 : f32 to vector<24x128xf32>
    %1133 = arith.mulf %1122, %1132 : vector<24x128xf32>
    %1134 = arith.addf %1080, %1133 : vector<24x128xf32>
    %1135 = vector.broadcast %201 : f32 to vector<24x128xf32>
    %1136 = arith.mulf %1122, %1135 : vector<24x128xf32>
    %1137 = arith.addf %1083, %1136 : vector<24x128xf32>
    %1138 = vector.broadcast %233 : f32 to vector<24x128xf32>
    %1139 = arith.mulf %1122, %1138 : vector<24x128xf32>
    %1140 = arith.addf %1086, %1139 : vector<24x128xf32>
    %1141 = vector.broadcast %265 : f32 to vector<24x128xf32>
    %1142 = arith.mulf %1122, %1141 : vector<24x128xf32>
    %1143 = arith.addf %1089, %1142 : vector<24x128xf32>
    %1144 = vector.broadcast %297 : f32 to vector<24x128xf32>
    %1145 = arith.mulf %1122, %1144 : vector<24x128xf32>
    %1146 = arith.addf %1092, %1145 : vector<24x128xf32>
    %1147 = vector.broadcast %329 : f32 to vector<24x128xf32>
    %1148 = arith.mulf %1122, %1147 : vector<24x128xf32>
    %1149 = arith.addf %1095, %1148 : vector<24x128xf32>
    %1150 = vector.broadcast %361 : f32 to vector<24x128xf32>
    %1151 = arith.mulf %1122, %1150 : vector<24x128xf32>
    %1152 = arith.addf %1098, %1151 : vector<24x128xf32>
    %1153 = vector.broadcast %393 : f32 to vector<24x128xf32>
    %1154 = arith.mulf %1122, %1153 : vector<24x128xf32>
    %1155 = arith.addf %1101, %1154 : vector<24x128xf32>
    %1156 = vector.broadcast %425 : f32 to vector<24x128xf32>
    %1157 = arith.mulf %1122, %1156 : vector<24x128xf32>
    %1158 = arith.addf %1104, %1157 : vector<24x128xf32>
    %1159 = vector.broadcast %457 : f32 to vector<24x128xf32>
    %1160 = arith.mulf %1122, %1159 : vector<24x128xf32>
    %1161 = arith.addf %1107, %1160 : vector<24x128xf32>
    %1162 = vector.broadcast %489 : f32 to vector<24x128xf32>
    %1163 = arith.mulf %1122, %1162 : vector<24x128xf32>
    %1164 = arith.addf %1110, %1163 : vector<24x128xf32>
    %1165 = vector.broadcast %521 : f32 to vector<24x128xf32>
    %1166 = arith.mulf %1122, %1165 : vector<24x128xf32>
    %1167 = arith.addf %1113, %1166 : vector<24x128xf32>
    %1168 = vector.broadcast %553 : f32 to vector<24x128xf32>
    %1169 = arith.mulf %1122, %1168 : vector<24x128xf32>
    %1170 = arith.addf %1116, %1169 : vector<24x128xf32>
    %1171 = vector.broadcast %10 : f32 to vector<24x128xf32>
    %1172 = arith.mulf %1171, %614 : vector<24x128xf32>
    %1173 = vector.broadcast %42 : f32 to vector<24x128xf32>
    %1174 = arith.addf %1172, %1173 : vector<24x128xf32>
    %cst_124 = arith.constant 0.000000e+00 : f32
    %1175 = vector.broadcast %cst_124 : f32 to vector<24x128xf32>
    %1176 = arith.maximumf %1174, %1175 : vector<24x128xf32>
    %1177 = vector.broadcast %74 : f32 to vector<24x128xf32>
    %1178 = arith.mulf %1176, %1177 : vector<24x128xf32>
    %1179 = arith.addf %1125, %1178 : vector<24x128xf32>
    %1180 = vector.broadcast %106 : f32 to vector<24x128xf32>
    %1181 = arith.mulf %1176, %1180 : vector<24x128xf32>
    %1182 = arith.addf %1128, %1181 : vector<24x128xf32>
    %1183 = vector.broadcast %138 : f32 to vector<24x128xf32>
    %1184 = arith.mulf %1176, %1183 : vector<24x128xf32>
    %1185 = arith.addf %1131, %1184 : vector<24x128xf32>
    %1186 = vector.broadcast %170 : f32 to vector<24x128xf32>
    %1187 = arith.mulf %1176, %1186 : vector<24x128xf32>
    %1188 = arith.addf %1134, %1187 : vector<24x128xf32>
    %1189 = vector.broadcast %202 : f32 to vector<24x128xf32>
    %1190 = arith.mulf %1176, %1189 : vector<24x128xf32>
    %1191 = arith.addf %1137, %1190 : vector<24x128xf32>
    %1192 = vector.broadcast %234 : f32 to vector<24x128xf32>
    %1193 = arith.mulf %1176, %1192 : vector<24x128xf32>
    %1194 = arith.addf %1140, %1193 : vector<24x128xf32>
    %1195 = vector.broadcast %266 : f32 to vector<24x128xf32>
    %1196 = arith.mulf %1176, %1195 : vector<24x128xf32>
    %1197 = arith.addf %1143, %1196 : vector<24x128xf32>
    %1198 = vector.broadcast %298 : f32 to vector<24x128xf32>
    %1199 = arith.mulf %1176, %1198 : vector<24x128xf32>
    %1200 = arith.addf %1146, %1199 : vector<24x128xf32>
    %1201 = vector.broadcast %330 : f32 to vector<24x128xf32>
    %1202 = arith.mulf %1176, %1201 : vector<24x128xf32>
    %1203 = arith.addf %1149, %1202 : vector<24x128xf32>
    %1204 = vector.broadcast %362 : f32 to vector<24x128xf32>
    %1205 = arith.mulf %1176, %1204 : vector<24x128xf32>
    %1206 = arith.addf %1152, %1205 : vector<24x128xf32>
    %1207 = vector.broadcast %394 : f32 to vector<24x128xf32>
    %1208 = arith.mulf %1176, %1207 : vector<24x128xf32>
    %1209 = arith.addf %1155, %1208 : vector<24x128xf32>
    %1210 = vector.broadcast %426 : f32 to vector<24x128xf32>
    %1211 = arith.mulf %1176, %1210 : vector<24x128xf32>
    %1212 = arith.addf %1158, %1211 : vector<24x128xf32>
    %1213 = vector.broadcast %458 : f32 to vector<24x128xf32>
    %1214 = arith.mulf %1176, %1213 : vector<24x128xf32>
    %1215 = arith.addf %1161, %1214 : vector<24x128xf32>
    %1216 = vector.broadcast %490 : f32 to vector<24x128xf32>
    %1217 = arith.mulf %1176, %1216 : vector<24x128xf32>
    %1218 = arith.addf %1164, %1217 : vector<24x128xf32>
    %1219 = vector.broadcast %522 : f32 to vector<24x128xf32>
    %1220 = arith.mulf %1176, %1219 : vector<24x128xf32>
    %1221 = arith.addf %1167, %1220 : vector<24x128xf32>
    %1222 = vector.broadcast %554 : f32 to vector<24x128xf32>
    %1223 = arith.mulf %1176, %1222 : vector<24x128xf32>
    %1224 = arith.addf %1170, %1223 : vector<24x128xf32>
    %1225 = vector.broadcast %11 : f32 to vector<24x128xf32>
    %1226 = arith.mulf %1225, %614 : vector<24x128xf32>
    %1227 = vector.broadcast %43 : f32 to vector<24x128xf32>
    %1228 = arith.addf %1226, %1227 : vector<24x128xf32>
    %cst_125 = arith.constant 0.000000e+00 : f32
    %1229 = vector.broadcast %cst_125 : f32 to vector<24x128xf32>
    %1230 = arith.maximumf %1228, %1229 : vector<24x128xf32>
    %1231 = vector.broadcast %75 : f32 to vector<24x128xf32>
    %1232 = arith.mulf %1230, %1231 : vector<24x128xf32>
    %1233 = arith.addf %1179, %1232 : vector<24x128xf32>
    %1234 = vector.broadcast %107 : f32 to vector<24x128xf32>
    %1235 = arith.mulf %1230, %1234 : vector<24x128xf32>
    %1236 = arith.addf %1182, %1235 : vector<24x128xf32>
    %1237 = vector.broadcast %139 : f32 to vector<24x128xf32>
    %1238 = arith.mulf %1230, %1237 : vector<24x128xf32>
    %1239 = arith.addf %1185, %1238 : vector<24x128xf32>
    %1240 = vector.broadcast %171 : f32 to vector<24x128xf32>
    %1241 = arith.mulf %1230, %1240 : vector<24x128xf32>
    %1242 = arith.addf %1188, %1241 : vector<24x128xf32>
    %1243 = vector.broadcast %203 : f32 to vector<24x128xf32>
    %1244 = arith.mulf %1230, %1243 : vector<24x128xf32>
    %1245 = arith.addf %1191, %1244 : vector<24x128xf32>
    %1246 = vector.broadcast %235 : f32 to vector<24x128xf32>
    %1247 = arith.mulf %1230, %1246 : vector<24x128xf32>
    %1248 = arith.addf %1194, %1247 : vector<24x128xf32>
    %1249 = vector.broadcast %267 : f32 to vector<24x128xf32>
    %1250 = arith.mulf %1230, %1249 : vector<24x128xf32>
    %1251 = arith.addf %1197, %1250 : vector<24x128xf32>
    %1252 = vector.broadcast %299 : f32 to vector<24x128xf32>
    %1253 = arith.mulf %1230, %1252 : vector<24x128xf32>
    %1254 = arith.addf %1200, %1253 : vector<24x128xf32>
    %1255 = vector.broadcast %331 : f32 to vector<24x128xf32>
    %1256 = arith.mulf %1230, %1255 : vector<24x128xf32>
    %1257 = arith.addf %1203, %1256 : vector<24x128xf32>
    %1258 = vector.broadcast %363 : f32 to vector<24x128xf32>
    %1259 = arith.mulf %1230, %1258 : vector<24x128xf32>
    %1260 = arith.addf %1206, %1259 : vector<24x128xf32>
    %1261 = vector.broadcast %395 : f32 to vector<24x128xf32>
    %1262 = arith.mulf %1230, %1261 : vector<24x128xf32>
    %1263 = arith.addf %1209, %1262 : vector<24x128xf32>
    %1264 = vector.broadcast %427 : f32 to vector<24x128xf32>
    %1265 = arith.mulf %1230, %1264 : vector<24x128xf32>
    %1266 = arith.addf %1212, %1265 : vector<24x128xf32>
    %1267 = vector.broadcast %459 : f32 to vector<24x128xf32>
    %1268 = arith.mulf %1230, %1267 : vector<24x128xf32>
    %1269 = arith.addf %1215, %1268 : vector<24x128xf32>
    %1270 = vector.broadcast %491 : f32 to vector<24x128xf32>
    %1271 = arith.mulf %1230, %1270 : vector<24x128xf32>
    %1272 = arith.addf %1218, %1271 : vector<24x128xf32>
    %1273 = vector.broadcast %523 : f32 to vector<24x128xf32>
    %1274 = arith.mulf %1230, %1273 : vector<24x128xf32>
    %1275 = arith.addf %1221, %1274 : vector<24x128xf32>
    %1276 = vector.broadcast %555 : f32 to vector<24x128xf32>
    %1277 = arith.mulf %1230, %1276 : vector<24x128xf32>
    %1278 = arith.addf %1224, %1277 : vector<24x128xf32>
    %1279 = vector.broadcast %12 : f32 to vector<24x128xf32>
    %1280 = arith.mulf %1279, %614 : vector<24x128xf32>
    %1281 = vector.broadcast %44 : f32 to vector<24x128xf32>
    %1282 = arith.addf %1280, %1281 : vector<24x128xf32>
    %cst_126 = arith.constant 0.000000e+00 : f32
    %1283 = vector.broadcast %cst_126 : f32 to vector<24x128xf32>
    %1284 = arith.maximumf %1282, %1283 : vector<24x128xf32>
    %1285 = vector.broadcast %76 : f32 to vector<24x128xf32>
    %1286 = arith.mulf %1284, %1285 : vector<24x128xf32>
    %1287 = arith.addf %1233, %1286 : vector<24x128xf32>
    %1288 = vector.broadcast %108 : f32 to vector<24x128xf32>
    %1289 = arith.mulf %1284, %1288 : vector<24x128xf32>
    %1290 = arith.addf %1236, %1289 : vector<24x128xf32>
    %1291 = vector.broadcast %140 : f32 to vector<24x128xf32>
    %1292 = arith.mulf %1284, %1291 : vector<24x128xf32>
    %1293 = arith.addf %1239, %1292 : vector<24x128xf32>
    %1294 = vector.broadcast %172 : f32 to vector<24x128xf32>
    %1295 = arith.mulf %1284, %1294 : vector<24x128xf32>
    %1296 = arith.addf %1242, %1295 : vector<24x128xf32>
    %1297 = vector.broadcast %204 : f32 to vector<24x128xf32>
    %1298 = arith.mulf %1284, %1297 : vector<24x128xf32>
    %1299 = arith.addf %1245, %1298 : vector<24x128xf32>
    %1300 = vector.broadcast %236 : f32 to vector<24x128xf32>
    %1301 = arith.mulf %1284, %1300 : vector<24x128xf32>
    %1302 = arith.addf %1248, %1301 : vector<24x128xf32>
    %1303 = vector.broadcast %268 : f32 to vector<24x128xf32>
    %1304 = arith.mulf %1284, %1303 : vector<24x128xf32>
    %1305 = arith.addf %1251, %1304 : vector<24x128xf32>
    %1306 = vector.broadcast %300 : f32 to vector<24x128xf32>
    %1307 = arith.mulf %1284, %1306 : vector<24x128xf32>
    %1308 = arith.addf %1254, %1307 : vector<24x128xf32>
    %1309 = vector.broadcast %332 : f32 to vector<24x128xf32>
    %1310 = arith.mulf %1284, %1309 : vector<24x128xf32>
    %1311 = arith.addf %1257, %1310 : vector<24x128xf32>
    %1312 = vector.broadcast %364 : f32 to vector<24x128xf32>
    %1313 = arith.mulf %1284, %1312 : vector<24x128xf32>
    %1314 = arith.addf %1260, %1313 : vector<24x128xf32>
    %1315 = vector.broadcast %396 : f32 to vector<24x128xf32>
    %1316 = arith.mulf %1284, %1315 : vector<24x128xf32>
    %1317 = arith.addf %1263, %1316 : vector<24x128xf32>
    %1318 = vector.broadcast %428 : f32 to vector<24x128xf32>
    %1319 = arith.mulf %1284, %1318 : vector<24x128xf32>
    %1320 = arith.addf %1266, %1319 : vector<24x128xf32>
    %1321 = vector.broadcast %460 : f32 to vector<24x128xf32>
    %1322 = arith.mulf %1284, %1321 : vector<24x128xf32>
    %1323 = arith.addf %1269, %1322 : vector<24x128xf32>
    %1324 = vector.broadcast %492 : f32 to vector<24x128xf32>
    %1325 = arith.mulf %1284, %1324 : vector<24x128xf32>
    %1326 = arith.addf %1272, %1325 : vector<24x128xf32>
    %1327 = vector.broadcast %524 : f32 to vector<24x128xf32>
    %1328 = arith.mulf %1284, %1327 : vector<24x128xf32>
    %1329 = arith.addf %1275, %1328 : vector<24x128xf32>
    %1330 = vector.broadcast %556 : f32 to vector<24x128xf32>
    %1331 = arith.mulf %1284, %1330 : vector<24x128xf32>
    %1332 = arith.addf %1278, %1331 : vector<24x128xf32>
    %1333 = vector.broadcast %13 : f32 to vector<24x128xf32>
    %1334 = arith.mulf %1333, %614 : vector<24x128xf32>
    %1335 = vector.broadcast %45 : f32 to vector<24x128xf32>
    %1336 = arith.addf %1334, %1335 : vector<24x128xf32>
    %cst_127 = arith.constant 0.000000e+00 : f32
    %1337 = vector.broadcast %cst_127 : f32 to vector<24x128xf32>
    %1338 = arith.maximumf %1336, %1337 : vector<24x128xf32>
    %1339 = vector.broadcast %77 : f32 to vector<24x128xf32>
    %1340 = arith.mulf %1338, %1339 : vector<24x128xf32>
    %1341 = arith.addf %1287, %1340 : vector<24x128xf32>
    %1342 = vector.broadcast %109 : f32 to vector<24x128xf32>
    %1343 = arith.mulf %1338, %1342 : vector<24x128xf32>
    %1344 = arith.addf %1290, %1343 : vector<24x128xf32>
    %1345 = vector.broadcast %141 : f32 to vector<24x128xf32>
    %1346 = arith.mulf %1338, %1345 : vector<24x128xf32>
    %1347 = arith.addf %1293, %1346 : vector<24x128xf32>
    %1348 = vector.broadcast %173 : f32 to vector<24x128xf32>
    %1349 = arith.mulf %1338, %1348 : vector<24x128xf32>
    %1350 = arith.addf %1296, %1349 : vector<24x128xf32>
    %1351 = vector.broadcast %205 : f32 to vector<24x128xf32>
    %1352 = arith.mulf %1338, %1351 : vector<24x128xf32>
    %1353 = arith.addf %1299, %1352 : vector<24x128xf32>
    %1354 = vector.broadcast %237 : f32 to vector<24x128xf32>
    %1355 = arith.mulf %1338, %1354 : vector<24x128xf32>
    %1356 = arith.addf %1302, %1355 : vector<24x128xf32>
    %1357 = vector.broadcast %269 : f32 to vector<24x128xf32>
    %1358 = arith.mulf %1338, %1357 : vector<24x128xf32>
    %1359 = arith.addf %1305, %1358 : vector<24x128xf32>
    %1360 = vector.broadcast %301 : f32 to vector<24x128xf32>
    %1361 = arith.mulf %1338, %1360 : vector<24x128xf32>
    %1362 = arith.addf %1308, %1361 : vector<24x128xf32>
    %1363 = vector.broadcast %333 : f32 to vector<24x128xf32>
    %1364 = arith.mulf %1338, %1363 : vector<24x128xf32>
    %1365 = arith.addf %1311, %1364 : vector<24x128xf32>
    %1366 = vector.broadcast %365 : f32 to vector<24x128xf32>
    %1367 = arith.mulf %1338, %1366 : vector<24x128xf32>
    %1368 = arith.addf %1314, %1367 : vector<24x128xf32>
    %1369 = vector.broadcast %397 : f32 to vector<24x128xf32>
    %1370 = arith.mulf %1338, %1369 : vector<24x128xf32>
    %1371 = arith.addf %1317, %1370 : vector<24x128xf32>
    %1372 = vector.broadcast %429 : f32 to vector<24x128xf32>
    %1373 = arith.mulf %1338, %1372 : vector<24x128xf32>
    %1374 = arith.addf %1320, %1373 : vector<24x128xf32>
    %1375 = vector.broadcast %461 : f32 to vector<24x128xf32>
    %1376 = arith.mulf %1338, %1375 : vector<24x128xf32>
    %1377 = arith.addf %1323, %1376 : vector<24x128xf32>
    %1378 = vector.broadcast %493 : f32 to vector<24x128xf32>
    %1379 = arith.mulf %1338, %1378 : vector<24x128xf32>
    %1380 = arith.addf %1326, %1379 : vector<24x128xf32>
    %1381 = vector.broadcast %525 : f32 to vector<24x128xf32>
    %1382 = arith.mulf %1338, %1381 : vector<24x128xf32>
    %1383 = arith.addf %1329, %1382 : vector<24x128xf32>
    %1384 = vector.broadcast %557 : f32 to vector<24x128xf32>
    %1385 = arith.mulf %1338, %1384 : vector<24x128xf32>
    %1386 = arith.addf %1332, %1385 : vector<24x128xf32>
    %1387 = vector.broadcast %14 : f32 to vector<24x128xf32>
    %1388 = arith.mulf %1387, %614 : vector<24x128xf32>
    %1389 = vector.broadcast %46 : f32 to vector<24x128xf32>
    %1390 = arith.addf %1388, %1389 : vector<24x128xf32>
    %cst_128 = arith.constant 0.000000e+00 : f32
    %1391 = vector.broadcast %cst_128 : f32 to vector<24x128xf32>
    %1392 = arith.maximumf %1390, %1391 : vector<24x128xf32>
    %1393 = vector.broadcast %78 : f32 to vector<24x128xf32>
    %1394 = arith.mulf %1392, %1393 : vector<24x128xf32>
    %1395 = arith.addf %1341, %1394 : vector<24x128xf32>
    %1396 = vector.broadcast %110 : f32 to vector<24x128xf32>
    %1397 = arith.mulf %1392, %1396 : vector<24x128xf32>
    %1398 = arith.addf %1344, %1397 : vector<24x128xf32>
    %1399 = vector.broadcast %142 : f32 to vector<24x128xf32>
    %1400 = arith.mulf %1392, %1399 : vector<24x128xf32>
    %1401 = arith.addf %1347, %1400 : vector<24x128xf32>
    %1402 = vector.broadcast %174 : f32 to vector<24x128xf32>
    %1403 = arith.mulf %1392, %1402 : vector<24x128xf32>
    %1404 = arith.addf %1350, %1403 : vector<24x128xf32>
    %1405 = vector.broadcast %206 : f32 to vector<24x128xf32>
    %1406 = arith.mulf %1392, %1405 : vector<24x128xf32>
    %1407 = arith.addf %1353, %1406 : vector<24x128xf32>
    %1408 = vector.broadcast %238 : f32 to vector<24x128xf32>
    %1409 = arith.mulf %1392, %1408 : vector<24x128xf32>
    %1410 = arith.addf %1356, %1409 : vector<24x128xf32>
    %1411 = vector.broadcast %270 : f32 to vector<24x128xf32>
    %1412 = arith.mulf %1392, %1411 : vector<24x128xf32>
    %1413 = arith.addf %1359, %1412 : vector<24x128xf32>
    %1414 = vector.broadcast %302 : f32 to vector<24x128xf32>
    %1415 = arith.mulf %1392, %1414 : vector<24x128xf32>
    %1416 = arith.addf %1362, %1415 : vector<24x128xf32>
    %1417 = vector.broadcast %334 : f32 to vector<24x128xf32>
    %1418 = arith.mulf %1392, %1417 : vector<24x128xf32>
    %1419 = arith.addf %1365, %1418 : vector<24x128xf32>
    %1420 = vector.broadcast %366 : f32 to vector<24x128xf32>
    %1421 = arith.mulf %1392, %1420 : vector<24x128xf32>
    %1422 = arith.addf %1368, %1421 : vector<24x128xf32>
    %1423 = vector.broadcast %398 : f32 to vector<24x128xf32>
    %1424 = arith.mulf %1392, %1423 : vector<24x128xf32>
    %1425 = arith.addf %1371, %1424 : vector<24x128xf32>
    %1426 = vector.broadcast %430 : f32 to vector<24x128xf32>
    %1427 = arith.mulf %1392, %1426 : vector<24x128xf32>
    %1428 = arith.addf %1374, %1427 : vector<24x128xf32>
    %1429 = vector.broadcast %462 : f32 to vector<24x128xf32>
    %1430 = arith.mulf %1392, %1429 : vector<24x128xf32>
    %1431 = arith.addf %1377, %1430 : vector<24x128xf32>
    %1432 = vector.broadcast %494 : f32 to vector<24x128xf32>
    %1433 = arith.mulf %1392, %1432 : vector<24x128xf32>
    %1434 = arith.addf %1380, %1433 : vector<24x128xf32>
    %1435 = vector.broadcast %526 : f32 to vector<24x128xf32>
    %1436 = arith.mulf %1392, %1435 : vector<24x128xf32>
    %1437 = arith.addf %1383, %1436 : vector<24x128xf32>
    %1438 = vector.broadcast %558 : f32 to vector<24x128xf32>
    %1439 = arith.mulf %1392, %1438 : vector<24x128xf32>
    %1440 = arith.addf %1386, %1439 : vector<24x128xf32>
    %1441 = vector.broadcast %15 : f32 to vector<24x128xf32>
    %1442 = arith.mulf %1441, %614 : vector<24x128xf32>
    %1443 = vector.broadcast %47 : f32 to vector<24x128xf32>
    %1444 = arith.addf %1442, %1443 : vector<24x128xf32>
    %cst_129 = arith.constant 0.000000e+00 : f32
    %1445 = vector.broadcast %cst_129 : f32 to vector<24x128xf32>
    %1446 = arith.maximumf %1444, %1445 : vector<24x128xf32>
    %1447 = vector.broadcast %79 : f32 to vector<24x128xf32>
    %1448 = arith.mulf %1446, %1447 : vector<24x128xf32>
    %1449 = arith.addf %1395, %1448 : vector<24x128xf32>
    %1450 = vector.broadcast %111 : f32 to vector<24x128xf32>
    %1451 = arith.mulf %1446, %1450 : vector<24x128xf32>
    %1452 = arith.addf %1398, %1451 : vector<24x128xf32>
    %1453 = vector.broadcast %143 : f32 to vector<24x128xf32>
    %1454 = arith.mulf %1446, %1453 : vector<24x128xf32>
    %1455 = arith.addf %1401, %1454 : vector<24x128xf32>
    %1456 = vector.broadcast %175 : f32 to vector<24x128xf32>
    %1457 = arith.mulf %1446, %1456 : vector<24x128xf32>
    %1458 = arith.addf %1404, %1457 : vector<24x128xf32>
    %1459 = vector.broadcast %207 : f32 to vector<24x128xf32>
    %1460 = arith.mulf %1446, %1459 : vector<24x128xf32>
    %1461 = arith.addf %1407, %1460 : vector<24x128xf32>
    %1462 = vector.broadcast %239 : f32 to vector<24x128xf32>
    %1463 = arith.mulf %1446, %1462 : vector<24x128xf32>
    %1464 = arith.addf %1410, %1463 : vector<24x128xf32>
    %1465 = vector.broadcast %271 : f32 to vector<24x128xf32>
    %1466 = arith.mulf %1446, %1465 : vector<24x128xf32>
    %1467 = arith.addf %1413, %1466 : vector<24x128xf32>
    %1468 = vector.broadcast %303 : f32 to vector<24x128xf32>
    %1469 = arith.mulf %1446, %1468 : vector<24x128xf32>
    %1470 = arith.addf %1416, %1469 : vector<24x128xf32>
    %1471 = vector.broadcast %335 : f32 to vector<24x128xf32>
    %1472 = arith.mulf %1446, %1471 : vector<24x128xf32>
    %1473 = arith.addf %1419, %1472 : vector<24x128xf32>
    %1474 = vector.broadcast %367 : f32 to vector<24x128xf32>
    %1475 = arith.mulf %1446, %1474 : vector<24x128xf32>
    %1476 = arith.addf %1422, %1475 : vector<24x128xf32>
    %1477 = vector.broadcast %399 : f32 to vector<24x128xf32>
    %1478 = arith.mulf %1446, %1477 : vector<24x128xf32>
    %1479 = arith.addf %1425, %1478 : vector<24x128xf32>
    %1480 = vector.broadcast %431 : f32 to vector<24x128xf32>
    %1481 = arith.mulf %1446, %1480 : vector<24x128xf32>
    %1482 = arith.addf %1428, %1481 : vector<24x128xf32>
    %1483 = vector.broadcast %463 : f32 to vector<24x128xf32>
    %1484 = arith.mulf %1446, %1483 : vector<24x128xf32>
    %1485 = arith.addf %1431, %1484 : vector<24x128xf32>
    %1486 = vector.broadcast %495 : f32 to vector<24x128xf32>
    %1487 = arith.mulf %1446, %1486 : vector<24x128xf32>
    %1488 = arith.addf %1434, %1487 : vector<24x128xf32>
    %1489 = vector.broadcast %527 : f32 to vector<24x128xf32>
    %1490 = arith.mulf %1446, %1489 : vector<24x128xf32>
    %1491 = arith.addf %1437, %1490 : vector<24x128xf32>
    %1492 = vector.broadcast %559 : f32 to vector<24x128xf32>
    %1493 = arith.mulf %1446, %1492 : vector<24x128xf32>
    %1494 = arith.addf %1440, %1493 : vector<24x128xf32>
    %1495 = vector.broadcast %16 : f32 to vector<24x128xf32>
    %1496 = arith.mulf %1495, %614 : vector<24x128xf32>
    %1497 = vector.broadcast %48 : f32 to vector<24x128xf32>
    %1498 = arith.addf %1496, %1497 : vector<24x128xf32>
    %cst_130 = arith.constant 0.000000e+00 : f32
    %1499 = vector.broadcast %cst_130 : f32 to vector<24x128xf32>
    %1500 = arith.maximumf %1498, %1499 : vector<24x128xf32>
    %1501 = vector.broadcast %80 : f32 to vector<24x128xf32>
    %1502 = arith.mulf %1500, %1501 : vector<24x128xf32>
    %1503 = arith.addf %1449, %1502 : vector<24x128xf32>
    %1504 = vector.broadcast %112 : f32 to vector<24x128xf32>
    %1505 = arith.mulf %1500, %1504 : vector<24x128xf32>
    %1506 = arith.addf %1452, %1505 : vector<24x128xf32>
    %1507 = vector.broadcast %144 : f32 to vector<24x128xf32>
    %1508 = arith.mulf %1500, %1507 : vector<24x128xf32>
    %1509 = arith.addf %1455, %1508 : vector<24x128xf32>
    %1510 = vector.broadcast %176 : f32 to vector<24x128xf32>
    %1511 = arith.mulf %1500, %1510 : vector<24x128xf32>
    %1512 = arith.addf %1458, %1511 : vector<24x128xf32>
    %1513 = vector.broadcast %208 : f32 to vector<24x128xf32>
    %1514 = arith.mulf %1500, %1513 : vector<24x128xf32>
    %1515 = arith.addf %1461, %1514 : vector<24x128xf32>
    %1516 = vector.broadcast %240 : f32 to vector<24x128xf32>
    %1517 = arith.mulf %1500, %1516 : vector<24x128xf32>
    %1518 = arith.addf %1464, %1517 : vector<24x128xf32>
    %1519 = vector.broadcast %272 : f32 to vector<24x128xf32>
    %1520 = arith.mulf %1500, %1519 : vector<24x128xf32>
    %1521 = arith.addf %1467, %1520 : vector<24x128xf32>
    %1522 = vector.broadcast %304 : f32 to vector<24x128xf32>
    %1523 = arith.mulf %1500, %1522 : vector<24x128xf32>
    %1524 = arith.addf %1470, %1523 : vector<24x128xf32>
    %1525 = vector.broadcast %336 : f32 to vector<24x128xf32>
    %1526 = arith.mulf %1500, %1525 : vector<24x128xf32>
    %1527 = arith.addf %1473, %1526 : vector<24x128xf32>
    %1528 = vector.broadcast %368 : f32 to vector<24x128xf32>
    %1529 = arith.mulf %1500, %1528 : vector<24x128xf32>
    %1530 = arith.addf %1476, %1529 : vector<24x128xf32>
    %1531 = vector.broadcast %400 : f32 to vector<24x128xf32>
    %1532 = arith.mulf %1500, %1531 : vector<24x128xf32>
    %1533 = arith.addf %1479, %1532 : vector<24x128xf32>
    %1534 = vector.broadcast %432 : f32 to vector<24x128xf32>
    %1535 = arith.mulf %1500, %1534 : vector<24x128xf32>
    %1536 = arith.addf %1482, %1535 : vector<24x128xf32>
    %1537 = vector.broadcast %464 : f32 to vector<24x128xf32>
    %1538 = arith.mulf %1500, %1537 : vector<24x128xf32>
    %1539 = arith.addf %1485, %1538 : vector<24x128xf32>
    %1540 = vector.broadcast %496 : f32 to vector<24x128xf32>
    %1541 = arith.mulf %1500, %1540 : vector<24x128xf32>
    %1542 = arith.addf %1488, %1541 : vector<24x128xf32>
    %1543 = vector.broadcast %528 : f32 to vector<24x128xf32>
    %1544 = arith.mulf %1500, %1543 : vector<24x128xf32>
    %1545 = arith.addf %1491, %1544 : vector<24x128xf32>
    %1546 = vector.broadcast %560 : f32 to vector<24x128xf32>
    %1547 = arith.mulf %1500, %1546 : vector<24x128xf32>
    %1548 = arith.addf %1494, %1547 : vector<24x128xf32>
    %1549 = vector.broadcast %17 : f32 to vector<24x128xf32>
    %1550 = arith.mulf %1549, %614 : vector<24x128xf32>
    %1551 = vector.broadcast %49 : f32 to vector<24x128xf32>
    %1552 = arith.addf %1550, %1551 : vector<24x128xf32>
    %cst_131 = arith.constant 0.000000e+00 : f32
    %1553 = vector.broadcast %cst_131 : f32 to vector<24x128xf32>
    %1554 = arith.maximumf %1552, %1553 : vector<24x128xf32>
    %1555 = vector.broadcast %81 : f32 to vector<24x128xf32>
    %1556 = arith.mulf %1554, %1555 : vector<24x128xf32>
    %1557 = arith.addf %1503, %1556 : vector<24x128xf32>
    %1558 = vector.broadcast %113 : f32 to vector<24x128xf32>
    %1559 = arith.mulf %1554, %1558 : vector<24x128xf32>
    %1560 = arith.addf %1506, %1559 : vector<24x128xf32>
    %1561 = vector.broadcast %145 : f32 to vector<24x128xf32>
    %1562 = arith.mulf %1554, %1561 : vector<24x128xf32>
    %1563 = arith.addf %1509, %1562 : vector<24x128xf32>
    %1564 = vector.broadcast %177 : f32 to vector<24x128xf32>
    %1565 = arith.mulf %1554, %1564 : vector<24x128xf32>
    %1566 = arith.addf %1512, %1565 : vector<24x128xf32>
    %1567 = vector.broadcast %209 : f32 to vector<24x128xf32>
    %1568 = arith.mulf %1554, %1567 : vector<24x128xf32>
    %1569 = arith.addf %1515, %1568 : vector<24x128xf32>
    %1570 = vector.broadcast %241 : f32 to vector<24x128xf32>
    %1571 = arith.mulf %1554, %1570 : vector<24x128xf32>
    %1572 = arith.addf %1518, %1571 : vector<24x128xf32>
    %1573 = vector.broadcast %273 : f32 to vector<24x128xf32>
    %1574 = arith.mulf %1554, %1573 : vector<24x128xf32>
    %1575 = arith.addf %1521, %1574 : vector<24x128xf32>
    %1576 = vector.broadcast %305 : f32 to vector<24x128xf32>
    %1577 = arith.mulf %1554, %1576 : vector<24x128xf32>
    %1578 = arith.addf %1524, %1577 : vector<24x128xf32>
    %1579 = vector.broadcast %337 : f32 to vector<24x128xf32>
    %1580 = arith.mulf %1554, %1579 : vector<24x128xf32>
    %1581 = arith.addf %1527, %1580 : vector<24x128xf32>
    %1582 = vector.broadcast %369 : f32 to vector<24x128xf32>
    %1583 = arith.mulf %1554, %1582 : vector<24x128xf32>
    %1584 = arith.addf %1530, %1583 : vector<24x128xf32>
    %1585 = vector.broadcast %401 : f32 to vector<24x128xf32>
    %1586 = arith.mulf %1554, %1585 : vector<24x128xf32>
    %1587 = arith.addf %1533, %1586 : vector<24x128xf32>
    %1588 = vector.broadcast %433 : f32 to vector<24x128xf32>
    %1589 = arith.mulf %1554, %1588 : vector<24x128xf32>
    %1590 = arith.addf %1536, %1589 : vector<24x128xf32>
    %1591 = vector.broadcast %465 : f32 to vector<24x128xf32>
    %1592 = arith.mulf %1554, %1591 : vector<24x128xf32>
    %1593 = arith.addf %1539, %1592 : vector<24x128xf32>
    %1594 = vector.broadcast %497 : f32 to vector<24x128xf32>
    %1595 = arith.mulf %1554, %1594 : vector<24x128xf32>
    %1596 = arith.addf %1542, %1595 : vector<24x128xf32>
    %1597 = vector.broadcast %529 : f32 to vector<24x128xf32>
    %1598 = arith.mulf %1554, %1597 : vector<24x128xf32>
    %1599 = arith.addf %1545, %1598 : vector<24x128xf32>
    %1600 = vector.broadcast %561 : f32 to vector<24x128xf32>
    %1601 = arith.mulf %1554, %1600 : vector<24x128xf32>
    %1602 = arith.addf %1548, %1601 : vector<24x128xf32>
    %1603 = vector.broadcast %18 : f32 to vector<24x128xf32>
    %1604 = arith.mulf %1603, %614 : vector<24x128xf32>
    %1605 = vector.broadcast %50 : f32 to vector<24x128xf32>
    %1606 = arith.addf %1604, %1605 : vector<24x128xf32>
    %cst_132 = arith.constant 0.000000e+00 : f32
    %1607 = vector.broadcast %cst_132 : f32 to vector<24x128xf32>
    %1608 = arith.maximumf %1606, %1607 : vector<24x128xf32>
    %1609 = vector.broadcast %82 : f32 to vector<24x128xf32>
    %1610 = arith.mulf %1608, %1609 : vector<24x128xf32>
    %1611 = arith.addf %1557, %1610 : vector<24x128xf32>
    %1612 = vector.broadcast %114 : f32 to vector<24x128xf32>
    %1613 = arith.mulf %1608, %1612 : vector<24x128xf32>
    %1614 = arith.addf %1560, %1613 : vector<24x128xf32>
    %1615 = vector.broadcast %146 : f32 to vector<24x128xf32>
    %1616 = arith.mulf %1608, %1615 : vector<24x128xf32>
    %1617 = arith.addf %1563, %1616 : vector<24x128xf32>
    %1618 = vector.broadcast %178 : f32 to vector<24x128xf32>
    %1619 = arith.mulf %1608, %1618 : vector<24x128xf32>
    %1620 = arith.addf %1566, %1619 : vector<24x128xf32>
    %1621 = vector.broadcast %210 : f32 to vector<24x128xf32>
    %1622 = arith.mulf %1608, %1621 : vector<24x128xf32>
    %1623 = arith.addf %1569, %1622 : vector<24x128xf32>
    %1624 = vector.broadcast %242 : f32 to vector<24x128xf32>
    %1625 = arith.mulf %1608, %1624 : vector<24x128xf32>
    %1626 = arith.addf %1572, %1625 : vector<24x128xf32>
    %1627 = vector.broadcast %274 : f32 to vector<24x128xf32>
    %1628 = arith.mulf %1608, %1627 : vector<24x128xf32>
    %1629 = arith.addf %1575, %1628 : vector<24x128xf32>
    %1630 = vector.broadcast %306 : f32 to vector<24x128xf32>
    %1631 = arith.mulf %1608, %1630 : vector<24x128xf32>
    %1632 = arith.addf %1578, %1631 : vector<24x128xf32>
    %1633 = vector.broadcast %338 : f32 to vector<24x128xf32>
    %1634 = arith.mulf %1608, %1633 : vector<24x128xf32>
    %1635 = arith.addf %1581, %1634 : vector<24x128xf32>
    %1636 = vector.broadcast %370 : f32 to vector<24x128xf32>
    %1637 = arith.mulf %1608, %1636 : vector<24x128xf32>
    %1638 = arith.addf %1584, %1637 : vector<24x128xf32>
    %1639 = vector.broadcast %402 : f32 to vector<24x128xf32>
    %1640 = arith.mulf %1608, %1639 : vector<24x128xf32>
    %1641 = arith.addf %1587, %1640 : vector<24x128xf32>
    %1642 = vector.broadcast %434 : f32 to vector<24x128xf32>
    %1643 = arith.mulf %1608, %1642 : vector<24x128xf32>
    %1644 = arith.addf %1590, %1643 : vector<24x128xf32>
    %1645 = vector.broadcast %466 : f32 to vector<24x128xf32>
    %1646 = arith.mulf %1608, %1645 : vector<24x128xf32>
    %1647 = arith.addf %1593, %1646 : vector<24x128xf32>
    %1648 = vector.broadcast %498 : f32 to vector<24x128xf32>
    %1649 = arith.mulf %1608, %1648 : vector<24x128xf32>
    %1650 = arith.addf %1596, %1649 : vector<24x128xf32>
    %1651 = vector.broadcast %530 : f32 to vector<24x128xf32>
    %1652 = arith.mulf %1608, %1651 : vector<24x128xf32>
    %1653 = arith.addf %1599, %1652 : vector<24x128xf32>
    %1654 = vector.broadcast %562 : f32 to vector<24x128xf32>
    %1655 = arith.mulf %1608, %1654 : vector<24x128xf32>
    %1656 = arith.addf %1602, %1655 : vector<24x128xf32>
    %1657 = vector.broadcast %19 : f32 to vector<24x128xf32>
    %1658 = arith.mulf %1657, %614 : vector<24x128xf32>
    %1659 = vector.broadcast %51 : f32 to vector<24x128xf32>
    %1660 = arith.addf %1658, %1659 : vector<24x128xf32>
    %cst_133 = arith.constant 0.000000e+00 : f32
    %1661 = vector.broadcast %cst_133 : f32 to vector<24x128xf32>
    %1662 = arith.maximumf %1660, %1661 : vector<24x128xf32>
    %1663 = vector.broadcast %83 : f32 to vector<24x128xf32>
    %1664 = arith.mulf %1662, %1663 : vector<24x128xf32>
    %1665 = arith.addf %1611, %1664 : vector<24x128xf32>
    %1666 = vector.broadcast %115 : f32 to vector<24x128xf32>
    %1667 = arith.mulf %1662, %1666 : vector<24x128xf32>
    %1668 = arith.addf %1614, %1667 : vector<24x128xf32>
    %1669 = vector.broadcast %147 : f32 to vector<24x128xf32>
    %1670 = arith.mulf %1662, %1669 : vector<24x128xf32>
    %1671 = arith.addf %1617, %1670 : vector<24x128xf32>
    %1672 = vector.broadcast %179 : f32 to vector<24x128xf32>
    %1673 = arith.mulf %1662, %1672 : vector<24x128xf32>
    %1674 = arith.addf %1620, %1673 : vector<24x128xf32>
    %1675 = vector.broadcast %211 : f32 to vector<24x128xf32>
    %1676 = arith.mulf %1662, %1675 : vector<24x128xf32>
    %1677 = arith.addf %1623, %1676 : vector<24x128xf32>
    %1678 = vector.broadcast %243 : f32 to vector<24x128xf32>
    %1679 = arith.mulf %1662, %1678 : vector<24x128xf32>
    %1680 = arith.addf %1626, %1679 : vector<24x128xf32>
    %1681 = vector.broadcast %275 : f32 to vector<24x128xf32>
    %1682 = arith.mulf %1662, %1681 : vector<24x128xf32>
    %1683 = arith.addf %1629, %1682 : vector<24x128xf32>
    %1684 = vector.broadcast %307 : f32 to vector<24x128xf32>
    %1685 = arith.mulf %1662, %1684 : vector<24x128xf32>
    %1686 = arith.addf %1632, %1685 : vector<24x128xf32>
    %1687 = vector.broadcast %339 : f32 to vector<24x128xf32>
    %1688 = arith.mulf %1662, %1687 : vector<24x128xf32>
    %1689 = arith.addf %1635, %1688 : vector<24x128xf32>
    %1690 = vector.broadcast %371 : f32 to vector<24x128xf32>
    %1691 = arith.mulf %1662, %1690 : vector<24x128xf32>
    %1692 = arith.addf %1638, %1691 : vector<24x128xf32>
    %1693 = vector.broadcast %403 : f32 to vector<24x128xf32>
    %1694 = arith.mulf %1662, %1693 : vector<24x128xf32>
    %1695 = arith.addf %1641, %1694 : vector<24x128xf32>
    %1696 = vector.broadcast %435 : f32 to vector<24x128xf32>
    %1697 = arith.mulf %1662, %1696 : vector<24x128xf32>
    %1698 = arith.addf %1644, %1697 : vector<24x128xf32>
    %1699 = vector.broadcast %467 : f32 to vector<24x128xf32>
    %1700 = arith.mulf %1662, %1699 : vector<24x128xf32>
    %1701 = arith.addf %1647, %1700 : vector<24x128xf32>
    %1702 = vector.broadcast %499 : f32 to vector<24x128xf32>
    %1703 = arith.mulf %1662, %1702 : vector<24x128xf32>
    %1704 = arith.addf %1650, %1703 : vector<24x128xf32>
    %1705 = vector.broadcast %531 : f32 to vector<24x128xf32>
    %1706 = arith.mulf %1662, %1705 : vector<24x128xf32>
    %1707 = arith.addf %1653, %1706 : vector<24x128xf32>
    %1708 = vector.broadcast %563 : f32 to vector<24x128xf32>
    %1709 = arith.mulf %1662, %1708 : vector<24x128xf32>
    %1710 = arith.addf %1656, %1709 : vector<24x128xf32>
    %1711 = vector.broadcast %20 : f32 to vector<24x128xf32>
    %1712 = arith.mulf %1711, %614 : vector<24x128xf32>
    %1713 = vector.broadcast %52 : f32 to vector<24x128xf32>
    %1714 = arith.addf %1712, %1713 : vector<24x128xf32>
    %cst_134 = arith.constant 0.000000e+00 : f32
    %1715 = vector.broadcast %cst_134 : f32 to vector<24x128xf32>
    %1716 = arith.maximumf %1714, %1715 : vector<24x128xf32>
    %1717 = vector.broadcast %84 : f32 to vector<24x128xf32>
    %1718 = arith.mulf %1716, %1717 : vector<24x128xf32>
    %1719 = arith.addf %1665, %1718 : vector<24x128xf32>
    %1720 = vector.broadcast %116 : f32 to vector<24x128xf32>
    %1721 = arith.mulf %1716, %1720 : vector<24x128xf32>
    %1722 = arith.addf %1668, %1721 : vector<24x128xf32>
    %1723 = vector.broadcast %148 : f32 to vector<24x128xf32>
    %1724 = arith.mulf %1716, %1723 : vector<24x128xf32>
    %1725 = arith.addf %1671, %1724 : vector<24x128xf32>
    %1726 = vector.broadcast %180 : f32 to vector<24x128xf32>
    %1727 = arith.mulf %1716, %1726 : vector<24x128xf32>
    %1728 = arith.addf %1674, %1727 : vector<24x128xf32>
    %1729 = vector.broadcast %212 : f32 to vector<24x128xf32>
    %1730 = arith.mulf %1716, %1729 : vector<24x128xf32>
    %1731 = arith.addf %1677, %1730 : vector<24x128xf32>
    %1732 = vector.broadcast %244 : f32 to vector<24x128xf32>
    %1733 = arith.mulf %1716, %1732 : vector<24x128xf32>
    %1734 = arith.addf %1680, %1733 : vector<24x128xf32>
    %1735 = vector.broadcast %276 : f32 to vector<24x128xf32>
    %1736 = arith.mulf %1716, %1735 : vector<24x128xf32>
    %1737 = arith.addf %1683, %1736 : vector<24x128xf32>
    %1738 = vector.broadcast %308 : f32 to vector<24x128xf32>
    %1739 = arith.mulf %1716, %1738 : vector<24x128xf32>
    %1740 = arith.addf %1686, %1739 : vector<24x128xf32>
    %1741 = vector.broadcast %340 : f32 to vector<24x128xf32>
    %1742 = arith.mulf %1716, %1741 : vector<24x128xf32>
    %1743 = arith.addf %1689, %1742 : vector<24x128xf32>
    %1744 = vector.broadcast %372 : f32 to vector<24x128xf32>
    %1745 = arith.mulf %1716, %1744 : vector<24x128xf32>
    %1746 = arith.addf %1692, %1745 : vector<24x128xf32>
    %1747 = vector.broadcast %404 : f32 to vector<24x128xf32>
    %1748 = arith.mulf %1716, %1747 : vector<24x128xf32>
    %1749 = arith.addf %1695, %1748 : vector<24x128xf32>
    %1750 = vector.broadcast %436 : f32 to vector<24x128xf32>
    %1751 = arith.mulf %1716, %1750 : vector<24x128xf32>
    %1752 = arith.addf %1698, %1751 : vector<24x128xf32>
    %1753 = vector.broadcast %468 : f32 to vector<24x128xf32>
    %1754 = arith.mulf %1716, %1753 : vector<24x128xf32>
    %1755 = arith.addf %1701, %1754 : vector<24x128xf32>
    %1756 = vector.broadcast %500 : f32 to vector<24x128xf32>
    %1757 = arith.mulf %1716, %1756 : vector<24x128xf32>
    %1758 = arith.addf %1704, %1757 : vector<24x128xf32>
    %1759 = vector.broadcast %532 : f32 to vector<24x128xf32>
    %1760 = arith.mulf %1716, %1759 : vector<24x128xf32>
    %1761 = arith.addf %1707, %1760 : vector<24x128xf32>
    %1762 = vector.broadcast %564 : f32 to vector<24x128xf32>
    %1763 = arith.mulf %1716, %1762 : vector<24x128xf32>
    %1764 = arith.addf %1710, %1763 : vector<24x128xf32>
    %1765 = vector.broadcast %21 : f32 to vector<24x128xf32>
    %1766 = arith.mulf %1765, %614 : vector<24x128xf32>
    %1767 = vector.broadcast %53 : f32 to vector<24x128xf32>
    %1768 = arith.addf %1766, %1767 : vector<24x128xf32>
    %cst_135 = arith.constant 0.000000e+00 : f32
    %1769 = vector.broadcast %cst_135 : f32 to vector<24x128xf32>
    %1770 = arith.maximumf %1768, %1769 : vector<24x128xf32>
    %1771 = vector.broadcast %85 : f32 to vector<24x128xf32>
    %1772 = arith.mulf %1770, %1771 : vector<24x128xf32>
    %1773 = arith.addf %1719, %1772 : vector<24x128xf32>
    %1774 = vector.broadcast %117 : f32 to vector<24x128xf32>
    %1775 = arith.mulf %1770, %1774 : vector<24x128xf32>
    %1776 = arith.addf %1722, %1775 : vector<24x128xf32>
    %1777 = vector.broadcast %149 : f32 to vector<24x128xf32>
    %1778 = arith.mulf %1770, %1777 : vector<24x128xf32>
    %1779 = arith.addf %1725, %1778 : vector<24x128xf32>
    %1780 = vector.broadcast %181 : f32 to vector<24x128xf32>
    %1781 = arith.mulf %1770, %1780 : vector<24x128xf32>
    %1782 = arith.addf %1728, %1781 : vector<24x128xf32>
    %1783 = vector.broadcast %213 : f32 to vector<24x128xf32>
    %1784 = arith.mulf %1770, %1783 : vector<24x128xf32>
    %1785 = arith.addf %1731, %1784 : vector<24x128xf32>
    %1786 = vector.broadcast %245 : f32 to vector<24x128xf32>
    %1787 = arith.mulf %1770, %1786 : vector<24x128xf32>
    %1788 = arith.addf %1734, %1787 : vector<24x128xf32>
    %1789 = vector.broadcast %277 : f32 to vector<24x128xf32>
    %1790 = arith.mulf %1770, %1789 : vector<24x128xf32>
    %1791 = arith.addf %1737, %1790 : vector<24x128xf32>
    %1792 = vector.broadcast %309 : f32 to vector<24x128xf32>
    %1793 = arith.mulf %1770, %1792 : vector<24x128xf32>
    %1794 = arith.addf %1740, %1793 : vector<24x128xf32>
    %1795 = vector.broadcast %341 : f32 to vector<24x128xf32>
    %1796 = arith.mulf %1770, %1795 : vector<24x128xf32>
    %1797 = arith.addf %1743, %1796 : vector<24x128xf32>
    %1798 = vector.broadcast %373 : f32 to vector<24x128xf32>
    %1799 = arith.mulf %1770, %1798 : vector<24x128xf32>
    %1800 = arith.addf %1746, %1799 : vector<24x128xf32>
    %1801 = vector.broadcast %405 : f32 to vector<24x128xf32>
    %1802 = arith.mulf %1770, %1801 : vector<24x128xf32>
    %1803 = arith.addf %1749, %1802 : vector<24x128xf32>
    %1804 = vector.broadcast %437 : f32 to vector<24x128xf32>
    %1805 = arith.mulf %1770, %1804 : vector<24x128xf32>
    %1806 = arith.addf %1752, %1805 : vector<24x128xf32>
    %1807 = vector.broadcast %469 : f32 to vector<24x128xf32>
    %1808 = arith.mulf %1770, %1807 : vector<24x128xf32>
    %1809 = arith.addf %1755, %1808 : vector<24x128xf32>
    %1810 = vector.broadcast %501 : f32 to vector<24x128xf32>
    %1811 = arith.mulf %1770, %1810 : vector<24x128xf32>
    %1812 = arith.addf %1758, %1811 : vector<24x128xf32>
    %1813 = vector.broadcast %533 : f32 to vector<24x128xf32>
    %1814 = arith.mulf %1770, %1813 : vector<24x128xf32>
    %1815 = arith.addf %1761, %1814 : vector<24x128xf32>
    %1816 = vector.broadcast %565 : f32 to vector<24x128xf32>
    %1817 = arith.mulf %1770, %1816 : vector<24x128xf32>
    %1818 = arith.addf %1764, %1817 : vector<24x128xf32>
    %1819 = vector.broadcast %22 : f32 to vector<24x128xf32>
    %1820 = arith.mulf %1819, %614 : vector<24x128xf32>
    %1821 = vector.broadcast %54 : f32 to vector<24x128xf32>
    %1822 = arith.addf %1820, %1821 : vector<24x128xf32>
    %cst_136 = arith.constant 0.000000e+00 : f32
    %1823 = vector.broadcast %cst_136 : f32 to vector<24x128xf32>
    %1824 = arith.maximumf %1822, %1823 : vector<24x128xf32>
    %1825 = vector.broadcast %86 : f32 to vector<24x128xf32>
    %1826 = arith.mulf %1824, %1825 : vector<24x128xf32>
    %1827 = arith.addf %1773, %1826 : vector<24x128xf32>
    %1828 = vector.broadcast %118 : f32 to vector<24x128xf32>
    %1829 = arith.mulf %1824, %1828 : vector<24x128xf32>
    %1830 = arith.addf %1776, %1829 : vector<24x128xf32>
    %1831 = vector.broadcast %150 : f32 to vector<24x128xf32>
    %1832 = arith.mulf %1824, %1831 : vector<24x128xf32>
    %1833 = arith.addf %1779, %1832 : vector<24x128xf32>
    %1834 = vector.broadcast %182 : f32 to vector<24x128xf32>
    %1835 = arith.mulf %1824, %1834 : vector<24x128xf32>
    %1836 = arith.addf %1782, %1835 : vector<24x128xf32>
    %1837 = vector.broadcast %214 : f32 to vector<24x128xf32>
    %1838 = arith.mulf %1824, %1837 : vector<24x128xf32>
    %1839 = arith.addf %1785, %1838 : vector<24x128xf32>
    %1840 = vector.broadcast %246 : f32 to vector<24x128xf32>
    %1841 = arith.mulf %1824, %1840 : vector<24x128xf32>
    %1842 = arith.addf %1788, %1841 : vector<24x128xf32>
    %1843 = vector.broadcast %278 : f32 to vector<24x128xf32>
    %1844 = arith.mulf %1824, %1843 : vector<24x128xf32>
    %1845 = arith.addf %1791, %1844 : vector<24x128xf32>
    %1846 = vector.broadcast %310 : f32 to vector<24x128xf32>
    %1847 = arith.mulf %1824, %1846 : vector<24x128xf32>
    %1848 = arith.addf %1794, %1847 : vector<24x128xf32>
    %1849 = vector.broadcast %342 : f32 to vector<24x128xf32>
    %1850 = arith.mulf %1824, %1849 : vector<24x128xf32>
    %1851 = arith.addf %1797, %1850 : vector<24x128xf32>
    %1852 = vector.broadcast %374 : f32 to vector<24x128xf32>
    %1853 = arith.mulf %1824, %1852 : vector<24x128xf32>
    %1854 = arith.addf %1800, %1853 : vector<24x128xf32>
    %1855 = vector.broadcast %406 : f32 to vector<24x128xf32>
    %1856 = arith.mulf %1824, %1855 : vector<24x128xf32>
    %1857 = arith.addf %1803, %1856 : vector<24x128xf32>
    %1858 = vector.broadcast %438 : f32 to vector<24x128xf32>
    %1859 = arith.mulf %1824, %1858 : vector<24x128xf32>
    %1860 = arith.addf %1806, %1859 : vector<24x128xf32>
    %1861 = vector.broadcast %470 : f32 to vector<24x128xf32>
    %1862 = arith.mulf %1824, %1861 : vector<24x128xf32>
    %1863 = arith.addf %1809, %1862 : vector<24x128xf32>
    %1864 = vector.broadcast %502 : f32 to vector<24x128xf32>
    %1865 = arith.mulf %1824, %1864 : vector<24x128xf32>
    %1866 = arith.addf %1812, %1865 : vector<24x128xf32>
    %1867 = vector.broadcast %534 : f32 to vector<24x128xf32>
    %1868 = arith.mulf %1824, %1867 : vector<24x128xf32>
    %1869 = arith.addf %1815, %1868 : vector<24x128xf32>
    %1870 = vector.broadcast %566 : f32 to vector<24x128xf32>
    %1871 = arith.mulf %1824, %1870 : vector<24x128xf32>
    %1872 = arith.addf %1818, %1871 : vector<24x128xf32>
    %1873 = vector.broadcast %23 : f32 to vector<24x128xf32>
    %1874 = arith.mulf %1873, %614 : vector<24x128xf32>
    %1875 = vector.broadcast %55 : f32 to vector<24x128xf32>
    %1876 = arith.addf %1874, %1875 : vector<24x128xf32>
    %cst_137 = arith.constant 0.000000e+00 : f32
    %1877 = vector.broadcast %cst_137 : f32 to vector<24x128xf32>
    %1878 = arith.maximumf %1876, %1877 : vector<24x128xf32>
    %1879 = vector.broadcast %87 : f32 to vector<24x128xf32>
    %1880 = arith.mulf %1878, %1879 : vector<24x128xf32>
    %1881 = arith.addf %1827, %1880 : vector<24x128xf32>
    %1882 = vector.broadcast %119 : f32 to vector<24x128xf32>
    %1883 = arith.mulf %1878, %1882 : vector<24x128xf32>
    %1884 = arith.addf %1830, %1883 : vector<24x128xf32>
    %1885 = vector.broadcast %151 : f32 to vector<24x128xf32>
    %1886 = arith.mulf %1878, %1885 : vector<24x128xf32>
    %1887 = arith.addf %1833, %1886 : vector<24x128xf32>
    %1888 = vector.broadcast %183 : f32 to vector<24x128xf32>
    %1889 = arith.mulf %1878, %1888 : vector<24x128xf32>
    %1890 = arith.addf %1836, %1889 : vector<24x128xf32>
    %1891 = vector.broadcast %215 : f32 to vector<24x128xf32>
    %1892 = arith.mulf %1878, %1891 : vector<24x128xf32>
    %1893 = arith.addf %1839, %1892 : vector<24x128xf32>
    %1894 = vector.broadcast %247 : f32 to vector<24x128xf32>
    %1895 = arith.mulf %1878, %1894 : vector<24x128xf32>
    %1896 = arith.addf %1842, %1895 : vector<24x128xf32>
    %1897 = vector.broadcast %279 : f32 to vector<24x128xf32>
    %1898 = arith.mulf %1878, %1897 : vector<24x128xf32>
    %1899 = arith.addf %1845, %1898 : vector<24x128xf32>
    %1900 = vector.broadcast %311 : f32 to vector<24x128xf32>
    %1901 = arith.mulf %1878, %1900 : vector<24x128xf32>
    %1902 = arith.addf %1848, %1901 : vector<24x128xf32>
    %1903 = vector.broadcast %343 : f32 to vector<24x128xf32>
    %1904 = arith.mulf %1878, %1903 : vector<24x128xf32>
    %1905 = arith.addf %1851, %1904 : vector<24x128xf32>
    %1906 = vector.broadcast %375 : f32 to vector<24x128xf32>
    %1907 = arith.mulf %1878, %1906 : vector<24x128xf32>
    %1908 = arith.addf %1854, %1907 : vector<24x128xf32>
    %1909 = vector.broadcast %407 : f32 to vector<24x128xf32>
    %1910 = arith.mulf %1878, %1909 : vector<24x128xf32>
    %1911 = arith.addf %1857, %1910 : vector<24x128xf32>
    %1912 = vector.broadcast %439 : f32 to vector<24x128xf32>
    %1913 = arith.mulf %1878, %1912 : vector<24x128xf32>
    %1914 = arith.addf %1860, %1913 : vector<24x128xf32>
    %1915 = vector.broadcast %471 : f32 to vector<24x128xf32>
    %1916 = arith.mulf %1878, %1915 : vector<24x128xf32>
    %1917 = arith.addf %1863, %1916 : vector<24x128xf32>
    %1918 = vector.broadcast %503 : f32 to vector<24x128xf32>
    %1919 = arith.mulf %1878, %1918 : vector<24x128xf32>
    %1920 = arith.addf %1866, %1919 : vector<24x128xf32>
    %1921 = vector.broadcast %535 : f32 to vector<24x128xf32>
    %1922 = arith.mulf %1878, %1921 : vector<24x128xf32>
    %1923 = arith.addf %1869, %1922 : vector<24x128xf32>
    %1924 = vector.broadcast %567 : f32 to vector<24x128xf32>
    %1925 = arith.mulf %1878, %1924 : vector<24x128xf32>
    %1926 = arith.addf %1872, %1925 : vector<24x128xf32>
    %1927 = vector.broadcast %24 : f32 to vector<24x128xf32>
    %1928 = arith.mulf %1927, %614 : vector<24x128xf32>
    %1929 = vector.broadcast %56 : f32 to vector<24x128xf32>
    %1930 = arith.addf %1928, %1929 : vector<24x128xf32>
    %cst_138 = arith.constant 0.000000e+00 : f32
    %1931 = vector.broadcast %cst_138 : f32 to vector<24x128xf32>
    %1932 = arith.maximumf %1930, %1931 : vector<24x128xf32>
    %1933 = vector.broadcast %88 : f32 to vector<24x128xf32>
    %1934 = arith.mulf %1932, %1933 : vector<24x128xf32>
    %1935 = arith.addf %1881, %1934 : vector<24x128xf32>
    %1936 = vector.broadcast %120 : f32 to vector<24x128xf32>
    %1937 = arith.mulf %1932, %1936 : vector<24x128xf32>
    %1938 = arith.addf %1884, %1937 : vector<24x128xf32>
    %1939 = vector.broadcast %152 : f32 to vector<24x128xf32>
    %1940 = arith.mulf %1932, %1939 : vector<24x128xf32>
    %1941 = arith.addf %1887, %1940 : vector<24x128xf32>
    %1942 = vector.broadcast %184 : f32 to vector<24x128xf32>
    %1943 = arith.mulf %1932, %1942 : vector<24x128xf32>
    %1944 = arith.addf %1890, %1943 : vector<24x128xf32>
    %1945 = vector.broadcast %216 : f32 to vector<24x128xf32>
    %1946 = arith.mulf %1932, %1945 : vector<24x128xf32>
    %1947 = arith.addf %1893, %1946 : vector<24x128xf32>
    %1948 = vector.broadcast %248 : f32 to vector<24x128xf32>
    %1949 = arith.mulf %1932, %1948 : vector<24x128xf32>
    %1950 = arith.addf %1896, %1949 : vector<24x128xf32>
    %1951 = vector.broadcast %280 : f32 to vector<24x128xf32>
    %1952 = arith.mulf %1932, %1951 : vector<24x128xf32>
    %1953 = arith.addf %1899, %1952 : vector<24x128xf32>
    %1954 = vector.broadcast %312 : f32 to vector<24x128xf32>
    %1955 = arith.mulf %1932, %1954 : vector<24x128xf32>
    %1956 = arith.addf %1902, %1955 : vector<24x128xf32>
    %1957 = vector.broadcast %344 : f32 to vector<24x128xf32>
    %1958 = arith.mulf %1932, %1957 : vector<24x128xf32>
    %1959 = arith.addf %1905, %1958 : vector<24x128xf32>
    %1960 = vector.broadcast %376 : f32 to vector<24x128xf32>
    %1961 = arith.mulf %1932, %1960 : vector<24x128xf32>
    %1962 = arith.addf %1908, %1961 : vector<24x128xf32>
    %1963 = vector.broadcast %408 : f32 to vector<24x128xf32>
    %1964 = arith.mulf %1932, %1963 : vector<24x128xf32>
    %1965 = arith.addf %1911, %1964 : vector<24x128xf32>
    %1966 = vector.broadcast %440 : f32 to vector<24x128xf32>
    %1967 = arith.mulf %1932, %1966 : vector<24x128xf32>
    %1968 = arith.addf %1914, %1967 : vector<24x128xf32>
    %1969 = vector.broadcast %472 : f32 to vector<24x128xf32>
    %1970 = arith.mulf %1932, %1969 : vector<24x128xf32>
    %1971 = arith.addf %1917, %1970 : vector<24x128xf32>
    %1972 = vector.broadcast %504 : f32 to vector<24x128xf32>
    %1973 = arith.mulf %1932, %1972 : vector<24x128xf32>
    %1974 = arith.addf %1920, %1973 : vector<24x128xf32>
    %1975 = vector.broadcast %536 : f32 to vector<24x128xf32>
    %1976 = arith.mulf %1932, %1975 : vector<24x128xf32>
    %1977 = arith.addf %1923, %1976 : vector<24x128xf32>
    %1978 = vector.broadcast %568 : f32 to vector<24x128xf32>
    %1979 = arith.mulf %1932, %1978 : vector<24x128xf32>
    %1980 = arith.addf %1926, %1979 : vector<24x128xf32>
    %1981 = vector.broadcast %25 : f32 to vector<24x128xf32>
    %1982 = arith.mulf %1981, %614 : vector<24x128xf32>
    %1983 = vector.broadcast %57 : f32 to vector<24x128xf32>
    %1984 = arith.addf %1982, %1983 : vector<24x128xf32>
    %cst_139 = arith.constant 0.000000e+00 : f32
    %1985 = vector.broadcast %cst_139 : f32 to vector<24x128xf32>
    %1986 = arith.maximumf %1984, %1985 : vector<24x128xf32>
    %1987 = vector.broadcast %89 : f32 to vector<24x128xf32>
    %1988 = arith.mulf %1986, %1987 : vector<24x128xf32>
    %1989 = arith.addf %1935, %1988 : vector<24x128xf32>
    %1990 = vector.broadcast %121 : f32 to vector<24x128xf32>
    %1991 = arith.mulf %1986, %1990 : vector<24x128xf32>
    %1992 = arith.addf %1938, %1991 : vector<24x128xf32>
    %1993 = vector.broadcast %153 : f32 to vector<24x128xf32>
    %1994 = arith.mulf %1986, %1993 : vector<24x128xf32>
    %1995 = arith.addf %1941, %1994 : vector<24x128xf32>
    %1996 = vector.broadcast %185 : f32 to vector<24x128xf32>
    %1997 = arith.mulf %1986, %1996 : vector<24x128xf32>
    %1998 = arith.addf %1944, %1997 : vector<24x128xf32>
    %1999 = vector.broadcast %217 : f32 to vector<24x128xf32>
    %2000 = arith.mulf %1986, %1999 : vector<24x128xf32>
    %2001 = arith.addf %1947, %2000 : vector<24x128xf32>
    %2002 = vector.broadcast %249 : f32 to vector<24x128xf32>
    %2003 = arith.mulf %1986, %2002 : vector<24x128xf32>
    %2004 = arith.addf %1950, %2003 : vector<24x128xf32>
    %2005 = vector.broadcast %281 : f32 to vector<24x128xf32>
    %2006 = arith.mulf %1986, %2005 : vector<24x128xf32>
    %2007 = arith.addf %1953, %2006 : vector<24x128xf32>
    %2008 = vector.broadcast %313 : f32 to vector<24x128xf32>
    %2009 = arith.mulf %1986, %2008 : vector<24x128xf32>
    %2010 = arith.addf %1956, %2009 : vector<24x128xf32>
    %2011 = vector.broadcast %345 : f32 to vector<24x128xf32>
    %2012 = arith.mulf %1986, %2011 : vector<24x128xf32>
    %2013 = arith.addf %1959, %2012 : vector<24x128xf32>
    %2014 = vector.broadcast %377 : f32 to vector<24x128xf32>
    %2015 = arith.mulf %1986, %2014 : vector<24x128xf32>
    %2016 = arith.addf %1962, %2015 : vector<24x128xf32>
    %2017 = vector.broadcast %409 : f32 to vector<24x128xf32>
    %2018 = arith.mulf %1986, %2017 : vector<24x128xf32>
    %2019 = arith.addf %1965, %2018 : vector<24x128xf32>
    %2020 = vector.broadcast %441 : f32 to vector<24x128xf32>
    %2021 = arith.mulf %1986, %2020 : vector<24x128xf32>
    %2022 = arith.addf %1968, %2021 : vector<24x128xf32>
    %2023 = vector.broadcast %473 : f32 to vector<24x128xf32>
    %2024 = arith.mulf %1986, %2023 : vector<24x128xf32>
    %2025 = arith.addf %1971, %2024 : vector<24x128xf32>
    %2026 = vector.broadcast %505 : f32 to vector<24x128xf32>
    %2027 = arith.mulf %1986, %2026 : vector<24x128xf32>
    %2028 = arith.addf %1974, %2027 : vector<24x128xf32>
    %2029 = vector.broadcast %537 : f32 to vector<24x128xf32>
    %2030 = arith.mulf %1986, %2029 : vector<24x128xf32>
    %2031 = arith.addf %1977, %2030 : vector<24x128xf32>
    %2032 = vector.broadcast %569 : f32 to vector<24x128xf32>
    %2033 = arith.mulf %1986, %2032 : vector<24x128xf32>
    %2034 = arith.addf %1980, %2033 : vector<24x128xf32>
    %2035 = vector.broadcast %26 : f32 to vector<24x128xf32>
    %2036 = arith.mulf %2035, %614 : vector<24x128xf32>
    %2037 = vector.broadcast %58 : f32 to vector<24x128xf32>
    %2038 = arith.addf %2036, %2037 : vector<24x128xf32>
    %cst_140 = arith.constant 0.000000e+00 : f32
    %2039 = vector.broadcast %cst_140 : f32 to vector<24x128xf32>
    %2040 = arith.maximumf %2038, %2039 : vector<24x128xf32>
    %2041 = vector.broadcast %90 : f32 to vector<24x128xf32>
    %2042 = arith.mulf %2040, %2041 : vector<24x128xf32>
    %2043 = arith.addf %1989, %2042 : vector<24x128xf32>
    %2044 = vector.broadcast %122 : f32 to vector<24x128xf32>
    %2045 = arith.mulf %2040, %2044 : vector<24x128xf32>
    %2046 = arith.addf %1992, %2045 : vector<24x128xf32>
    %2047 = vector.broadcast %154 : f32 to vector<24x128xf32>
    %2048 = arith.mulf %2040, %2047 : vector<24x128xf32>
    %2049 = arith.addf %1995, %2048 : vector<24x128xf32>
    %2050 = vector.broadcast %186 : f32 to vector<24x128xf32>
    %2051 = arith.mulf %2040, %2050 : vector<24x128xf32>
    %2052 = arith.addf %1998, %2051 : vector<24x128xf32>
    %2053 = vector.broadcast %218 : f32 to vector<24x128xf32>
    %2054 = arith.mulf %2040, %2053 : vector<24x128xf32>
    %2055 = arith.addf %2001, %2054 : vector<24x128xf32>
    %2056 = vector.broadcast %250 : f32 to vector<24x128xf32>
    %2057 = arith.mulf %2040, %2056 : vector<24x128xf32>
    %2058 = arith.addf %2004, %2057 : vector<24x128xf32>
    %2059 = vector.broadcast %282 : f32 to vector<24x128xf32>
    %2060 = arith.mulf %2040, %2059 : vector<24x128xf32>
    %2061 = arith.addf %2007, %2060 : vector<24x128xf32>
    %2062 = vector.broadcast %314 : f32 to vector<24x128xf32>
    %2063 = arith.mulf %2040, %2062 : vector<24x128xf32>
    %2064 = arith.addf %2010, %2063 : vector<24x128xf32>
    %2065 = vector.broadcast %346 : f32 to vector<24x128xf32>
    %2066 = arith.mulf %2040, %2065 : vector<24x128xf32>
    %2067 = arith.addf %2013, %2066 : vector<24x128xf32>
    %2068 = vector.broadcast %378 : f32 to vector<24x128xf32>
    %2069 = arith.mulf %2040, %2068 : vector<24x128xf32>
    %2070 = arith.addf %2016, %2069 : vector<24x128xf32>
    %2071 = vector.broadcast %410 : f32 to vector<24x128xf32>
    %2072 = arith.mulf %2040, %2071 : vector<24x128xf32>
    %2073 = arith.addf %2019, %2072 : vector<24x128xf32>
    %2074 = vector.broadcast %442 : f32 to vector<24x128xf32>
    %2075 = arith.mulf %2040, %2074 : vector<24x128xf32>
    %2076 = arith.addf %2022, %2075 : vector<24x128xf32>
    %2077 = vector.broadcast %474 : f32 to vector<24x128xf32>
    %2078 = arith.mulf %2040, %2077 : vector<24x128xf32>
    %2079 = arith.addf %2025, %2078 : vector<24x128xf32>
    %2080 = vector.broadcast %506 : f32 to vector<24x128xf32>
    %2081 = arith.mulf %2040, %2080 : vector<24x128xf32>
    %2082 = arith.addf %2028, %2081 : vector<24x128xf32>
    %2083 = vector.broadcast %538 : f32 to vector<24x128xf32>
    %2084 = arith.mulf %2040, %2083 : vector<24x128xf32>
    %2085 = arith.addf %2031, %2084 : vector<24x128xf32>
    %2086 = vector.broadcast %570 : f32 to vector<24x128xf32>
    %2087 = arith.mulf %2040, %2086 : vector<24x128xf32>
    %2088 = arith.addf %2034, %2087 : vector<24x128xf32>
    %2089 = vector.broadcast %27 : f32 to vector<24x128xf32>
    %2090 = arith.mulf %2089, %614 : vector<24x128xf32>
    %2091 = vector.broadcast %59 : f32 to vector<24x128xf32>
    %2092 = arith.addf %2090, %2091 : vector<24x128xf32>
    %cst_141 = arith.constant 0.000000e+00 : f32
    %2093 = vector.broadcast %cst_141 : f32 to vector<24x128xf32>
    %2094 = arith.maximumf %2092, %2093 : vector<24x128xf32>
    %2095 = vector.broadcast %91 : f32 to vector<24x128xf32>
    %2096 = arith.mulf %2094, %2095 : vector<24x128xf32>
    %2097 = arith.addf %2043, %2096 : vector<24x128xf32>
    %2098 = vector.broadcast %123 : f32 to vector<24x128xf32>
    %2099 = arith.mulf %2094, %2098 : vector<24x128xf32>
    %2100 = arith.addf %2046, %2099 : vector<24x128xf32>
    %2101 = vector.broadcast %155 : f32 to vector<24x128xf32>
    %2102 = arith.mulf %2094, %2101 : vector<24x128xf32>
    %2103 = arith.addf %2049, %2102 : vector<24x128xf32>
    %2104 = vector.broadcast %187 : f32 to vector<24x128xf32>
    %2105 = arith.mulf %2094, %2104 : vector<24x128xf32>
    %2106 = arith.addf %2052, %2105 : vector<24x128xf32>
    %2107 = vector.broadcast %219 : f32 to vector<24x128xf32>
    %2108 = arith.mulf %2094, %2107 : vector<24x128xf32>
    %2109 = arith.addf %2055, %2108 : vector<24x128xf32>
    %2110 = vector.broadcast %251 : f32 to vector<24x128xf32>
    %2111 = arith.mulf %2094, %2110 : vector<24x128xf32>
    %2112 = arith.addf %2058, %2111 : vector<24x128xf32>
    %2113 = vector.broadcast %283 : f32 to vector<24x128xf32>
    %2114 = arith.mulf %2094, %2113 : vector<24x128xf32>
    %2115 = arith.addf %2061, %2114 : vector<24x128xf32>
    %2116 = vector.broadcast %315 : f32 to vector<24x128xf32>
    %2117 = arith.mulf %2094, %2116 : vector<24x128xf32>
    %2118 = arith.addf %2064, %2117 : vector<24x128xf32>
    %2119 = vector.broadcast %347 : f32 to vector<24x128xf32>
    %2120 = arith.mulf %2094, %2119 : vector<24x128xf32>
    %2121 = arith.addf %2067, %2120 : vector<24x128xf32>
    %2122 = vector.broadcast %379 : f32 to vector<24x128xf32>
    %2123 = arith.mulf %2094, %2122 : vector<24x128xf32>
    %2124 = arith.addf %2070, %2123 : vector<24x128xf32>
    %2125 = vector.broadcast %411 : f32 to vector<24x128xf32>
    %2126 = arith.mulf %2094, %2125 : vector<24x128xf32>
    %2127 = arith.addf %2073, %2126 : vector<24x128xf32>
    %2128 = vector.broadcast %443 : f32 to vector<24x128xf32>
    %2129 = arith.mulf %2094, %2128 : vector<24x128xf32>
    %2130 = arith.addf %2076, %2129 : vector<24x128xf32>
    %2131 = vector.broadcast %475 : f32 to vector<24x128xf32>
    %2132 = arith.mulf %2094, %2131 : vector<24x128xf32>
    %2133 = arith.addf %2079, %2132 : vector<24x128xf32>
    %2134 = vector.broadcast %507 : f32 to vector<24x128xf32>
    %2135 = arith.mulf %2094, %2134 : vector<24x128xf32>
    %2136 = arith.addf %2082, %2135 : vector<24x128xf32>
    %2137 = vector.broadcast %539 : f32 to vector<24x128xf32>
    %2138 = arith.mulf %2094, %2137 : vector<24x128xf32>
    %2139 = arith.addf %2085, %2138 : vector<24x128xf32>
    %2140 = vector.broadcast %571 : f32 to vector<24x128xf32>
    %2141 = arith.mulf %2094, %2140 : vector<24x128xf32>
    %2142 = arith.addf %2088, %2141 : vector<24x128xf32>
    %2143 = vector.broadcast %28 : f32 to vector<24x128xf32>
    %2144 = arith.mulf %2143, %614 : vector<24x128xf32>
    %2145 = vector.broadcast %60 : f32 to vector<24x128xf32>
    %2146 = arith.addf %2144, %2145 : vector<24x128xf32>
    %cst_142 = arith.constant 0.000000e+00 : f32
    %2147 = vector.broadcast %cst_142 : f32 to vector<24x128xf32>
    %2148 = arith.maximumf %2146, %2147 : vector<24x128xf32>
    %2149 = vector.broadcast %92 : f32 to vector<24x128xf32>
    %2150 = arith.mulf %2148, %2149 : vector<24x128xf32>
    %2151 = arith.addf %2097, %2150 : vector<24x128xf32>
    %2152 = vector.broadcast %124 : f32 to vector<24x128xf32>
    %2153 = arith.mulf %2148, %2152 : vector<24x128xf32>
    %2154 = arith.addf %2100, %2153 : vector<24x128xf32>
    %2155 = vector.broadcast %156 : f32 to vector<24x128xf32>
    %2156 = arith.mulf %2148, %2155 : vector<24x128xf32>
    %2157 = arith.addf %2103, %2156 : vector<24x128xf32>
    %2158 = vector.broadcast %188 : f32 to vector<24x128xf32>
    %2159 = arith.mulf %2148, %2158 : vector<24x128xf32>
    %2160 = arith.addf %2106, %2159 : vector<24x128xf32>
    %2161 = vector.broadcast %220 : f32 to vector<24x128xf32>
    %2162 = arith.mulf %2148, %2161 : vector<24x128xf32>
    %2163 = arith.addf %2109, %2162 : vector<24x128xf32>
    %2164 = vector.broadcast %252 : f32 to vector<24x128xf32>
    %2165 = arith.mulf %2148, %2164 : vector<24x128xf32>
    %2166 = arith.addf %2112, %2165 : vector<24x128xf32>
    %2167 = vector.broadcast %284 : f32 to vector<24x128xf32>
    %2168 = arith.mulf %2148, %2167 : vector<24x128xf32>
    %2169 = arith.addf %2115, %2168 : vector<24x128xf32>
    %2170 = vector.broadcast %316 : f32 to vector<24x128xf32>
    %2171 = arith.mulf %2148, %2170 : vector<24x128xf32>
    %2172 = arith.addf %2118, %2171 : vector<24x128xf32>
    %2173 = vector.broadcast %348 : f32 to vector<24x128xf32>
    %2174 = arith.mulf %2148, %2173 : vector<24x128xf32>
    %2175 = arith.addf %2121, %2174 : vector<24x128xf32>
    %2176 = vector.broadcast %380 : f32 to vector<24x128xf32>
    %2177 = arith.mulf %2148, %2176 : vector<24x128xf32>
    %2178 = arith.addf %2124, %2177 : vector<24x128xf32>
    %2179 = vector.broadcast %412 : f32 to vector<24x128xf32>
    %2180 = arith.mulf %2148, %2179 : vector<24x128xf32>
    %2181 = arith.addf %2127, %2180 : vector<24x128xf32>
    %2182 = vector.broadcast %444 : f32 to vector<24x128xf32>
    %2183 = arith.mulf %2148, %2182 : vector<24x128xf32>
    %2184 = arith.addf %2130, %2183 : vector<24x128xf32>
    %2185 = vector.broadcast %476 : f32 to vector<24x128xf32>
    %2186 = arith.mulf %2148, %2185 : vector<24x128xf32>
    %2187 = arith.addf %2133, %2186 : vector<24x128xf32>
    %2188 = vector.broadcast %508 : f32 to vector<24x128xf32>
    %2189 = arith.mulf %2148, %2188 : vector<24x128xf32>
    %2190 = arith.addf %2136, %2189 : vector<24x128xf32>
    %2191 = vector.broadcast %540 : f32 to vector<24x128xf32>
    %2192 = arith.mulf %2148, %2191 : vector<24x128xf32>
    %2193 = arith.addf %2139, %2192 : vector<24x128xf32>
    %2194 = vector.broadcast %572 : f32 to vector<24x128xf32>
    %2195 = arith.mulf %2148, %2194 : vector<24x128xf32>
    %2196 = arith.addf %2142, %2195 : vector<24x128xf32>
    %2197 = vector.broadcast %29 : f32 to vector<24x128xf32>
    %2198 = arith.mulf %2197, %614 : vector<24x128xf32>
    %2199 = vector.broadcast %61 : f32 to vector<24x128xf32>
    %2200 = arith.addf %2198, %2199 : vector<24x128xf32>
    %cst_143 = arith.constant 0.000000e+00 : f32
    %2201 = vector.broadcast %cst_143 : f32 to vector<24x128xf32>
    %2202 = arith.maximumf %2200, %2201 : vector<24x128xf32>
    %2203 = vector.broadcast %93 : f32 to vector<24x128xf32>
    %2204 = arith.mulf %2202, %2203 : vector<24x128xf32>
    %2205 = arith.addf %2151, %2204 : vector<24x128xf32>
    %2206 = vector.broadcast %125 : f32 to vector<24x128xf32>
    %2207 = arith.mulf %2202, %2206 : vector<24x128xf32>
    %2208 = arith.addf %2154, %2207 : vector<24x128xf32>
    %2209 = vector.broadcast %157 : f32 to vector<24x128xf32>
    %2210 = arith.mulf %2202, %2209 : vector<24x128xf32>
    %2211 = arith.addf %2157, %2210 : vector<24x128xf32>
    %2212 = vector.broadcast %189 : f32 to vector<24x128xf32>
    %2213 = arith.mulf %2202, %2212 : vector<24x128xf32>
    %2214 = arith.addf %2160, %2213 : vector<24x128xf32>
    %2215 = vector.broadcast %221 : f32 to vector<24x128xf32>
    %2216 = arith.mulf %2202, %2215 : vector<24x128xf32>
    %2217 = arith.addf %2163, %2216 : vector<24x128xf32>
    %2218 = vector.broadcast %253 : f32 to vector<24x128xf32>
    %2219 = arith.mulf %2202, %2218 : vector<24x128xf32>
    %2220 = arith.addf %2166, %2219 : vector<24x128xf32>
    %2221 = vector.broadcast %285 : f32 to vector<24x128xf32>
    %2222 = arith.mulf %2202, %2221 : vector<24x128xf32>
    %2223 = arith.addf %2169, %2222 : vector<24x128xf32>
    %2224 = vector.broadcast %317 : f32 to vector<24x128xf32>
    %2225 = arith.mulf %2202, %2224 : vector<24x128xf32>
    %2226 = arith.addf %2172, %2225 : vector<24x128xf32>
    %2227 = vector.broadcast %349 : f32 to vector<24x128xf32>
    %2228 = arith.mulf %2202, %2227 : vector<24x128xf32>
    %2229 = arith.addf %2175, %2228 : vector<24x128xf32>
    %2230 = vector.broadcast %381 : f32 to vector<24x128xf32>
    %2231 = arith.mulf %2202, %2230 : vector<24x128xf32>
    %2232 = arith.addf %2178, %2231 : vector<24x128xf32>
    %2233 = vector.broadcast %413 : f32 to vector<24x128xf32>
    %2234 = arith.mulf %2202, %2233 : vector<24x128xf32>
    %2235 = arith.addf %2181, %2234 : vector<24x128xf32>
    %2236 = vector.broadcast %445 : f32 to vector<24x128xf32>
    %2237 = arith.mulf %2202, %2236 : vector<24x128xf32>
    %2238 = arith.addf %2184, %2237 : vector<24x128xf32>
    %2239 = vector.broadcast %477 : f32 to vector<24x128xf32>
    %2240 = arith.mulf %2202, %2239 : vector<24x128xf32>
    %2241 = arith.addf %2187, %2240 : vector<24x128xf32>
    %2242 = vector.broadcast %509 : f32 to vector<24x128xf32>
    %2243 = arith.mulf %2202, %2242 : vector<24x128xf32>
    %2244 = arith.addf %2190, %2243 : vector<24x128xf32>
    %2245 = vector.broadcast %541 : f32 to vector<24x128xf32>
    %2246 = arith.mulf %2202, %2245 : vector<24x128xf32>
    %2247 = arith.addf %2193, %2246 : vector<24x128xf32>
    %2248 = vector.broadcast %573 : f32 to vector<24x128xf32>
    %2249 = arith.mulf %2202, %2248 : vector<24x128xf32>
    %2250 = arith.addf %2196, %2249 : vector<24x128xf32>
    %2251 = vector.broadcast %30 : f32 to vector<24x128xf32>
    %2252 = arith.mulf %2251, %614 : vector<24x128xf32>
    %2253 = vector.broadcast %62 : f32 to vector<24x128xf32>
    %2254 = arith.addf %2252, %2253 : vector<24x128xf32>
    %cst_144 = arith.constant 0.000000e+00 : f32
    %2255 = vector.broadcast %cst_144 : f32 to vector<24x128xf32>
    %2256 = arith.maximumf %2254, %2255 : vector<24x128xf32>
    %2257 = vector.broadcast %94 : f32 to vector<24x128xf32>
    %2258 = arith.mulf %2256, %2257 : vector<24x128xf32>
    %2259 = arith.addf %2205, %2258 : vector<24x128xf32>
    %2260 = vector.broadcast %126 : f32 to vector<24x128xf32>
    %2261 = arith.mulf %2256, %2260 : vector<24x128xf32>
    %2262 = arith.addf %2208, %2261 : vector<24x128xf32>
    %2263 = vector.broadcast %158 : f32 to vector<24x128xf32>
    %2264 = arith.mulf %2256, %2263 : vector<24x128xf32>
    %2265 = arith.addf %2211, %2264 : vector<24x128xf32>
    %2266 = vector.broadcast %190 : f32 to vector<24x128xf32>
    %2267 = arith.mulf %2256, %2266 : vector<24x128xf32>
    %2268 = arith.addf %2214, %2267 : vector<24x128xf32>
    %2269 = vector.broadcast %222 : f32 to vector<24x128xf32>
    %2270 = arith.mulf %2256, %2269 : vector<24x128xf32>
    %2271 = arith.addf %2217, %2270 : vector<24x128xf32>
    %2272 = vector.broadcast %254 : f32 to vector<24x128xf32>
    %2273 = arith.mulf %2256, %2272 : vector<24x128xf32>
    %2274 = arith.addf %2220, %2273 : vector<24x128xf32>
    %2275 = vector.broadcast %286 : f32 to vector<24x128xf32>
    %2276 = arith.mulf %2256, %2275 : vector<24x128xf32>
    %2277 = arith.addf %2223, %2276 : vector<24x128xf32>
    %2278 = vector.broadcast %318 : f32 to vector<24x128xf32>
    %2279 = arith.mulf %2256, %2278 : vector<24x128xf32>
    %2280 = arith.addf %2226, %2279 : vector<24x128xf32>
    %2281 = vector.broadcast %350 : f32 to vector<24x128xf32>
    %2282 = arith.mulf %2256, %2281 : vector<24x128xf32>
    %2283 = arith.addf %2229, %2282 : vector<24x128xf32>
    %2284 = vector.broadcast %382 : f32 to vector<24x128xf32>
    %2285 = arith.mulf %2256, %2284 : vector<24x128xf32>
    %2286 = arith.addf %2232, %2285 : vector<24x128xf32>
    %2287 = vector.broadcast %414 : f32 to vector<24x128xf32>
    %2288 = arith.mulf %2256, %2287 : vector<24x128xf32>
    %2289 = arith.addf %2235, %2288 : vector<24x128xf32>
    %2290 = vector.broadcast %446 : f32 to vector<24x128xf32>
    %2291 = arith.mulf %2256, %2290 : vector<24x128xf32>
    %2292 = arith.addf %2238, %2291 : vector<24x128xf32>
    %2293 = vector.broadcast %478 : f32 to vector<24x128xf32>
    %2294 = arith.mulf %2256, %2293 : vector<24x128xf32>
    %2295 = arith.addf %2241, %2294 : vector<24x128xf32>
    %2296 = vector.broadcast %510 : f32 to vector<24x128xf32>
    %2297 = arith.mulf %2256, %2296 : vector<24x128xf32>
    %2298 = arith.addf %2244, %2297 : vector<24x128xf32>
    %2299 = vector.broadcast %542 : f32 to vector<24x128xf32>
    %2300 = arith.mulf %2256, %2299 : vector<24x128xf32>
    %2301 = arith.addf %2247, %2300 : vector<24x128xf32>
    %2302 = vector.broadcast %574 : f32 to vector<24x128xf32>
    %2303 = arith.mulf %2256, %2302 : vector<24x128xf32>
    %2304 = arith.addf %2250, %2303 : vector<24x128xf32>
    %2305 = vector.broadcast %31 : f32 to vector<24x128xf32>
    %2306 = arith.mulf %2305, %614 : vector<24x128xf32>
    %2307 = vector.broadcast %63 : f32 to vector<24x128xf32>
    %2308 = arith.addf %2306, %2307 : vector<24x128xf32>
    %cst_145 = arith.constant 0.000000e+00 : f32
    %2309 = vector.broadcast %cst_145 : f32 to vector<24x128xf32>
    %2310 = arith.maximumf %2308, %2309 : vector<24x128xf32>
    %2311 = vector.broadcast %95 : f32 to vector<24x128xf32>
    %2312 = arith.mulf %2310, %2311 : vector<24x128xf32>
    %2313 = arith.addf %2259, %2312 : vector<24x128xf32>
    %2314 = vector.broadcast %127 : f32 to vector<24x128xf32>
    %2315 = arith.mulf %2310, %2314 : vector<24x128xf32>
    %2316 = arith.addf %2262, %2315 : vector<24x128xf32>
    %2317 = vector.broadcast %159 : f32 to vector<24x128xf32>
    %2318 = arith.mulf %2310, %2317 : vector<24x128xf32>
    %2319 = arith.addf %2265, %2318 : vector<24x128xf32>
    %2320 = vector.broadcast %191 : f32 to vector<24x128xf32>
    %2321 = arith.mulf %2310, %2320 : vector<24x128xf32>
    %2322 = arith.addf %2268, %2321 : vector<24x128xf32>
    %2323 = vector.broadcast %223 : f32 to vector<24x128xf32>
    %2324 = arith.mulf %2310, %2323 : vector<24x128xf32>
    %2325 = arith.addf %2271, %2324 : vector<24x128xf32>
    %2326 = vector.broadcast %255 : f32 to vector<24x128xf32>
    %2327 = arith.mulf %2310, %2326 : vector<24x128xf32>
    %2328 = arith.addf %2274, %2327 : vector<24x128xf32>
    %2329 = vector.broadcast %287 : f32 to vector<24x128xf32>
    %2330 = arith.mulf %2310, %2329 : vector<24x128xf32>
    %2331 = arith.addf %2277, %2330 : vector<24x128xf32>
    %2332 = vector.broadcast %319 : f32 to vector<24x128xf32>
    %2333 = arith.mulf %2310, %2332 : vector<24x128xf32>
    %2334 = arith.addf %2280, %2333 : vector<24x128xf32>
    %2335 = vector.broadcast %351 : f32 to vector<24x128xf32>
    %2336 = arith.mulf %2310, %2335 : vector<24x128xf32>
    %2337 = arith.addf %2283, %2336 : vector<24x128xf32>
    %2338 = vector.broadcast %383 : f32 to vector<24x128xf32>
    %2339 = arith.mulf %2310, %2338 : vector<24x128xf32>
    %2340 = arith.addf %2286, %2339 : vector<24x128xf32>
    %2341 = vector.broadcast %415 : f32 to vector<24x128xf32>
    %2342 = arith.mulf %2310, %2341 : vector<24x128xf32>
    %2343 = arith.addf %2289, %2342 : vector<24x128xf32>
    %2344 = vector.broadcast %447 : f32 to vector<24x128xf32>
    %2345 = arith.mulf %2310, %2344 : vector<24x128xf32>
    %2346 = arith.addf %2292, %2345 : vector<24x128xf32>
    %2347 = vector.broadcast %479 : f32 to vector<24x128xf32>
    %2348 = arith.mulf %2310, %2347 : vector<24x128xf32>
    %2349 = arith.addf %2295, %2348 : vector<24x128xf32>
    %2350 = vector.broadcast %511 : f32 to vector<24x128xf32>
    %2351 = arith.mulf %2310, %2350 : vector<24x128xf32>
    %2352 = arith.addf %2298, %2351 : vector<24x128xf32>
    %2353 = vector.broadcast %543 : f32 to vector<24x128xf32>
    %2354 = arith.mulf %2310, %2353 : vector<24x128xf32>
    %2355 = arith.addf %2301, %2354 : vector<24x128xf32>
    %2356 = vector.broadcast %575 : f32 to vector<24x128xf32>
    %2357 = arith.mulf %2310, %2356 : vector<24x128xf32>
    %2358 = arith.addf %2304, %2357 : vector<24x128xf32>
    %2359 = vector.broadcast %576 : f32 to vector<24x128xf32>
    %2360 = arith.addf %2313, %2359 : vector<24x128xf32>
    %cst_146 = arith.constant 0.000000e+00 : f32
    %2361 = vector.broadcast %cst_146 : f32 to vector<24x128xf32>
    %2362 = arith.maximumf %2360, %2361 : vector<24x128xf32>
    %2363 = vector.broadcast %592 : f32 to vector<24x128xf32>
    %2364 = arith.mulf %2362, %2363 : vector<24x128xf32>
    %2365 = vector.broadcast %577 : f32 to vector<24x128xf32>
    %2366 = arith.addf %2316, %2365 : vector<24x128xf32>
    %cst_147 = arith.constant 0.000000e+00 : f32
    %2367 = vector.broadcast %cst_147 : f32 to vector<24x128xf32>
    %2368 = arith.maximumf %2366, %2367 : vector<24x128xf32>
    %2369 = vector.broadcast %593 : f32 to vector<24x128xf32>
    %2370 = arith.mulf %2368, %2369 : vector<24x128xf32>
    %2371 = arith.addf %2364, %2370 : vector<24x128xf32>
    %2372 = vector.broadcast %578 : f32 to vector<24x128xf32>
    %2373 = arith.addf %2319, %2372 : vector<24x128xf32>
    %cst_148 = arith.constant 0.000000e+00 : f32
    %2374 = vector.broadcast %cst_148 : f32 to vector<24x128xf32>
    %2375 = arith.maximumf %2373, %2374 : vector<24x128xf32>
    %2376 = vector.broadcast %594 : f32 to vector<24x128xf32>
    %2377 = arith.mulf %2375, %2376 : vector<24x128xf32>
    %2378 = arith.addf %2371, %2377 : vector<24x128xf32>
    %2379 = vector.broadcast %579 : f32 to vector<24x128xf32>
    %2380 = arith.addf %2322, %2379 : vector<24x128xf32>
    %cst_149 = arith.constant 0.000000e+00 : f32
    %2381 = vector.broadcast %cst_149 : f32 to vector<24x128xf32>
    %2382 = arith.maximumf %2380, %2381 : vector<24x128xf32>
    %2383 = vector.broadcast %595 : f32 to vector<24x128xf32>
    %2384 = arith.mulf %2382, %2383 : vector<24x128xf32>
    %2385 = arith.addf %2378, %2384 : vector<24x128xf32>
    %2386 = vector.broadcast %580 : f32 to vector<24x128xf32>
    %2387 = arith.addf %2325, %2386 : vector<24x128xf32>
    %cst_150 = arith.constant 0.000000e+00 : f32
    %2388 = vector.broadcast %cst_150 : f32 to vector<24x128xf32>
    %2389 = arith.maximumf %2387, %2388 : vector<24x128xf32>
    %2390 = vector.broadcast %596 : f32 to vector<24x128xf32>
    %2391 = arith.mulf %2389, %2390 : vector<24x128xf32>
    %2392 = arith.addf %2385, %2391 : vector<24x128xf32>
    %2393 = vector.broadcast %581 : f32 to vector<24x128xf32>
    %2394 = arith.addf %2328, %2393 : vector<24x128xf32>
    %cst_151 = arith.constant 0.000000e+00 : f32
    %2395 = vector.broadcast %cst_151 : f32 to vector<24x128xf32>
    %2396 = arith.maximumf %2394, %2395 : vector<24x128xf32>
    %2397 = vector.broadcast %597 : f32 to vector<24x128xf32>
    %2398 = arith.mulf %2396, %2397 : vector<24x128xf32>
    %2399 = arith.addf %2392, %2398 : vector<24x128xf32>
    %2400 = vector.broadcast %582 : f32 to vector<24x128xf32>
    %2401 = arith.addf %2331, %2400 : vector<24x128xf32>
    %cst_152 = arith.constant 0.000000e+00 : f32
    %2402 = vector.broadcast %cst_152 : f32 to vector<24x128xf32>
    %2403 = arith.maximumf %2401, %2402 : vector<24x128xf32>
    %2404 = vector.broadcast %598 : f32 to vector<24x128xf32>
    %2405 = arith.mulf %2403, %2404 : vector<24x128xf32>
    %2406 = arith.addf %2399, %2405 : vector<24x128xf32>
    %2407 = vector.broadcast %583 : f32 to vector<24x128xf32>
    %2408 = arith.addf %2334, %2407 : vector<24x128xf32>
    %cst_153 = arith.constant 0.000000e+00 : f32
    %2409 = vector.broadcast %cst_153 : f32 to vector<24x128xf32>
    %2410 = arith.maximumf %2408, %2409 : vector<24x128xf32>
    %2411 = vector.broadcast %599 : f32 to vector<24x128xf32>
    %2412 = arith.mulf %2410, %2411 : vector<24x128xf32>
    %2413 = arith.addf %2406, %2412 : vector<24x128xf32>
    %2414 = vector.broadcast %584 : f32 to vector<24x128xf32>
    %2415 = arith.addf %2337, %2414 : vector<24x128xf32>
    %cst_154 = arith.constant 0.000000e+00 : f32
    %2416 = vector.broadcast %cst_154 : f32 to vector<24x128xf32>
    %2417 = arith.maximumf %2415, %2416 : vector<24x128xf32>
    %2418 = vector.broadcast %600 : f32 to vector<24x128xf32>
    %2419 = arith.mulf %2417, %2418 : vector<24x128xf32>
    %2420 = arith.addf %2413, %2419 : vector<24x128xf32>
    %2421 = vector.broadcast %585 : f32 to vector<24x128xf32>
    %2422 = arith.addf %2340, %2421 : vector<24x128xf32>
    %cst_155 = arith.constant 0.000000e+00 : f32
    %2423 = vector.broadcast %cst_155 : f32 to vector<24x128xf32>
    %2424 = arith.maximumf %2422, %2423 : vector<24x128xf32>
    %2425 = vector.broadcast %601 : f32 to vector<24x128xf32>
    %2426 = arith.mulf %2424, %2425 : vector<24x128xf32>
    %2427 = arith.addf %2420, %2426 : vector<24x128xf32>
    %2428 = vector.broadcast %586 : f32 to vector<24x128xf32>
    %2429 = arith.addf %2343, %2428 : vector<24x128xf32>
    %cst_156 = arith.constant 0.000000e+00 : f32
    %2430 = vector.broadcast %cst_156 : f32 to vector<24x128xf32>
    %2431 = arith.maximumf %2429, %2430 : vector<24x128xf32>
    %2432 = vector.broadcast %602 : f32 to vector<24x128xf32>
    %2433 = arith.mulf %2431, %2432 : vector<24x128xf32>
    %2434 = arith.addf %2427, %2433 : vector<24x128xf32>
    %2435 = vector.broadcast %587 : f32 to vector<24x128xf32>
    %2436 = arith.addf %2346, %2435 : vector<24x128xf32>
    %cst_157 = arith.constant 0.000000e+00 : f32
    %2437 = vector.broadcast %cst_157 : f32 to vector<24x128xf32>
    %2438 = arith.maximumf %2436, %2437 : vector<24x128xf32>
    %2439 = vector.broadcast %603 : f32 to vector<24x128xf32>
    %2440 = arith.mulf %2438, %2439 : vector<24x128xf32>
    %2441 = arith.addf %2434, %2440 : vector<24x128xf32>
    %2442 = vector.broadcast %588 : f32 to vector<24x128xf32>
    %2443 = arith.addf %2349, %2442 : vector<24x128xf32>
    %cst_158 = arith.constant 0.000000e+00 : f32
    %2444 = vector.broadcast %cst_158 : f32 to vector<24x128xf32>
    %2445 = arith.maximumf %2443, %2444 : vector<24x128xf32>
    %2446 = vector.broadcast %604 : f32 to vector<24x128xf32>
    %2447 = arith.mulf %2445, %2446 : vector<24x128xf32>
    %2448 = arith.addf %2441, %2447 : vector<24x128xf32>
    %2449 = vector.broadcast %589 : f32 to vector<24x128xf32>
    %2450 = arith.addf %2352, %2449 : vector<24x128xf32>
    %cst_159 = arith.constant 0.000000e+00 : f32
    %2451 = vector.broadcast %cst_159 : f32 to vector<24x128xf32>
    %2452 = arith.maximumf %2450, %2451 : vector<24x128xf32>
    %2453 = vector.broadcast %605 : f32 to vector<24x128xf32>
    %2454 = arith.mulf %2452, %2453 : vector<24x128xf32>
    %2455 = arith.addf %2448, %2454 : vector<24x128xf32>
    %2456 = vector.broadcast %590 : f32 to vector<24x128xf32>
    %2457 = arith.addf %2355, %2456 : vector<24x128xf32>
    %cst_160 = arith.constant 0.000000e+00 : f32
    %2458 = vector.broadcast %cst_160 : f32 to vector<24x128xf32>
    %2459 = arith.maximumf %2457, %2458 : vector<24x128xf32>
    %2460 = vector.broadcast %606 : f32 to vector<24x128xf32>
    %2461 = arith.mulf %2459, %2460 : vector<24x128xf32>
    %2462 = arith.addf %2455, %2461 : vector<24x128xf32>
    %2463 = vector.broadcast %591 : f32 to vector<24x128xf32>
    %2464 = arith.addf %2358, %2463 : vector<24x128xf32>
    %cst_161 = arith.constant 0.000000e+00 : f32
    %2465 = vector.broadcast %cst_161 : f32 to vector<24x128xf32>
    %2466 = arith.maximumf %2464, %2465 : vector<24x128xf32>
    %2467 = vector.broadcast %607 : f32 to vector<24x128xf32>
    %2468 = arith.mulf %2466, %2467 : vector<24x128xf32>
    %2469 = arith.addf %2462, %2468 : vector<24x128xf32>
    %2470 = vector.broadcast %608 : f32 to vector<24x128xf32>
    %2471 = arith.addf %2469, %2470 : vector<24x128xf32>
    %2472 = arith.negf %2471 : vector<24x128xf32>
    %2473 = math.exp %2472 : vector<24x128xf32>
    %cst_162 = arith.constant 1.000000e+00 : f32
    %2474 = vector.broadcast %cst_162 : f32 to vector<24x128xf32>
    %2475 = arith.addf %2474, %2473 : vector<24x128xf32>
    %2476 = arith.divf %2474, %2475 : vector<24x128xf32>
    %cst_163 = arith.constant 1.150000e+02 : f32
    %2477 = vector.broadcast %cst_163 : f32 to vector<24x128xf32>
    %2478 = arith.mulf %2476, %2477 : vector<24x128xf32>
    %2479 = arith.index_cast %612 : i32 to index
    %c0_164 = arith.constant 0 : index
    %2480 = vector.load %arg8[%2479, %c0_164] : memref<24x128xf32, #tpu.memory_space<vmem>>, vector<24x128xf32>
    tpu.vector_store %arg8[%2479, %c0_164], %2478 {strides = array<i32>} : memref<24x128xf32, #tpu.memory_space<vmem>>, vector<24x128xf32>,
    %c1_i32_165 = arith.constant 1 : i32
    return
  }
  func.func @transform_0(%arg0: i32) -> (i32, i32) {
    %c0_i32 = arith.constant 0 : i32
    %c0_i32_0 = arith.constant 0 : i32
    return %arg0, %c0_i32 : i32, i32
  }
  func.func @transform_1(%arg0: i32) -> i32 {
    %c0_i32 = arith.constant 0 : i32
    %c0_i32_0 = arith.constant 0 : i32
    return %c0_i32 : i32
  }
  func.func @transform_2(%arg0: i32) -> i32 {
    %c0_i32 = arith.constant 0 : i32
    %c0_i32_0 = arith.constant 0 : i32
    return %c0_i32 : i32
  }
  func.func @transform_3(%arg0: i32) -> i32 {
    %c0_i32 = arith.constant 0 : i32
    %c0_i32_0 = arith.constant 0 : i32
    return %c0_i32 : i32
  }
  func.func @transform_4(%arg0: i32) -> i32 {
    %c0_i32 = arith.constant 0 : i32
    %c0_i32_0 = arith.constant 0 : i32
    return %c0_i32 : i32
  }
  func.func @transform_5(%arg0: i32) -> i32 {
    %c0_i32 = arith.constant 0 : i32
    %c0_i32_0 = arith.constant 0 : i32
    return %c0_i32 : i32
  }
  func.func @transform_6(%arg0: i32) -> i32 {
    %c0_i32 = arith.constant 0 : i32
    %c0_i32_0 = arith.constant 0 : i32
    return %c0_i32 : i32
  }
  func.func @transform_7(%arg0: i32) -> (i32, i32) {
    %c0_i32 = arith.constant 0 : i32
    %c0_i32_0 = arith.constant 0 : i32
    return %arg0, %c0_i32 : i32, i32
  }
}

</mosaic_0001>

<llo_original>
// kernel: tpu_custom_call.1
$region0: #{tpu_custom_call.1}
  #allocation0 [shape = 'u32[]', space=smem, size = 0x4, offset = 0x4, fixed_abs, tag = 'smem constant byte address 0x4 - core index']
  #allocation1 [shape = 'u32[144,128]{1,0:T(1,128)}', space=vmem, size = 0x12000, scoped, tag = 'internal scratch']
  #allocation2 [shape = 'f32[1]{0:T(128)S(6)}', space=smem, size = 0x200, scoped, tag = 'scoped memory for tpu_custom_call.1']
  %s0 = inlined_call_operand.hbm [shape: f32[24,128], index: 0, kind: input, shape index: {}]
  %s1 = inlined_call_operand.vmem [shape: f32[32], index: 1, kind: input, shape index: {}]
  %s2 = inlined_call_operand.vmem [shape: f32[32], index: 2, kind: input, shape index: {}]
  %s3 = inlined_call_operand.vmem [shape: f32[512], index: 3, kind: input, shape index: {}]
  %s4 = inlined_call_operand.vmem [shape: f32[16], index: 4, kind: input, shape index: {}]
  %s5 = inlined_call_operand.vmem [shape: f32[16], index: 5, kind: input, shape index: {}]
  %s6 = inlined_call_operand.<no memory space> [shape: f32[1], index: 6, kind: input, shape index: {}]
  %s7 = inlined_call_operand.hbm [shape: f32[24,128], index: 7, kind: output, shape index: {}]
  %s8 = sld [smem:[#allocation0]]
  $region62: #{tpu_custom_call.1} parent=0
    _
  %s10 = ssub.s32 1, %s8
  %s11 = scalar_select 0, %s10, %s8
  %12 = sst [smem:[#allocation2]] %s6
  $region1: #{tpu_custom_call.1} parent=0
    #allocation3 [shape = 'u8[12288]{0}', space=vmem, size = 0x3000, scoped, tag = 'input window, operand 0, single buffered']
    #allocation4 [shape = 's32[1]{0}', space=sflag, size = 0x4, scoped, tag = 'scoped memory for tpu_custom_call.1']
    #allocation5 [shape = 's32[1]{0}', space=sflag, size = 0x4, scoped, tag = 'scoped memory for tpu_custom_call.1']
    #allocation6 [shape = 's32[1]{0}', space=sflag, size = 0x4, scoped, tag = 'scoped memory for tpu_custom_call.1']
    #allocation7 [shape = 'u8[512]{0}', space=smem, size = 0x200, scoped, tag = 'input window, operand 1, single buffered']
    #allocation8 [shape = 'u8[512]{0}', space=smem, size = 0x200, scoped, tag = 'input window, operand 2, single buffered']
    #allocation9 [shape = 's32[1]{0}', space=sflag, size = 0x4, scoped, tag = 'scoped memory for tpu_custom_call.1']
    #allocation10 [shape = 'u8[2048]{0}', space=smem, size = 0x800, scoped, tag = 'input window, operand 3, single buffered']
    #allocation11 [shape = 'u8[512]{0}', space=smem, size = 0x200, scoped, tag = 'input window, operand 4, single buffered']
    #allocation12 [shape = 's32[1]{0}', space=sflag, size = 0x4, scoped, tag = 'scoped memory for tpu_custom_call.1']
    #allocation13 [shape = 'u8[512]{0}', space=smem, size = 0x200, scoped, tag = 'input window, operand 5, single buffered']
    #allocation14 [shape = 'u8[12288]{0}', space=vmem, size = 0x3000, scoped, tag = 'output window, operand 0, single buffered']
    %13 = vsyncpa [#allocation4], 0
    %14 = vsyncpa [#allocation6], 0
    %15 = vsyncpa [#allocation9], 0
    %16 = vsyncpa [#allocation12], 0
    %17 = vsyncpa [#allocation5], 0
    // Predicated region
    $region2: #{tpu_custom_call.1} parent=1 // pred_check
      _
    $region3: #{tpu_custom_call.1} parent=1 // pred_check_branch
      %19 = sbr.rel (0) target = $region5
    $region4: #{tpu_custom_call.1} parent=1 // pred_region
      %s21 = ssub.s32 384, 384
      %22 = vsyncadd [#allocation4], %s21
      %s23 = sshll.u32 [#allocation3], 4
      %s24 = int_to_ptr.vmem [resolvable:$true] %s23
      %29 = dma.hbm_to_vmem [thread:$0]  %s0, 384, %s24, [#allocation4], 128, 128, 8
    $region5: #{tpu_custom_call.1} parent=1 // pred_fallthru
      _
    // Predicated region
    $region6: #{tpu_custom_call.1} parent=1 // pred_check
      _
    $region7: #{tpu_custom_call.1} parent=1 // pred_check_branch
      %31 = sbr.rel (0) target = $region9
    $region8: #{tpu_custom_call.1} parent=1 // pred_region
      %s33 = ssub.s32 16, 16
      %34 = vsyncadd [#allocation6], %s33
      %s36 = sshll.u32 %s1, 4
      %s37 = int_to_ptr.vmem [resolvable:$true] %s36
      %39 = dma.vmem_to_smem %s37, 16, [#allocation7], [#allocation6]
    $region9: #{tpu_custom_call.1} parent=1 // pred_fallthru
      _
    // Predicated region
    $region10: #{tpu_custom_call.1} parent=1 // pred_check
      _
    $region11: #{tpu_custom_call.1} parent=1 // pred_check_branch
      %41 = sbr.rel (0) target = $region13
    $region12: #{tpu_custom_call.1} parent=1 // pred_region
      %s43 = ssub.s32 16, 16
      %44 = vsyncadd [#allocation9], %s43
      %s46 = sshll.u32 %s2, 4
      %s47 = int_to_ptr.vmem [resolvable:$true] %s46
      %49 = dma.vmem_to_smem %s47, 16, [#allocation8], [#allocation9]
    $region13: #{tpu_custom_call.1} parent=1 // pred_fallthru
      _
    // Predicated region
    $region14: #{tpu_custom_call.1} parent=1 // pred_check
      _
    $region15: #{tpu_custom_call.1} parent=1 // pred_check_branch
      %51 = sbr.rel (0) target = $region17
    $region16: #{tpu_custom_call.1} parent=1 // pred_region
      %s53 = ssub.s32 64, 64
      %54 = vsyncadd [#allocation9], %s53
      %s56 = sshll.u32 %s3, 4
      %s57 = int_to_ptr.vmem [resolvable:$true] %s56
      %59 = dma.vmem_to_smem %s57, 64, [#allocation10], [#allocation9]
    $region17: #{tpu_custom_call.1} parent=1 // pred_fallthru
      _
    // Predicated region
    $region18: #{tpu_custom_call.1} parent=1 // pred_check
      _
    $region19: #{tpu_custom_call.1} parent=1 // pred_check_branch
      %61 = sbr.rel (0) target = $region21
    $region20: #{tpu_custom_call.1} parent=1 // pred_region
      %s63 = ssub.s32 16, 16
      %64 = vsyncadd [#allocation12], %s63
      %s66 = sshll.u32 %s4, 4
      %s67 = int_to_ptr.vmem [resolvable:$true] %s66
      %69 = dma.vmem_to_smem %s67, 16, [#allocation11], [#allocation12]
    $region21: #{tpu_custom_call.1} parent=1 // pred_fallthru
      _
    // Predicated region
    $region22: #{tpu_custom_call.1} parent=1 // pred_check
      _
    $region23: #{tpu_custom_call.1} parent=1 // pred_check_branch
      %71 = sbr.rel (0) target = $region25
    $region24: #{tpu_custom_call.1} parent=1 // pred_region
      %s73 = ssub.s32 16, 16
      %74 = vsyncadd [#allocation12], %s73
      %s76 = sshll.u32 %s5, 4
      %s77 = int_to_ptr.vmem [resolvable:$true] %s76
      %79 = dma.vmem_to_smem %s77, 16, [#allocation13], [#allocation12]
    $region25: #{tpu_custom_call.1} parent=1 // pred_fallthru
      _
    // Predicated region
    $region26: #{tpu_custom_call.1} parent=1 // pred_check
      _
    $region27: #{tpu_custom_call.1} parent=1 // pred_check_branch
      %81 = sbr.rel (0) target = $region29
    $region28: #{tpu_custom_call.1} parent=1 // pred_region
      _
    $region29: #{tpu_custom_call.1} parent=1 // pred_fallthru
      _
    // Predicated region
    $region30: #{tpu_custom_call.1} parent=1 // pred_check
      _
    $region31: #{tpu_custom_call.1} parent=1 // pred_check_branch
      %83 = sbr.rel (0) target = $region33
    $region32: #{tpu_custom_call.1} parent=1 // pred_region
      %84 = dma.done [#allocation4], 384
    $region33: #{tpu_custom_call.1} parent=1 // pred_fallthru
      _
    // Predicated region
    $region34: #{tpu_custom_call.1} parent=1 // pred_check
      _
    $region35: #{tpu_custom_call.1} parent=1 // pred_check_branch
      %86 = sbr.rel (0) target = $region37
    $region36: #{tpu_custom_call.1} parent=1 // pred_region
      %87 = dma.done [#allocation6], 16
    $region37: #{tpu_custom_call.1} parent=1 // pred_fallthru
      _
    // Predicated region
    $region38: #{tpu_custom_call.1} parent=1 // pred_check
      _
    $region39: #{tpu_custom_call.1} parent=1 // pred_check_branch
      %89 = sbr.rel (0) target = $region41
    $region40: #{tpu_custom_call.1} parent=1 // pred_region
      %90 = dma.done [#allocation9], 16
    $region41: #{tpu_custom_call.1} parent=1 // pred_fallthru
      _
    // Predicated region
    $region42: #{tpu_custom_call.1} parent=1 // pred_check
      _
    $region43: #{tpu_custom_call.1} parent=1 // pred_check_branch
      %92 = sbr.rel (0) target = $region45
    $region44: #{tpu_custom_call.1} parent=1 // pred_region
      %93 = dma.done [#allocation9], 64
    $region45: #{tpu_custom_call.1} parent=1 // pred_fallthru
      _
    // Predicated region
    $region46: #{tpu_custom_call.1} parent=1 // pred_check
      _
    $region47: #{tpu_custom_call.1} parent=1 // pred_check_branch
      %95 = sbr.rel (0) target = $region49
    $region48: #{tpu_custom_call.1} parent=1 // pred_region
      %96 = dma.done [#allocation12], 16
    $region49: #{tpu_custom_call.1} parent=1 // pred_fallthru
      _
    // Predicated region
    $region50: #{tpu_custom_call.1} parent=1 // pred_check
      _
    $region51: #{tpu_custom_call.1} parent=1 // pred_check_branch
      %98 = sbr.rel (0) target = $region53
    $region52: #{tpu_custom_call.1} parent=1 // pred_region
      %99 = dma.done [#allocation12], 16
    $region53: #{tpu_custom_call.1} parent=1 // pred_fallthru
      _
    %100 = sfence
    %s101 = sld [smem:[#allocation7]]
    %s102 = sld [smem:[#allocation7 + $0x1]]
    %s103 = sld [smem:[#allocation7 + $0x2]]
    %s104 = sld [smem:[#allocation7 + $0x3]]
    %s105 = sld [smem:[#allocation7 + $0x4]]
    %s106 = sld [smem:[#allocation7 + $0x5]]
    %s107 = sld [smem:[#allocation7 + $0x6]]
    %s108 = sld [smem:[#allocation7 + $0x7]]
    %s109 = sld [smem:[#allocation7 + $0x8]]
    %s110 = sld [smem:[#allocation7 + $0x9]]
    %s111 = sld [smem:[#allocation7 + $0xa]]
    %s112 = sld [smem:[#allocation7 + $0xb]]
    %s113 = sld [smem:[#allocation7 + $0xc]]
    %s114 = sld [smem:[#allocation7 + $0xd]]
    %s115 = sld [smem:[#allocation7 + $0xe]]
    %s116 = sld [smem:[#allocation7 + $0xf]]
    %s117 = sld [smem:[#allocation7 + $0x10]]
    %s118 = sld [smem:[#allocation7 + $0x11]]
    %s119 = sld [smem:[#allocation7 + $0x12]]
    %s120 = sld [smem:[#allocation7 + $0x13]]
    %s121 = sld [smem:[#allocation7 + $0x14]]
    %s122 = sld [smem:[#allocation7 + $0x15]]
    %s123 = sld [smem:[#allocation7 + $0x16]]
    %s124 = sld [smem:[#allocation7 + $0x17]]
    %s125 = sld [smem:[#allocation7 + $0x18]]
    %s126 = sld [smem:[#allocation7 + $0x19]]
    %s127 = sld [smem:[#allocation7 + $0x1a]]
    %s128 = sld [smem:[#allocation7 + $0x1b]]
    %s129 = sld [smem:[#allocation7 + $0x1c]]
    %s130 = sld [smem:[#allocation7 + $0x1d]]
    %s131 = sld [smem:[#allocation7 + $0x1e]]
    %s132 = sld [smem:[#allocation7 + $0x1f]]
    %s133 = sld [smem:[#allocation8]]
    %s134 = sld [smem:[#allocation8 + $0x1]]
    %s135 = sld [smem:[#allocation8 + $0x2]]
    %s136 = sld [smem:[#allocation8 + $0x3]]
    %s137 = sld [smem:[#allocation8 + $0x4]]
    %s138 = sld [smem:[#allocation8 + $0x5]]
    %s139 = sld [smem:[#allocation8 + $0x6]]
    %s140 = sld [smem:[#allocation8 + $0x7]]
    %s141 = sld [smem:[#allocation8 + $0x8]]
    %s142 = sld [smem:[#allocation8 + $0x9]]
    %s143 = sld [smem:[#allocation8 + $0xa]]
    %s144 = sld [smem:[#allocation8 + $0xb]]
    %s145 = sld [smem:[#allocation8 + $0xc]]
    %s146 = sld [smem:[#allocation8 + $0xd]]
    %s147 = sld [smem:[#allocation8 + $0xe]]
    %s148 = sld [smem:[#allocation8 + $0xf]]
    %s149 = sld [smem:[#allocation8 + $0x10]]
    %s150 = sld [smem:[#allocation8 + $0x11]]
    %s151 = sld [smem:[#allocation8 + $0x12]]
    %s152 = sld [smem:[#allocation8 + $0x13]]
    %s153 = sld [smem:[#allocation8 + $0x14]]
    %s154 = sld [smem:[#allocation8 + $0x15]]
    %s155 = sld [smem:[#allocation8 + $0x16]]
    %s156 = sld [smem:[#allocation8 + $0x17]]
    %s157 = sld [smem:[#allocation8 + $0x18]]
    %s158 = sld [smem:[#allocation8 + $0x19]]
    %s159 = sld [smem:[#allocation8 + $0x1a]]
    %s160 = sld [smem:[#allocation8 + $0x1b]]
    %s161 = sld [smem:[#allocation8 + $0x1c]]
    %s162 = sld [smem:[#allocation8 + $0x1d]]
    %s163 = sld [smem:[#allocation8 + $0x1e]]
    %s164 = sld [smem:[#allocation8 + $0x1f]]
    %s165 = sld [smem:[#allocation10]]
    %s166 = sld [smem:[#allocation10 + $0x1]]
    %s167 = sld [smem:[#allocation10 + $0x2]]
    %s168 = sld [smem:[#allocation10 + $0x3]]
    %s169 = sld [smem:[#allocation10 + $0x4]]
    %s170 = sld [smem:[#allocation10 + $0x5]]
    %s171 = sld [smem:[#allocation10 + $0x6]]
    %s172 = sld [smem:[#allocation10 + $0x7]]
    %s173 = sld [smem:[#allocation10 + $0x8]]
    %s174 = sld [smem:[#allocation10 + $0x9]]
    %s175 = sld [smem:[#allocation10 + $0xa]]
    %s176 = sld [smem:[#allocation10 + $0xb]]
    %s177 = sld [smem:[#allocation10 + $0xc]]
    %s178 = sld [smem:[#allocation10 + $0xd]]
    %s179 = sld [smem:[#allocation10 + $0xe]]
    %s180 = sld [smem:[#allocation10 + $0xf]]
    %s181 = sld [smem:[#allocation10 + $0x10]]
    %s182 = sld [smem:[#allocation10 + $0x11]]
    %s183 = sld [smem:[#allocation10 + $0x12]]
    %s184 = sld [smem:[#allocation10 + $0x13]]
    %s185 = sld [smem:[#allocation10 + $0x14]]
    %s186 = sld [smem:[#allocation10 + $0x15]]
    %s187 = sld [smem:[#allocation10 + $0x16]]
    %s188 = sld [smem:[#allocation10 + $0x17]]
    %s189 = sld [smem:[#allocation10 + $0x18]]
    %s190 = sld [smem:[#allocation10 + $0x19]]
    %s191 = sld [smem:[#allocation10 + $0x1a]]
    %s192 = sld [smem:[#allocation10 + $0x1b]]
    %s193 = sld [smem:[#allocation10 + $0x1c]]
    %s194 = sld [smem:[#allocation10 + $0x1d]]
    %s195 = sld [smem:[#allocation10 + $0x1e]]
    %s196 = sld [smem:[#allocation10 + $0x1f]]
    %s197 = sld [smem:[#allocation10 + $0x20]]
    %s198 = sld [smem:[#allocation10 + $0x21]]
    %s199 = sld [smem:[#allocation10 + $0x22]]
    %s200 = sld [smem:[#allocation10 + $0x23]]
    %s201 = sld [smem:[#allocation10 + $0x24]]
    %s202 = sld [smem:[#allocation10 + $0x25]]
    %s203 = sld [smem:[#allocation10 + $0x26]]
    %s204 = sld [smem:[#allocation10 + $0x27]]
    %s205 = sld [smem:[#allocation10 + $0x28]]
    %s206 = sld [smem:[#allocation10 + $0x29]]
    %s207 = sld [smem:[#allocation10 + $0x2a]]
    %s208 = sld [smem:[#allocation10 + $0x2b]]
    %s209 = sld [smem:[#allocation10 + $0x2c]]
    %s210 = sld [smem:[#allocation10 + $0x2d]]
    %s211 = sld [smem:[#allocation10 + $0x2e]]
    %s212 = sld [smem:[#allocation10 + $0x2f]]
    %s213 = sld [smem:[#allocation10 + $0x30]]
    %s214 = sld [smem:[#allocation10 + $0x31]]
    %s215 = sld [smem:[#allocation10 + $0x32]]
    %s216 = sld [smem:[#allocation10 + $0x33]]
    %s217 = sld [smem:[#allocation10 + $0x34]]
    %s218 = sld [smem:[#allocation10 + $0x35]]
    %s219 = sld [smem:[#allocation10 + $0x36]]
    %s220 = sld [smem:[#allocation10 + $0x37]]
    %s221 = sld [smem:[#allocation10 + $0x38]]
    %s222 = sld [smem:[#allocation10 + $0x39]]
    %s223 = sld [smem:[#allocation10 + $0x3a]]
    %s224 = sld [smem:[#allocation10 + $0x3b]]
    %s225 = sld [smem:[#allocation10 + $0x3c]]
    %s226 = sld [smem:[#allocation10 + $0x3d]]
    %s227 = sld [smem:[#allocation10 + $0x3e]]
    %s228 = sld [smem:[#allocation10 + $0x3f]]
    %s229 = sld [smem:[#allocation10 + $0x40]]
    %s230 = sld [smem:[#allocation10 + $0x41]]
    %s231 = sld [smem:[#allocation10 + $0x42]]
    %s232 = sld [smem:[#allocation10 + $0x43]]
    %s233 = sld [smem:[#allocation10 + $0x44]]
    %s234 = sld [smem:[#allocation10 + $0x45]]
    %s235 = sld [smem:[#allocation10 + $0x46]]
    %s236 = sld [smem:[#allocation10 + $0x47]]
    %s237 = sld [smem:[#allocation10 + $0x48]]
    %s238 = sld [smem:[#allocation10 + $0x49]]
    %s239 = sld [smem:[#allocation10 + $0x4a]]
    %s240 = sld [smem:[#allocation10 + $0x4b]]
    %s241 = sld [smem:[#allocation10 + $0x4c]]
    %s242 = sld [smem:[#allocation10 + $0x4d]]
    %s243 = sld [smem:[#allocation10 + $0x4e]]
    %s244 = sld [smem:[#allocation10 + $0x4f]]
    %s245 = sld [smem:[#allocation10 + $0x50]]
    %s246 = sld [smem:[#allocation10 + $0x51]]
    %s247 = sld [smem:[#allocation10 + $0x52]]
    %s248 = sld [smem:[#allocation10 + $0x53]]
    %s249 = sld [smem:[#allocation10 + $0x54]]
    %s250 = sld [smem:[#allocation10 + $0x55]]
    %s251 = sld [smem:[#allocation10 + $0x56]]
    %s252 = sld [smem:[#allocation10 + $0x57]]
    %s253 = sld [smem:[#allocation10 + $0x58]]
    %s254 = sld [smem:[#allocation10 + $0x59]]
    %s255 = sld [smem:[#allocation10 + $0x5a]]
    %s256 = sld [smem:[#allocation10 + $0x5b]]
    %s257 = sld [smem:[#allocation10 + $0x5c]]
    %s258 = sld [smem:[#allocation10 + $0x5d]]
    %s259 = sld [smem:[#allocation10 + $0x5e]]
    %s260 = sld [smem:[#allocation10 + $0x5f]]
    %s261 = sld [smem:[#allocation10 + $0x60]]
    %s262 = sld [smem:[#allocation10 + $0x61]]
    %s263 = sld [smem:[#allocation10 + $0x62]]
    %s264 = sld [smem:[#allocation10 + $0x63]]
    %s265 = sld [smem:[#allocation10 + $0x64]]
    %s266 = sld [smem:[#allocation10 + $0x65]]
    %s267 = sld [smem:[#allocation10 + $0x66]]
    %s268 = sld [smem:[#allocation10 + $0x67]]
    %s269 = sld [smem:[#allocation10 + $0x68]]
    %s270 = sld [smem:[#allocation10 + $0x69]]
    %s271 = sld [smem:[#allocation10 + $0x6a]]
    %s272 = sld [smem:[#allocation10 + $0x6b]]
    %s273 = sld [smem:[#allocation10 + $0x6c]]
    %s274 = sld [smem:[#allocation10 + $0x6d]]
    %s275 = sld [smem:[#allocation10 + $0x6e]]
    %s276 = sld [smem:[#allocation10 + $0x6f]]
    %s277 = sld [smem:[#allocation10 + $0x70]]
    %s278 = sld [smem:[#allocation10 + $0x71]]
    %s279 = sld [smem:[#allocation10 + $0x72]]
    %s280 = sld [smem:[#allocation10 + $0x73]]
    %s281 = sld [smem:[#allocation10 + $0x74]]
    %s282 = sld [smem:[#allocation10 + $0x75]]
    %s283 = sld [smem:[#allocation10 + $0x76]]
    %s284 = sld [smem:[#allocation10 + $0x77]]
    %s285 = sld [smem:[#allocation10 + $0x78]]
    %s286 = sld [smem:[#allocation10 + $0x79]]
    %s287 = sld [smem:[#allocation10 + $0x7a]]
    %s288 = sld [smem:[#allocation10 + $0x7b]]
    %s289 = sld [smem:[#allocation10 + $0x7c]]
    %s290 = sld [smem:[#allocation10 + $0x7d]]
    %s291 = sld [smem:[#allocation10 + $0x7e]]
    %s292 = sld [smem:[#allocation10 + $0x7f]]
    %s293 = sld [smem:[#allocation10 + $0x80]]
    %s294 = sld [smem:[#allocation10 + $0x81]]
    %s295 = sld [smem:[#allocation10 + $0x82]]
    %s296 = sld [smem:[#allocation10 + $0x83]]
    %s297 = sld [smem:[#allocation10 + $0x84]]
    %s298 = sld [smem:[#allocation10 + $0x85]]
    %s299 = sld [smem:[#allocation10 + $0x86]]
    %s300 = sld [smem:[#allocation10 + $0x87]]
    %s301 = sld [smem:[#allocation10 + $0x88]]
    %s302 = sld [smem:[#allocation10 + $0x89]]
    %s303 = sld [smem:[#allocation10 + $0x8a]]
    %s304 = sld [smem:[#allocation10 + $0x8b]]
    %s305 = sld [smem:[#allocation10 + $0x8c]]
    %s306 = sld [smem:[#allocation10 + $0x8d]]
    %s307 = sld [smem:[#allocation10 + $0x8e]]
    %s308 = sld [smem:[#allocation10 + $0x8f]]
    %s309 = sld [smem:[#allocation10 + $0x90]]
    %s310 = sld [smem:[#allocation10 + $0x91]]
    %s311 = sld [smem:[#allocation10 + $0x92]]
    %s312 = sld [smem:[#allocation10 + $0x93]]
    %s313 = sld [smem:[#allocation10 + $0x94]]
    %s314 = sld [smem:[#allocation10 + $0x95]]
    %s315 = sld [smem:[#allocation10 + $0x96]]
    %s316 = sld [smem:[#allocation10 + $0x97]]
    %s317 = sld [smem:[#allocation10 + $0x98]]
    %s318 = sld [smem:[#allocation10 + $0x99]]
    %s319 = sld [smem:[#allocation10 + $0x9a]]
    %s320 = sld [smem:[#allocation10 + $0x9b]]
    %s321 = sld [smem:[#allocation10 + $0x9c]]
    %s322 = sld [smem:[#allocation10 + $0x9d]]
    %s323 = sld [smem:[#allocation10 + $0x9e]]
    %s324 = sld [smem:[#allocation10 + $0x9f]]
    %s325 = sld [smem:[#allocation10 + $0xa0]]
    %s326 = sld [smem:[#allocation10 + $0xa1]]
    %s327 = sld [smem:[#allocation10 + $0xa2]]
    %s328 = sld [smem:[#allocation10 + $0xa3]]
    %s329 = sld [smem:[#allocation10 + $0xa4]]
    %s330 = sld [smem:[#allocation10 + $0xa5]]
    %s331 = sld [smem:[#allocation10 + $0xa6]]
    %s332 = sld [smem:[#allocation10 + $0xa7]]
    %s333 = sld [smem:[#allocation10 + $0xa8]]
    %s334 = sld [smem:[#allocation10 + $0xa9]]
    %s335 = sld [smem:[#allocation10 + $0xaa]]
    %s336 = sld [smem:[#allocation10 + $0xab]]
    %s337 = sld [smem:[#allocation10 + $0xac]]
    %s338 = sld [smem:[#allocation10 + $0xad]]
    %s339 = sld [smem:[#allocation10 + $0xae]]
    %s340 = sld [smem:[#allocation10 + $0xaf]]
    %s341 = sld [smem:[#allocation10 + $0xb0]]
    %s342 = sld [smem:[#allocation10 + $0xb1]]
    %s343 = sld [smem:[#allocation10 + $0xb2]]
    %s344 = sld [smem:[#allocation10 + $0xb3]]
    %s345 = sld [smem:[#allocation10 + $0xb4]]
    %s346 = sld [smem:[#allocation10 + $0xb5]]
    %s347 = sld [smem:[#allocation10 + $0xb6]]
    %s348 = sld [smem:[#allocation10 + $0xb7]]
    %s349 = sld [smem:[#allocation10 + $0xb8]]
    %s350 = sld [smem:[#allocation10 + $0xb9]]
    %s351 = sld [smem:[#allocation10 + $0xba]]
    %s352 = sld [smem:[#allocation10 + $0xbb]]
    %s353 = sld [smem:[#allocation10 + $0xbc]]
    %s354 = sld [smem:[#allocation10 + $0xbd]]
    %s355 = sld [smem:[#allocation10 + $0xbe]]
    %s356 = sld [smem:[#allocation10 + $0xbf]]
    %s357 = sld [smem:[#allocation10 + $0xc0]]
    %s358 = sld [smem:[#allocation10 + $0xc1]]
    %s359 = sld [smem:[#allocation10 + $0xc2]]
    %s360 = sld [smem:[#allocation10 + $0xc3]]
    %s361 = sld [smem:[#allocation10 + $0xc4]]
    %s362 = sld [smem:[#allocation10 + $0xc5]]
    %s363 = sld [smem:[#allocation10 + $0xc6]]
    %s364 = sld [smem:[#allocation10 + $0xc7]]
    %s365 = sld [smem:[#allocation10 + $0xc8]]
    %s366 = sld [smem:[#allocation10 + $0xc9]]
    %s367 = sld [smem:[#allocation10 + $0xca]]
    %s368 = sld [smem:[#allocation10 + $0xcb]]
    %s369 = sld [smem:[#allocation10 + $0xcc]]
    %s370 = sld [smem:[#allocation10 + $0xcd]]
    %s371 = sld [smem:[#allocation10 + $0xce]]
    %s372 = sld [smem:[#allocation10 + $0xcf]]
    %s373 = sld [smem:[#allocation10 + $0xd0]]
    %s374 = sld [smem:[#allocation10 + $0xd1]]
    %s375 = sld [smem:[#allocation10 + $0xd2]]
    %s376 = sld [smem:[#allocation10 + $0xd3]]
    %s377 = sld [smem:[#allocation10 + $0xd4]]
    %s378 = sld [smem:[#allocation10 + $0xd5]]
    %s379 = sld [smem:[#allocation10 + $0xd6]]
    %s380 = sld [smem:[#allocation10 + $0xd7]]
    %s381 = sld [smem:[#allocation10 + $0xd8]]
    %s382 = sld [smem:[#allocation10 + $0xd9]]
    %s383 = sld [smem:[#allocation10 + $0xda]]
    %s384 = sld [smem:[#allocation10 + $0xdb]]
    %s385 = sld [smem:[#allocation10 + $0xdc]]
    %s386 = sld [smem:[#allocation10 + $0xdd]]
    %s387 = sld [smem:[#allocation10 + $0xde]]
    %s388 = sld [smem:[#allocation10 + $0xdf]]
    %s389 = sld [smem:[#allocation10 + $0xe0]]
    %s390 = sld [smem:[#allocation10 + $0xe1]]
    %s391 = sld [smem:[#allocation10 + $0xe2]]
    %s392 = sld [smem:[#allocation10 + $0xe3]]
    %s393 = sld [smem:[#allocation10 + $0xe4]]
    %s394 = sld [smem:[#allocation10 + $0xe5]]
    %s395 = sld [smem:[#allocation10 + $0xe6]]
    %s396 = sld [smem:[#allocation10 + $0xe7]]
    %s397 = sld [smem:[#allocation10 + $0xe8]]
    %s398 = sld [smem:[#allocation10 + $0xe9]]
    %s399 = sld [smem:[#allocation10 + $0xea]]
    %s400 = sld [smem:[#allocation10 + $0xeb]]
    %s401 = sld [smem:[#allocation10 + $0xec]]
    %s402 = sld [smem:[#allocation10 + $0xed]]
    %s403 = sld [smem:[#allocation10 + $0xee]]
    %s404 = sld [smem:[#allocation10 + $0xef]]
    %s405 = sld [smem:[#allocation10 + $0xf0]]
    %s406 = sld [smem:[#allocation10 + $0xf1]]
    %s407 = sld [smem:[#allocation10 + $0xf2]]
    %s408 = sld [smem:[#allocation10 + $0xf3]]
    %s409 = sld [smem:[#allocation10 + $0xf4]]
    %s410 = sld [smem:[#allocation10 + $0xf5]]
    %s411 = sld [smem:[#allocation10 + $0xf6]]
    %s412 = sld [smem:[#allocation10 + $0xf7]]
    %s413 = sld [smem:[#allocation10 + $0xf8]]
    %s414 = sld [smem:[#allocation10 + $0xf9]]
    %s415 = sld [smem:[#allocation10 + $0xfa]]
    %s416 = sld [smem:[#allocation10 + $0xfb]]
    %s417 = sld [smem:[#allocation10 + $0xfc]]
    %s418 = sld [smem:[#allocation10 + $0xfd]]
    %s419 = sld [smem:[#allocation10 + $0xfe]]
    %s420 = sld [smem:[#allocation10 + $0xff]]
    %s421 = sld [smem:[#allocation10 + $0x100]]
    %s422 = sld [smem:[#allocation10 + $0x101]]
    %s423 = sld [smem:[#allocation10 + $0x102]]
    %s424 = sld [smem:[#allocation10 + $0x103]]
    %s425 = sld [smem:[#allocation10 + $0x104]]
    %s426 = sld [smem:[#allocation10 + $0x105]]
    %s427 = sld [smem:[#allocation10 + $0x106]]
    %s428 = sld [smem:[#allocation10 + $0x107]]
    %s429 = sld [smem:[#allocation10 + $0x108]]
    %s430 = sld [smem:[#allocation10 + $0x109]]
    %s431 = sld [smem:[#allocation10 + $0x10a]]
    %s432 = sld [smem:[#allocation10 + $0x10b]]
    %s433 = sld [smem:[#allocation10 + $0x10c]]
    %s434 = sld [smem:[#allocation10 + $0x10d]]
    %s435 = sld [smem:[#allocation10 + $0x10e]]
    %s436 = sld [smem:[#allocation10 + $0x10f]]
    %s437 = sld [smem:[#allocation10 + $0x110]]
    %s438 = sld [smem:[#allocation10 + $0x111]]
    %s439 = sld [smem:[#allocation10 + $0x112]]
    %s440 = sld [smem:[#allocation10 + $0x113]]
    %s441 = sld [smem:[#allocation10 + $0x114]]
    %s442 = sld [smem:[#allocation10 + $0x115]]
    %s443 = sld [smem:[#allocation10 + $0x116]]
    %s444 = sld [smem:[#allocation10 + $0x117]]
    %s445 = sld [smem:[#allocation10 + $0x118]]
    %s446 = sld [smem:[#allocation10 + $0x119]]
    %s447 = sld [smem:[#allocation10 + $0x11a]]
    %s448 = sld [smem:[#allocation10 + $0x11b]]
    %s449 = sld [smem:[#allocation10 + $0x11c]]
    %s450 = sld [smem:[#allocation10 + $0x11d]]
    %s451 = sld [smem:[#allocation10 + $0x11e]]
    %s452 = sld [smem:[#allocation10 + $0x11f]]
    %s453 = sld [smem:[#allocation10 + $0x120]]
    %s454 = sld [smem:[#allocation10 + $0x121]]
    %s455 = sld [smem:[#allocation10 + $0x122]]
    %s456 = sld [smem:[#allocation10 + $0x123]]
    %s457 = sld [smem:[#allocation10 + $0x124]]
    %s458 = sld [smem:[#allocation10 + $0x125]]
    %s459 = sld [smem:[#allocation10 + $0x126]]
    %s460 = sld [smem:[#allocation10 + $0x127]]
    %s461 = sld [smem:[#allocation10 + $0x128]]
    %s462 = sld [smem:[#allocation10 + $0x129]]
    %s463 = sld [smem:[#allocation10 + $0x12a]]
    %s464 = sld [smem:[#allocation10 + $0x12b]]
    %s465 = sld [smem:[#allocation10 + $0x12c]]
    %s466 = sld [smem:[#allocation10 + $0x12d]]
    %s467 = sld [smem:[#allocation10 + $0x12e]]
    %s468 = sld [smem:[#allocation10 + $0x12f]]
    %s469 = sld [smem:[#allocation10 + $0x130]]
    %s470 = sld [smem:[#allocation10 + $0x131]]
    %s471 = sld [smem:[#allocation10 + $0x132]]
    %s472 = sld [smem:[#allocation10 + $0x133]]
    %s473 = sld [smem:[#allocation10 + $0x134]]
    %s474 = sld [smem:[#allocation10 + $0x135]]
    %s475 = sld [smem:[#allocation10 + $0x136]]
    %s476 = sld [smem:[#allocation10 + $0x137]]
    %s477 = sld [smem:[#allocation10 + $0x138]]
    %s478 = sld [smem:[#allocation10 + $0x139]]
    %s479 = sld [smem:[#allocation10 + $0x13a]]
    %s480 = sld [smem:[#allocation10 + $0x13b]]
    %s481 = sld [smem:[#allocation10 + $0x13c]]
    %s482 = sld [smem:[#allocation10 + $0x13d]]
    %s483 = sld [smem:[#allocation10 + $0x13e]]
    %s484 = sld [smem:[#allocation10 + $0x13f]]
    %s485 = sld [smem:[#allocation10 + $0x140]]
    %s486 = sld [smem:[#allocation10 + $0x141]]
    %s487 = sld [smem:[#allocation10 + $0x142]]
    %s488 = sld [smem:[#allocation10 + $0x143]]
    %s489 = sld [smem:[#allocation10 + $0x144]]
    %s490 = sld [smem:[#allocation10 + $0x145]]
    %s491 = sld [smem:[#allocation10 + $0x146]]
    %s492 = sld [smem:[#allocation10 + $0x147]]
    %s493 = sld [smem:[#allocation10 + $0x148]]
    %s494 = sld [smem:[#allocation10 + $0x149]]
    %s495 = sld [smem:[#allocation10 + $0x14a]]
    %s496 = sld [smem:[#allocation10 + $0x14b]]
    %s497 = sld [smem:[#allocation10 + $0x14c]]
    %s498 = sld [smem:[#allocation10 + $0x14d]]
    %s499 = sld [smem:[#allocation10 + $0x14e]]
    %s500 = sld [smem:[#allocation10 + $0x14f]]
    %s501 = sld [smem:[#allocation10 + $0x150]]
    %s502 = sld [smem:[#allocation10 + $0x151]]
    %s503 = sld [smem:[#allocation10 + $0x152]]
    %s504 = sld [smem:[#allocation10 + $0x153]]
    %s505 = sld [smem:[#allocation10 + $0x154]]
    %s506 = sld [smem:[#allocation10 + $0x155]]
    %s507 = sld [smem:[#allocation10 + $0x156]]
    %s508 = sld [smem:[#allocation10 + $0x157]]
    %s509 = sld [smem:[#allocation10 + $0x158]]
    %s510 = sld [smem:[#allocation10 + $0x159]]
    %s511 = sld [smem:[#allocation10 + $0x15a]]
    %s512 = sld [smem:[#allocation10 + $0x15b]]
    %s513 = sld [smem:[#allocation10 + $0x15c]]
    %s514 = sld [smem:[#allocation10 + $0x15d]]
    %s515 = sld [smem:[#allocation10 + $0x15e]]
    %s516 = sld [smem:[#allocation10 + $0x15f]]
    %s517 = sld [smem:[#allocation10 + $0x160]]
    %s518 = sld [smem:[#allocation10 + $0x161]]
    %s519 = sld [smem:[#allocation10 + $0x162]]
    %s520 = sld [smem:[#allocation10 + $0x163]]
    %s521 = sld [smem:[#allocation10 + $0x164]]
    %s522 = sld [smem:[#allocation10 + $0x165]]
    %s523 = sld [smem:[#allocation10 + $0x166]]
    %s524 = sld [smem:[#allocation10 + $0x167]]
    %s525 = sld [smem:[#allocation10 + $0x168]]
    %s526 = sld [smem:[#allocation10 + $0x169]]
    %s527 = sld [smem:[#allocation10 + $0x16a]]
    %s528 = sld [smem:[#allocation10 + $0x16b]]
    %s529 = sld [smem:[#allocation10 + $0x16c]]
    %s530 = sld [smem:[#allocation10 + $0x16d]]
    %s531 = sld [smem:[#allocation10 + $0x16e]]
    %s532 = sld [smem:[#allocation10 + $0x16f]]
    %s533 = sld [smem:[#allocation10 + $0x170]]
    %s534 = sld [smem:[#allocation10 + $0x171]]
    %s535 = sld [smem:[#allocation10 + $0x172]]
    %s536 = sld [smem:[#allocation10 + $0x173]]
    %s537 = sld [smem:[#allocation10 + $0x174]]
    %s538 = sld [smem:[#allocation10 + $0x175]]
    %s539 = sld [smem:[#allocation10 + $0x176]]
    %s540 = sld [smem:[#allocation10 + $0x177]]
    %s541 = sld [smem:[#allocation10 + $0x178]]
    %s542 = sld [smem:[#allocation10 + $0x179]]
    %s543 = sld [smem:[#allocation10 + $0x17a]]
    %s544 = sld [smem:[#allocation10 + $0x17b]]
    %s545 = sld [smem:[#allocation10 + $0x17c]]
    %s546 = sld [smem:[#allocation10 + $0x17d]]
    %s547 = sld [smem:[#allocation10 + $0x17e]]
    %s548 = sld [smem:[#allocation10 + $0x17f]]
    %s549 = sld [smem:[#allocation10 + $0x180]]
    %s550 = sld [smem:[#allocation10 + $0x181]]
    %s551 = sld [smem:[#allocation10 + $0x182]]
    %s552 = sld [smem:[#allocation10 + $0x183]]
    %s553 = sld [smem:[#allocation10 + $0x184]]
    %s554 = sld [smem:[#allocation10 + $0x185]]
    %s555 = sld [smem:[#allocation10 + $0x186]]
    %s556 = sld [smem:[#allocation10 + $0x187]]
    %s557 = sld [smem:[#allocation10 + $0x188]]
    %s558 = sld [smem:[#allocation10 + $0x189]]
    %s559 = sld [smem:[#allocation10 + $0x18a]]
    %s560 = sld [smem:[#allocation10 + $0x18b]]
    %s561 = sld [smem:[#allocation10 + $0x18c]]
    %s562 = sld [smem:[#allocation10 + $0x18d]]
    %s563 = sld [smem:[#allocation10 + $0x18e]]
    %s564 = sld [smem:[#allocation10 + $0x18f]]
    %s565 = sld [smem:[#allocation10 + $0x190]]
    %s566 = sld [smem:[#allocation10 + $0x191]]
    %s567 = sld [smem:[#allocation10 + $0x192]]
    %s568 = sld [smem:[#allocation10 + $0x193]]
    %s569 = sld [smem:[#allocation10 + $0x194]]
    %s570 = sld [smem:[#allocation10 + $0x195]]
    %s571 = sld [smem:[#allocation10 + $0x196]]
    %s572 = sld [smem:[#allocation10 + $0x197]]
    %s573 = sld [smem:[#allocation10 + $0x198]]
    %s574 = sld [smem:[#allocation10 + $0x199]]
    %s575 = sld [smem:[#allocation10 + $0x19a]]
    %s576 = sld [smem:[#allocation10 + $0x19b]]
    %s577 = sld [smem:[#allocation10 + $0x19c]]
    %s578 = sld [smem:[#allocation10 + $0x19d]]
    %s579 = sld [smem:[#allocation10 + $0x19e]]
    %s580 = sld [smem:[#allocation10 + $0x19f]]
    %s581 = sld [smem:[#allocation10 + $0x1a0]]
    %s582 = sld [smem:[#allocation10 + $0x1a1]]
    %s583 = sld [smem:[#allocation10 + $0x1a2]]
    %s584 = sld [smem:[#allocation10 + $0x1a3]]
    %s585 = sld [smem:[#allocation10 + $0x1a4]]
    %s586 = sld [smem:[#allocation10 + $0x1a5]]
    %s587 = sld [smem:[#allocation10 + $0x1a6]]
    %s588 = sld [smem:[#allocation10 + $0x1a7]]
    %s589 = sld [smem:[#allocation10 + $0x1a8]]
    %s590 = sld [smem:[#allocation10 + $0x1a9]]
    %s591 = sld [smem:[#allocation10 + $0x1aa]]
    %s592 = sld [smem:[#allocation10 + $0x1ab]]
    %s593 = sld [smem:[#allocation10 + $0x1ac]]
    %s594 = sld [smem:[#allocation10 + $0x1ad]]
    %s595 = sld [smem:[#allocation10 + $0x1ae]]
    %s596 = sld [smem:[#allocation10 + $0x1af]]
    %s597 = sld [smem:[#allocation10 + $0x1b0]]
    %s598 = sld [smem:[#allocation10 + $0x1b1]]
    %s599 = sld [smem:[#allocation10 + $0x1b2]]
    %s600 = sld [smem:[#allocation10 + $0x1b3]]
    %s601 = sld [smem:[#allocation10 + $0x1b4]]
    %s602 = sld [smem:[#allocation10 + $0x1b5]]
    %s603 = sld [smem:[#allocation10 + $0x1b6]]
    %s604 = sld [smem:[#allocation10 + $0x1b7]]
    %s605 = sld [smem:[#allocation10 + $0x1b8]]
    %s606 = sld [smem:[#allocation10 + $0x1b9]]
    %s607 = sld [smem:[#allocation10 + $0x1ba]]
    %s608 = sld [smem:[#allocation10 + $0x1bb]]
    %s609 = sld [smem:[#allocation10 + $0x1bc]]
    %s610 = sld [smem:[#allocation10 + $0x1bd]]
    %s611 = sld [smem:[#allocation10 + $0x1be]]
    %s612 = sld [smem:[#allocation10 + $0x1bf]]
    %s613 = sld [smem:[#allocation10 + $0x1c0]]
    %s614 = sld [smem:[#allocation10 + $0x1c1]]
    %s615 = sld [smem:[#allocation10 + $0x1c2]]
    %s616 = sld [smem:[#allocation10 + $0x1c3]]
    %s617 = sld [smem:[#allocation10 + $0x1c4]]
    %s618 = sld [smem:[#allocation10 + $0x1c5]]
    %s619 = sld [smem:[#allocation10 + $0x1c6]]
    %s620 = sld [smem:[#allocation10 + $0x1c7]]
    %s621 = sld [smem:[#allocation10 + $0x1c8]]
    %s622 = sld [smem:[#allocation10 + $0x1c9]]
    %s623 = sld [smem:[#allocation10 + $0x1ca]]
    %s624 = sld [smem:[#allocation10 + $0x1cb]]
    %s625 = sld [smem:[#allocation10 + $0x1cc]]
    %s626 = sld [smem:[#allocation10 + $0x1cd]]
    %s627 = sld [smem:[#allocation10 + $0x1ce]]
    %s628 = sld [smem:[#allocation10 + $0x1cf]]
    %s629 = sld [smem:[#allocation10 + $0x1d0]]
    %s630 = sld [smem:[#allocation10 + $0x1d1]]
    %s631 = sld [smem:[#allocation10 + $0x1d2]]
    %s632 = sld [smem:[#allocation10 + $0x1d3]]
    %s633 = sld [smem:[#allocation10 + $0x1d4]]
    %s634 = sld [smem:[#allocation10 + $0x1d5]]
    %s635 = sld [smem:[#allocation10 + $0x1d6]]
    %s636 = sld [smem:[#allocation10 + $0x1d7]]
    %s637 = sld [smem:[#allocation10 + $0x1d8]]
    %s638 = sld [smem:[#allocation10 + $0x1d9]]
    %s639 = sld [smem:[#allocation10 + $0x1da]]
    %s640 = sld [smem:[#allocation10 + $0x1db]]
    %s641 = sld [smem:[#allocation10 + $0x1dc]]
    %s642 = sld [smem:[#allocation10 + $0x1dd]]
    %s643 = sld [smem:[#allocation10 + $0x1de]]
    %s644 = sld [smem:[#allocation10 + $0x1df]]
    %s645 = sld [smem:[#allocation10 + $0x1e0]]
    %s646 = sld [smem:[#allocation10 + $0x1e1]]
    %s647 = sld [smem:[#allocation10 + $0x1e2]]
    %s648 = sld [smem:[#allocation10 + $0x1e3]]
    %s649 = sld [smem:[#allocation10 + $0x1e4]]
    %s650 = sld [smem:[#allocation10 + $0x1e5]]
    %s651 = sld [smem:[#allocation10 + $0x1e6]]
    %s652 = sld [smem:[#allocation10 + $0x1e7]]
    %s653 = sld [smem:[#allocation10 + $0x1e8]]
    %s654 = sld [smem:[#allocation10 + $0x1e9]]
    %s655 = sld [smem:[#allocation10 + $0x1ea]]
    %s656 = sld [smem:[#allocation10 + $0x1eb]]
    %s657 = sld [smem:[#allocation10 + $0x1ec]]
    %s658 = sld [smem:[#allocation10 + $0x1ed]]
    %s659 = sld [smem:[#allocation10 + $0x1ee]]
    %s660 = sld [smem:[#allocation10 + $0x1ef]]
    %s661 = sld [smem:[#allocation10 + $0x1f0]]
    %s662 = sld [smem:[#allocation10 + $0x1f1]]
    %s663 = sld [smem:[#allocation10 + $0x1f2]]
    %s664 = sld [smem:[#allocation10 + $0x1f3]]
    %s665 = sld [smem:[#allocation10 + $0x1f4]]
    %s666 = sld [smem:[#allocation10 + $0x1f5]]
    %s667 = sld [smem:[#allocation10 + $0x1f6]]
    %s668 = sld [smem:[#allocation10 + $0x1f7]]
    %s669 = sld [smem:[#allocation10 + $0x1f8]]
    %s670 = sld [smem:[#allocation10 + $0x1f9]]
    %s671 = sld [smem:[#allocation10 + $0x1fa]]
    %s672 = sld [smem:[#allocation10 + $0x1fb]]
    %s673 = sld [smem:[#allocation10 + $0x1fc]]
    %s674 = sld [smem:[#allocation10 + $0x1fd]]
    %s675 = sld [smem:[#allocation10 + $0x1fe]]
    %s676 = sld [smem:[#allocation10 + $0x1ff]]
    %s677 = sld [smem:[#allocation11]]
    %s678 = sld [smem:[#allocation11 + $0x1]]
    %s679 = sld [smem:[#allocation11 + $0x2]]
    %s680 = sld [smem:[#allocation11 + $0x3]]
    %s681 = sld [smem:[#allocation11 + $0x4]]
    %s682 = sld [smem:[#allocation11 + $0x5]]
    %s683 = sld [smem:[#allocation11 + $0x6]]
    %s684 = sld [smem:[#allocation11 + $0x7]]
    %s685 = sld [smem:[#allocation11 + $0x8]]
    %s686 = sld [smem:[#allocation11 + $0x9]]
    %s687 = sld [smem:[#allocation11 + $0xa]]
    %s688 = sld [smem:[#allocation11 + $0xb]]
    %s689 = sld [smem:[#allocation11 + $0xc]]
    %s690 = sld [smem:[#allocation11 + $0xd]]
    %s691 = sld [smem:[#allocation11 + $0xe]]
    %s692 = sld [smem:[#allocation11 + $0xf]]
    %s693 = sld [smem:[#allocation13]]
    %s694 = sld [smem:[#allocation13 + $0x1]]
    %s695 = sld [smem:[#allocation13 + $0x2]]
    %s696 = sld [smem:[#allocation13 + $0x3]]
    %s697 = sld [smem:[#allocation13 + $0x4]]
    %s698 = sld [smem:[#allocation13 + $0x5]]
    %s699 = sld [smem:[#allocation13 + $0x6]]
    %s700 = sld [smem:[#allocation13 + $0x7]]
    %s701 = sld [smem:[#allocation13 + $0x8]]
    %s702 = sld [smem:[#allocation13 + $0x9]]
    %s703 = sld [smem:[#allocation13 + $0xa]]
    %s704 = sld [smem:[#allocation13 + $0xb]]
    %s705 = sld [smem:[#allocation13 + $0xc]]
    %s706 = sld [smem:[#allocation13 + $0xd]]
    %s707 = sld [smem:[#allocation13 + $0xe]]
    %s708 = sld [smem:[#allocation13 + $0xf]]
    %s709 = sld [smem:[#allocation2]]
    %v710 = vld [vmem:[#allocation3] sm:$0xff]
    %v711 = vld [vmem:[#allocation3 + $0x8] sm:$0xff]
    %v712 = vld [vmem:[#allocation3 + $0x10] sm:$0xff]
    %v713 = vstv %s101
    %v714 = vmul.f32 %v713, %v710
    %v715 = vmul.f32 %v713, %v711
    %v716 = vmul.f32 %v713, %v712
    %v717 = vstv %s133
    %v718 = vadd.f32 %v714, %v717
    %v719 = vadd.f32 %v715, %v717
    %v720 = vadd.f32 %v716, %v717
    %v721 = vmax.f32 %v718, 0.0
    %v722 = vmax.f32 %v719, 0.0
    %v723 = vmax.f32 %v720, 0.0
    %v724 = vstv %s165
    %v725 = vmul.f32 %v721, %v724
    %v726 = vmul.f32 %v722, %v724
    %v727 = vmul.f32 %v723, %v724
    %v728 = vadd.f32 %v725, 0.0
    %v729 = vadd.f32 %v726, 0.0
    %v730 = vadd.f32 %v727, 0.0
    %v731 = vstv %s197
    %v732 = vmul.f32 %v721, %v731
    %v733 = vmul.f32 %v722, %v731
    %v734 = vmul.f32 %v723, %v731
    %v735 = vadd.f32 %v732, 0.0
    %v736 = vadd.f32 %v733, 0.0
    %v737 = vadd.f32 %v734, 0.0
    %v738 = vstv %s229
    %v739 = vmul.f32 %v721, %v738
    %v740 = vmul.f32 %v722, %v738
    %v741 = vmul.f32 %v723, %v738
    %v742 = vadd.f32 %v739, 0.0
    %v743 = vadd.f32 %v740, 0.0
    %v744 = vadd.f32 %v741, 0.0
    %v745 = vstv %s261
    %v746 = vmul.f32 %v721, %v745
    %v747 = vmul.f32 %v722, %v745
    %v748 = vmul.f32 %v723, %v745
    %v749 = vadd.f32 %v746, 0.0
    %v750 = vadd.f32 %v747, 0.0
    %v751 = vadd.f32 %v748, 0.0
    %v752 = vstv %s293
    %v753 = vmul.f32 %v721, %v752
    %v754 = vmul.f32 %v722, %v752
    %v755 = vmul.f32 %v723, %v752
    %v756 = vadd.f32 %v753, 0.0
    %v757 = vadd.f32 %v754, 0.0
    %v758 = vadd.f32 %v755, 0.0
    %v759 = vstv %s325
    %v760 = vmul.f32 %v721, %v759
    %v761 = vmul.f32 %v722, %v759
    %v762 = vmul.f32 %v723, %v759
    %v763 = vadd.f32 %v760, 0.0
    %v764 = vadd.f32 %v761, 0.0
    %v765 = vadd.f32 %v762, 0.0
    %v766 = vstv %s357
    %v767 = vmul.f32 %v721, %v766
    %v768 = vmul.f32 %v722, %v766
    %v769 = vmul.f32 %v723, %v766
    %v770 = vadd.f32 %v767, 0.0
    %v771 = vadd.f32 %v768, 0.0
    %v772 = vadd.f32 %v769, 0.0
    %v773 = vstv %s389
    %v774 = vmul.f32 %v721, %v773
    %v775 = vmul.f32 %v722, %v773
    %v776 = vmul.f32 %v723, %v773
    %v777 = vadd.f32 %v774, 0.0
    %v778 = vadd.f32 %v775, 0.0
    %v779 = vadd.f32 %v776, 0.0
    %v780 = vstv %s421
    %v781 = vmul.f32 %v721, %v780
    %v782 = vmul.f32 %v722, %v780
    %v783 = vmul.f32 %v723, %v780
    %v784 = vadd.f32 %v781, 0.0
    %v785 = vadd.f32 %v782, 0.0
    %v786 = vadd.f32 %v783, 0.0
    %v787 = vstv %s453
    %v788 = vmul.f32 %v721, %v787
    %v789 = vmul.f32 %v722, %v787
    %v790 = vmul.f32 %v723, %v787
    %v791 = vadd.f32 %v788, 0.0
    %v792 = vadd.f32 %v789, 0.0
    %v793 = vadd.f32 %v790, 0.0
    %v794 = vstv %s485
    %v795 = vmul.f32 %v721, %v794
    %v796 = vmul.f32 %v722, %v794
    %v797 = vmul.f32 %v723, %v794
    %v798 = vadd.f32 %v795, 0.0
    %v799 = vadd.f32 %v796, 0.0
    %v800 = vadd.f32 %v797, 0.0
    %v801 = vstv %s517
    %v802 = vmul.f32 %v721, %v801
    %v803 = vmul.f32 %v722, %v801
    %v804 = vmul.f32 %v723, %v801
    %v805 = vadd.f32 %v802, 0.0
    %v806 = vadd.f32 %v803, 0.0
    %v807 = vadd.f32 %v804, 0.0
    %v808 = vstv %s549
    %v809 = vmul.f32 %v721, %v808
    %v810 = vmul.f32 %v722, %v808
    %v811 = vmul.f32 %v723, %v808
    %v812 = vadd.f32 %v809, 0.0
    %v813 = vadd.f32 %v810, 0.0
    %v814 = vadd.f32 %v811, 0.0
    %v815 = vstv %s581
    %v816 = vmul.f32 %v721, %v815
    %v817 = vmul.f32 %v722, %v815
    %v818 = vmul.f32 %v723, %v815
    %v819 = vadd.f32 %v816, 0.0
    %v820 = vadd.f32 %v817, 0.0
    %v821 = vadd.f32 %v818, 0.0
    %v822 = vstv %s613
    %v823 = vmul.f32 %v721, %v822
    %v824 = vmul.f32 %v722, %v822
    %v825 = vmul.f32 %v723, %v822
    %v826 = vadd.f32 %v823, 0.0
    %v827 = vadd.f32 %v824, 0.0
    %v828 = vadd.f32 %v825, 0.0
    %v829 = vstv %s645
    %v830 = vmul.f32 %v721, %v829
    %v831 = vmul.f32 %v722, %v829
    %v832 = vmul.f32 %v723, %v829
    %v833 = vadd.f32 %v830, 0.0
    %v834 = vadd.f32 %v831, 0.0
    %v835 = vadd.f32 %v832, 0.0
    %v836 = vstv %s102
    %v837 = vmul.f32 %v836, %v710
    %v838 = vmul.f32 %v836, %v711
    %v839 = vmul.f32 %v836, %v712
    %v840 = vstv %s134
    %v841 = vadd.f32 %v837, %v840
    %v842 = vadd.f32 %v838, %v840
    %v843 = vadd.f32 %v839, %v840
    %v844 = vmax.f32 %v841, 0.0
    %v845 = vmax.f32 %v842, 0.0
    %v846 = vmax.f32 %v843, 0.0
    %v847 = vstv %s166
    %v848 = vmul.f32 %v844, %v847
    %v849 = vmul.f32 %v845, %v847
    %v850 = vmul.f32 %v846, %v847
    %v851 = vadd.f32 %v728, %v848
    %v852 = vadd.f32 %v729, %v849
    %v853 = vadd.f32 %v730, %v850
    %v854 = vstv %s198
    %v855 = vmul.f32 %v844, %v854
    %v856 = vmul.f32 %v845, %v854
    %v857 = vmul.f32 %v846, %v854
    %v858 = vadd.f32 %v735, %v855
    %v859 = vadd.f32 %v736, %v856
    %v860 = vadd.f32 %v737, %v857
    %v861 = vstv %s230
    %v862 = vmul.f32 %v844, %v861
    %v863 = vmul.f32 %v845, %v861
    %v864 = vmul.f32 %v846, %v861
    %v865 = vadd.f32 %v742, %v862
    %v866 = vadd.f32 %v743, %v863
    %v867 = vadd.f32 %v744, %v864
    %v868 = vstv %s262
    %v869 = vmul.f32 %v844, %v868
    %v870 = vmul.f32 %v845, %v868
    %v871 = vmul.f32 %v846, %v868
    %v872 = vadd.f32 %v749, %v869
    %v873 = vadd.f32 %v750, %v870
    %v874 = vadd.f32 %v751, %v871
    %v875 = vstv %s294
    %v876 = vmul.f32 %v844, %v875
    %v877 = vmul.f32 %v845, %v875
    %v878 = vmul.f32 %v846, %v875
    %v879 = vadd.f32 %v756, %v876
    %v880 = vadd.f32 %v757, %v877
    %v881 = vadd.f32 %v758, %v878
    %v882 = vstv %s326
    %v883 = vmul.f32 %v844, %v882
    %v884 = vmul.f32 %v845, %v882
    %v885 = vmul.f32 %v846, %v882
    %v886 = vadd.f32 %v763, %v883
    %v887 = vadd.f32 %v764, %v884
    %v888 = vadd.f32 %v765, %v885
    %v889 = vstv %s358
    %v890 = vmul.f32 %v844, %v889
    %v891 = vmul.f32 %v845, %v889
    %v892 = vmul.f32 %v846, %v889
    %v893 = vadd.f32 %v770, %v890
    %v894 = vadd.f32 %v771, %v891
    %v895 = vadd.f32 %v772, %v892
    %v896 = vstv %s390
    %v897 = vmul.f32 %v844, %v896
    %v898 = vmul.f32 %v845, %v896
    %v899 = vmul.f32 %v846, %v896
    %v900 = vadd.f32 %v777, %v897
    %v901 = vadd.f32 %v778, %v898
    %v902 = vadd.f32 %v779, %v899
    %v903 = vstv %s422
    %v904 = vmul.f32 %v844, %v903
    %v905 = vmul.f32 %v845, %v903
    %v906 = vmul.f32 %v846, %v903
    %v907 = vadd.f32 %v784, %v904
    %v908 = vadd.f32 %v785, %v905
    %v909 = vadd.f32 %v786, %v906
    %v910 = vstv %s454
    %v911 = vmul.f32 %v844, %v910
    %v912 = vmul.f32 %v845, %v910
    %v913 = vmul.f32 %v846, %v910
    %v914 = vadd.f32 %v791, %v911
    %v915 = vadd.f32 %v792, %v912
    %v916 = vadd.f32 %v793, %v913
    %v917 = vstv %s486
    %v918 = vmul.f32 %v844, %v917
    %v919 = vmul.f32 %v845, %v917
    %v920 = vmul.f32 %v846, %v917
    %v921 = vadd.f32 %v798, %v918
    %v922 = vadd.f32 %v799, %v919
    %v923 = vadd.f32 %v800, %v920
    %v924 = vstv %s518
    %v925 = vmul.f32 %v844, %v924
    %v926 = vmul.f32 %v845, %v924
    %v927 = vmul.f32 %v846, %v924
    %v928 = vadd.f32 %v805, %v925
    %v929 = vadd.f32 %v806, %v926
    %v930 = vadd.f32 %v807, %v927
    %v931 = vstv %s550
    %v932 = vmul.f32 %v844, %v931
    %v933 = vmul.f32 %v845, %v931
    %v934 = vmul.f32 %v846, %v931
    %v935 = vadd.f32 %v812, %v932
    %v936 = vadd.f32 %v813, %v933
    %v937 = vadd.f32 %v814, %v934
    %v938 = vstv %s582
    %v939 = vmul.f32 %v844, %v938
    %v940 = vmul.f32 %v845, %v938
    %v941 = vmul.f32 %v846, %v938
    %v942 = vadd.f32 %v819, %v939
    %v943 = vadd.f32 %v820, %v940
    %v944 = vadd.f32 %v821, %v941
    %v945 = vstv %s614
    %v946 = vmul.f32 %v844, %v945
    %v947 = vmul.f32 %v845, %v945
    %v948 = vmul.f32 %v846, %v945
    %v949 = vadd.f32 %v826, %v946
    %v950 = vadd.f32 %v827, %v947
    %v951 = vadd.f32 %v828, %v948
    %v952 = vstv %s646
    %v953 = vmul.f32 %v844, %v952
    %v954 = vmul.f32 %v845, %v952
    %v955 = vmul.f32 %v846, %v952
    %v956 = vadd.f32 %v833, %v953
    %v957 = vadd.f32 %v834, %v954
    %v958 = vadd.f32 %v835, %v955
    %v959 = vstv %s103
    %v960 = vmul.f32 %v959, %v710
    %v961 = vmul.f32 %v959, %v711
    %v962 = vmul.f32 %v959, %v712
    %v963 = vstv %s135
    %v964 = vadd.f32 %v960, %v963
    %v965 = vadd.f32 %v961, %v963
    %v966 = vadd.f32 %v962, %v963
    %v967 = vmax.f32 %v964, 0.0
    %v968 = vmax.f32 %v965, 0.0
    %v969 = vmax.f32 %v966, 0.0
    %v970 = vstv %s167
    %v971 = vmul.f32 %v967, %v970
    %v972 = vmul.f32 %v968, %v970
    %v973 = vmul.f32 %v969, %v970
    %v974 = vadd.f32 %v851, %v971
    %v975 = vadd.f32 %v852, %v972
    %v976 = vadd.f32 %v853, %v973
    %v977 = vstv %s199
    %v978 = vmul.f32 %v967, %v977
    %v979 = vmul.f32 %v968, %v977
    %v980 = vmul.f32 %v969, %v977
    %v981 = vadd.f32 %v858, %v978
    %v982 = vadd.f32 %v859, %v979
    %v983 = vadd.f32 %v860, %v980
    %v984 = vstv %s231
    %v985 = vmul.f32 %v967, %v984
    %v986 = vmul.f32 %v968, %v984
    %v987 = vmul.f32 %v969, %v984
    %v988 = vadd.f32 %v865, %v985
    %v989 = vadd.f32 %v866, %v986
    %v990 = vadd.f32 %v867, %v987
    %v991 = vstv %s263
    %v992 = vmul.f32 %v967, %v991
    %v993 = vmul.f32 %v968, %v991
    %v994 = vmul.f32 %v969, %v991
    %v995 = vadd.f32 %v872, %v992
    %v996 = vadd.f32 %v873, %v993
    %v997 = vadd.f32 %v874, %v994
    %v998 = vstv %s295
    %v999 = vmul.f32 %v967, %v998
    %v1000 = vmul.f32 %v968, %v998
    %v1001 = vmul.f32 %v969, %v998
    %v1002 = vadd.f32 %v879, %v999
    %v1003 = vadd.f32 %v880, %v1000
    %v1004 = vadd.f32 %v881, %v1001
    %v1005 = vstv %s327
    %v1006 = vmul.f32 %v967, %v1005
    %v1007 = vmul.f32 %v968, %v1005
    %v1008 = vmul.f32 %v969, %v1005
    %v1009 = vadd.f32 %v886, %v1006
    %v1010 = vadd.f32 %v887, %v1007
    %v1011 = vadd.f32 %v888, %v1008
    %v1012 = vstv %s359
    %v1013 = vmul.f32 %v967, %v1012
    %v1014 = vmul.f32 %v968, %v1012
    %v1015 = vmul.f32 %v969, %v1012
    %v1016 = vadd.f32 %v893, %v1013
    %v1017 = vadd.f32 %v894, %v1014
    %v1018 = vadd.f32 %v895, %v1015
    %v1019 = vstv %s391
    %v1020 = vmul.f32 %v967, %v1019
    %v1021 = vmul.f32 %v968, %v1019
    %v1022 = vmul.f32 %v969, %v1019
    %v1023 = vadd.f32 %v900, %v1020
    %v1024 = vadd.f32 %v901, %v1021
    %v1025 = vadd.f32 %v902, %v1022
    %v1026 = vstv %s423
    %v1027 = vmul.f32 %v967, %v1026
    %v1028 = vmul.f32 %v968, %v1026
    %v1029 = vmul.f32 %v969, %v1026
    %v1030 = vadd.f32 %v907, %v1027
    %v1031 = vadd.f32 %v908, %v1028
    %v1032 = vadd.f32 %v909, %v1029
    %v1033 = vstv %s455
    %v1034 = vmul.f32 %v967, %v1033
    %v1035 = vmul.f32 %v968, %v1033
    %v1036 = vmul.f32 %v969, %v1033
    %v1037 = vadd.f32 %v914, %v1034
    %v1038 = vadd.f32 %v915, %v1035
    %v1039 = vadd.f32 %v916, %v1036
    %v1040 = vstv %s487
    %v1041 = vmul.f32 %v967, %v1040
    %v1042 = vmul.f32 %v968, %v1040
    %v1043 = vmul.f32 %v969, %v1040
    %v1044 = vadd.f32 %v921, %v1041
    %v1045 = vadd.f32 %v922, %v1042
    %v1046 = vadd.f32 %v923, %v1043
    %v1047 = vstv %s519
    %v1048 = vmul.f32 %v967, %v1047
    %v1049 = vmul.f32 %v968, %v1047
    %v1050 = vmul.f32 %v969, %v1047
    %v1051 = vadd.f32 %v928, %v1048
    %v1052 = vadd.f32 %v929, %v1049
    %v1053 = vadd.f32 %v930, %v1050
    %v1054 = vstv %s551
    %v1055 = vmul.f32 %v967, %v1054
    %v1056 = vmul.f32 %v968, %v1054
    %v1057 = vmul.f32 %v969, %v1054
    %v1058 = vadd.f32 %v935, %v1055
    %v1059 = vadd.f32 %v936, %v1056
    %v1060 = vadd.f32 %v937, %v1057
    %v1061 = vstv %s583
    %v1062 = vmul.f32 %v967, %v1061
    %v1063 = vmul.f32 %v968, %v1061
    %v1064 = vmul.f32 %v969, %v1061
    %v1065 = vadd.f32 %v942, %v1062
    %v1066 = vadd.f32 %v943, %v1063
    %v1067 = vadd.f32 %v944, %v1064
    %v1068 = vstv %s615
    %v1069 = vmul.f32 %v967, %v1068
    %v1070 = vmul.f32 %v968, %v1068
    %v1071 = vmul.f32 %v969, %v1068
    %v1072 = vadd.f32 %v949, %v1069
    %v1073 = vadd.f32 %v950, %v1070
    %v1074 = vadd.f32 %v951, %v1071
    %v1075 = vstv %s647
    %v1076 = vmul.f32 %v967, %v1075
    %v1077 = vmul.f32 %v968, %v1075
    %v1078 = vmul.f32 %v969, %v1075
    %v1079 = vadd.f32 %v956, %v1076
    %v1080 = vadd.f32 %v957, %v1077
    %v1081 = vadd.f32 %v958, %v1078
    %v1082 = vstv %s104
    %v1083 = vmul.f32 %v1082, %v710
    %v1084 = vmul.f32 %v1082, %v711
    %v1085 = vmul.f32 %v1082, %v712
    %v1086 = vstv %s136
    %v1087 = vadd.f32 %v1083, %v1086
    %v1088 = vadd.f32 %v1084, %v1086
    %v1089 = vadd.f32 %v1085, %v1086
    %v1090 = vmax.f32 %v1087, 0.0
    %v1091 = vmax.f32 %v1088, 0.0
    %v1092 = vmax.f32 %v1089, 0.0
    %v1093 = vstv %s168
    %v1094 = vmul.f32 %v1090, %v1093
    %v1095 = vmul.f32 %v1091, %v1093
    %v1096 = vmul.f32 %v1092, %v1093
    %v1097 = vadd.f32 %v974, %v1094
    %v1098 = vadd.f32 %v975, %v1095
    %v1099 = vadd.f32 %v976, %v1096
    %v1100 = vstv %s200
    %v1101 = vmul.f32 %v1090, %v1100
    %v1102 = vmul.f32 %v1091, %v1100
    %v1103 = vmul.f32 %v1092, %v1100
    %v1104 = vadd.f32 %v981, %v1101
    %v1105 = vadd.f32 %v982, %v1102
    %v1106 = vadd.f32 %v983, %v1103
    %v1107 = vstv %s232
    %v1108 = vmul.f32 %v1090, %v1107
    %v1109 = vmul.f32 %v1091, %v1107
    %v1110 = vmul.f32 %v1092, %v1107
    %v1111 = vadd.f32 %v988, %v1108
    %v1112 = vadd.f32 %v989, %v1109
    %v1113 = vadd.f32 %v990, %v1110
    %v1114 = vstv %s264
    %v1115 = vmul.f32 %v1090, %v1114
    %v1116 = vmul.f32 %v1091, %v1114
    %v1117 = vmul.f32 %v1092, %v1114
    %v1118 = vadd.f32 %v995, %v1115
    %v1119 = vadd.f32 %v996, %v1116
    %v1120 = vadd.f32 %v997, %v1117
    %v1121 = vstv %s296
    %v1122 = vmul.f32 %v1090, %v1121
    %v1123 = vmul.f32 %v1091, %v1121
    %v1124 = vmul.f32 %v1092, %v1121
    %v1125 = vadd.f32 %v1002, %v1122
    %v1126 = vadd.f32 %v1003, %v1123
    %v1127 = vadd.f32 %v1004, %v1124
    %v1128 = vstv %s328
    %v1129 = vmul.f32 %v1090, %v1128
    %v1130 = vmul.f32 %v1091, %v1128
    %v1131 = vmul.f32 %v1092, %v1128
    %v1132 = vadd.f32 %v1009, %v1129
    %v1133 = vadd.f32 %v1010, %v1130
    %v1134 = vadd.f32 %v1011, %v1131
    %v1135 = vstv %s360
    %v1136 = vmul.f32 %v1090, %v1135
    %v1137 = vmul.f32 %v1091, %v1135
    %v1138 = vmul.f32 %v1092, %v1135
    %v1139 = vadd.f32 %v1016, %v1136
    %v1140 = vadd.f32 %v1017, %v1137
    %v1141 = vadd.f32 %v1018, %v1138
    %v1142 = vstv %s392
    %v1143 = vmul.f32 %v1090, %v1142
    %v1144 = vmul.f32 %v1091, %v1142
    %v1145 = vmul.f32 %v1092, %v1142
    %v1146 = vadd.f32 %v1023, %v1143
    %v1147 = vadd.f32 %v1024, %v1144
    %v1148 = vadd.f32 %v1025, %v1145
    %v1149 = vstv %s424
    %v1150 = vmul.f32 %v1090, %v1149
    %v1151 = vmul.f32 %v1091, %v1149
    %v1152 = vmul.f32 %v1092, %v1149
    %v1153 = vadd.f32 %v1030, %v1150
    %v1154 = vadd.f32 %v1031, %v1151
    %v1155 = vadd.f32 %v1032, %v1152
    %v1156 = vstv %s456
    %v1157 = vmul.f32 %v1090, %v1156
    %v1158 = vmul.f32 %v1091, %v1156
    %v1159 = vmul.f32 %v1092, %v1156
    %v1160 = vadd.f32 %v1037, %v1157
    %v1161 = vadd.f32 %v1038, %v1158
    %v1162 = vadd.f32 %v1039, %v1159
    %v1163 = vstv %s488
    %v1164 = vmul.f32 %v1090, %v1163
    %v1165 = vmul.f32 %v1091, %v1163
    %v1166 = vmul.f32 %v1092, %v1163
    %v1167 = vadd.f32 %v1044, %v1164
    %v1168 = vadd.f32 %v1045, %v1165
    %v1169 = vadd.f32 %v1046, %v1166
    %v1170 = vstv %s520
    %v1171 = vmul.f32 %v1090, %v1170
    %v1172 = vmul.f32 %v1091, %v1170
    %v1173 = vmul.f32 %v1092, %v1170
    %v1174 = vadd.f32 %v1051, %v1171
    %v1175 = vadd.f32 %v1052, %v1172
    %v1176 = vadd.f32 %v1053, %v1173
    %v1177 = vstv %s552
    %v1178 = vmul.f32 %v1090, %v1177
    %v1179 = vmul.f32 %v1091, %v1177
    %v1180 = vmul.f32 %v1092, %v1177
    %v1181 = vadd.f32 %v1058, %v1178
    %v1182 = vadd.f32 %v1059, %v1179
    %v1183 = vadd.f32 %v1060, %v1180
    %v1184 = vstv %s584
    %v1185 = vmul.f32 %v1090, %v1184
    %v1186 = vmul.f32 %v1091, %v1184
    %v1187 = vmul.f32 %v1092, %v1184
    %v1188 = vadd.f32 %v1065, %v1185
    %v1189 = vadd.f32 %v1066, %v1186
    %v1190 = vadd.f32 %v1067, %v1187
    %v1191 = vstv %s616
    %v1192 = vmul.f32 %v1090, %v1191
    %v1193 = vmul.f32 %v1091, %v1191
    %v1194 = vmul.f32 %v1092, %v1191
    %v1195 = vadd.f32 %v1072, %v1192
    %v1196 = vadd.f32 %v1073, %v1193
    %v1197 = vadd.f32 %v1074, %v1194
    %v1198 = vstv %s648
    %v1199 = vmul.f32 %v1090, %v1198
    %v1200 = vmul.f32 %v1091, %v1198
    %v1201 = vmul.f32 %v1092, %v1198
    %v1202 = vadd.f32 %v1079, %v1199
    %v1203 = vadd.f32 %v1080, %v1200
    %v1204 = vadd.f32 %v1081, %v1201
    %v1205 = vstv %s105
    %v1206 = vmul.f32 %v1205, %v710
    %v1207 = vmul.f32 %v1205, %v711
    %v1208 = vmul.f32 %v1205, %v712
    %v1209 = vstv %s137
    %v1210 = vadd.f32 %v1206, %v1209
    %v1211 = vadd.f32 %v1207, %v1209
    %v1212 = vadd.f32 %v1208, %v1209
    %v1213 = vmax.f32 %v1210, 0.0
    %v1214 = vmax.f32 %v1211, 0.0
    %v1215 = vmax.f32 %v1212, 0.0
    %v1216 = vstv %s169
    %v1217 = vmul.f32 %v1213, %v1216
    %v1218 = vmul.f32 %v1214, %v1216
    %v1219 = vmul.f32 %v1215, %v1216
    %v1220 = vadd.f32 %v1097, %v1217
    %v1221 = vadd.f32 %v1098, %v1218
    %v1222 = vadd.f32 %v1099, %v1219
    %v1223 = vstv %s201
    %v1224 = vmul.f32 %v1213, %v1223
    %v1225 = vmul.f32 %v1214, %v1223
    %v1226 = vmul.f32 %v1215, %v1223
    %v1227 = vadd.f32 %v1104, %v1224
    %v1228 = vadd.f32 %v1105, %v1225
    %v1229 = vadd.f32 %v1106, %v1226
    %v1230 = vstv %s233
    %v1231 = vmul.f32 %v1213, %v1230
    %v1232 = vmul.f32 %v1214, %v1230
    %v1233 = vmul.f32 %v1215, %v1230
    %v1234 = vadd.f32 %v1111, %v1231
    %v1235 = vadd.f32 %v1112, %v1232
    %v1236 = vadd.f32 %v1113, %v1233
    %v1237 = vstv %s265
    %v1238 = vmul.f32 %v1213, %v1237
    %v1239 = vmul.f32 %v1214, %v1237
    %v1240 = vmul.f32 %v1215, %v1237
    %v1241 = vadd.f32 %v1118, %v1238
    %v1242 = vadd.f32 %v1119, %v1239
    %v1243 = vadd.f32 %v1120, %v1240
    %v1244 = vstv %s297
    %v1245 = vmul.f32 %v1213, %v1244
    %v1246 = vmul.f32 %v1214, %v1244
    %v1247 = vmul.f32 %v1215, %v1244
    %v1248 = vadd.f32 %v1125, %v1245
    %v1249 = vadd.f32 %v1126, %v1246
    %v1250 = vadd.f32 %v1127, %v1247
    %v1251 = vstv %s329
    %v1252 = vmul.f32 %v1213, %v1251
    %v1253 = vmul.f32 %v1214, %v1251
    %v1254 = vmul.f32 %v1215, %v1251
    %v1255 = vadd.f32 %v1132, %v1252
    %v1256 = vadd.f32 %v1133, %v1253
    %v1257 = vadd.f32 %v1134, %v1254
    %v1258 = vstv %s361
    %v1259 = vmul.f32 %v1213, %v1258
    %v1260 = vmul.f32 %v1214, %v1258
    %v1261 = vmul.f32 %v1215, %v1258
    %v1262 = vadd.f32 %v1139, %v1259
    %v1263 = vadd.f32 %v1140, %v1260
    %v1264 = vadd.f32 %v1141, %v1261
    %v1265 = vstv %s393
    %v1266 = vmul.f32 %v1213, %v1265
    %v1267 = vmul.f32 %v1214, %v1265
    %v1268 = vmul.f32 %v1215, %v1265
    %v1269 = vadd.f32 %v1146, %v1266
    %v1270 = vadd.f32 %v1147, %v1267
    %v1271 = vadd.f32 %v1148, %v1268
    %v1272 = vstv %s425
    %v1273 = vmul.f32 %v1213, %v1272
    %v1274 = vmul.f32 %v1214, %v1272
    %v1275 = vmul.f32 %v1215, %v1272
    %v1276 = vadd.f32 %v1153, %v1273
    %v1277 = vadd.f32 %v1154, %v1274
    %v1278 = vadd.f32 %v1155, %v1275
    %v1279 = vstv %s457
    %v1280 = vmul.f32 %v1213, %v1279
    %v1281 = vmul.f32 %v1214, %v1279
    %v1282 = vmul.f32 %v1215, %v1279
    %v1283 = vadd.f32 %v1160, %v1280
    %v1284 = vadd.f32 %v1161, %v1281
    %v1285 = vadd.f32 %v1162, %v1282
    %v1286 = vstv %s489
    %v1287 = vmul.f32 %v1213, %v1286
    %v1288 = vmul.f32 %v1214, %v1286
    %v1289 = vmul.f32 %v1215, %v1286
    %v1290 = vadd.f32 %v1167, %v1287
    %v1291 = vadd.f32 %v1168, %v1288
    %v1292 = vadd.f32 %v1169, %v1289
    %v1293 = vstv %s521
    %v1294 = vmul.f32 %v1213, %v1293
    %v1295 = vmul.f32 %v1214, %v1293
    %v1296 = vmul.f32 %v1215, %v1293
    %v1297 = vadd.f32 %v1174, %v1294
    %v1298 = vadd.f32 %v1175, %v1295
    %v1299 = vadd.f32 %v1176, %v1296
    %v1300 = vstv %s553
    %v1301 = vmul.f32 %v1213, %v1300
    %v1302 = vmul.f32 %v1214, %v1300
    %v1303 = vmul.f32 %v1215, %v1300
    %v1304 = vadd.f32 %v1181, %v1301
    %v1305 = vadd.f32 %v1182, %v1302
    %v1306 = vadd.f32 %v1183, %v1303
    %v1307 = vstv %s585
    %v1308 = vmul.f32 %v1213, %v1307
    %v1309 = vmul.f32 %v1214, %v1307
    %v1310 = vmul.f32 %v1215, %v1307
    %v1311 = vadd.f32 %v1188, %v1308
    %v1312 = vadd.f32 %v1189, %v1309
    %v1313 = vadd.f32 %v1190, %v1310
    %v1314 = vstv %s617
    %v1315 = vmul.f32 %v1213, %v1314
    %v1316 = vmul.f32 %v1214, %v1314
    %v1317 = vmul.f32 %v1215, %v1314
    %v1318 = vadd.f32 %v1195, %v1315
    %v1319 = vadd.f32 %v1196, %v1316
    %v1320 = vadd.f32 %v1197, %v1317
    %v1321 = vstv %s649
    %v1322 = vmul.f32 %v1213, %v1321
    %v1323 = vmul.f32 %v1214, %v1321
    %v1324 = vmul.f32 %v1215, %v1321
    %v1325 = vadd.f32 %v1202, %v1322
    %v1326 = vadd.f32 %v1203, %v1323
    %v1327 = vadd.f32 %v1204, %v1324
    %v1328 = vstv %s106
    %v1329 = vmul.f32 %v1328, %v710
    %v1330 = vmul.f32 %v1328, %v711
    %v1331 = vmul.f32 %v1328, %v712
    %v1332 = vstv %s138
    %v1333 = vadd.f32 %v1329, %v1332
    %v1334 = vadd.f32 %v1330, %v1332
    %v1335 = vadd.f32 %v1331, %v1332
    %v1336 = vmax.f32 %v1333, 0.0
    %v1337 = vmax.f32 %v1334, 0.0
    %v1338 = vmax.f32 %v1335, 0.0
    %v1339 = vstv %s170
    %v1340 = vmul.f32 %v1336, %v1339
    %v1341 = vmul.f32 %v1337, %v1339
    %v1342 = vmul.f32 %v1338, %v1339
    %v1343 = vadd.f32 %v1220, %v1340
    %v1344 = vadd.f32 %v1221, %v1341
    %v1345 = vadd.f32 %v1222, %v1342
    %v1346 = vstv %s202
    %v1347 = vmul.f32 %v1336, %v1346
    %v1348 = vmul.f32 %v1337, %v1346
    %v1349 = vmul.f32 %v1338, %v1346
    %v1350 = vadd.f32 %v1227, %v1347
    %v1351 = vadd.f32 %v1228, %v1348
    %v1352 = vadd.f32 %v1229, %v1349
    %v1353 = vstv %s234
    %v1354 = vmul.f32 %v1336, %v1353
    %v1355 = vmul.f32 %v1337, %v1353
    %v1356 = vmul.f32 %v1338, %v1353
    %v1357 = vadd.f32 %v1234, %v1354
    %v1358 = vadd.f32 %v1235, %v1355
    %v1359 = vadd.f32 %v1236, %v1356
    %v1360 = vstv %s266
    %v1361 = vmul.f32 %v1336, %v1360
    %v1362 = vmul.f32 %v1337, %v1360
    %v1363 = vmul.f32 %v1338, %v1360
    %v1364 = vadd.f32 %v1241, %v1361
    %v1365 = vadd.f32 %v1242, %v1362
    %v1366 = vadd.f32 %v1243, %v1363
    %v1367 = vstv %s298
    %v1368 = vmul.f32 %v1336, %v1367
    %v1369 = vmul.f32 %v1337, %v1367
    %v1370 = vmul.f32 %v1338, %v1367
    %v1371 = vadd.f32 %v1248, %v1368
    %v1372 = vadd.f32 %v1249, %v1369
    %v1373 = vadd.f32 %v1250, %v1370
    %v1374 = vstv %s330
    %v1375 = vmul.f32 %v1336, %v1374
    %v1376 = vmul.f32 %v1337, %v1374
    %v1377 = vmul.f32 %v1338, %v1374
    %v1378 = vadd.f32 %v1255, %v1375
    %v1379 = vadd.f32 %v1256, %v1376
    %v1380 = vadd.f32 %v1257, %v1377
    %v1381 = vstv %s362
    %v1382 = vmul.f32 %v1336, %v1381
    %v1383 = vmul.f32 %v1337, %v1381
    %v1384 = vmul.f32 %v1338, %v1381
    %v1385 = vadd.f32 %v1262, %v1382
    %v1386 = vadd.f32 %v1263, %v1383
    %v1387 = vadd.f32 %v1264, %v1384
    %v1388 = vstv %s394
    %v1389 = vmul.f32 %v1336, %v1388
    %v1390 = vmul.f32 %v1337, %v1388
    %v1391 = vmul.f32 %v1338, %v1388
    %v1392 = vadd.f32 %v1269, %v1389
    %v1393 = vadd.f32 %v1270, %v1390
    %v1394 = vadd.f32 %v1271, %v1391
    %v1395 = vstv %s426
    %v1396 = vmul.f32 %v1336, %v1395
    %v1397 = vmul.f32 %v1337, %v1395
    %v1398 = vmul.f32 %v1338, %v1395
    %v1399 = vadd.f32 %v1276, %v1396
    %v1400 = vadd.f32 %v1277, %v1397
    %v1401 = vadd.f32 %v1278, %v1398
    %v1402 = vstv %s458
    %v1403 = vmul.f32 %v1336, %v1402
    %v1404 = vmul.f32 %v1337, %v1402
    %v1405 = vmul.f32 %v1338, %v1402
    %v1406 = vadd.f32 %v1283, %v1403
    %v1407 = vadd.f32 %v1284, %v1404
    %v1408 = vadd.f32 %v1285, %v1405
    %v1409 = vstv %s490
    %v1410 = vmul.f32 %v1336, %v1409
    %v1411 = vmul.f32 %v1337, %v1409
    %v1412 = vmul.f32 %v1338, %v1409
    %v1413 = vadd.f32 %v1290, %v1410
    %v1414 = vadd.f32 %v1291, %v1411
    %v1415 = vadd.f32 %v1292, %v1412
    %v1416 = vstv %s522
    %v1417 = vmul.f32 %v1336, %v1416
    %v1418 = vmul.f32 %v1337, %v1416
    %v1419 = vmul.f32 %v1338, %v1416
    %v1420 = vadd.f32 %v1297, %v1417
    %v1421 = vadd.f32 %v1298, %v1418
    %v1422 = vadd.f32 %v1299, %v1419
    %v1423 = vstv %s554
    %v1424 = vmul.f32 %v1336, %v1423
    %v1425 = vmul.f32 %v1337, %v1423
    %v1426 = vmul.f32 %v1338, %v1423
    %v1427 = vadd.f32 %v1304, %v1424
    %v1428 = vadd.f32 %v1305, %v1425
    %v1429 = vadd.f32 %v1306, %v1426
    %v1430 = vstv %s586
    %v1431 = vmul.f32 %v1336, %v1430
    %v1432 = vmul.f32 %v1337, %v1430
    %v1433 = vmul.f32 %v1338, %v1430
    %v1434 = vadd.f32 %v1311, %v1431
    %v1435 = vadd.f32 %v1312, %v1432
    %v1436 = vadd.f32 %v1313, %v1433
    %v1437 = vstv %s618
    %v1438 = vmul.f32 %v1336, %v1437
    %v1439 = vmul.f32 %v1337, %v1437
    %v1440 = vmul.f32 %v1338, %v1437
    %v1441 = vadd.f32 %v1318, %v1438
    %v1442 = vadd.f32 %v1319, %v1439
    %v1443 = vadd.f32 %v1320, %v1440
    %v1444 = vstv %s650
    %v1445 = vmul.f32 %v1336, %v1444
    %v1446 = vmul.f32 %v1337, %v1444
    %v1447 = vmul.f32 %v1338, %v1444
    %v1448 = vadd.f32 %v1325, %v1445
    %v1449 = vadd.f32 %v1326, %v1446
    %v1450 = vadd.f32 %v1327, %v1447
    %v1451 = vstv %s107
    %v1452 = vmul.f32 %v1451, %v710
    %v1453 = vmul.f32 %v1451, %v711
    %v1454 = vmul.f32 %v1451, %v712
    %v1455 = vstv %s139
    %v1456 = vadd.f32 %v1452, %v1455
    %v1457 = vadd.f32 %v1453, %v1455
    %v1458 = vadd.f32 %v1454, %v1455
    %v1459 = vmax.f32 %v1456, 0.0
    %v1460 = vmax.f32 %v1457, 0.0
    %v1461 = vmax.f32 %v1458, 0.0
    %v1462 = vstv %s171
    %v1463 = vmul.f32 %v1459, %v1462
    %v1464 = vmul.f32 %v1460, %v1462
    %v1465 = vmul.f32 %v1461, %v1462
    %v1466 = vadd.f32 %v1343, %v1463
    %v1467 = vadd.f32 %v1344, %v1464
    %v1468 = vadd.f32 %v1345, %v1465
    %v1469 = vstv %s203
    %v1470 = vmul.f32 %v1459, %v1469
    %v1471 = vmul.f32 %v1460, %v1469
    %v1472 = vmul.f32 %v1461, %v1469
    %v1473 = vadd.f32 %v1350, %v1470
    %v1474 = vadd.f32 %v1351, %v1471
    %v1475 = vadd.f32 %v1352, %v1472
    %v1476 = vstv %s235
    %v1477 = vmul.f32 %v1459, %v1476
    %v1478 = vmul.f32 %v1460, %v1476
    %v1479 = vmul.f32 %v1461, %v1476
    %v1480 = vadd.f32 %v1357, %v1477
    %v1481 = vadd.f32 %v1358, %v1478
    %v1482 = vadd.f32 %v1359, %v1479
    %v1483 = vstv %s267
    %v1484 = vmul.f32 %v1459, %v1483
    %v1485 = vmul.f32 %v1460, %v1483
    %v1486 = vmul.f32 %v1461, %v1483
    %v1487 = vadd.f32 %v1364, %v1484
    %v1488 = vadd.f32 %v1365, %v1485
    %v1489 = vadd.f32 %v1366, %v1486
    %v1490 = vstv %s299
    %v1491 = vmul.f32 %v1459, %v1490
    %v1492 = vmul.f32 %v1460, %v1490
    %v1493 = vmul.f32 %v1461, %v1490
    %v1494 = vadd.f32 %v1371, %v1491
    %v1495 = vadd.f32 %v1372, %v1492
    %v1496 = vadd.f32 %v1373, %v1493
    %v1497 = vstv %s331
    %v1498 = vmul.f32 %v1459, %v1497
    %v1499 = vmul.f32 %v1460, %v1497
    %v1500 = vmul.f32 %v1461, %v1497
    %v1501 = vadd.f32 %v1378, %v1498
    %v1502 = vadd.f32 %v1379, %v1499
    %v1503 = vadd.f32 %v1380, %v1500
    %v1504 = vstv %s363
    %v1505 = vmul.f32 %v1459, %v1504
    %v1506 = vmul.f32 %v1460, %v1504
    %v1507 = vmul.f32 %v1461, %v1504
    %v1508 = vadd.f32 %v1385, %v1505
    %v1509 = vadd.f32 %v1386, %v1506
    %v1510 = vadd.f32 %v1387, %v1507
    %v1511 = vstv %s395
    %v1512 = vmul.f32 %v1459, %v1511
    %v1513 = vmul.f32 %v1460, %v1511
    %v1514 = vmul.f32 %v1461, %v1511
    %v1515 = vadd.f32 %v1392, %v1512
    %v1516 = vadd.f32 %v1393, %v1513
    %v1517 = vadd.f32 %v1394, %v1514
    %v1518 = vstv %s427
    %v1519 = vmul.f32 %v1459, %v1518
    %v1520 = vmul.f32 %v1460, %v1518
    %v1521 = vmul.f32 %v1461, %v1518
    %v1522 = vadd.f32 %v1399, %v1519
    %v1523 = vadd.f32 %v1400, %v1520
    %v1524 = vadd.f32 %v1401, %v1521
    %v1525 = vstv %s459
    %v1526 = vmul.f32 %v1459, %v1525
    %v1527 = vmul.f32 %v1460, %v1525
    %v1528 = vmul.f32 %v1461, %v1525
    %v1529 = vadd.f32 %v1406, %v1526
    %v1530 = vadd.f32 %v1407, %v1527
    %v1531 = vadd.f32 %v1408, %v1528
    %v1532 = vstv %s491
    %v1533 = vmul.f32 %v1459, %v1532
    %v1534 = vmul.f32 %v1460, %v1532
    %v1535 = vmul.f32 %v1461, %v1532
    %v1536 = vadd.f32 %v1413, %v1533
    %v1537 = vadd.f32 %v1414, %v1534
    %v1538 = vadd.f32 %v1415, %v1535
    %v1539 = vstv %s523
    %v1540 = vmul.f32 %v1459, %v1539
    %v1541 = vmul.f32 %v1460, %v1539
    %v1542 = vmul.f32 %v1461, %v1539
    %v1543 = vadd.f32 %v1420, %v1540
    %v1544 = vadd.f32 %v1421, %v1541
    %v1545 = vadd.f32 %v1422, %v1542
    %v1546 = vstv %s555
    %v1547 = vmul.f32 %v1459, %v1546
    %v1548 = vmul.f32 %v1460, %v1546
    %v1549 = vmul.f32 %v1461, %v1546
    %v1550 = vadd.f32 %v1427, %v1547
    %v1551 = vadd.f32 %v1428, %v1548
    %v1552 = vadd.f32 %v1429, %v1549
    %v1553 = vstv %s587
    %v1554 = vmul.f32 %v1459, %v1553
    %v1555 = vmul.f32 %v1460, %v1553
    %v1556 = vmul.f32 %v1461, %v1553
    %v1557 = vadd.f32 %v1434, %v1554
    %v1558 = vadd.f32 %v1435, %v1555
    %v1559 = vadd.f32 %v1436, %v1556
    %v1560 = vstv %s619
    %v1561 = vmul.f32 %v1459, %v1560
    %v1562 = vmul.f32 %v1460, %v1560
    %v1563 = vmul.f32 %v1461, %v1560
    %v1564 = vadd.f32 %v1441, %v1561
    %v1565 = vadd.f32 %v1442, %v1562
    %v1566 = vadd.f32 %v1443, %v1563
    %v1567 = vstv %s651
    %v1568 = vmul.f32 %v1459, %v1567
    %v1569 = vmul.f32 %v1460, %v1567
    %v1570 = vmul.f32 %v1461, %v1567
    %v1571 = vadd.f32 %v1448, %v1568
    %v1572 = vadd.f32 %v1449, %v1569
    %v1573 = vadd.f32 %v1450, %v1570
    %v1574 = vstv %s108
    %v1575 = vmul.f32 %v1574, %v710
    %v1576 = vmul.f32 %v1574, %v711
    %v1577 = vmul.f32 %v1574, %v712
    %v1578 = vstv %s140
    %v1579 = vadd.f32 %v1575, %v1578
    %v1580 = vadd.f32 %v1576, %v1578
    %v1581 = vadd.f32 %v1577, %v1578
    %v1582 = vmax.f32 %v1579, 0.0
    %v1583 = vmax.f32 %v1580, 0.0
    %v1584 = vmax.f32 %v1581, 0.0
    %v1585 = vstv %s172
    %v1586 = vmul.f32 %v1582, %v1585
    %v1587 = vmul.f32 %v1583, %v1585
    %v1588 = vmul.f32 %v1584, %v1585
    %v1589 = vadd.f32 %v1466, %v1586
    %v1590 = vadd.f32 %v1467, %v1587
    %v1591 = vadd.f32 %v1468, %v1588
    %v1592 = vstv %s204
    %v1593 = vmul.f32 %v1582, %v1592
    %v1594 = vmul.f32 %v1583, %v1592
    %v1595 = vmul.f32 %v1584, %v1592
    %v1596 = vadd.f32 %v1473, %v1593
    %v1597 = vadd.f32 %v1474, %v1594
    %v1598 = vadd.f32 %v1475, %v1595
    %v1599 = vstv %s236
    %v1600 = vmul.f32 %v1582, %v1599
    %v1601 = vmul.f32 %v1583, %v1599
    %v1602 = vmul.f32 %v1584, %v1599
    %v1603 = vadd.f32 %v1480, %v1600
    %v1604 = vadd.f32 %v1481, %v1601
    %v1605 = vadd.f32 %v1482, %v1602
    %v1606 = vstv %s268
    %v1607 = vmul.f32 %v1582, %v1606
    %v1608 = vmul.f32 %v1583, %v1606
    %v1609 = vmul.f32 %v1584, %v1606
    %v1610 = vadd.f32 %v1487, %v1607
    %v1611 = vadd.f32 %v1488, %v1608
    %v1612 = vadd.f32 %v1489, %v1609
    %v1613 = vstv %s300
    %v1614 = vmul.f32 %v1582, %v1613
    %v1615 = vmul.f32 %v1583, %v1613
    %v1616 = vmul.f32 %v1584, %v1613
    %v1617 = vadd.f32 %v1494, %v1614
    %v1618 = vadd.f32 %v1495, %v1615
    %v1619 = vadd.f32 %v1496, %v1616
    %v1620 = vstv %s332
    %v1621 = vmul.f32 %v1582, %v1620
    %v1622 = vmul.f32 %v1583, %v1620
    %v1623 = vmul.f32 %v1584, %v1620
    %v1624 = vadd.f32 %v1501, %v1621
    %v1625 = vadd.f32 %v1502, %v1622
    %v1626 = vadd.f32 %v1503, %v1623
    %v1627 = vstv %s364
    %v1628 = vmul.f32 %v1582, %v1627
    %v1629 = vmul.f32 %v1583, %v1627
    %v1630 = vmul.f32 %v1584, %v1627
    %v1631 = vadd.f32 %v1508, %v1628
    %v1632 = vadd.f32 %v1509, %v1629
    %v1633 = vadd.f32 %v1510, %v1630
    %v1634 = vstv %s396
    %v1635 = vmul.f32 %v1582, %v1634
    %v1636 = vmul.f32 %v1583, %v1634
    %v1637 = vmul.f32 %v1584, %v1634
    %v1638 = vadd.f32 %v1515, %v1635
    %v1639 = vadd.f32 %v1516, %v1636
    %v1640 = vadd.f32 %v1517, %v1637
    %v1641 = vstv %s428
    %v1642 = vmul.f32 %v1582, %v1641
    %v1643 = vmul.f32 %v1583, %v1641
    %v1644 = vmul.f32 %v1584, %v1641
    %v1645 = vadd.f32 %v1522, %v1642
    %v1646 = vadd.f32 %v1523, %v1643
    %v1647 = vadd.f32 %v1524, %v1644
    %v1648 = vstv %s460
    %v1649 = vmul.f32 %v1582, %v1648
    %v1650 = vmul.f32 %v1583, %v1648
    %v1651 = vmul.f32 %v1584, %v1648
    %v1652 = vadd.f32 %v1529, %v1649
    %v1653 = vadd.f32 %v1530, %v1650
    %v1654 = vadd.f32 %v1531, %v1651
    %v1655 = vstv %s492
    %v1656 = vmul.f32 %v1582, %v1655
    %v1657 = vmul.f32 %v1583, %v1655
    %v1658 = vmul.f32 %v1584, %v1655
    %v1659 = vadd.f32 %v1536, %v1656
    %v1660 = vadd.f32 %v1537, %v1657
    %v1661 = vadd.f32 %v1538, %v1658
    %v1662 = vstv %s524
    %v1663 = vmul.f32 %v1582, %v1662
    %v1664 = vmul.f32 %v1583, %v1662
    %v1665 = vmul.f32 %v1584, %v1662
    %v1666 = vadd.f32 %v1543, %v1663
    %v1667 = vadd.f32 %v1544, %v1664
    %v1668 = vadd.f32 %v1545, %v1665
    %v1669 = vstv %s556
    %v1670 = vmul.f32 %v1582, %v1669
    %v1671 = vmul.f32 %v1583, %v1669
    %v1672 = vmul.f32 %v1584, %v1669
    %v1673 = vadd.f32 %v1550, %v1670
    %v1674 = vadd.f32 %v1551, %v1671
    %v1675 = vadd.f32 %v1552, %v1672
    %v1676 = vstv %s588
    %v1677 = vmul.f32 %v1582, %v1676
    %v1678 = vmul.f32 %v1583, %v1676
    %v1679 = vmul.f32 %v1584, %v1676
    %v1680 = vadd.f32 %v1557, %v1677
    %v1681 = vadd.f32 %v1558, %v1678
    %v1682 = vadd.f32 %v1559, %v1679
    %v1683 = vstv %s620
    %v1684 = vmul.f32 %v1582, %v1683
    %v1685 = vmul.f32 %v1583, %v1683
    %v1686 = vmul.f32 %v1584, %v1683
    %v1687 = vadd.f32 %v1564, %v1684
    %v1688 = vadd.f32 %v1565, %v1685
    %v1689 = vadd.f32 %v1566, %v1686
    %v1690 = vstv %s652
    %v1691 = vmul.f32 %v1582, %v1690
    %v1692 = vmul.f32 %v1583, %v1690
    %v1693 = vmul.f32 %v1584, %v1690
    %v1694 = vadd.f32 %v1571, %v1691
    %v1695 = vadd.f32 %v1572, %v1692
    %v1696 = vadd.f32 %v1573, %v1693
    %v1697 = vstv %s109
    %v1698 = vmul.f32 %v1697, %v710
    %v1699 = vmul.f32 %v1697, %v711
    %v1700 = vmul.f32 %v1697, %v712
    %v1701 = vstv %s141
    %v1702 = vadd.f32 %v1698, %v1701
    %v1703 = vadd.f32 %v1699, %v1701
    %v1704 = vadd.f32 %v1700, %v1701
    %v1705 = vmax.f32 %v1702, 0.0
    %v1706 = vmax.f32 %v1703, 0.0
    %v1707 = vmax.f32 %v1704, 0.0
    %v1708 = vstv %s173
    %v1709 = vmul.f32 %v1705, %v1708
    %v1710 = vmul.f32 %v1706, %v1708
    %v1711 = vmul.f32 %v1707, %v1708
    %v1712 = vadd.f32 %v1589, %v1709
    %v1713 = vadd.f32 %v1590, %v1710
    %v1714 = vadd.f32 %v1591, %v1711
    %v1715 = vstv %s205
    %v1716 = vmul.f32 %v1705, %v1715
    %v1717 = vmul.f32 %v1706, %v1715
    %v1718 = vmul.f32 %v1707, %v1715
    %v1719 = vadd.f32 %v1596, %v1716
    %v1720 = vadd.f32 %v1597, %v1717
    %v1721 = vadd.f32 %v1598, %v1718
    %v1722 = vstv %s237
    %v1723 = vmul.f32 %v1705, %v1722
    %v1724 = vmul.f32 %v1706, %v1722
    %v1725 = vmul.f32 %v1707, %v1722
    %v1726 = vadd.f32 %v1603, %v1723
    %v1727 = vadd.f32 %v1604, %v1724
    %v1728 = vadd.f32 %v1605, %v1725
    %v1729 = vstv %s269
    %v1730 = vmul.f32 %v1705, %v1729
    %v1731 = vmul.f32 %v1706, %v1729
    %v1732 = vmul.f32 %v1707, %v1729
    %v1733 = vadd.f32 %v1610, %v1730
    %v1734 = vadd.f32 %v1611, %v1731
    %v1735 = vadd.f32 %v1612, %v1732
    %v1736 = vstv %s301
    %v1737 = vmul.f32 %v1705, %v1736
    %v1738 = vmul.f32 %v1706, %v1736
    %v1739 = vmul.f32 %v1707, %v1736
    %v1740 = vadd.f32 %v1617, %v1737
    %v1741 = vadd.f32 %v1618, %v1738
    %v1742 = vadd.f32 %v1619, %v1739
    %v1743 = vstv %s333
    %v1744 = vmul.f32 %v1705, %v1743
    %v1745 = vmul.f32 %v1706, %v1743
    %v1746 = vmul.f32 %v1707, %v1743
    %v1747 = vadd.f32 %v1624, %v1744
    %v1748 = vadd.f32 %v1625, %v1745
    %v1749 = vadd.f32 %v1626, %v1746
    %v1750 = vstv %s365
    %v1751 = vmul.f32 %v1705, %v1750
    %v1752 = vmul.f32 %v1706, %v1750
    %v1753 = vmul.f32 %v1707, %v1750
    %v1754 = vadd.f32 %v1631, %v1751
    %v1755 = vadd.f32 %v1632, %v1752
    %v1756 = vadd.f32 %v1633, %v1753
    %v1757 = vstv %s397
    %v1758 = vmul.f32 %v1705, %v1757
    %v1759 = vmul.f32 %v1706, %v1757
    %v1760 = vmul.f32 %v1707, %v1757
    %v1761 = vadd.f32 %v1638, %v1758
    %v1762 = vadd.f32 %v1639, %v1759
    %v1763 = vadd.f32 %v1640, %v1760
    %v1764 = vstv %s429
    %v1765 = vmul.f32 %v1705, %v1764
    %v1766 = vmul.f32 %v1706, %v1764
    %v1767 = vmul.f32 %v1707, %v1764
    %v1768 = vadd.f32 %v1645, %v1765
    %v1769 = vadd.f32 %v1646, %v1766
    %v1770 = vadd.f32 %v1647, %v1767
    %v1771 = vstv %s461
    %v1772 = vmul.f32 %v1705, %v1771
    %v1773 = vmul.f32 %v1706, %v1771
    %v1774 = vmul.f32 %v1707, %v1771
    %v1775 = vadd.f32 %v1652, %v1772
    %v1776 = vadd.f32 %v1653, %v1773
    %v1777 = vadd.f32 %v1654, %v1774
    %v1778 = vstv %s493
    %v1779 = vmul.f32 %v1705, %v1778
    %v1780 = vmul.f32 %v1706, %v1778
    %v1781 = vmul.f32 %v1707, %v1778
    %v1782 = vadd.f32 %v1659, %v1779
    %v1783 = vadd.f32 %v1660, %v1780
    %v1784 = vadd.f32 %v1661, %v1781
    %v1785 = vstv %s525
    %v1786 = vmul.f32 %v1705, %v1785
    %v1787 = vmul.f32 %v1706, %v1785
    %v1788 = vmul.f32 %v1707, %v1785
    %v1789 = vadd.f32 %v1666, %v1786
    %v1790 = vadd.f32 %v1667, %v1787
    %v1791 = vadd.f32 %v1668, %v1788
    %v1792 = vstv %s557
    %v1793 = vmul.f32 %v1705, %v1792
    %v1794 = vmul.f32 %v1706, %v1792
    %v1795 = vmul.f32 %v1707, %v1792
    %v1796 = vadd.f32 %v1673, %v1793
    %v1797 = vadd.f32 %v1674, %v1794
    %v1798 = vadd.f32 %v1675, %v1795
    %v1799 = vstv %s589
    %v1800 = vmul.f32 %v1705, %v1799
    %v1801 = vmul.f32 %v1706, %v1799
    %v1802 = vmul.f32 %v1707, %v1799
    %v1803 = vadd.f32 %v1680, %v1800
    %v1804 = vadd.f32 %v1681, %v1801
    %v1805 = vadd.f32 %v1682, %v1802
    %v1806 = vstv %s621
    %v1807 = vmul.f32 %v1705, %v1806
    %v1808 = vmul.f32 %v1706, %v1806
    %v1809 = vmul.f32 %v1707, %v1806
    %v1810 = vadd.f32 %v1687, %v1807
    %v1811 = vadd.f32 %v1688, %v1808
    %v1812 = vadd.f32 %v1689, %v1809
    %v1813 = vstv %s653
    %v1814 = vmul.f32 %v1705, %v1813
    %v1815 = vmul.f32 %v1706, %v1813
    %v1816 = vmul.f32 %v1707, %v1813
    %v1817 = vadd.f32 %v1694, %v1814
    %v1818 = vadd.f32 %v1695, %v1815
    %v1819 = vadd.f32 %v1696, %v1816
    %v1820 = vstv %s110
    %v1821 = vmul.f32 %v1820, %v710
    %v1822 = vmul.f32 %v1820, %v711
    %v1823 = vmul.f32 %v1820, %v712
    %v1824 = vstv %s142
    %v1825 = vadd.f32 %v1821, %v1824
    %v1826 = vadd.f32 %v1822, %v1824
    %v1827 = vadd.f32 %v1823, %v1824
    %v1828 = vmax.f32 %v1825, 0.0
    %v1829 = vmax.f32 %v1826, 0.0
    %v1830 = vmax.f32 %v1827, 0.0
    %v1831 = vstv %s174
    %v1832 = vmul.f32 %v1828, %v1831
    %v1833 = vmul.f32 %v1829, %v1831
    %v1834 = vmul.f32 %v1830, %v1831
    %v1835 = vadd.f32 %v1712, %v1832
    %v1836 = vadd.f32 %v1713, %v1833
    %v1837 = vadd.f32 %v1714, %v1834
    %v1838 = vstv %s206
    %v1839 = vmul.f32 %v1828, %v1838
    %v1840 = vmul.f32 %v1829, %v1838
    %v1841 = vmul.f32 %v1830, %v1838
    %v1842 = vadd.f32 %v1719, %v1839
    %v1843 = vadd.f32 %v1720, %v1840
    %v1844 = vadd.f32 %v1721, %v1841
    %v1845 = vstv %s238
    %v1846 = vmul.f32 %v1828, %v1845
    %v1847 = vmul.f32 %v1829, %v1845
    %v1848 = vmul.f32 %v1830, %v1845
    %v1849 = vadd.f32 %v1726, %v1846
    %v1850 = vadd.f32 %v1727, %v1847
    %v1851 = vadd.f32 %v1728, %v1848
    %v1852 = vstv %s270
    %v1853 = vmul.f32 %v1828, %v1852
    %v1854 = vmul.f32 %v1829, %v1852
    %v1855 = vmul.f32 %v1830, %v1852
    %v1856 = vadd.f32 %v1733, %v1853
    %v1857 = vadd.f32 %v1734, %v1854
    %v1858 = vadd.f32 %v1735, %v1855
    %v1859 = vstv %s302
    %v1860 = vmul.f32 %v1828, %v1859
    %v1861 = vmul.f32 %v1829, %v1859
    %v1862 = vmul.f32 %v1830, %v1859
    %v1863 = vadd.f32 %v1740, %v1860
    %v1864 = vadd.f32 %v1741, %v1861
    %v1865 = vadd.f32 %v1742, %v1862
    %v1866 = vstv %s334
    %v1867 = vmul.f32 %v1828, %v1866
    %v1868 = vmul.f32 %v1829, %v1866
    %v1869 = vmul.f32 %v1830, %v1866
    %v1870 = vadd.f32 %v1747, %v1867
    %v1871 = vadd.f32 %v1748, %v1868
    %v1872 = vadd.f32 %v1749, %v1869
    %v1873 = vstv %s366
    %v1874 = vmul.f32 %v1828, %v1873
    %v1875 = vmul.f32 %v1829, %v1873
    %v1876 = vmul.f32 %v1830, %v1873
    %v1877 = vadd.f32 %v1754, %v1874
    %v1878 = vadd.f32 %v1755, %v1875
    %v1879 = vadd.f32 %v1756, %v1876
    %v1880 = vstv %s398
    %v1881 = vmul.f32 %v1828, %v1880
    %v1882 = vmul.f32 %v1829, %v1880
    %v1883 = vmul.f32 %v1830, %v1880
    %v1884 = vadd.f32 %v1761, %v1881
    %v1885 = vadd.f32 %v1762, %v1882
    %v1886 = vadd.f32 %v1763, %v1883
    %v1887 = vstv %s430
    %v1888 = vmul.f32 %v1828, %v1887
    %v1889 = vmul.f32 %v1829, %v1887
    %v1890 = vmul.f32 %v1830, %v1887
    %v1891 = vadd.f32 %v1768, %v1888
    %v1892 = vadd.f32 %v1769, %v1889
    %v1893 = vadd.f32 %v1770, %v1890
    %v1894 = vstv %s462
    %v1895 = vmul.f32 %v1828, %v1894
    %v1896 = vmul.f32 %v1829, %v1894
    %v1897 = vmul.f32 %v1830, %v1894
    %v1898 = vadd.f32 %v1775, %v1895
    %v1899 = vadd.f32 %v1776, %v1896
    %v1900 = vadd.f32 %v1777, %v1897
    %v1901 = vstv %s494
    %v1902 = vmul.f32 %v1828, %v1901
    %v1903 = vmul.f32 %v1829, %v1901
    %v1904 = vmul.f32 %v1830, %v1901
    %v1905 = vadd.f32 %v1782, %v1902
    %v1906 = vadd.f32 %v1783, %v1903
    %v1907 = vadd.f32 %v1784, %v1904
    %v1908 = vstv %s526
    %v1909 = vmul.f32 %v1828, %v1908
    %v1910 = vmul.f32 %v1829, %v1908
    %v1911 = vmul.f32 %v1830, %v1908
    %v1912 = vadd.f32 %v1789, %v1909
    %v1913 = vadd.f32 %v1790, %v1910
    %v1914 = vadd.f32 %v1791, %v1911
    %v1915 = vstv %s558
    %v1916 = vmul.f32 %v1828, %v1915
    %v1917 = vmul.f32 %v1829, %v1915
    %v1918 = vmul.f32 %v1830, %v1915
    %v1919 = vadd.f32 %v1796, %v1916
    %v1920 = vadd.f32 %v1797, %v1917
    %v1921 = vadd.f32 %v1798, %v1918
    %v1922 = vstv %s590
    %v1923 = vmul.f32 %v1828, %v1922
    %v1924 = vmul.f32 %v1829, %v1922
    %v1925 = vmul.f32 %v1830, %v1922
    %v1926 = vadd.f32 %v1803, %v1923
    %v1927 = vadd.f32 %v1804, %v1924
    %v1928 = vadd.f32 %v1805, %v1925
    %v1929 = vstv %s622
    %v1930 = vmul.f32 %v1828, %v1929
    %v1931 = vmul.f32 %v1829, %v1929
    %v1932 = vmul.f32 %v1830, %v1929
    %v1933 = vadd.f32 %v1810, %v1930
    %v1934 = vadd.f32 %v1811, %v1931
    %v1935 = vadd.f32 %v1812, %v1932
    %v1936 = vstv %s654
    %v1937 = vmul.f32 %v1828, %v1936
    %v1938 = vmul.f32 %v1829, %v1936
    %v1939 = vmul.f32 %v1830, %v1936
    %v1940 = vadd.f32 %v1817, %v1937
    %v1941 = vadd.f32 %v1818, %v1938
    %v1942 = vadd.f32 %v1819, %v1939
    %v1943 = vstv %s111
    %v1944 = vmul.f32 %v1943, %v710
    %v1945 = vmul.f32 %v1943, %v711
    %v1946 = vmul.f32 %v1943, %v712
    %v1947 = vstv %s143
    %v1948 = vadd.f32 %v1944, %v1947
    %v1949 = vadd.f32 %v1945, %v1947
    %v1950 = vadd.f32 %v1946, %v1947
    %v1951 = vmax.f32 %v1948, 0.0
    %v1952 = vmax.f32 %v1949, 0.0
    %v1953 = vmax.f32 %v1950, 0.0
    %v1954 = vstv %s175
    %v1955 = vmul.f32 %v1951, %v1954
    %v1956 = vmul.f32 %v1952, %v1954
    %v1957 = vmul.f32 %v1953, %v1954
    %v1958 = vadd.f32 %v1835, %v1955
    %v1959 = vadd.f32 %v1836, %v1956
    %v1960 = vadd.f32 %v1837, %v1957
    %v1961 = vstv %s207
    %v1962 = vmul.f32 %v1951, %v1961
    %v1963 = vmul.f32 %v1952, %v1961
    %v1964 = vmul.f32 %v1953, %v1961
    %v1965 = vadd.f32 %v1842, %v1962
    %v1966 = vadd.f32 %v1843, %v1963
    %v1967 = vadd.f32 %v1844, %v1964
    %v1968 = vstv %s239
    %v1969 = vmul.f32 %v1951, %v1968
    %v1970 = vmul.f32 %v1952, %v1968
    %v1971 = vmul.f32 %v1953, %v1968
    %v1972 = vadd.f32 %v1849, %v1969
    %v1973 = vadd.f32 %v1850, %v1970
    %v1974 = vadd.f32 %v1851, %v1971
    %v1975 = vstv %s271
    %v1976 = vmul.f32 %v1951, %v1975
    %v1977 = vmul.f32 %v1952, %v1975
    %v1978 = vmul.f32 %v1953, %v1975
    %v1979 = vadd.f32 %v1856, %v1976
    %v1980 = vadd.f32 %v1857, %v1977
    %v1981 = vadd.f32 %v1858, %v1978
    %v1982 = vstv %s303
    %v1983 = vmul.f32 %v1951, %v1982
    %v1984 = vmul.f32 %v1952, %v1982
    %v1985 = vmul.f32 %v1953, %v1982
    %v1986 = vadd.f32 %v1863, %v1983
    %v1987 = vadd.f32 %v1864, %v1984
    %v1988 = vadd.f32 %v1865, %v1985
    %v1989 = vstv %s335
    %v1990 = vmul.f32 %v1951, %v1989
    %v1991 = vmul.f32 %v1952, %v1989
    %v1992 = vmul.f32 %v1953, %v1989
    %v1993 = vadd.f32 %v1870, %v1990
    %v1994 = vadd.f32 %v1871, %v1991
    %v1995 = vadd.f32 %v1872, %v1992
    %v1996 = vstv %s367
    %v1997 = vmul.f32 %v1951, %v1996
    %v1998 = vmul.f32 %v1952, %v1996
    %v1999 = vmul.f32 %v1953, %v1996
    %v2000 = vadd.f32 %v1877, %v1997
    %v2001 = vadd.f32 %v1878, %v1998
    %v2002 = vadd.f32 %v1879, %v1999
    %v2003 = vstv %s399
    %v2004 = vmul.f32 %v1951, %v2003
    %v2005 = vmul.f32 %v1952, %v2003
    %v2006 = vmul.f32 %v1953, %v2003
    %v2007 = vadd.f32 %v1884, %v2004
    %v2008 = vadd.f32 %v1885, %v2005
    %v2009 = vadd.f32 %v1886, %v2006
    %v2010 = vstv %s431
    %v2011 = vmul.f32 %v1951, %v2010
    %v2012 = vmul.f32 %v1952, %v2010
    %v2013 = vmul.f32 %v1953, %v2010
    %v2014 = vadd.f32 %v1891, %v2011
    %v2015 = vadd.f32 %v1892, %v2012
    %v2016 = vadd.f32 %v1893, %v2013
    %v2017 = vstv %s463
    %v2018 = vmul.f32 %v1951, %v2017
    %v2019 = vmul.f32 %v1952, %v2017
    %v2020 = vmul.f32 %v1953, %v2017
    %v2021 = vadd.f32 %v1898, %v2018
    %v2022 = vadd.f32 %v1899, %v2019
    %v2023 = vadd.f32 %v1900, %v2020
    %v2024 = vstv %s495
    %v2025 = vmul.f32 %v1951, %v2024
    %v2026 = vmul.f32 %v1952, %v2024
    %v2027 = vmul.f32 %v1953, %v2024
    %v2028 = vadd.f32 %v1905, %v2025
    %v2029 = vadd.f32 %v1906, %v2026
    %v2030 = vadd.f32 %v1907, %v2027
    %v2031 = vstv %s527
    %v2032 = vmul.f32 %v1951, %v2031
    %v2033 = vmul.f32 %v1952, %v2031
    %v2034 = vmul.f32 %v1953, %v2031
    %v2035 = vadd.f32 %v1912, %v2032
    %v2036 = vadd.f32 %v1913, %v2033
    %v2037 = vadd.f32 %v1914, %v2034
    %v2038 = vstv %s559
    %v2039 = vmul.f32 %v1951, %v2038
    %v2040 = vmul.f32 %v1952, %v2038
    %v2041 = vmul.f32 %v1953, %v2038
    %v2042 = vadd.f32 %v1919, %v2039
    %v2043 = vadd.f32 %v1920, %v2040
    %v2044 = vadd.f32 %v1921, %v2041
    %v2045 = vstv %s591
    %v2046 = vmul.f32 %v1951, %v2045
    %v2047 = vmul.f32 %v1952, %v2045
    %v2048 = vmul.f32 %v1953, %v2045
    %v2049 = vadd.f32 %v1926, %v2046
    %v2050 = vadd.f32 %v1927, %v2047
    %v2051 = vadd.f32 %v1928, %v2048
    %v2052 = vstv %s623
    %v2053 = vmul.f32 %v1951, %v2052
    %v2054 = vmul.f32 %v1952, %v2052
    %v2055 = vmul.f32 %v1953, %v2052
    %v2056 = vadd.f32 %v1933, %v2053
    %v2057 = vadd.f32 %v1934, %v2054
    %v2058 = vadd.f32 %v1935, %v2055
    %v2059 = vstv %s655
    %v2060 = vmul.f32 %v1951, %v2059
    %v2061 = vmul.f32 %v1952, %v2059
    %v2062 = vmul.f32 %v1953, %v2059
    %v2063 = vadd.f32 %v1940, %v2060
    %v2064 = vadd.f32 %v1941, %v2061
    %v2065 = vadd.f32 %v1942, %v2062
    %v2066 = vstv %s112
    %v2067 = vmul.f32 %v2066, %v710
    %v2068 = vmul.f32 %v2066, %v711
    %v2069 = vmul.f32 %v2066, %v712
    %v2070 = vstv %s144
    %v2071 = vadd.f32 %v2067, %v2070
    %v2072 = vadd.f32 %v2068, %v2070
    %v2073 = vadd.f32 %v2069, %v2070
    %v2074 = vmax.f32 %v2071, 0.0
    %v2075 = vmax.f32 %v2072, 0.0
    %v2076 = vmax.f32 %v2073, 0.0
    %v2077 = vstv %s176
    %v2078 = vmul.f32 %v2074, %v2077
    %v2079 = vmul.f32 %v2075, %v2077
    %v2080 = vmul.f32 %v2076, %v2077
    %v2081 = vadd.f32 %v1958, %v2078
    %v2082 = vadd.f32 %v1959, %v2079
    %v2083 = vadd.f32 %v1960, %v2080
    %v2084 = vstv %s208
    %v2085 = vmul.f32 %v2074, %v2084
    %v2086 = vmul.f32 %v2075, %v2084
    %v2087 = vmul.f32 %v2076, %v2084
    %v2088 = vadd.f32 %v1965, %v2085
    %v2089 = vadd.f32 %v1966, %v2086
    %v2090 = vadd.f32 %v1967, %v2087
    %v2091 = vstv %s240
    %v2092 = vmul.f32 %v2074, %v2091
    %v2093 = vmul.f32 %v2075, %v2091
    %v2094 = vmul.f32 %v2076, %v2091
    %v2095 = vadd.f32 %v1972, %v2092
    %v2096 = vadd.f32 %v1973, %v2093
    %v2097 = vadd.f32 %v1974, %v2094
    %v2098 = vstv %s272
    %v2099 = vmul.f32 %v2074, %v2098
    %v2100 = vmul.f32 %v2075, %v2098
    %v2101 = vmul.f32 %v2076, %v2098
    %v2102 = vadd.f32 %v1979, %v2099
    %v2103 = vadd.f32 %v1980, %v2100
    %v2104 = vadd.f32 %v1981, %v2101
    %v2105 = vstv %s304
    %v2106 = vmul.f32 %v2074, %v2105
    %v2107 = vmul.f32 %v2075, %v2105
    %v2108 = vmul.f32 %v2076, %v2105
    %v2109 = vadd.f32 %v1986, %v2106
    %v2110 = vadd.f32 %v1987, %v2107
    %v2111 = vadd.f32 %v1988, %v2108
    %v2112 = vstv %s336
    %v2113 = vmul.f32 %v2074, %v2112
    %v2114 = vmul.f32 %v2075, %v2112
    %v2115 = vmul.f32 %v2076, %v2112
    %v2116 = vadd.f32 %v1993, %v2113
    %v2117 = vadd.f32 %v1994, %v2114
    %v2118 = vadd.f32 %v1995, %v2115
    %v2119 = vstv %s368
    %v2120 = vmul.f32 %v2074, %v2119
    %v2121 = vmul.f32 %v2075, %v2119
    %v2122 = vmul.f32 %v2076, %v2119
    %v2123 = vadd.f32 %v2000, %v2120
    %v2124 = vadd.f32 %v2001, %v2121
    %v2125 = vadd.f32 %v2002, %v2122
    %v2126 = vstv %s400
    %v2127 = vmul.f32 %v2074, %v2126
    %v2128 = vmul.f32 %v2075, %v2126
    %v2129 = vmul.f32 %v2076, %v2126
    %v2130 = vadd.f32 %v2007, %v2127
    %v2131 = vadd.f32 %v2008, %v2128
    %v2132 = vadd.f32 %v2009, %v2129
    %v2133 = vstv %s432
    %v2134 = vmul.f32 %v2074, %v2133
    %v2135 = vmul.f32 %v2075, %v2133
    %v2136 = vmul.f32 %v2076, %v2133
    %v2137 = vadd.f32 %v2014, %v2134
    %v2138 = vadd.f32 %v2015, %v2135
    %v2139 = vadd.f32 %v2016, %v2136
    %v2140 = vstv %s464
    %v2141 = vmul.f32 %v2074, %v2140
    %v2142 = vmul.f32 %v2075, %v2140
    %v2143 = vmul.f32 %v2076, %v2140
    %v2144 = vadd.f32 %v2021, %v2141
    %v2145 = vadd.f32 %v2022, %v2142
    %v2146 = vadd.f32 %v2023, %v2143
    %v2147 = vstv %s496
    %v2148 = vmul.f32 %v2074, %v2147
    %v2149 = vmul.f32 %v2075, %v2147
    %v2150 = vmul.f32 %v2076, %v2147
    %v2151 = vadd.f32 %v2028, %v2148
    %v2152 = vadd.f32 %v2029, %v2149
    %v2153 = vadd.f32 %v2030, %v2150
    %v2154 = vstv %s528
    %v2155 = vmul.f32 %v2074, %v2154
    %v2156 = vmul.f32 %v2075, %v2154
    %v2157 = vmul.f32 %v2076, %v2154
    %v2158 = vadd.f32 %v2035, %v2155
    %v2159 = vadd.f32 %v2036, %v2156
    %v2160 = vadd.f32 %v2037, %v2157
    %v2161 = vstv %s560
    %v2162 = vmul.f32 %v2074, %v2161
    %v2163 = vmul.f32 %v2075, %v2161
    %v2164 = vmul.f32 %v2076, %v2161
    %v2165 = vadd.f32 %v2042, %v2162
    %v2166 = vadd.f32 %v2043, %v2163
    %v2167 = vadd.f32 %v2044, %v2164
    %v2168 = vstv %s592
    %v2169 = vmul.f32 %v2074, %v2168
    %v2170 = vmul.f32 %v2075, %v2168
    %v2171 = vmul.f32 %v2076, %v2168
    %v2172 = vadd.f32 %v2049, %v2169
    %v2173 = vadd.f32 %v2050, %v2170
    %v2174 = vadd.f32 %v2051, %v2171
    %v2175 = vstv %s624
    %v2176 = vmul.f32 %v2074, %v2175
    %v2177 = vmul.f32 %v2075, %v2175
    %v2178 = vmul.f32 %v2076, %v2175
    %v2179 = vadd.f32 %v2056, %v2176
    %v2180 = vadd.f32 %v2057, %v2177
    %v2181 = vadd.f32 %v2058, %v2178
    %v2182 = vstv %s656
    %v2183 = vmul.f32 %v2074, %v2182
    %v2184 = vmul.f32 %v2075, %v2182
    %v2185 = vmul.f32 %v2076, %v2182
    %v2186 = vadd.f32 %v2063, %v2183
    %v2187 = vadd.f32 %v2064, %v2184
    %v2188 = vadd.f32 %v2065, %v2185
    %v2189 = vstv %s113
    %v2190 = vmul.f32 %v2189, %v710
    %v2191 = vmul.f32 %v2189, %v711
    %v2192 = vmul.f32 %v2189, %v712
    %v2193 = vstv %s145
    %v2194 = vadd.f32 %v2190, %v2193
    %v2195 = vadd.f32 %v2191, %v2193
    %v2196 = vadd.f32 %v2192, %v2193
    %v2197 = vmax.f32 %v2194, 0.0
    %v2198 = vmax.f32 %v2195, 0.0
    %v2199 = vmax.f32 %v2196, 0.0
    %v2200 = vstv %s177
    %v2201 = vmul.f32 %v2197, %v2200
    %v2202 = vmul.f32 %v2198, %v2200
    %v2203 = vmul.f32 %v2199, %v2200
    %v2204 = vadd.f32 %v2081, %v2201
    %v2205 = vadd.f32 %v2082, %v2202
    %v2206 = vadd.f32 %v2083, %v2203
    %v2207 = vstv %s209
    %v2208 = vmul.f32 %v2197, %v2207
    %v2209 = vmul.f32 %v2198, %v2207
    %v2210 = vmul.f32 %v2199, %v2207
    %v2211 = vadd.f32 %v2088, %v2208
    %v2212 = vadd.f32 %v2089, %v2209
    %v2213 = vadd.f32 %v2090, %v2210
    %v2214 = vstv %s241
    %v2215 = vmul.f32 %v2197, %v2214
    %v2216 = vmul.f32 %v2198, %v2214
    %v2217 = vmul.f32 %v2199, %v2214
    %v2218 = vadd.f32 %v2095, %v2215
    %v2219 = vadd.f32 %v2096, %v2216
    %v2220 = vadd.f32 %v2097, %v2217
    %v2221 = vstv %s273
    %v2222 = vmul.f32 %v2197, %v2221
    %v2223 = vmul.f32 %v2198, %v2221
    %v2224 = vmul.f32 %v2199, %v2221
    %v2225 = vadd.f32 %v2102, %v2222
    %v2226 = vadd.f32 %v2103, %v2223
    %v2227 = vadd.f32 %v2104, %v2224
    %v2228 = vstv %s305
    %v2229 = vmul.f32 %v2197, %v2228
    %v2230 = vmul.f32 %v2198, %v2228
    %v2231 = vmul.f32 %v2199, %v2228
    %v2232 = vadd.f32 %v2109, %v2229
    %v2233 = vadd.f32 %v2110, %v2230
    %v2234 = vadd.f32 %v2111, %v2231
    %v2235 = vstv %s337
    %v2236 = vmul.f32 %v2197, %v2235
    %v2237 = vmul.f32 %v2198, %v2235
    %v2238 = vmul.f32 %v2199, %v2235
    %v2239 = vadd.f32 %v2116, %v2236
    %v2240 = vadd.f32 %v2117, %v2237
    %v2241 = vadd.f32 %v2118, %v2238
    %v2242 = vstv %s369
    %v2243 = vmul.f32 %v2197, %v2242
    %v2244 = vmul.f32 %v2198, %v2242
    %v2245 = vmul.f32 %v2199, %v2242
    %v2246 = vadd.f32 %v2123, %v2243
    %v2247 = vadd.f32 %v2124, %v2244
    %v2248 = vadd.f32 %v2125, %v2245
    %v2249 = vstv %s401
    %v2250 = vmul.f32 %v2197, %v2249
    %v2251 = vmul.f32 %v2198, %v2249
    %v2252 = vmul.f32 %v2199, %v2249
    %v2253 = vadd.f32 %v2130, %v2250
    %v2254 = vadd.f32 %v2131, %v2251
    %v2255 = vadd.f32 %v2132, %v2252
    %v2256 = vstv %s433
    %v2257 = vmul.f32 %v2197, %v2256
    %v2258 = vmul.f32 %v2198, %v2256
    %v2259 = vmul.f32 %v2199, %v2256
    %v2260 = vadd.f32 %v2137, %v2257
    %v2261 = vadd.f32 %v2138, %v2258
    %v2262 = vadd.f32 %v2139, %v2259
    %v2263 = vstv %s465
    %v2264 = vmul.f32 %v2197, %v2263
    %v2265 = vmul.f32 %v2198, %v2263
    %v2266 = vmul.f32 %v2199, %v2263
    %v2267 = vadd.f32 %v2144, %v2264
    %v2268 = vadd.f32 %v2145, %v2265
    %v2269 = vadd.f32 %v2146, %v2266
    %v2270 = vstv %s497
    %v2271 = vmul.f32 %v2197, %v2270
    %v2272 = vmul.f32 %v2198, %v2270
    %v2273 = vmul.f32 %v2199, %v2270
    %v2274 = vadd.f32 %v2151, %v2271
    %v2275 = vadd.f32 %v2152, %v2272
    %v2276 = vadd.f32 %v2153, %v2273
    %v2277 = vstv %s529
    %v2278 = vmul.f32 %v2197, %v2277
    %v2279 = vmul.f32 %v2198, %v2277
    %v2280 = vmul.f32 %v2199, %v2277
    %v2281 = vadd.f32 %v2158, %v2278
    %v2282 = vadd.f32 %v2159, %v2279
    %v2283 = vadd.f32 %v2160, %v2280
    %v2284 = vstv %s561
    %v2285 = vmul.f32 %v2197, %v2284
    %v2286 = vmul.f32 %v2198, %v2284
    %v2287 = vmul.f32 %v2199, %v2284
    %v2288 = vadd.f32 %v2165, %v2285
    %v2289 = vadd.f32 %v2166, %v2286
    %v2290 = vadd.f32 %v2167, %v2287
    %v2291 = vstv %s593
    %v2292 = vmul.f32 %v2197, %v2291
    %v2293 = vmul.f32 %v2198, %v2291
    %v2294 = vmul.f32 %v2199, %v2291
    %v2295 = vadd.f32 %v2172, %v2292
    %v2296 = vadd.f32 %v2173, %v2293
    %v2297 = vadd.f32 %v2174, %v2294
    %v2298 = vstv %s625
    %v2299 = vmul.f32 %v2197, %v2298
    %v2300 = vmul.f32 %v2198, %v2298
    %v2301 = vmul.f32 %v2199, %v2298
    %v2302 = vadd.f32 %v2179, %v2299
    %v2303 = vadd.f32 %v2180, %v2300
    %v2304 = vadd.f32 %v2181, %v2301
    %v2305 = vstv %s657
    %v2306 = vmul.f32 %v2197, %v2305
    %v2307 = vmul.f32 %v2198, %v2305
    %v2308 = vmul.f32 %v2199, %v2305
    %v2309 = vadd.f32 %v2186, %v2306
    %v2310 = vadd.f32 %v2187, %v2307
    %v2311 = vadd.f32 %v2188, %v2308
    %v2312 = vstv %s114
    %v2313 = vmul.f32 %v2312, %v710
    %v2314 = vmul.f32 %v2312, %v711
    %v2315 = vmul.f32 %v2312, %v712
    %v2316 = vstv %s146
    %v2317 = vadd.f32 %v2313, %v2316
    %v2318 = vadd.f32 %v2314, %v2316
    %v2319 = vadd.f32 %v2315, %v2316
    %v2320 = vmax.f32 %v2317, 0.0
    %v2321 = vmax.f32 %v2318, 0.0
    %v2322 = vmax.f32 %v2319, 0.0
    %v2323 = vstv %s178
    %v2324 = vmul.f32 %v2320, %v2323
    %v2325 = vmul.f32 %v2321, %v2323
    %v2326 = vmul.f32 %v2322, %v2323
    %v2327 = vadd.f32 %v2204, %v2324
    %v2328 = vadd.f32 %v2205, %v2325
    %v2329 = vadd.f32 %v2206, %v2326
    %v2330 = vstv %s210
    %v2331 = vmul.f32 %v2320, %v2330
    %v2332 = vmul.f32 %v2321, %v2330
    %v2333 = vmul.f32 %v2322, %v2330
    %v2334 = vadd.f32 %v2211, %v2331
    %v2335 = vadd.f32 %v2212, %v2332
    %v2336 = vadd.f32 %v2213, %v2333
    %v2337 = vstv %s242
    %v2338 = vmul.f32 %v2320, %v2337
    %v2339 = vmul.f32 %v2321, %v2337
    %v2340 = vmul.f32 %v2322, %v2337
    %v2341 = vadd.f32 %v2218, %v2338
    %v2342 = vadd.f32 %v2219, %v2339
    %v2343 = vadd.f32 %v2220, %v2340
    %v2344 = vstv %s274
    %v2345 = vmul.f32 %v2320, %v2344
    %v2346 = vmul.f32 %v2321, %v2344
    %v2347 = vmul.f32 %v2322, %v2344
    %v2348 = vadd.f32 %v2225, %v2345
    %v2349 = vadd.f32 %v2226, %v2346
    %v2350 = vadd.f32 %v2227, %v2347
    %v2351 = vstv %s306
    %v2352 = vmul.f32 %v2320, %v2351
    %v2353 = vmul.f32 %v2321, %v2351
    %v2354 = vmul.f32 %v2322, %v2351
    %v2355 = vadd.f32 %v2232, %v2352
    %v2356 = vadd.f32 %v2233, %v2353
    %v2357 = vadd.f32 %v2234, %v2354
    %v2358 = vstv %s338
    %v2359 = vmul.f32 %v2320, %v2358
    %v2360 = vmul.f32 %v2321, %v2358
    %v2361 = vmul.f32 %v2322, %v2358
    %v2362 = vadd.f32 %v2239, %v2359
    %v2363 = vadd.f32 %v2240, %v2360
    %v2364 = vadd.f32 %v2241, %v2361
    %v2365 = vstv %s370
    %v2366 = vmul.f32 %v2320, %v2365
    %v2367 = vmul.f32 %v2321, %v2365
    %v2368 = vmul.f32 %v2322, %v2365
    %v2369 = vadd.f32 %v2246, %v2366
    %v2370 = vadd.f32 %v2247, %v2367
    %v2371 = vadd.f32 %v2248, %v2368
    %v2372 = vstv %s402
    %v2373 = vmul.f32 %v2320, %v2372
    %v2374 = vmul.f32 %v2321, %v2372
    %v2375 = vmul.f32 %v2322, %v2372
    %v2376 = vadd.f32 %v2253, %v2373
    %v2377 = vadd.f32 %v2254, %v2374
    %v2378 = vadd.f32 %v2255, %v2375
    %v2379 = vstv %s434
    %v2380 = vmul.f32 %v2320, %v2379
    %v2381 = vmul.f32 %v2321, %v2379
    %v2382 = vmul.f32 %v2322, %v2379
    %v2383 = vadd.f32 %v2260, %v2380
    %v2384 = vadd.f32 %v2261, %v2381
    %v2385 = vadd.f32 %v2262, %v2382
    %v2386 = vstv %s466
    %v2387 = vmul.f32 %v2320, %v2386
    %v2388 = vmul.f32 %v2321, %v2386
    %v2389 = vmul.f32 %v2322, %v2386
    %v2390 = vadd.f32 %v2267, %v2387
    %v2391 = vadd.f32 %v2268, %v2388
    %v2392 = vadd.f32 %v2269, %v2389
    %v2393 = vstv %s498
    %v2394 = vmul.f32 %v2320, %v2393
    %v2395 = vmul.f32 %v2321, %v2393
    %v2396 = vmul.f32 %v2322, %v2393
    %v2397 = vadd.f32 %v2274, %v2394
    %v2398 = vadd.f32 %v2275, %v2395
    %v2399 = vadd.f32 %v2276, %v2396
    %v2400 = vstv %s530
    %v2401 = vmul.f32 %v2320, %v2400
    %v2402 = vmul.f32 %v2321, %v2400
    %v2403 = vmul.f32 %v2322, %v2400
    %v2404 = vadd.f32 %v2281, %v2401
    %v2405 = vadd.f32 %v2282, %v2402
    %v2406 = vadd.f32 %v2283, %v2403
    %v2407 = vstv %s562
    %v2408 = vmul.f32 %v2320, %v2407
    %v2409 = vmul.f32 %v2321, %v2407
    %v2410 = vmul.f32 %v2322, %v2407
    %v2411 = vadd.f32 %v2288, %v2408
    %v2412 = vadd.f32 %v2289, %v2409
    %v2413 = vadd.f32 %v2290, %v2410
    %v2414 = vstv %s594
    %v2415 = vmul.f32 %v2320, %v2414
    %v2416 = vmul.f32 %v2321, %v2414
    %v2417 = vmul.f32 %v2322, %v2414
    %v2418 = vadd.f32 %v2295, %v2415
    %v2419 = vadd.f32 %v2296, %v2416
    %v2420 = vadd.f32 %v2297, %v2417
    %v2421 = vstv %s626
    %v2422 = vmul.f32 %v2320, %v2421
    %v2423 = vmul.f32 %v2321, %v2421
    %v2424 = vmul.f32 %v2322, %v2421
    %v2425 = vadd.f32 %v2302, %v2422
    %v2426 = vadd.f32 %v2303, %v2423
    %v2427 = vadd.f32 %v2304, %v2424
    %v2428 = vstv %s658
    %v2429 = vmul.f32 %v2320, %v2428
    %v2430 = vmul.f32 %v2321, %v2428
    %v2431 = vmul.f32 %v2322, %v2428
    %v2432 = vadd.f32 %v2309, %v2429
    %v2433 = vadd.f32 %v2310, %v2430
    %v2434 = vadd.f32 %v2311, %v2431
    %v2435 = vstv %s115
    %v2436 = vmul.f32 %v2435, %v710
    %v2437 = vmul.f32 %v2435, %v711
    %v2438 = vmul.f32 %v2435, %v712
    %v2439 = vstv %s147
    %v2440 = vadd.f32 %v2436, %v2439
    %v2441 = vadd.f32 %v2437, %v2439
    %v2442 = vadd.f32 %v2438, %v2439
    %v2443 = vmax.f32 %v2440, 0.0
    %v2444 = vmax.f32 %v2441, 0.0
    %v2445 = vmax.f32 %v2442, 0.0
    %v2446 = vstv %s179
    %v2447 = vmul.f32 %v2443, %v2446
    %v2448 = vmul.f32 %v2444, %v2446
    %v2449 = vmul.f32 %v2445, %v2446
    %v2450 = vadd.f32 %v2327, %v2447
    %v2451 = vadd.f32 %v2328, %v2448
    %v2452 = vadd.f32 %v2329, %v2449
    %v2453 = vstv %s211
    %v2454 = vmul.f32 %v2443, %v2453
    %v2455 = vmul.f32 %v2444, %v2453
    %v2456 = vmul.f32 %v2445, %v2453
    %v2457 = vadd.f32 %v2334, %v2454
    %v2458 = vadd.f32 %v2335, %v2455
    %v2459 = vadd.f32 %v2336, %v2456
    %v2460 = vstv %s243
    %v2461 = vmul.f32 %v2443, %v2460
    %v2462 = vmul.f32 %v2444, %v2460
    %v2463 = vmul.f32 %v2445, %v2460
    %v2464 = vadd.f32 %v2341, %v2461
    %v2465 = vadd.f32 %v2342, %v2462
    %v2466 = vadd.f32 %v2343, %v2463
    %v2467 = vstv %s275
    %v2468 = vmul.f32 %v2443, %v2467
    %v2469 = vmul.f32 %v2444, %v2467
    %v2470 = vmul.f32 %v2445, %v2467
    %v2471 = vadd.f32 %v2348, %v2468
    %v2472 = vadd.f32 %v2349, %v2469
    %v2473 = vadd.f32 %v2350, %v2470
    %v2474 = vstv %s307
    %v2475 = vmul.f32 %v2443, %v2474
    %v2476 = vmul.f32 %v2444, %v2474
    %v2477 = vmul.f32 %v2445, %v2474
    %v2478 = vadd.f32 %v2355, %v2475
    %v2479 = vadd.f32 %v2356, %v2476
    %v2480 = vadd.f32 %v2357, %v2477
    %v2481 = vstv %s339
    %v2482 = vmul.f32 %v2443, %v2481
    %v2483 = vmul.f32 %v2444, %v2481
    %v2484 = vmul.f32 %v2445, %v2481
    %v2485 = vadd.f32 %v2362, %v2482
    %v2486 = vadd.f32 %v2363, %v2483
    %v2487 = vadd.f32 %v2364, %v2484
    %v2488 = vstv %s371
    %v2489 = vmul.f32 %v2443, %v2488
    %v2490 = vmul.f32 %v2444, %v2488
    %v2491 = vmul.f32 %v2445, %v2488
    %v2492 = vadd.f32 %v2369, %v2489
    %v2493 = vadd.f32 %v2370, %v2490
    %v2494 = vadd.f32 %v2371, %v2491
    %v2495 = vstv %s403
    %v2496 = vmul.f32 %v2443, %v2495
    %v2497 = vmul.f32 %v2444, %v2495
    %v2498 = vmul.f32 %v2445, %v2495
    %v2499 = vadd.f32 %v2376, %v2496
    %v2500 = vadd.f32 %v2377, %v2497
    %v2501 = vadd.f32 %v2378, %v2498
    %v2502 = vstv %s435
    %v2503 = vmul.f32 %v2443, %v2502
    %v2504 = vmul.f32 %v2444, %v2502
    %v2505 = vmul.f32 %v2445, %v2502
    %v2506 = vadd.f32 %v2383, %v2503
    %v2507 = vadd.f32 %v2384, %v2504
    %v2508 = vadd.f32 %v2385, %v2505
    %v2509 = vstv %s467
    %v2510 = vmul.f32 %v2443, %v2509
    %v2511 = vmul.f32 %v2444, %v2509
    %v2512 = vmul.f32 %v2445, %v2509
    %v2513 = vadd.f32 %v2390, %v2510
    %v2514 = vadd.f32 %v2391, %v2511
    %v2515 = vadd.f32 %v2392, %v2512
    %v2516 = vstv %s499
    %v2517 = vmul.f32 %v2443, %v2516
    %v2518 = vmul.f32 %v2444, %v2516
    %v2519 = vmul.f32 %v2445, %v2516
    %v2520 = vadd.f32 %v2397, %v2517
    %v2521 = vadd.f32 %v2398, %v2518
    %v2522 = vadd.f32 %v2399, %v2519
    %v2523 = vstv %s531
    %v2524 = vmul.f32 %v2443, %v2523
    %v2525 = vmul.f32 %v2444, %v2523
    %v2526 = vmul.f32 %v2445, %v2523
    %v2527 = vadd.f32 %v2404, %v2524
    %v2528 = vadd.f32 %v2405, %v2525
    %v2529 = vadd.f32 %v2406, %v2526
    %v2530 = vstv %s563
    %v2531 = vmul.f32 %v2443, %v2530
    %v2532 = vmul.f32 %v2444, %v2530
    %v2533 = vmul.f32 %v2445, %v2530
    %v2534 = vadd.f32 %v2411, %v2531
    %v2535 = vadd.f32 %v2412, %v2532
    %v2536 = vadd.f32 %v2413, %v2533
    %v2537 = vstv %s595
    %v2538 = vmul.f32 %v2443, %v2537
    %v2539 = vmul.f32 %v2444, %v2537
    %v2540 = vmul.f32 %v2445, %v2537
    %v2541 = vadd.f32 %v2418, %v2538
    %v2542 = vadd.f32 %v2419, %v2539
    %v2543 = vadd.f32 %v2420, %v2540
    %v2544 = vstv %s627
    %v2545 = vmul.f32 %v2443, %v2544
    %v2546 = vmul.f32 %v2444, %v2544
    %v2547 = vmul.f32 %v2445, %v2544
    %v2548 = vadd.f32 %v2425, %v2545
    %v2549 = vadd.f32 %v2426, %v2546
    %v2550 = vadd.f32 %v2427, %v2547
    %v2551 = vstv %s659
    %v2552 = vmul.f32 %v2443, %v2551
    %v2553 = vmul.f32 %v2444, %v2551
    %v2554 = vmul.f32 %v2445, %v2551
    %v2555 = vadd.f32 %v2432, %v2552
    %v2556 = vadd.f32 %v2433, %v2553
    %v2557 = vadd.f32 %v2434, %v2554
    %v2558 = vstv %s116
    %v2559 = vmul.f32 %v2558, %v710
    %v2560 = vmul.f32 %v2558, %v711
    %v2561 = vmul.f32 %v2558, %v712
    %v2562 = vstv %s148
    %v2563 = vadd.f32 %v2559, %v2562
    %v2564 = vadd.f32 %v2560, %v2562
    %v2565 = vadd.f32 %v2561, %v2562
    %v2566 = vmax.f32 %v2563, 0.0
    %v2567 = vmax.f32 %v2564, 0.0
    %v2568 = vmax.f32 %v2565, 0.0
    %v2569 = vstv %s180
    %v2570 = vmul.f32 %v2566, %v2569
    %v2571 = vmul.f32 %v2567, %v2569
    %v2572 = vmul.f32 %v2568, %v2569
    %v2573 = vadd.f32 %v2450, %v2570
    %v2574 = vadd.f32 %v2451, %v2571
    %v2575 = vadd.f32 %v2452, %v2572
    %v2576 = vstv %s212
    %v2577 = vmul.f32 %v2566, %v2576
    %v2578 = vmul.f32 %v2567, %v2576
    %v2579 = vmul.f32 %v2568, %v2576
    %v2580 = vadd.f32 %v2457, %v2577
    %v2581 = vadd.f32 %v2458, %v2578
    %v2582 = vadd.f32 %v2459, %v2579
    %v2583 = vstv %s244
    %v2584 = vmul.f32 %v2566, %v2583
    %v2585 = vmul.f32 %v2567, %v2583
    %v2586 = vmul.f32 %v2568, %v2583
    %v2587 = vadd.f32 %v2464, %v2584
    %v2588 = vadd.f32 %v2465, %v2585
    %v2589 = vadd.f32 %v2466, %v2586
    %v2590 = vstv %s276
    %v2591 = vmul.f32 %v2566, %v2590
    %v2592 = vmul.f32 %v2567, %v2590
    %v2593 = vmul.f32 %v2568, %v2590
    %v2594 = vadd.f32 %v2471, %v2591
    %v2595 = vadd.f32 %v2472, %v2592
    %v2596 = vadd.f32 %v2473, %v2593
    %v2597 = vstv %s308
    %v2598 = vmul.f32 %v2566, %v2597
    %v2599 = vmul.f32 %v2567, %v2597
    %v2600 = vmul.f32 %v2568, %v2597
    %v2601 = vadd.f32 %v2478, %v2598
    %v2602 = vadd.f32 %v2479, %v2599
    %v2603 = vadd.f32 %v2480, %v2600
    %v2604 = vstv %s340
    %v2605 = vmul.f32 %v2566, %v2604
    %v2606 = vmul.f32 %v2567, %v2604
    %v2607 = vmul.f32 %v2568, %v2604
    %v2608 = vadd.f32 %v2485, %v2605
    %v2609 = vadd.f32 %v2486, %v2606
    %v2610 = vadd.f32 %v2487, %v2607
    %v2611 = vstv %s372
    %v2612 = vmul.f32 %v2566, %v2611
    %v2613 = vmul.f32 %v2567, %v2611
    %v2614 = vmul.f32 %v2568, %v2611
    %v2615 = vadd.f32 %v2492, %v2612
    %v2616 = vadd.f32 %v2493, %v2613
    %v2617 = vadd.f32 %v2494, %v2614
    %v2618 = vstv %s404
    %v2619 = vmul.f32 %v2566, %v2618
    %v2620 = vmul.f32 %v2567, %v2618
    %v2621 = vmul.f32 %v2568, %v2618
    %v2622 = vadd.f32 %v2499, %v2619
    %v2623 = vadd.f32 %v2500, %v2620
    %v2624 = vadd.f32 %v2501, %v2621
    %v2625 = vstv %s436
    %v2626 = vmul.f32 %v2566, %v2625
    %v2627 = vmul.f32 %v2567, %v2625
    %v2628 = vmul.f32 %v2568, %v2625
    %v2629 = vadd.f32 %v2506, %v2626
    %v2630 = vadd.f32 %v2507, %v2627
    %v2631 = vadd.f32 %v2508, %v2628
    %v2632 = vstv %s468
    %v2633 = vmul.f32 %v2566, %v2632
    %v2634 = vmul.f32 %v2567, %v2632
    %v2635 = vmul.f32 %v2568, %v2632
    %v2636 = vadd.f32 %v2513, %v2633
    %v2637 = vadd.f32 %v2514, %v2634
    %v2638 = vadd.f32 %v2515, %v2635
    %v2639 = vstv %s500
    %v2640 = vmul.f32 %v2566, %v2639
    %v2641 = vmul.f32 %v2567, %v2639
    %v2642 = vmul.f32 %v2568, %v2639
    %v2643 = vadd.f32 %v2520, %v2640
    %v2644 = vadd.f32 %v2521, %v2641
    %v2645 = vadd.f32 %v2522, %v2642
    %v2646 = vstv %s532
    %v2647 = vmul.f32 %v2566, %v2646
    %v2648 = vmul.f32 %v2567, %v2646
    %v2649 = vmul.f32 %v2568, %v2646
    %v2650 = vadd.f32 %v2527, %v2647
    %v2651 = vadd.f32 %v2528, %v2648
    %v2652 = vadd.f32 %v2529, %v2649
    %v2653 = vstv %s564
    %v2654 = vmul.f32 %v2566, %v2653
    %v2655 = vmul.f32 %v2567, %v2653
    %v2656 = vmul.f32 %v2568, %v2653
    %v2657 = vadd.f32 %v2534, %v2654
    %v2658 = vadd.f32 %v2535, %v2655
    %v2659 = vadd.f32 %v2536, %v2656
    %v2660 = vstv %s596
    %v2661 = vmul.f32 %v2566, %v2660
    %v2662 = vmul.f32 %v2567, %v2660
    %v2663 = vmul.f32 %v2568, %v2660
    %v2664 = vadd.f32 %v2541, %v2661
    %v2665 = vadd.f32 %v2542, %v2662
    %v2666 = vadd.f32 %v2543, %v2663
    %v2667 = vstv %s628
    %v2668 = vmul.f32 %v2566, %v2667
    %v2669 = vmul.f32 %v2567, %v2667
    %v2670 = vmul.f32 %v2568, %v2667
    %v2671 = vadd.f32 %v2548, %v2668
    %v2672 = vadd.f32 %v2549, %v2669
    %v2673 = vadd.f32 %v2550, %v2670
    %v2674 = vstv %s660
    %v2675 = vmul.f32 %v2566, %v2674
    %v2676 = vmul.f32 %v2567, %v2674
    %v2677 = vmul.f32 %v2568, %v2674
    %v2678 = vadd.f32 %v2555, %v2675
    %v2679 = vadd.f32 %v2556, %v2676
    %v2680 = vadd.f32 %v2557, %v2677
    %v2681 = vstv %s117
    %v2682 = vmul.f32 %v2681, %v710
    %v2683 = vmul.f32 %v2681, %v711
    %v2684 = vmul.f32 %v2681, %v712
    %v2685 = vstv %s149
    %v2686 = vadd.f32 %v2682, %v2685
    %v2687 = vadd.f32 %v2683, %v2685
    %v2688 = vadd.f32 %v2684, %v2685
    %v2689 = vmax.f32 %v2686, 0.0
    %v2690 = vmax.f32 %v2687, 0.0
    %v2691 = vmax.f32 %v2688, 0.0
    %v2692 = vstv %s181
    %v2693 = vmul.f32 %v2689, %v2692
    %v2694 = vmul.f32 %v2690, %v2692
    %v2695 = vmul.f32 %v2691, %v2692
    %v2696 = vadd.f32 %v2573, %v2693
    %v2697 = vadd.f32 %v2574, %v2694
    %v2698 = vadd.f32 %v2575, %v2695
    %v2699 = vstv %s213
    %v2700 = vmul.f32 %v2689, %v2699
    %v2701 = vmul.f32 %v2690, %v2699
    %v2702 = vmul.f32 %v2691, %v2699
    %v2703 = vadd.f32 %v2580, %v2700
    %v2704 = vadd.f32 %v2581, %v2701
    %v2705 = vadd.f32 %v2582, %v2702
    %v2706 = vstv %s245
    %v2707 = vmul.f32 %v2689, %v2706
    %v2708 = vmul.f32 %v2690, %v2706
    %v2709 = vmul.f32 %v2691, %v2706
    %v2710 = vadd.f32 %v2587, %v2707
    %v2711 = vadd.f32 %v2588, %v2708
    %v2712 = vadd.f32 %v2589, %v2709
    %v2713 = vstv %s277
    %v2714 = vmul.f32 %v2689, %v2713
    %v2715 = vmul.f32 %v2690, %v2713
    %v2716 = vmul.f32 %v2691, %v2713
    %v2717 = vadd.f32 %v2594, %v2714
    %v2718 = vadd.f32 %v2595, %v2715
    %v2719 = vadd.f32 %v2596, %v2716
    %v2720 = vstv %s309
    %v2721 = vmul.f32 %v2689, %v2720
    %v2722 = vmul.f32 %v2690, %v2720
    %v2723 = vmul.f32 %v2691, %v2720
    %v2724 = vadd.f32 %v2601, %v2721
    %v2725 = vadd.f32 %v2602, %v2722
    %v2726 = vadd.f32 %v2603, %v2723
    %v2727 = vstv %s341
    %v2728 = vmul.f32 %v2689, %v2727
    %v2729 = vmul.f32 %v2690, %v2727
    %v2730 = vmul.f32 %v2691, %v2727
    %v2731 = vadd.f32 %v2608, %v2728
    %v2732 = vadd.f32 %v2609, %v2729
    %v2733 = vadd.f32 %v2610, %v2730
    %v2734 = vstv %s373
    %v2735 = vmul.f32 %v2689, %v2734
    %v2736 = vmul.f32 %v2690, %v2734
    %v2737 = vmul.f32 %v2691, %v2734
    %v2738 = vadd.f32 %v2615, %v2735
    %v2739 = vadd.f32 %v2616, %v2736
    %v2740 = vadd.f32 %v2617, %v2737
    %v2741 = vstv %s405
    %v2742 = vmul.f32 %v2689, %v2741
    %v2743 = vmul.f32 %v2690, %v2741
    %v2744 = vmul.f32 %v2691, %v2741
    %v2745 = vadd.f32 %v2622, %v2742
    %v2746 = vadd.f32 %v2623, %v2743
    %v2747 = vadd.f32 %v2624, %v2744
    %v2748 = vstv %s437
    %v2749 = vmul.f32 %v2689, %v2748
    %v2750 = vmul.f32 %v2690, %v2748
    %v2751 = vmul.f32 %v2691, %v2748
    %v2752 = vadd.f32 %v2629, %v2749
    %v2753 = vadd.f32 %v2630, %v2750
    %v2754 = vadd.f32 %v2631, %v2751
    %v2755 = vstv %s469
    %v2756 = vmul.f32 %v2689, %v2755
    %v2757 = vmul.f32 %v2690, %v2755
    %v2758 = vmul.f32 %v2691, %v2755
    %v2759 = vadd.f32 %v2636, %v2756
    %v2760 = vadd.f32 %v2637, %v2757
    %v2761 = vadd.f32 %v2638, %v2758
    %v2762 = vstv %s501
    %v2763 = vmul.f32 %v2689, %v2762
    %v2764 = vmul.f32 %v2690, %v2762
    %v2765 = vmul.f32 %v2691, %v2762
    %v2766 = vadd.f32 %v2643, %v2763
    %v2767 = vadd.f32 %v2644, %v2764
    %v2768 = vadd.f32 %v2645, %v2765
    %v2769 = vstv %s533
    %v2770 = vmul.f32 %v2689, %v2769
    %v2771 = vmul.f32 %v2690, %v2769
    %v2772 = vmul.f32 %v2691, %v2769
    %v2773 = vadd.f32 %v2650, %v2770
    %v2774 = vadd.f32 %v2651, %v2771
    %v2775 = vadd.f32 %v2652, %v2772
    %v2776 = vstv %s565
    %v2777 = vmul.f32 %v2689, %v2776
    %v2778 = vmul.f32 %v2690, %v2776
    %v2779 = vmul.f32 %v2691, %v2776
    %v2780 = vadd.f32 %v2657, %v2777
    %v2781 = vadd.f32 %v2658, %v2778
    %v2782 = vadd.f32 %v2659, %v2779
    %v2783 = vstv %s597
    %v2784 = vmul.f32 %v2689, %v2783
    %v2785 = vmul.f32 %v2690, %v2783
    %v2786 = vmul.f32 %v2691, %v2783
    %v2787 = vadd.f32 %v2664, %v2784
    %v2788 = vadd.f32 %v2665, %v2785
    %v2789 = vadd.f32 %v2666, %v2786
    %v2790 = vstv %s629
    %v2791 = vmul.f32 %v2689, %v2790
    %v2792 = vmul.f32 %v2690, %v2790
    %v2793 = vmul.f32 %v2691, %v2790
    %v2794 = vadd.f32 %v2671, %v2791
    %v2795 = vadd.f32 %v2672, %v2792
    %v2796 = vadd.f32 %v2673, %v2793
    %v2797 = vstv %s661
    %v2798 = vmul.f32 %v2689, %v2797
    %v2799 = vmul.f32 %v2690, %v2797
    %v2800 = vmul.f32 %v2691, %v2797
    %v2801 = vadd.f32 %v2678, %v2798
    %v2802 = vadd.f32 %v2679, %v2799
    %v2803 = vadd.f32 %v2680, %v2800
    %v2804 = vstv %s118
    %v2805 = vmul.f32 %v2804, %v710
    %v2806 = vmul.f32 %v2804, %v711
    %v2807 = vmul.f32 %v2804, %v712
    %v2808 = vstv %s150
    %v2809 = vadd.f32 %v2805, %v2808
    %v2810 = vadd.f32 %v2806, %v2808
    %v2811 = vadd.f32 %v2807, %v2808
    %v2812 = vmax.f32 %v2809, 0.0
    %v2813 = vmax.f32 %v2810, 0.0
    %v2814 = vmax.f32 %v2811, 0.0
    %v2815 = vstv %s182
    %v2816 = vmul.f32 %v2812, %v2815
    %v2817 = vmul.f32 %v2813, %v2815
    %v2818 = vmul.f32 %v2814, %v2815
    %v2819 = vadd.f32 %v2696, %v2816
    %v2820 = vadd.f32 %v2697, %v2817
    %v2821 = vadd.f32 %v2698, %v2818
    %v2822 = vstv %s214
    %v2823 = vmul.f32 %v2812, %v2822
    %v2824 = vmul.f32 %v2813, %v2822
    %v2825 = vmul.f32 %v2814, %v2822
    %v2826 = vadd.f32 %v2703, %v2823
    %v2827 = vadd.f32 %v2704, %v2824
    %v2828 = vadd.f32 %v2705, %v2825
    %v2829 = vstv %s246
    %v2830 = vmul.f32 %v2812, %v2829
    %v2831 = vmul.f32 %v2813, %v2829
    %v2832 = vmul.f32 %v2814, %v2829
    %v2833 = vadd.f32 %v2710, %v2830
    %v2834 = vadd.f32 %v2711, %v2831
    %v2835 = vadd.f32 %v2712, %v2832
    %v2836 = vstv %s278
    %v2837 = vmul.f32 %v2812, %v2836
    %v2838 = vmul.f32 %v2813, %v2836
    %v2839 = vmul.f32 %v2814, %v2836
    %v2840 = vadd.f32 %v2717, %v2837
    %v2841 = vadd.f32 %v2718, %v2838
    %v2842 = vadd.f32 %v2719, %v2839
    %v2843 = vstv %s310
    %v2844 = vmul.f32 %v2812, %v2843
    %v2845 = vmul.f32 %v2813, %v2843
    %v2846 = vmul.f32 %v2814, %v2843
    %v2847 = vadd.f32 %v2724, %v2844
    %v2848 = vadd.f32 %v2725, %v2845
    %v2849 = vadd.f32 %v2726, %v2846
    %v2850 = vstv %s342
    %v2851 = vmul.f32 %v2812, %v2850
    %v2852 = vmul.f32 %v2813, %v2850
    %v2853 = vmul.f32 %v2814, %v2850
    %v2854 = vadd.f32 %v2731, %v2851
    %v2855 = vadd.f32 %v2732, %v2852
    %v2856 = vadd.f32 %v2733, %v2853
    %v2857 = vstv %s374
    %v2858 = vmul.f32 %v2812, %v2857
    %v2859 = vmul.f32 %v2813, %v2857
    %v2860 = vmul.f32 %v2814, %v2857
    %v2861 = vadd.f32 %v2738, %v2858
    %v2862 = vadd.f32 %v2739, %v2859
    %v2863 = vadd.f32 %v2740, %v2860
    %v2864 = vstv %s406
    %v2865 = vmul.f32 %v2812, %v2864
    %v2866 = vmul.f32 %v2813, %v2864
    %v2867 = vmul.f32 %v2814, %v2864
    %v2868 = vadd.f32 %v2745, %v2865
    %v2869 = vadd.f32 %v2746, %v2866
    %v2870 = vadd.f32 %v2747, %v2867
    %v2871 = vstv %s438
    %v2872 = vmul.f32 %v2812, %v2871
    %v2873 = vmul.f32 %v2813, %v2871
    %v2874 = vmul.f32 %v2814, %v2871
    %v2875 = vadd.f32 %v2752, %v2872
    %v2876 = vadd.f32 %v2753, %v2873
    %v2877 = vadd.f32 %v2754, %v2874
    %v2878 = vstv %s470
    %v2879 = vmul.f32 %v2812, %v2878
    %v2880 = vmul.f32 %v2813, %v2878
    %v2881 = vmul.f32 %v2814, %v2878
    %v2882 = vadd.f32 %v2759, %v2879
    %v2883 = vadd.f32 %v2760, %v2880
    %v2884 = vadd.f32 %v2761, %v2881
    %v2885 = vstv %s502
    %v2886 = vmul.f32 %v2812, %v2885
    %v2887 = vmul.f32 %v2813, %v2885
    %v2888 = vmul.f32 %v2814, %v2885
    %v2889 = vadd.f32 %v2766, %v2886
    %v2890 = vadd.f32 %v2767, %v2887
    %v2891 = vadd.f32 %v2768, %v2888
    %v2892 = vstv %s534
    %v2893 = vmul.f32 %v2812, %v2892
    %v2894 = vmul.f32 %v2813, %v2892
    %v2895 = vmul.f32 %v2814, %v2892
    %v2896 = vadd.f32 %v2773, %v2893
    %v2897 = vadd.f32 %v2774, %v2894
    %v2898 = vadd.f32 %v2775, %v2895
    %v2899 = vstv %s566
    %v2900 = vmul.f32 %v2812, %v2899
    %v2901 = vmul.f32 %v2813, %v2899
    %v2902 = vmul.f32 %v2814, %v2899
    %v2903 = vadd.f32 %v2780, %v2900
    %v2904 = vadd.f32 %v2781, %v2901
    %v2905 = vadd.f32 %v2782, %v2902
    %v2906 = vstv %s598
    %v2907 = vmul.f32 %v2812, %v2906
    %v2908 = vmul.f32 %v2813, %v2906
    %v2909 = vmul.f32 %v2814, %v2906
    %v2910 = vadd.f32 %v2787, %v2907
    %v2911 = vadd.f32 %v2788, %v2908
    %v2912 = vadd.f32 %v2789, %v2909
    %v2913 = vstv %s630
    %v2914 = vmul.f32 %v2812, %v2913
    %v2915 = vmul.f32 %v2813, %v2913
    %v2916 = vmul.f32 %v2814, %v2913
    %v2917 = vadd.f32 %v2794, %v2914
    %v2918 = vadd.f32 %v2795, %v2915
    %v2919 = vadd.f32 %v2796, %v2916
    %v2920 = vstv %s662
    %v2921 = vmul.f32 %v2812, %v2920
    %v2922 = vmul.f32 %v2813, %v2920
    %v2923 = vmul.f32 %v2814, %v2920
    %v2924 = vadd.f32 %v2801, %v2921
    %v2925 = vadd.f32 %v2802, %v2922
    %v2926 = vadd.f32 %v2803, %v2923
    %v2927 = vstv %s119
    %v2928 = vmul.f32 %v2927, %v710
    %v2929 = vmul.f32 %v2927, %v711
    %v2930 = vmul.f32 %v2927, %v712
    %v2931 = vstv %s151
    %v2932 = vadd.f32 %v2928, %v2931
    %v2933 = vadd.f32 %v2929, %v2931
    %v2934 = vadd.f32 %v2930, %v2931
    %v2935 = vmax.f32 %v2932, 0.0
    %v2936 = vmax.f32 %v2933, 0.0
    %v2937 = vmax.f32 %v2934, 0.0
    %v2938 = vstv %s183
    %v2939 = vmul.f32 %v2935, %v2938
    %v2940 = vmul.f32 %v2936, %v2938
    %v2941 = vmul.f32 %v2937, %v2938
    %v2942 = vadd.f32 %v2819, %v2939
    %v2943 = vadd.f32 %v2820, %v2940
    %v2944 = vadd.f32 %v2821, %v2941
    %v2945 = vstv %s215
    %v2946 = vmul.f32 %v2935, %v2945
    %v2947 = vmul.f32 %v2936, %v2945
    %v2948 = vmul.f32 %v2937, %v2945
    %v2949 = vadd.f32 %v2826, %v2946
    %v2950 = vadd.f32 %v2827, %v2947
    %v2951 = vadd.f32 %v2828, %v2948
    %v2952 = vstv %s247
    %v2953 = vmul.f32 %v2935, %v2952
    %v2954 = vmul.f32 %v2936, %v2952
    %v2955 = vmul.f32 %v2937, %v2952
    %v2956 = vadd.f32 %v2833, %v2953
    %v2957 = vadd.f32 %v2834, %v2954
    %v2958 = vadd.f32 %v2835, %v2955
    %v2959 = vstv %s279
    %v2960 = vmul.f32 %v2935, %v2959
    %v2961 = vmul.f32 %v2936, %v2959
    %v2962 = vmul.f32 %v2937, %v2959
    %v2963 = vadd.f32 %v2840, %v2960
    %v2964 = vadd.f32 %v2841, %v2961
    %v2965 = vadd.f32 %v2842, %v2962
    %v2966 = vstv %s311
    %v2967 = vmul.f32 %v2935, %v2966
    %v2968 = vmul.f32 %v2936, %v2966
    %v2969 = vmul.f32 %v2937, %v2966
    %v2970 = vadd.f32 %v2847, %v2967
    %v2971 = vadd.f32 %v2848, %v2968
    %v2972 = vadd.f32 %v2849, %v2969
    %v2973 = vstv %s343
    %v2974 = vmul.f32 %v2935, %v2973
    %v2975 = vmul.f32 %v2936, %v2973
    %v2976 = vmul.f32 %v2937, %v2973
    %v2977 = vadd.f32 %v2854, %v2974
    %v2978 = vadd.f32 %v2855, %v2975
    %v2979 = vadd.f32 %v2856, %v2976
    %v2980 = vstv %s375
    %v2981 = vmul.f32 %v2935, %v2980
    %v2982 = vmul.f32 %v2936, %v2980
    %v2983 = vmul.f32 %v2937, %v2980
    %v2984 = vadd.f32 %v2861, %v2981
    %v2985 = vadd.f32 %v2862, %v2982
    %v2986 = vadd.f32 %v2863, %v2983
    %v2987 = vstv %s407
    %v2988 = vmul.f32 %v2935, %v2987
    %v2989 = vmul.f32 %v2936, %v2987
    %v2990 = vmul.f32 %v2937, %v2987
    %v2991 = vadd.f32 %v2868, %v2988
    %v2992 = vadd.f32 %v2869, %v2989
    %v2993 = vadd.f32 %v2870, %v2990
    %v2994 = vstv %s439
    %v2995 = vmul.f32 %v2935, %v2994
    %v2996 = vmul.f32 %v2936, %v2994
    %v2997 = vmul.f32 %v2937, %v2994
    %v2998 = vadd.f32 %v2875, %v2995
    %v2999 = vadd.f32 %v2876, %v2996
    %v3000 = vadd.f32 %v2877, %v2997
    %v3001 = vstv %s471
    %v3002 = vmul.f32 %v2935, %v3001
    %v3003 = vmul.f32 %v2936, %v3001
    %v3004 = vmul.f32 %v2937, %v3001
    %v3005 = vadd.f32 %v2882, %v3002
    %v3006 = vadd.f32 %v2883, %v3003
    %v3007 = vadd.f32 %v2884, %v3004
    %v3008 = vstv %s503
    %v3009 = vmul.f32 %v2935, %v3008
    %v3010 = vmul.f32 %v2936, %v3008
    %v3011 = vmul.f32 %v2937, %v3008
    %v3012 = vadd.f32 %v2889, %v3009
    %v3013 = vadd.f32 %v2890, %v3010
    %v3014 = vadd.f32 %v2891, %v3011
    %v3015 = vstv %s535
    %v3016 = vmul.f32 %v2935, %v3015
    %v3017 = vmul.f32 %v2936, %v3015
    %v3018 = vmul.f32 %v2937, %v3015
    %v3019 = vadd.f32 %v2896, %v3016
    %v3020 = vadd.f32 %v2897, %v3017
    %v3021 = vadd.f32 %v2898, %v3018
    %v3022 = vstv %s567
    %v3023 = vmul.f32 %v2935, %v3022
    %v3024 = vmul.f32 %v2936, %v3022
    %v3025 = vmul.f32 %v2937, %v3022
    %v3026 = vadd.f32 %v2903, %v3023
    %v3027 = vadd.f32 %v2904, %v3024
    %v3028 = vadd.f32 %v2905, %v3025
    %v3029 = vstv %s599
    %v3030 = vmul.f32 %v2935, %v3029
    %v3031 = vmul.f32 %v2936, %v3029
    %v3032 = vmul.f32 %v2937, %v3029
    %v3033 = vadd.f32 %v2910, %v3030
    %v3034 = vadd.f32 %v2911, %v3031
    %v3035 = vadd.f32 %v2912, %v3032
    %v3036 = vstv %s631
    %v3037 = vmul.f32 %v2935, %v3036
    %v3038 = vmul.f32 %v2936, %v3036
    %v3039 = vmul.f32 %v2937, %v3036
    %v3040 = vadd.f32 %v2917, %v3037
    %v3041 = vadd.f32 %v2918, %v3038
    %v3042 = vadd.f32 %v2919, %v3039
    %v3043 = vstv %s663
    %v3044 = vmul.f32 %v2935, %v3043
    %v3045 = vmul.f32 %v2936, %v3043
    %v3046 = vmul.f32 %v2937, %v3043
    %v3047 = vadd.f32 %v2924, %v3044
    %v3048 = vadd.f32 %v2925, %v3045
    %v3049 = vadd.f32 %v2926, %v3046
    %v3050 = vstv %s120
    %v3051 = vmul.f32 %v3050, %v710
    %v3052 = vmul.f32 %v3050, %v711
    %v3053 = vmul.f32 %v3050, %v712
    %v3054 = vstv %s152
    %v3055 = vadd.f32 %v3051, %v3054
    %v3056 = vadd.f32 %v3052, %v3054
    %v3057 = vadd.f32 %v3053, %v3054
    %v3058 = vmax.f32 %v3055, 0.0
    %v3059 = vmax.f32 %v3056, 0.0
    %v3060 = vmax.f32 %v3057, 0.0
    %v3061 = vstv %s184
    %v3062 = vmul.f32 %v3058, %v3061
    %v3063 = vmul.f32 %v3059, %v3061
    %v3064 = vmul.f32 %v3060, %v3061
    %v3065 = vadd.f32 %v2942, %v3062
    %v3066 = vadd.f32 %v2943, %v3063
    %v3067 = vadd.f32 %v2944, %v3064
    %v3068 = vstv %s216
    %v3069 = vmul.f32 %v3058, %v3068
    %v3070 = vmul.f32 %v3059, %v3068
    %v3071 = vmul.f32 %v3060, %v3068
    %v3072 = vadd.f32 %v2949, %v3069
    %v3073 = vadd.f32 %v2950, %v3070
    %v3074 = vadd.f32 %v2951, %v3071
    %v3075 = vstv %s248
    %v3076 = vmul.f32 %v3058, %v3075
    %v3077 = vmul.f32 %v3059, %v3075
    %v3078 = vmul.f32 %v3060, %v3075
    %v3079 = vadd.f32 %v2956, %v3076
    %v3080 = vadd.f32 %v2957, %v3077
    %v3081 = vadd.f32 %v2958, %v3078
    %v3082 = vstv %s280
    %v3083 = vmul.f32 %v3058, %v3082
    %v3084 = vmul.f32 %v3059, %v3082
    %v3085 = vmul.f32 %v3060, %v3082
    %v3086 = vadd.f32 %v2963, %v3083
    %v3087 = vadd.f32 %v2964, %v3084
    %v3088 = vadd.f32 %v2965, %v3085
    %v3089 = vstv %s312
    %v3090 = vmul.f32 %v3058, %v3089
    %v3091 = vmul.f32 %v3059, %v3089
    %v3092 = vmul.f32 %v3060, %v3089
    %v3093 = vadd.f32 %v2970, %v3090
    %v3094 = vadd.f32 %v2971, %v3091
    %v3095 = vadd.f32 %v2972, %v3092
    %v3096 = vstv %s344
    %v3097 = vmul.f32 %v3058, %v3096
    %v3098 = vmul.f32 %v3059, %v3096
    %v3099 = vmul.f32 %v3060, %v3096
    %v3100 = vadd.f32 %v2977, %v3097
    %v3101 = vadd.f32 %v2978, %v3098
    %v3102 = vadd.f32 %v2979, %v3099
    %v3103 = vstv %s376
    %v3104 = vmul.f32 %v3058, %v3103
    %v3105 = vmul.f32 %v3059, %v3103
    %v3106 = vmul.f32 %v3060, %v3103
    %v3107 = vadd.f32 %v2984, %v3104
    %v3108 = vadd.f32 %v2985, %v3105
    %v3109 = vadd.f32 %v2986, %v3106
    %v3110 = vstv %s408
    %v3111 = vmul.f32 %v3058, %v3110
    %v3112 = vmul.f32 %v3059, %v3110
    %v3113 = vmul.f32 %v3060, %v3110
    %v3114 = vadd.f32 %v2991, %v3111
    %v3115 = vadd.f32 %v2992, %v3112
    %v3116 = vadd.f32 %v2993, %v3113
    %v3117 = vstv %s440
    %v3118 = vmul.f32 %v3058, %v3117
    %v3119 = vmul.f32 %v3059, %v3117
    %v3120 = vmul.f32 %v3060, %v3117
    %v3121 = vadd.f32 %v2998, %v3118
    %v3122 = vadd.f32 %v2999, %v3119
    %v3123 = vadd.f32 %v3000, %v3120
    %v3124 = vstv %s472
    %v3125 = vmul.f32 %v3058, %v3124
    %v3126 = vmul.f32 %v3059, %v3124
    %v3127 = vmul.f32 %v3060, %v3124
    %v3128 = vadd.f32 %v3005, %v3125
    %v3129 = vadd.f32 %v3006, %v3126
    %v3130 = vadd.f32 %v3007, %v3127
    %v3131 = vstv %s504
    %v3132 = vmul.f32 %v3058, %v3131
    %v3133 = vmul.f32 %v3059, %v3131
    %v3134 = vmul.f32 %v3060, %v3131
    %v3135 = vadd.f32 %v3012, %v3132
    %v3136 = vadd.f32 %v3013, %v3133
    %v3137 = vadd.f32 %v3014, %v3134
    %v3138 = vstv %s536
    %v3139 = vmul.f32 %v3058, %v3138
    %v3140 = vmul.f32 %v3059, %v3138
    %v3141 = vmul.f32 %v3060, %v3138
    %v3142 = vadd.f32 %v3019, %v3139
    %v3143 = vadd.f32 %v3020, %v3140
    %v3144 = vadd.f32 %v3021, %v3141
    %v3145 = vstv %s568
    %v3146 = vmul.f32 %v3058, %v3145
    %v3147 = vmul.f32 %v3059, %v3145
    %v3148 = vmul.f32 %v3060, %v3145
    %v3149 = vadd.f32 %v3026, %v3146
    %v3150 = vadd.f32 %v3027, %v3147
    %v3151 = vadd.f32 %v3028, %v3148
    %v3152 = vstv %s600
    %v3153 = vmul.f32 %v3058, %v3152
    %v3154 = vmul.f32 %v3059, %v3152
    %v3155 = vmul.f32 %v3060, %v3152
    %v3156 = vadd.f32 %v3033, %v3153
    %v3157 = vadd.f32 %v3034, %v3154
    %v3158 = vadd.f32 %v3035, %v3155
    %v3159 = vstv %s632
    %v3160 = vmul.f32 %v3058, %v3159
    %v3161 = vmul.f32 %v3059, %v3159
    %v3162 = vmul.f32 %v3060, %v3159
    %v3163 = vadd.f32 %v3040, %v3160
    %v3164 = vadd.f32 %v3041, %v3161
    %v3165 = vadd.f32 %v3042, %v3162
    %v3166 = vstv %s664
    %v3167 = vmul.f32 %v3058, %v3166
    %v3168 = vmul.f32 %v3059, %v3166
    %v3169 = vmul.f32 %v3060, %v3166
    %v3170 = vadd.f32 %v3047, %v3167
    %v3171 = vadd.f32 %v3048, %v3168
    %v3172 = vadd.f32 %v3049, %v3169
    %v3173 = vstv %s121
    %v3174 = vmul.f32 %v3173, %v710
    %v3175 = vmul.f32 %v3173, %v711
    %v3176 = vmul.f32 %v3173, %v712
    %v3177 = vstv %s153
    %v3178 = vadd.f32 %v3174, %v3177
    %v3179 = vadd.f32 %v3175, %v3177
    %v3180 = vadd.f32 %v3176, %v3177
    %v3181 = vmax.f32 %v3178, 0.0
    %v3182 = vmax.f32 %v3179, 0.0
    %v3183 = vmax.f32 %v3180, 0.0
    %v3184 = vstv %s185
    %v3185 = vmul.f32 %v3181, %v3184
    %v3186 = vmul.f32 %v3182, %v3184
    %v3187 = vmul.f32 %v3183, %v3184
    %v3188 = vadd.f32 %v3065, %v3185
    %v3189 = vadd.f32 %v3066, %v3186
    %v3190 = vadd.f32 %v3067, %v3187
    %v3191 = vstv %s217
    %v3192 = vmul.f32 %v3181, %v3191
    %v3193 = vmul.f32 %v3182, %v3191
    %v3194 = vmul.f32 %v3183, %v3191
    %v3195 = vadd.f32 %v3072, %v3192
    %v3196 = vadd.f32 %v3073, %v3193
    %v3197 = vadd.f32 %v3074, %v3194
    %v3198 = vstv %s249
    %v3199 = vmul.f32 %v3181, %v3198
    %v3200 = vmul.f32 %v3182, %v3198
    %v3201 = vmul.f32 %v3183, %v3198
    %v3202 = vadd.f32 %v3079, %v3199
    %v3203 = vadd.f32 %v3080, %v3200
    %v3204 = vadd.f32 %v3081, %v3201
    %v3205 = vstv %s281
    %v3206 = vmul.f32 %v3181, %v3205
    %v3207 = vmul.f32 %v3182, %v3205
    %v3208 = vmul.f32 %v3183, %v3205
    %v3209 = vadd.f32 %v3086, %v3206
    %v3210 = vadd.f32 %v3087, %v3207
    %v3211 = vadd.f32 %v3088, %v3208
    %v3212 = vstv %s313
    %v3213 = vmul.f32 %v3181, %v3212
    %v3214 = vmul.f32 %v3182, %v3212
    %v3215 = vmul.f32 %v3183, %v3212
    %v3216 = vadd.f32 %v3093, %v3213
    %v3217 = vadd.f32 %v3094, %v3214
    %v3218 = vadd.f32 %v3095, %v3215
    %v3219 = vstv %s345
    %v3220 = vmul.f32 %v3181, %v3219
    %v3221 = vmul.f32 %v3182, %v3219
    %v3222 = vmul.f32 %v3183, %v3219
    %v3223 = vadd.f32 %v3100, %v3220
    %v3224 = vadd.f32 %v3101, %v3221
    %v3225 = vadd.f32 %v3102, %v3222
    %v3226 = vstv %s377
    %v3227 = vmul.f32 %v3181, %v3226
    %v3228 = vmul.f32 %v3182, %v3226
    %v3229 = vmul.f32 %v3183, %v3226
    %v3230 = vadd.f32 %v3107, %v3227
    %v3231 = vadd.f32 %v3108, %v3228
    %v3232 = vadd.f32 %v3109, %v3229
    %v3233 = vstv %s409
    %v3234 = vmul.f32 %v3181, %v3233
    %v3235 = vmul.f32 %v3182, %v3233
    %v3236 = vmul.f32 %v3183, %v3233
    %v3237 = vadd.f32 %v3114, %v3234
    %v3238 = vadd.f32 %v3115, %v3235
    %v3239 = vadd.f32 %v3116, %v3236
    %v3240 = vstv %s441
    %v3241 = vmul.f32 %v3181, %v3240
    %v3242 = vmul.f32 %v3182, %v3240
    %v3243 = vmul.f32 %v3183, %v3240
    %v3244 = vadd.f32 %v3121, %v3241
    %v3245 = vadd.f32 %v3122, %v3242
    %v3246 = vadd.f32 %v3123, %v3243
    %v3247 = vstv %s473
    %v3248 = vmul.f32 %v3181, %v3247
    %v3249 = vmul.f32 %v3182, %v3247
    %v3250 = vmul.f32 %v3183, %v3247
    %v3251 = vadd.f32 %v3128, %v3248
    %v3252 = vadd.f32 %v3129, %v3249
    %v3253 = vadd.f32 %v3130, %v3250
    %v3254 = vstv %s505
    %v3255 = vmul.f32 %v3181, %v3254
    %v3256 = vmul.f32 %v3182, %v3254
    %v3257 = vmul.f32 %v3183, %v3254
    %v3258 = vadd.f32 %v3135, %v3255
    %v3259 = vadd.f32 %v3136, %v3256
    %v3260 = vadd.f32 %v3137, %v3257
    %v3261 = vstv %s537
    %v3262 = vmul.f32 %v3181, %v3261
    %v3263 = vmul.f32 %v3182, %v3261
    %v3264 = vmul.f32 %v3183, %v3261
    %v3265 = vadd.f32 %v3142, %v3262
    %v3266 = vadd.f32 %v3143, %v3263
    %v3267 = vadd.f32 %v3144, %v3264
    %v3268 = vstv %s569
    %v3269 = vmul.f32 %v3181, %v3268
    %v3270 = vmul.f32 %v3182, %v3268
    %v3271 = vmul.f32 %v3183, %v3268
    %v3272 = vadd.f32 %v3149, %v3269
    %v3273 = vadd.f32 %v3150, %v3270
    %v3274 = vadd.f32 %v3151, %v3271
    %v3275 = vstv %s601
    %v3276 = vmul.f32 %v3181, %v3275
    %v3277 = vmul.f32 %v3182, %v3275
    %v3278 = vmul.f32 %v3183, %v3275
    %v3279 = vadd.f32 %v3156, %v3276
    %v3280 = vadd.f32 %v3157, %v3277
    %v3281 = vadd.f32 %v3158, %v3278
    %v3282 = vstv %s633
    %v3283 = vmul.f32 %v3181, %v3282
    %v3284 = vmul.f32 %v3182, %v3282
    %v3285 = vmul.f32 %v3183, %v3282
    %v3286 = vadd.f32 %v3163, %v3283
    %v3287 = vadd.f32 %v3164, %v3284
    %v3288 = vadd.f32 %v3165, %v3285
    %v3289 = vstv %s665
    %v3290 = vmul.f32 %v3181, %v3289
    %v3291 = vmul.f32 %v3182, %v3289
    %v3292 = vmul.f32 %v3183, %v3289
    %v3293 = vadd.f32 %v3170, %v3290
    %v3294 = vadd.f32 %v3171, %v3291
    %v3295 = vadd.f32 %v3172, %v3292
    %v3296 = vstv %s122
    %v3297 = vmul.f32 %v3296, %v710
    %v3298 = vmul.f32 %v3296, %v711
    %v3299 = vmul.f32 %v3296, %v712
    %v3300 = vstv %s154
    %v3301 = vadd.f32 %v3297, %v3300
    %v3302 = vadd.f32 %v3298, %v3300
    %v3303 = vadd.f32 %v3299, %v3300
    %v3304 = vmax.f32 %v3301, 0.0
    %v3305 = vmax.f32 %v3302, 0.0
    %v3306 = vmax.f32 %v3303, 0.0
    %v3307 = vstv %s186
    %v3308 = vmul.f32 %v3304, %v3307
    %v3309 = vmul.f32 %v3305, %v3307
    %v3310 = vmul.f32 %v3306, %v3307
    %v3311 = vadd.f32 %v3188, %v3308
    %v3312 = vadd.f32 %v3189, %v3309
    %v3313 = vadd.f32 %v3190, %v3310
    %v3314 = vstv %s218
    %v3315 = vmul.f32 %v3304, %v3314
    %v3316 = vmul.f32 %v3305, %v3314
    %v3317 = vmul.f32 %v3306, %v3314
    %v3318 = vadd.f32 %v3195, %v3315
    %v3319 = vadd.f32 %v3196, %v3316
    %v3320 = vadd.f32 %v3197, %v3317
    %v3321 = vstv %s250
    %v3322 = vmul.f32 %v3304, %v3321
    %v3323 = vmul.f32 %v3305, %v3321
    %v3324 = vmul.f32 %v3306, %v3321
    %v3325 = vadd.f32 %v3202, %v3322
    %v3326 = vadd.f32 %v3203, %v3323
    %v3327 = vadd.f32 %v3204, %v3324
    %v3328 = vstv %s282
    %v3329 = vmul.f32 %v3304, %v3328
    %v3330 = vmul.f32 %v3305, %v3328
    %v3331 = vmul.f32 %v3306, %v3328
    %v3332 = vadd.f32 %v3209, %v3329
    %v3333 = vadd.f32 %v3210, %v3330
    %v3334 = vadd.f32 %v3211, %v3331
    %v3335 = vstv %s314
    %v3336 = vmul.f32 %v3304, %v3335
    %v3337 = vmul.f32 %v3305, %v3335
    %v3338 = vmul.f32 %v3306, %v3335
    %v3339 = vadd.f32 %v3216, %v3336
    %v3340 = vadd.f32 %v3217, %v3337
    %v3341 = vadd.f32 %v3218, %v3338
    %v3342 = vstv %s346
    %v3343 = vmul.f32 %v3304, %v3342
    %v3344 = vmul.f32 %v3305, %v3342
    %v3345 = vmul.f32 %v3306, %v3342
    %v3346 = vadd.f32 %v3223, %v3343
    %v3347 = vadd.f32 %v3224, %v3344
    %v3348 = vadd.f32 %v3225, %v3345
    %v3349 = vstv %s378
    %v3350 = vmul.f32 %v3304, %v3349
    %v3351 = vmul.f32 %v3305, %v3349
    %v3352 = vmul.f32 %v3306, %v3349
    %v3353 = vadd.f32 %v3230, %v3350
    %v3354 = vadd.f32 %v3231, %v3351
    %v3355 = vadd.f32 %v3232, %v3352
    %v3356 = vstv %s410
    %v3357 = vmul.f32 %v3304, %v3356
    %v3358 = vmul.f32 %v3305, %v3356
    %v3359 = vmul.f32 %v3306, %v3356
    %v3360 = vadd.f32 %v3237, %v3357
    %v3361 = vadd.f32 %v3238, %v3358
    %v3362 = vadd.f32 %v3239, %v3359
    %v3363 = vstv %s442
    %v3364 = vmul.f32 %v3304, %v3363
    %v3365 = vmul.f32 %v3305, %v3363
    %v3366 = vmul.f32 %v3306, %v3363
    %v3367 = vadd.f32 %v3244, %v3364
    %v3368 = vadd.f32 %v3245, %v3365
    %v3369 = vadd.f32 %v3246, %v3366
    %v3370 = vstv %s474
    %v3371 = vmul.f32 %v3304, %v3370
    %v3372 = vmul.f32 %v3305, %v3370
    %v3373 = vmul.f32 %v3306, %v3370
    %v3374 = vadd.f32 %v3251, %v3371
    %v3375 = vadd.f32 %v3252, %v3372
    %v3376 = vadd.f32 %v3253, %v3373
    %v3377 = vstv %s506
    %v3378 = vmul.f32 %v3304, %v3377
    %v3379 = vmul.f32 %v3305, %v3377
    %v3380 = vmul.f32 %v3306, %v3377
    %v3381 = vadd.f32 %v3258, %v3378
    %v3382 = vadd.f32 %v3259, %v3379
    %v3383 = vadd.f32 %v3260, %v3380
    %v3384 = vstv %s538
    %v3385 = vmul.f32 %v3304, %v3384
    %v3386 = vmul.f32 %v3305, %v3384
    %v3387 = vmul.f32 %v3306, %v3384
    %v3388 = vadd.f32 %v3265, %v3385
    %v3389 = vadd.f32 %v3266, %v3386
    %v3390 = vadd.f32 %v3267, %v3387
    %v3391 = vstv %s570
    %v3392 = vmul.f32 %v3304, %v3391
    %v3393 = vmul.f32 %v3305, %v3391
    %v3394 = vmul.f32 %v3306, %v3391
    %v3395 = vadd.f32 %v3272, %v3392
    %v3396 = vadd.f32 %v3273, %v3393
    %v3397 = vadd.f32 %v3274, %v3394
    %v3398 = vstv %s602
    %v3399 = vmul.f32 %v3304, %v3398
    %v3400 = vmul.f32 %v3305, %v3398
    %v3401 = vmul.f32 %v3306, %v3398
    %v3402 = vadd.f32 %v3279, %v3399
    %v3403 = vadd.f32 %v3280, %v3400
    %v3404 = vadd.f32 %v3281, %v3401
    %v3405 = vstv %s634
    %v3406 = vmul.f32 %v3304, %v3405
    %v3407 = vmul.f32 %v3305, %v3405
    %v3408 = vmul.f32 %v3306, %v3405
    %v3409 = vadd.f32 %v3286, %v3406
    %v3410 = vadd.f32 %v3287, %v3407
    %v3411 = vadd.f32 %v3288, %v3408
    %v3412 = vstv %s666
    %v3413 = vmul.f32 %v3304, %v3412
    %v3414 = vmul.f32 %v3305, %v3412
    %v3415 = vmul.f32 %v3306, %v3412
    %v3416 = vadd.f32 %v3293, %v3413
    %v3417 = vadd.f32 %v3294, %v3414
    %v3418 = vadd.f32 %v3295, %v3415
    %v3419 = vstv %s123
    %v3420 = vmul.f32 %v3419, %v710
    %v3421 = vmul.f32 %v3419, %v711
    %v3422 = vmul.f32 %v3419, %v712
    %v3423 = vstv %s155
    %v3424 = vadd.f32 %v3420, %v3423
    %v3425 = vadd.f32 %v3421, %v3423
    %v3426 = vadd.f32 %v3422, %v3423
    %v3427 = vmax.f32 %v3424, 0.0
    %v3428 = vmax.f32 %v3425, 0.0
    %v3429 = vmax.f32 %v3426, 0.0
    %v3430 = vstv %s187
    %v3431 = vmul.f32 %v3427, %v3430
    %v3432 = vmul.f32 %v3428, %v3430
    %v3433 = vmul.f32 %v3429, %v3430
    %v3434 = vadd.f32 %v3311, %v3431
    %v3435 = vadd.f32 %v3312, %v3432
    %v3436 = vadd.f32 %v3313, %v3433
    %v3437 = vstv %s219
    %v3438 = vmul.f32 %v3427, %v3437
    %v3439 = vmul.f32 %v3428, %v3437
    %v3440 = vmul.f32 %v3429, %v3437
    %v3441 = vadd.f32 %v3318, %v3438
    %v3442 = vadd.f32 %v3319, %v3439
    %v3443 = vadd.f32 %v3320, %v3440
    %v3444 = vstv %s251
    %v3445 = vmul.f32 %v3427, %v3444
    %v3446 = vmul.f32 %v3428, %v3444
    %v3447 = vmul.f32 %v3429, %v3444
    %v3448 = vadd.f32 %v3325, %v3445
    %v3449 = vadd.f32 %v3326, %v3446
    %v3450 = vadd.f32 %v3327, %v3447
    %v3451 = vstv %s283
    %v3452 = vmul.f32 %v3427, %v3451
    %v3453 = vmul.f32 %v3428, %v3451
    %v3454 = vmul.f32 %v3429, %v3451
    %v3455 = vadd.f32 %v3332, %v3452
    %v3456 = vadd.f32 %v3333, %v3453
    %v3457 = vadd.f32 %v3334, %v3454
    %v3458 = vstv %s315
    %v3459 = vmul.f32 %v3427, %v3458
    %v3460 = vmul.f32 %v3428, %v3458
    %v3461 = vmul.f32 %v3429, %v3458
    %v3462 = vadd.f32 %v3339, %v3459
    %v3463 = vadd.f32 %v3340, %v3460
    %v3464 = vadd.f32 %v3341, %v3461
    %v3465 = vstv %s347
    %v3466 = vmul.f32 %v3427, %v3465
    %v3467 = vmul.f32 %v3428, %v3465
    %v3468 = vmul.f32 %v3429, %v3465
    %v3469 = vadd.f32 %v3346, %v3466
    %v3470 = vadd.f32 %v3347, %v3467
    %v3471 = vadd.f32 %v3348, %v3468
    %v3472 = vstv %s379
    %v3473 = vmul.f32 %v3427, %v3472
    %v3474 = vmul.f32 %v3428, %v3472
    %v3475 = vmul.f32 %v3429, %v3472
    %v3476 = vadd.f32 %v3353, %v3473
    %v3477 = vadd.f32 %v3354, %v3474
    %v3478 = vadd.f32 %v3355, %v3475
    %v3479 = vstv %s411
    %v3480 = vmul.f32 %v3427, %v3479
    %v3481 = vmul.f32 %v3428, %v3479
    %v3482 = vmul.f32 %v3429, %v3479
    %v3483 = vadd.f32 %v3360, %v3480
    %v3484 = vadd.f32 %v3361, %v3481
    %v3485 = vadd.f32 %v3362, %v3482
    %v3486 = vstv %s443
    %v3487 = vmul.f32 %v3427, %v3486
    %v3488 = vmul.f32 %v3428, %v3486
    %v3489 = vmul.f32 %v3429, %v3486
    %v3490 = vadd.f32 %v3367, %v3487
    %v3491 = vadd.f32 %v3368, %v3488
    %v3492 = vadd.f32 %v3369, %v3489
    %v3493 = vstv %s475
    %v3494 = vmul.f32 %v3427, %v3493
    %v3495 = vmul.f32 %v3428, %v3493
    %v3496 = vmul.f32 %v3429, %v3493
    %v3497 = vadd.f32 %v3374, %v3494
    %v3498 = vadd.f32 %v3375, %v3495
    %v3499 = vadd.f32 %v3376, %v3496
    %v3500 = vstv %s507
    %v3501 = vmul.f32 %v3427, %v3500
    %v3502 = vmul.f32 %v3428, %v3500
    %v3503 = vmul.f32 %v3429, %v3500
    %v3504 = vadd.f32 %v3381, %v3501
    %v3505 = vadd.f32 %v3382, %v3502
    %v3506 = vadd.f32 %v3383, %v3503
    %v3507 = vstv %s539
    %v3508 = vmul.f32 %v3427, %v3507
    %v3509 = vmul.f32 %v3428, %v3507
    %v3510 = vmul.f32 %v3429, %v3507
    %v3511 = vadd.f32 %v3388, %v3508
    %v3512 = vadd.f32 %v3389, %v3509
    %v3513 = vadd.f32 %v3390, %v3510
    %v3514 = vstv %s571
    %v3515 = vmul.f32 %v3427, %v3514
    %v3516 = vmul.f32 %v3428, %v3514
    %v3517 = vmul.f32 %v3429, %v3514
    %v3518 = vadd.f32 %v3395, %v3515
    %v3519 = vadd.f32 %v3396, %v3516
    %v3520 = vadd.f32 %v3397, %v3517
    %v3521 = vstv %s603
    %v3522 = vmul.f32 %v3427, %v3521
    %v3523 = vmul.f32 %v3428, %v3521
    %v3524 = vmul.f32 %v3429, %v3521
    %v3525 = vadd.f32 %v3402, %v3522
    %v3526 = vadd.f32 %v3403, %v3523
    %v3527 = vadd.f32 %v3404, %v3524
    %v3528 = vstv %s635
    %v3529 = vmul.f32 %v3427, %v3528
    %v3530 = vmul.f32 %v3428, %v3528
    %v3531 = vmul.f32 %v3429, %v3528
    %v3532 = vadd.f32 %v3409, %v3529
    %v3533 = vadd.f32 %v3410, %v3530
    %v3534 = vadd.f32 %v3411, %v3531
    %v3535 = vstv %s667
    %v3536 = vmul.f32 %v3427, %v3535
    %v3537 = vmul.f32 %v3428, %v3535
    %v3538 = vmul.f32 %v3429, %v3535
    %v3539 = vadd.f32 %v3416, %v3536
    %v3540 = vadd.f32 %v3417, %v3537
    %v3541 = vadd.f32 %v3418, %v3538
    %v3542 = vstv %s124
    %v3543 = vmul.f32 %v3542, %v710
    %v3544 = vmul.f32 %v3542, %v711
    %v3545 = vmul.f32 %v3542, %v712
    %v3546 = vstv %s156
    %v3547 = vadd.f32 %v3543, %v3546
    %v3548 = vadd.f32 %v3544, %v3546
    %v3549 = vadd.f32 %v3545, %v3546
    %v3550 = vmax.f32 %v3547, 0.0
    %v3551 = vmax.f32 %v3548, 0.0
    %v3552 = vmax.f32 %v3549, 0.0
    %v3553 = vstv %s188
    %v3554 = vmul.f32 %v3550, %v3553
    %v3555 = vmul.f32 %v3551, %v3553
    %v3556 = vmul.f32 %v3552, %v3553
    %v3557 = vadd.f32 %v3434, %v3554
    %v3558 = vadd.f32 %v3435, %v3555
    %v3559 = vadd.f32 %v3436, %v3556
    %v3560 = vstv %s220
    %v3561 = vmul.f32 %v3550, %v3560
    %v3562 = vmul.f32 %v3551, %v3560
    %v3563 = vmul.f32 %v3552, %v3560
    %v3564 = vadd.f32 %v3441, %v3561
    %v3565 = vadd.f32 %v3442, %v3562
    %v3566 = vadd.f32 %v3443, %v3563
    %v3567 = vstv %s252
    %v3568 = vmul.f32 %v3550, %v3567
    %v3569 = vmul.f32 %v3551, %v3567
    %v3570 = vmul.f32 %v3552, %v3567
    %v3571 = vadd.f32 %v3448, %v3568
    %v3572 = vadd.f32 %v3449, %v3569
    %v3573 = vadd.f32 %v3450, %v3570
    %v3574 = vstv %s284
    %v3575 = vmul.f32 %v3550, %v3574
    %v3576 = vmul.f32 %v3551, %v3574
    %v3577 = vmul.f32 %v3552, %v3574
    %v3578 = vadd.f32 %v3455, %v3575
    %v3579 = vadd.f32 %v3456, %v3576
    %v3580 = vadd.f32 %v3457, %v3577
    %v3581 = vstv %s316
    %v3582 = vmul.f32 %v3550, %v3581
    %v3583 = vmul.f32 %v3551, %v3581
    %v3584 = vmul.f32 %v3552, %v3581
    %v3585 = vadd.f32 %v3462, %v3582
    %v3586 = vadd.f32 %v3463, %v3583
    %v3587 = vadd.f32 %v3464, %v3584
    %v3588 = vstv %s348
    %v3589 = vmul.f32 %v3550, %v3588
    %v3590 = vmul.f32 %v3551, %v3588
    %v3591 = vmul.f32 %v3552, %v3588
    %v3592 = vadd.f32 %v3469, %v3589
    %v3593 = vadd.f32 %v3470, %v3590
    %v3594 = vadd.f32 %v3471, %v3591
    %v3595 = vstv %s380
    %v3596 = vmul.f32 %v3550, %v3595
    %v3597 = vmul.f32 %v3551, %v3595
    %v3598 = vmul.f32 %v3552, %v3595
    %v3599 = vadd.f32 %v3476, %v3596
    %v3600 = vadd.f32 %v3477, %v3597
    %v3601 = vadd.f32 %v3478, %v3598
    %v3602 = vstv %s412
    %v3603 = vmul.f32 %v3550, %v3602
    %v3604 = vmul.f32 %v3551, %v3602
    %v3605 = vmul.f32 %v3552, %v3602
    %v3606 = vadd.f32 %v3483, %v3603
    %v3607 = vadd.f32 %v3484, %v3604
    %v3608 = vadd.f32 %v3485, %v3605
    %v3609 = vstv %s444
    %v3610 = vmul.f32 %v3550, %v3609
    %v3611 = vmul.f32 %v3551, %v3609
    %v3612 = vmul.f32 %v3552, %v3609
    %v3613 = vadd.f32 %v3490, %v3610
    %v3614 = vadd.f32 %v3491, %v3611
    %v3615 = vadd.f32 %v3492, %v3612
    %v3616 = vstv %s476
    %v3617 = vmul.f32 %v3550, %v3616
    %v3618 = vmul.f32 %v3551, %v3616
    %v3619 = vmul.f32 %v3552, %v3616
    %v3620 = vadd.f32 %v3497, %v3617
    %v3621 = vadd.f32 %v3498, %v3618
    %v3622 = vadd.f32 %v3499, %v3619
    %v3623 = vstv %s508
    %v3624 = vmul.f32 %v3550, %v3623
    %v3625 = vmul.f32 %v3551, %v3623
    %v3626 = vmul.f32 %v3552, %v3623
    %v3627 = vadd.f32 %v3504, %v3624
    %v3628 = vadd.f32 %v3505, %v3625
    %v3629 = vadd.f32 %v3506, %v3626
    %v3630 = vstv %s540
    %v3631 = vmul.f32 %v3550, %v3630
    %v3632 = vmul.f32 %v3551, %v3630
    %v3633 = vmul.f32 %v3552, %v3630
    %v3634 = vadd.f32 %v3511, %v3631
    %v3635 = vadd.f32 %v3512, %v3632
    %v3636 = vadd.f32 %v3513, %v3633
    %v3637 = vstv %s572
    %v3638 = vmul.f32 %v3550, %v3637
    %v3639 = vmul.f32 %v3551, %v3637
    %v3640 = vmul.f32 %v3552, %v3637
    %v3641 = vadd.f32 %v3518, %v3638
    %v3642 = vadd.f32 %v3519, %v3639
    %v3643 = vadd.f32 %v3520, %v3640
    %v3644 = vstv %s604
    %v3645 = vmul.f32 %v3550, %v3644
    %v3646 = vmul.f32 %v3551, %v3644
    %v3647 = vmul.f32 %v3552, %v3644
    %v3648 = vadd.f32 %v3525, %v3645
    %v3649 = vadd.f32 %v3526, %v3646
    %v3650 = vadd.f32 %v3527, %v3647
    %v3651 = vstv %s636
    %v3652 = vmul.f32 %v3550, %v3651
    %v3653 = vmul.f32 %v3551, %v3651
    %v3654 = vmul.f32 %v3552, %v3651
    %v3655 = vadd.f32 %v3532, %v3652
    %v3656 = vadd.f32 %v3533, %v3653
    %v3657 = vadd.f32 %v3534, %v3654
    %v3658 = vstv %s668
    %v3659 = vmul.f32 %v3550, %v3658
    %v3660 = vmul.f32 %v3551, %v3658
    %v3661 = vmul.f32 %v3552, %v3658
    %v3662 = vadd.f32 %v3539, %v3659
    %v3663 = vadd.f32 %v3540, %v3660
    %v3664 = vadd.f32 %v3541, %v3661
    %v3665 = vstv %s125
    %v3666 = vmul.f32 %v3665, %v710
    %v3667 = vmul.f32 %v3665, %v711
    %v3668 = vmul.f32 %v3665, %v712
    %v3669 = vstv %s157
    %v3670 = vadd.f32 %v3666, %v3669
    %v3671 = vadd.f32 %v3667, %v3669
    %v3672 = vadd.f32 %v3668, %v3669
    %v3673 = vmax.f32 %v3670, 0.0
    %v3674 = vmax.f32 %v3671, 0.0
    %v3675 = vmax.f32 %v3672, 0.0
    %v3676 = vstv %s189
    %v3677 = vmul.f32 %v3673, %v3676
    %v3678 = vmul.f32 %v3674, %v3676
    %v3679 = vmul.f32 %v3675, %v3676
    %v3680 = vadd.f32 %v3557, %v3677
    %v3681 = vadd.f32 %v3558, %v3678
    %v3682 = vadd.f32 %v3559, %v3679
    %v3683 = vstv %s221
    %v3684 = vmul.f32 %v3673, %v3683
    %v3685 = vmul.f32 %v3674, %v3683
    %v3686 = vmul.f32 %v3675, %v3683
    %v3687 = vadd.f32 %v3564, %v3684
    %v3688 = vadd.f32 %v3565, %v3685
    %v3689 = vadd.f32 %v3566, %v3686
    %v3690 = vstv %s253
    %v3691 = vmul.f32 %v3673, %v3690
    %v3692 = vmul.f32 %v3674, %v3690
    %v3693 = vmul.f32 %v3675, %v3690
    %v3694 = vadd.f32 %v3571, %v3691
    %v3695 = vadd.f32 %v3572, %v3692
    %v3696 = vadd.f32 %v3573, %v3693
    %v3697 = vstv %s285
    %v3698 = vmul.f32 %v3673, %v3697
    %v3699 = vmul.f32 %v3674, %v3697
    %v3700 = vmul.f32 %v3675, %v3697
    %v3701 = vadd.f32 %v3578, %v3698
    %v3702 = vadd.f32 %v3579, %v3699
    %v3703 = vadd.f32 %v3580, %v3700
    %v3704 = vstv %s317
    %v3705 = vmul.f32 %v3673, %v3704
    %v3706 = vmul.f32 %v3674, %v3704
    %v3707 = vmul.f32 %v3675, %v3704
    %v3708 = vadd.f32 %v3585, %v3705
    %v3709 = vadd.f32 %v3586, %v3706
    %v3710 = vadd.f32 %v3587, %v3707
    %v3711 = vstv %s349
    %v3712 = vmul.f32 %v3673, %v3711
    %v3713 = vmul.f32 %v3674, %v3711
    %v3714 = vmul.f32 %v3675, %v3711
    %v3715 = vadd.f32 %v3592, %v3712
    %v3716 = vadd.f32 %v3593, %v3713
    %v3717 = vadd.f32 %v3594, %v3714
    %v3718 = vstv %s381
    %v3719 = vmul.f32 %v3673, %v3718
    %v3720 = vmul.f32 %v3674, %v3718
    %v3721 = vmul.f32 %v3675, %v3718
    %v3722 = vadd.f32 %v3599, %v3719
    %v3723 = vadd.f32 %v3600, %v3720
    %v3724 = vadd.f32 %v3601, %v3721
    %v3725 = vstv %s413
    %v3726 = vmul.f32 %v3673, %v3725
    %v3727 = vmul.f32 %v3674, %v3725
    %v3728 = vmul.f32 %v3675, %v3725
    %v3729 = vadd.f32 %v3606, %v3726
    %v3730 = vadd.f32 %v3607, %v3727
    %v3731 = vadd.f32 %v3608, %v3728
    %v3732 = vstv %s445
    %v3733 = vmul.f32 %v3673, %v3732
    %v3734 = vmul.f32 %v3674, %v3732
    %v3735 = vmul.f32 %v3675, %v3732
    %v3736 = vadd.f32 %v3613, %v3733
    %v3737 = vadd.f32 %v3614, %v3734
    %v3738 = vadd.f32 %v3615, %v3735
    %v3739 = vstv %s477
    %v3740 = vmul.f32 %v3673, %v3739
    %v3741 = vmul.f32 %v3674, %v3739
    %v3742 = vmul.f32 %v3675, %v3739
    %v3743 = vadd.f32 %v3620, %v3740
    %v3744 = vadd.f32 %v3621, %v3741
    %v3745 = vadd.f32 %v3622, %v3742
    %v3746 = vstv %s509
    %v3747 = vmul.f32 %v3673, %v3746
    %v3748 = vmul.f32 %v3674, %v3746
    %v3749 = vmul.f32 %v3675, %v3746
    %v3750 = vadd.f32 %v3627, %v3747
    %v3751 = vadd.f32 %v3628, %v3748
    %v3752 = vadd.f32 %v3629, %v3749
    %v3753 = vstv %s541
    %v3754 = vmul.f32 %v3673, %v3753
    %v3755 = vmul.f32 %v3674, %v3753
    %v3756 = vmul.f32 %v3675, %v3753
    %v3757 = vadd.f32 %v3634, %v3754
    %v3758 = vadd.f32 %v3635, %v3755
    %v3759 = vadd.f32 %v3636, %v3756
    %v3760 = vstv %s573
    %v3761 = vmul.f32 %v3673, %v3760
    %v3762 = vmul.f32 %v3674, %v3760
    %v3763 = vmul.f32 %v3675, %v3760
    %v3764 = vadd.f32 %v3641, %v3761
    %v3765 = vadd.f32 %v3642, %v3762
    %v3766 = vadd.f32 %v3643, %v3763
    %v3767 = vstv %s605
    %v3768 = vmul.f32 %v3673, %v3767
    %v3769 = vmul.f32 %v3674, %v3767
    %v3770 = vmul.f32 %v3675, %v3767
    %v3771 = vadd.f32 %v3648, %v3768
    %v3772 = vadd.f32 %v3649, %v3769
    %v3773 = vadd.f32 %v3650, %v3770
    %v3774 = vstv %s637
    %v3775 = vmul.f32 %v3673, %v3774
    %v3776 = vmul.f32 %v3674, %v3774
    %v3777 = vmul.f32 %v3675, %v3774
    %v3778 = vadd.f32 %v3655, %v3775
    %v3779 = vadd.f32 %v3656, %v3776
    %v3780 = vadd.f32 %v3657, %v3777
    %v3781 = vstv %s669
    %v3782 = vmul.f32 %v3673, %v3781
    %v3783 = vmul.f32 %v3674, %v3781
    %v3784 = vmul.f32 %v3675, %v3781
    %v3785 = vadd.f32 %v3662, %v3782
    %v3786 = vadd.f32 %v3663, %v3783
    %v3787 = vadd.f32 %v3664, %v3784
    %v3788 = vstv %s126
    %v3789 = vmul.f32 %v3788, %v710
    %v3790 = vmul.f32 %v3788, %v711
    %v3791 = vmul.f32 %v3788, %v712
    %v3792 = vstv %s158
    %v3793 = vadd.f32 %v3789, %v3792
    %v3794 = vadd.f32 %v3790, %v3792
    %v3795 = vadd.f32 %v3791, %v3792
    %v3796 = vmax.f32 %v3793, 0.0
    %v3797 = vmax.f32 %v3794, 0.0
    %v3798 = vmax.f32 %v3795, 0.0
    %v3799 = vstv %s190
    %v3800 = vmul.f32 %v3796, %v3799
    %v3801 = vmul.f32 %v3797, %v3799
    %v3802 = vmul.f32 %v3798, %v3799
    %v3803 = vadd.f32 %v3680, %v3800
    %v3804 = vadd.f32 %v3681, %v3801
    %v3805 = vadd.f32 %v3682, %v3802
    %v3806 = vstv %s222
    %v3807 = vmul.f32 %v3796, %v3806
    %v3808 = vmul.f32 %v3797, %v3806
    %v3809 = vmul.f32 %v3798, %v3806
    %v3810 = vadd.f32 %v3687, %v3807
    %v3811 = vadd.f32 %v3688, %v3808
    %v3812 = vadd.f32 %v3689, %v3809
    %v3813 = vstv %s254
    %v3814 = vmul.f32 %v3796, %v3813
    %v3815 = vmul.f32 %v3797, %v3813
    %v3816 = vmul.f32 %v3798, %v3813
    %v3817 = vadd.f32 %v3694, %v3814
    %v3818 = vadd.f32 %v3695, %v3815
    %v3819 = vadd.f32 %v3696, %v3816
    %v3820 = vstv %s286
    %v3821 = vmul.f32 %v3796, %v3820
    %v3822 = vmul.f32 %v3797, %v3820
    %v3823 = vmul.f32 %v3798, %v3820
    %v3824 = vadd.f32 %v3701, %v3821
    %v3825 = vadd.f32 %v3702, %v3822
    %v3826 = vadd.f32 %v3703, %v3823
    %v3827 = vstv %s318
    %v3828 = vmul.f32 %v3796, %v3827
    %v3829 = vmul.f32 %v3797, %v3827
    %v3830 = vmul.f32 %v3798, %v3827
    %v3831 = vadd.f32 %v3708, %v3828
    %v3832 = vadd.f32 %v3709, %v3829
    %v3833 = vadd.f32 %v3710, %v3830
    %v3834 = vstv %s350
    %v3835 = vmul.f32 %v3796, %v3834
    %v3836 = vmul.f32 %v3797, %v3834
    %v3837 = vmul.f32 %v3798, %v3834
    %v3838 = vadd.f32 %v3715, %v3835
    %v3839 = vadd.f32 %v3716, %v3836
    %v3840 = vadd.f32 %v3717, %v3837
    %v3841 = vstv %s382
    %v3842 = vmul.f32 %v3796, %v3841
    %v3843 = vmul.f32 %v3797, %v3841
    %v3844 = vmul.f32 %v3798, %v3841
    %v3845 = vadd.f32 %v3722, %v3842
    %v3846 = vadd.f32 %v3723, %v3843
    %v3847 = vadd.f32 %v3724, %v3844
    %v3848 = vstv %s414
    %v3849 = vmul.f32 %v3796, %v3848
    %v3850 = vmul.f32 %v3797, %v3848
    %v3851 = vmul.f32 %v3798, %v3848
    %v3852 = vadd.f32 %v3729, %v3849
    %v3853 = vadd.f32 %v3730, %v3850
    %v3854 = vadd.f32 %v3731, %v3851
    %v3855 = vstv %s446
    %v3856 = vmul.f32 %v3796, %v3855
    %v3857 = vmul.f32 %v3797, %v3855
    %v3858 = vmul.f32 %v3798, %v3855
    %v3859 = vadd.f32 %v3736, %v3856
    %v3860 = vadd.f32 %v3737, %v3857
    %v3861 = vadd.f32 %v3738, %v3858
    %v3862 = vstv %s478
    %v3863 = vmul.f32 %v3796, %v3862
    %v3864 = vmul.f32 %v3797, %v3862
    %v3865 = vmul.f32 %v3798, %v3862
    %v3866 = vadd.f32 %v3743, %v3863
    %v3867 = vadd.f32 %v3744, %v3864
    %v3868 = vadd.f32 %v3745, %v3865
    %v3869 = vstv %s510
    %v3870 = vmul.f32 %v3796, %v3869
    %v3871 = vmul.f32 %v3797, %v3869
    %v3872 = vmul.f32 %v3798, %v3869
    %v3873 = vadd.f32 %v3750, %v3870
    %v3874 = vadd.f32 %v3751, %v3871
    %v3875 = vadd.f32 %v3752, %v3872
    %v3876 = vstv %s542
    %v3877 = vmul.f32 %v3796, %v3876
    %v3878 = vmul.f32 %v3797, %v3876
    %v3879 = vmul.f32 %v3798, %v3876
    %v3880 = vadd.f32 %v3757, %v3877
    %v3881 = vadd.f32 %v3758, %v3878
    %v3882 = vadd.f32 %v3759, %v3879
    %v3883 = vstv %s574
    %v3884 = vmul.f32 %v3796, %v3883
    %v3885 = vmul.f32 %v3797, %v3883
    %v3886 = vmul.f32 %v3798, %v3883
    %v3887 = vadd.f32 %v3764, %v3884
    %v3888 = vadd.f32 %v3765, %v3885
    %v3889 = vadd.f32 %v3766, %v3886
    %v3890 = vstv %s606
    %v3891 = vmul.f32 %v3796, %v3890
    %v3892 = vmul.f32 %v3797, %v3890
    %v3893 = vmul.f32 %v3798, %v3890
    %v3894 = vadd.f32 %v3771, %v3891
    %v3895 = vadd.f32 %v3772, %v3892
    %v3896 = vadd.f32 %v3773, %v3893
    %v3897 = vstv %s638
    %v3898 = vmul.f32 %v3796, %v3897
    %v3899 = vmul.f32 %v3797, %v3897
    %v3900 = vmul.f32 %v3798, %v3897
    %v3901 = vadd.f32 %v3778, %v3898
    %v3902 = vadd.f32 %v3779, %v3899
    %v3903 = vadd.f32 %v3780, %v3900
    %v3904 = vstv %s670
    %v3905 = vmul.f32 %v3796, %v3904
    %v3906 = vmul.f32 %v3797, %v3904
    %v3907 = vmul.f32 %v3798, %v3904
    %v3908 = vadd.f32 %v3785, %v3905
    %v3909 = vadd.f32 %v3786, %v3906
    %v3910 = vadd.f32 %v3787, %v3907
    %v3911 = vstv %s127
    %v3912 = vmul.f32 %v3911, %v710
    %v3913 = vmul.f32 %v3911, %v711
    %v3914 = vmul.f32 %v3911, %v712
    %v3915 = vstv %s159
    %v3916 = vadd.f32 %v3912, %v3915
    %v3917 = vadd.f32 %v3913, %v3915
    %v3918 = vadd.f32 %v3914, %v3915
    %v3919 = vmax.f32 %v3916, 0.0
    %v3920 = vmax.f32 %v3917, 0.0
    %v3921 = vmax.f32 %v3918, 0.0
    %v3922 = vstv %s191
    %v3923 = vmul.f32 %v3919, %v3922
    %v3924 = vmul.f32 %v3920, %v3922
    %v3925 = vmul.f32 %v3921, %v3922
    %v3926 = vadd.f32 %v3803, %v3923
    %v3927 = vadd.f32 %v3804, %v3924
    %v3928 = vadd.f32 %v3805, %v3925
    %v3929 = vstv %s223
    %v3930 = vmul.f32 %v3919, %v3929
    %v3931 = vmul.f32 %v3920, %v3929
    %v3932 = vmul.f32 %v3921, %v3929
    %v3933 = vadd.f32 %v3810, %v3930
    %v3934 = vadd.f32 %v3811, %v3931
    %v3935 = vadd.f32 %v3812, %v3932
    %v3936 = vstv %s255
    %v3937 = vmul.f32 %v3919, %v3936
    %v3938 = vmul.f32 %v3920, %v3936
    %v3939 = vmul.f32 %v3921, %v3936
    %v3940 = vadd.f32 %v3817, %v3937
    %v3941 = vadd.f32 %v3818, %v3938
    %v3942 = vadd.f32 %v3819, %v3939
    %v3943 = vstv %s287
    %v3944 = vmul.f32 %v3919, %v3943
    %v3945 = vmul.f32 %v3920, %v3943
    %v3946 = vmul.f32 %v3921, %v3943
    %v3947 = vadd.f32 %v3824, %v3944
    %v3948 = vadd.f32 %v3825, %v3945
    %v3949 = vadd.f32 %v3826, %v3946
    %v3950 = vstv %s319
    %v3951 = vmul.f32 %v3919, %v3950
    %v3952 = vmul.f32 %v3920, %v3950
    %v3953 = vmul.f32 %v3921, %v3950
    %v3954 = vadd.f32 %v3831, %v3951
    %v3955 = vadd.f32 %v3832, %v3952
    %v3956 = vadd.f32 %v3833, %v3953
    %v3957 = vstv %s351
    %v3958 = vmul.f32 %v3919, %v3957
    %v3959 = vmul.f32 %v3920, %v3957
    %v3960 = vmul.f32 %v3921, %v3957
    %v3961 = vadd.f32 %v3838, %v3958
    %v3962 = vadd.f32 %v3839, %v3959
    %v3963 = vadd.f32 %v3840, %v3960
    %v3964 = vstv %s383
    %v3965 = vmul.f32 %v3919, %v3964
    %v3966 = vmul.f32 %v3920, %v3964
    %v3967 = vmul.f32 %v3921, %v3964
    %v3968 = vadd.f32 %v3845, %v3965
    %v3969 = vadd.f32 %v3846, %v3966
    %v3970 = vadd.f32 %v3847, %v3967
    %v3971 = vstv %s415
    %v3972 = vmul.f32 %v3919, %v3971
    %v3973 = vmul.f32 %v3920, %v3971
    %v3974 = vmul.f32 %v3921, %v3971
    %v3975 = vadd.f32 %v3852, %v3972
    %v3976 = vadd.f32 %v3853, %v3973
    %v3977 = vadd.f32 %v3854, %v3974
    %v3978 = vstv %s447
    %v3979 = vmul.f32 %v3919, %v3978
    %v3980 = vmul.f32 %v3920, %v3978
    %v3981 = vmul.f32 %v3921, %v3978
    %v3982 = vadd.f32 %v3859, %v3979
    %v3983 = vadd.f32 %v3860, %v3980
    %v3984 = vadd.f32 %v3861, %v3981
    %v3985 = vstv %s479
    %v3986 = vmul.f32 %v3919, %v3985
    %v3987 = vmul.f32 %v3920, %v3985
    %v3988 = vmul.f32 %v3921, %v3985
    %v3989 = vadd.f32 %v3866, %v3986
    %v3990 = vadd.f32 %v3867, %v3987
    %v3991 = vadd.f32 %v3868, %v3988
    %v3992 = vstv %s511
    %v3993 = vmul.f32 %v3919, %v3992
    %v3994 = vmul.f32 %v3920, %v3992
    %v3995 = vmul.f32 %v3921, %v3992
    %v3996 = vadd.f32 %v3873, %v3993
    %v3997 = vadd.f32 %v3874, %v3994
    %v3998 = vadd.f32 %v3875, %v3995
    %v3999 = vstv %s543
    %v4000 = vmul.f32 %v3919, %v3999
    %v4001 = vmul.f32 %v3920, %v3999
    %v4002 = vmul.f32 %v3921, %v3999
    %v4003 = vadd.f32 %v3880, %v4000
    %v4004 = vadd.f32 %v3881, %v4001
    %v4005 = vadd.f32 %v3882, %v4002
    %v4006 = vstv %s575
    %v4007 = vmul.f32 %v3919, %v4006
    %v4008 = vmul.f32 %v3920, %v4006
    %v4009 = vmul.f32 %v3921, %v4006
    %v4010 = vadd.f32 %v3887, %v4007
    %v4011 = vadd.f32 %v3888, %v4008
    %v4012 = vadd.f32 %v3889, %v4009
    %v4013 = vstv %s607
    %v4014 = vmul.f32 %v3919, %v4013
    %v4015 = vmul.f32 %v3920, %v4013
    %v4016 = vmul.f32 %v3921, %v4013
    %v4017 = vadd.f32 %v3894, %v4014
    %v4018 = vadd.f32 %v3895, %v4015
    %v4019 = vadd.f32 %v3896, %v4016
    %v4020 = vstv %s639
    %v4021 = vmul.f32 %v3919, %v4020
    %v4022 = vmul.f32 %v3920, %v4020
    %v4023 = vmul.f32 %v3921, %v4020
    %v4024 = vadd.f32 %v3901, %v4021
    %v4025 = vadd.f32 %v3902, %v4022
    %v4026 = vadd.f32 %v3903, %v4023
    %v4027 = vstv %s671
    %v4028 = vmul.f32 %v3919, %v4027
    %v4029 = vmul.f32 %v3920, %v4027
    %v4030 = vmul.f32 %v3921, %v4027
    %v4031 = vadd.f32 %v3908, %v4028
    %v4032 = vadd.f32 %v3909, %v4029
    %v4033 = vadd.f32 %v3910, %v4030
    %v4034 = vstv %s128
    %v4035 = vmul.f32 %v4034, %v710
    %v4036 = vmul.f32 %v4034, %v711
    %v4037 = vmul.f32 %v4034, %v712
    %v4038 = vstv %s160
    %v4039 = vadd.f32 %v4035, %v4038
    %v4040 = vadd.f32 %v4036, %v4038
    %v4041 = vadd.f32 %v4037, %v4038
    %v4042 = vmax.f32 %v4039, 0.0
    %v4043 = vmax.f32 %v4040, 0.0
    %v4044 = vmax.f32 %v4041, 0.0
    %v4045 = vstv %s192
    %v4046 = vmul.f32 %v4042, %v4045
    %v4047 = vmul.f32 %v4043, %v4045
    %v4048 = vmul.f32 %v4044, %v4045
    %v4049 = vadd.f32 %v3926, %v4046
    %v4050 = vadd.f32 %v3927, %v4047
    %v4051 = vadd.f32 %v3928, %v4048
    %v4052 = vstv %s224
    %v4053 = vmul.f32 %v4042, %v4052
    %v4054 = vmul.f32 %v4043, %v4052
    %v4055 = vmul.f32 %v4044, %v4052
    %v4056 = vadd.f32 %v3933, %v4053
    %v4057 = vadd.f32 %v3934, %v4054
    %v4058 = vadd.f32 %v3935, %v4055
    %v4059 = vstv %s256
    %v4060 = vmul.f32 %v4042, %v4059
    %v4061 = vmul.f32 %v4043, %v4059
    %v4062 = vmul.f32 %v4044, %v4059
    %v4063 = vadd.f32 %v3940, %v4060
    %v4064 = vadd.f32 %v3941, %v4061
    %v4065 = vadd.f32 %v3942, %v4062
    %v4066 = vstv %s288
    %v4067 = vmul.f32 %v4042, %v4066
    %v4068 = vmul.f32 %v4043, %v4066
    %v4069 = vmul.f32 %v4044, %v4066
    %v4070 = vadd.f32 %v3947, %v4067
    %v4071 = vadd.f32 %v3948, %v4068
    %v4072 = vadd.f32 %v3949, %v4069
    %v4073 = vstv %s320
    %v4074 = vmul.f32 %v4042, %v4073
    %v4075 = vmul.f32 %v4043, %v4073
    %v4076 = vmul.f32 %v4044, %v4073
    %v4077 = vadd.f32 %v3954, %v4074
    %v4078 = vadd.f32 %v3955, %v4075
    %v4079 = vadd.f32 %v3956, %v4076
    %v4080 = vstv %s352
    %v4081 = vmul.f32 %v4042, %v4080
    %v4082 = vmul.f32 %v4043, %v4080
    %v4083 = vmul.f32 %v4044, %v4080
    %v4084 = vadd.f32 %v3961, %v4081
    %v4085 = vadd.f32 %v3962, %v4082
    %v4086 = vadd.f32 %v3963, %v4083
    %v4087 = vstv %s384
    %v4088 = vmul.f32 %v4042, %v4087
    %v4089 = vmul.f32 %v4043, %v4087
    %v4090 = vmul.f32 %v4044, %v4087
    %v4091 = vadd.f32 %v3968, %v4088
    %v4092 = vadd.f32 %v3969, %v4089
    %v4093 = vadd.f32 %v3970, %v4090
    %v4094 = vstv %s416
    %v4095 = vmul.f32 %v4042, %v4094
    %v4096 = vmul.f32 %v4043, %v4094
    %v4097 = vmul.f32 %v4044, %v4094
    %v4098 = vadd.f32 %v3975, %v4095
    %v4099 = vadd.f32 %v3976, %v4096
    %v4100 = vadd.f32 %v3977, %v4097
    %v4101 = vstv %s448
    %v4102 = vmul.f32 %v4042, %v4101
    %v4103 = vmul.f32 %v4043, %v4101
    %v4104 = vmul.f32 %v4044, %v4101
    %v4105 = vadd.f32 %v3982, %v4102
    %v4106 = vadd.f32 %v3983, %v4103
    %v4107 = vadd.f32 %v3984, %v4104
    %v4108 = vstv %s480
    %v4109 = vmul.f32 %v4042, %v4108
    %v4110 = vmul.f32 %v4043, %v4108
    %v4111 = vmul.f32 %v4044, %v4108
    %v4112 = vadd.f32 %v3989, %v4109
    %v4113 = vadd.f32 %v3990, %v4110
    %v4114 = vadd.f32 %v3991, %v4111
    %v4115 = vstv %s512
    %v4116 = vmul.f32 %v4042, %v4115
    %v4117 = vmul.f32 %v4043, %v4115
    %v4118 = vmul.f32 %v4044, %v4115
    %v4119 = vadd.f32 %v3996, %v4116
    %v4120 = vadd.f32 %v3997, %v4117
    %v4121 = vadd.f32 %v3998, %v4118
    %v4122 = vstv %s544
    %v4123 = vmul.f32 %v4042, %v4122
    %v4124 = vmul.f32 %v4043, %v4122
    %v4125 = vmul.f32 %v4044, %v4122
    %v4126 = vadd.f32 %v4003, %v4123
    %v4127 = vadd.f32 %v4004, %v4124
    %v4128 = vadd.f32 %v4005, %v4125
    %v4129 = vstv %s576
    %v4130 = vmul.f32 %v4042, %v4129
    %v4131 = vmul.f32 %v4043, %v4129
    %v4132 = vmul.f32 %v4044, %v4129
    %v4133 = vadd.f32 %v4010, %v4130
    %v4134 = vadd.f32 %v4011, %v4131
    %v4135 = vadd.f32 %v4012, %v4132
    %v4136 = vstv %s608
    %v4137 = vmul.f32 %v4042, %v4136
    %v4138 = vmul.f32 %v4043, %v4136
    %v4139 = vmul.f32 %v4044, %v4136
    %v4140 = vadd.f32 %v4017, %v4137
    %v4141 = vadd.f32 %v4018, %v4138
    %v4142 = vadd.f32 %v4019, %v4139
    %v4143 = vstv %s640
    %v4144 = vmul.f32 %v4042, %v4143
    %v4145 = vmul.f32 %v4043, %v4143
    %v4146 = vmul.f32 %v4044, %v4143
    %v4147 = vadd.f32 %v4024, %v4144
    %v4148 = vadd.f32 %v4025, %v4145
    %v4149 = vadd.f32 %v4026, %v4146
    %v4150 = vstv %s672
    %v4151 = vmul.f32 %v4042, %v4150
    %v4152 = vmul.f32 %v4043, %v4150
    %v4153 = vmul.f32 %v4044, %v4150
    %v4154 = vadd.f32 %v4031, %v4151
    %v4155 = vadd.f32 %v4032, %v4152
    %v4156 = vadd.f32 %v4033, %v4153
    %v4157 = vstv %s129
    %v4158 = vmul.f32 %v4157, %v710
    %v4159 = vmul.f32 %v4157, %v711
    %v4160 = vmul.f32 %v4157, %v712
    %v4161 = vstv %s161
    %v4162 = vadd.f32 %v4158, %v4161
    %v4163 = vadd.f32 %v4159, %v4161
    %v4164 = vadd.f32 %v4160, %v4161
    %v4165 = vmax.f32 %v4162, 0.0
    %v4166 = vmax.f32 %v4163, 0.0
    %v4167 = vmax.f32 %v4164, 0.0
    %v4168 = vstv %s193
    %v4169 = vmul.f32 %v4165, %v4168
    %v4170 = vmul.f32 %v4166, %v4168
    %v4171 = vmul.f32 %v4167, %v4168
    %v4172 = vadd.f32 %v4049, %v4169
    %v4173 = vadd.f32 %v4050, %v4170
    %v4174 = vadd.f32 %v4051, %v4171
    %v4175 = vstv %s225
    %v4176 = vmul.f32 %v4165, %v4175
    %v4177 = vmul.f32 %v4166, %v4175
    %v4178 = vmul.f32 %v4167, %v4175
    %v4179 = vadd.f32 %v4056, %v4176
    %v4180 = vadd.f32 %v4057, %v4177
    %v4181 = vadd.f32 %v4058, %v4178
    %v4182 = vstv %s257
    %v4183 = vmul.f32 %v4165, %v4182
    %v4184 = vmul.f32 %v4166, %v4182
    %v4185 = vmul.f32 %v4167, %v4182
    %v4186 = vadd.f32 %v4063, %v4183
    %v4187 = vadd.f32 %v4064, %v4184
    %v4188 = vadd.f32 %v4065, %v4185
    %v4189 = vstv %s289
    %v4190 = vmul.f32 %v4165, %v4189
    %v4191 = vmul.f32 %v4166, %v4189
    %v4192 = vmul.f32 %v4167, %v4189
    %v4193 = vadd.f32 %v4070, %v4190
    %v4194 = vadd.f32 %v4071, %v4191
    %v4195 = vadd.f32 %v4072, %v4192
    %v4196 = vstv %s321
    %v4197 = vmul.f32 %v4165, %v4196
    %v4198 = vmul.f32 %v4166, %v4196
    %v4199 = vmul.f32 %v4167, %v4196
    %v4200 = vadd.f32 %v4077, %v4197
    %v4201 = vadd.f32 %v4078, %v4198
    %v4202 = vadd.f32 %v4079, %v4199
    %v4203 = vstv %s353
    %v4204 = vmul.f32 %v4165, %v4203
    %v4205 = vmul.f32 %v4166, %v4203
    %v4206 = vmul.f32 %v4167, %v4203
    %v4207 = vadd.f32 %v4084, %v4204
    %v4208 = vadd.f32 %v4085, %v4205
    %v4209 = vadd.f32 %v4086, %v4206
    %v4210 = vstv %s385
    %v4211 = vmul.f32 %v4165, %v4210
    %v4212 = vmul.f32 %v4166, %v4210
    %v4213 = vmul.f32 %v4167, %v4210
    %v4214 = vadd.f32 %v4091, %v4211
    %v4215 = vadd.f32 %v4092, %v4212
    %v4216 = vadd.f32 %v4093, %v4213
    %v4217 = vstv %s417
    %v4218 = vmul.f32 %v4165, %v4217
    %v4219 = vmul.f32 %v4166, %v4217
    %v4220 = vmul.f32 %v4167, %v4217
    %v4221 = vadd.f32 %v4098, %v4218
    %v4222 = vadd.f32 %v4099, %v4219
    %v4223 = vadd.f32 %v4100, %v4220
    %v4224 = vstv %s449
    %v4225 = vmul.f32 %v4165, %v4224
    %v4226 = vmul.f32 %v4166, %v4224
    %v4227 = vmul.f32 %v4167, %v4224
    %v4228 = vadd.f32 %v4105, %v4225
    %v4229 = vadd.f32 %v4106, %v4226
    %v4230 = vadd.f32 %v4107, %v4227
    %v4231 = vstv %s481
    %v4232 = vmul.f32 %v4165, %v4231
    %v4233 = vmul.f32 %v4166, %v4231
    %v4234 = vmul.f32 %v4167, %v4231
    %v4235 = vadd.f32 %v4112, %v4232
    %v4236 = vadd.f32 %v4113, %v4233
    %v4237 = vadd.f32 %v4114, %v4234
    %v4238 = vstv %s513
    %v4239 = vmul.f32 %v4165, %v4238
    %v4240 = vmul.f32 %v4166, %v4238
    %v4241 = vmul.f32 %v4167, %v4238
    %v4242 = vadd.f32 %v4119, %v4239
    %v4243 = vadd.f32 %v4120, %v4240
    %v4244 = vadd.f32 %v4121, %v4241
    %v4245 = vstv %s545
    %v4246 = vmul.f32 %v4165, %v4245
    %v4247 = vmul.f32 %v4166, %v4245
    %v4248 = vmul.f32 %v4167, %v4245
    %v4249 = vadd.f32 %v4126, %v4246
    %v4250 = vadd.f32 %v4127, %v4247
    %v4251 = vadd.f32 %v4128, %v4248
    %v4252 = vstv %s577
    %v4253 = vmul.f32 %v4165, %v4252
    %v4254 = vmul.f32 %v4166, %v4252
    %v4255 = vmul.f32 %v4167, %v4252
    %v4256 = vadd.f32 %v4133, %v4253
    %v4257 = vadd.f32 %v4134, %v4254
    %v4258 = vadd.f32 %v4135, %v4255
    %v4259 = vstv %s609
    %v4260 = vmul.f32 %v4165, %v4259
    %v4261 = vmul.f32 %v4166, %v4259
    %v4262 = vmul.f32 %v4167, %v4259
    %v4263 = vadd.f32 %v4140, %v4260
    %v4264 = vadd.f32 %v4141, %v4261
    %v4265 = vadd.f32 %v4142, %v4262
    %v4266 = vstv %s641
    %v4267 = vmul.f32 %v4165, %v4266
    %v4268 = vmul.f32 %v4166, %v4266
    %v4269 = vmul.f32 %v4167, %v4266
    %v4270 = vadd.f32 %v4147, %v4267
    %v4271 = vadd.f32 %v4148, %v4268
    %v4272 = vadd.f32 %v4149, %v4269
    %v4273 = vstv %s673
    %v4274 = vmul.f32 %v4165, %v4273
    %v4275 = vmul.f32 %v4166, %v4273
    %v4276 = vmul.f32 %v4167, %v4273
    %v4277 = vadd.f32 %v4154, %v4274
    %v4278 = vadd.f32 %v4155, %v4275
    %v4279 = vadd.f32 %v4156, %v4276
    %v4280 = vstv %s130
    %v4281 = vmul.f32 %v4280, %v710
    %v4282 = vmul.f32 %v4280, %v711
    %v4283 = vmul.f32 %v4280, %v712
    %v4284 = vstv %s162
    %v4285 = vadd.f32 %v4281, %v4284
    %v4286 = vadd.f32 %v4282, %v4284
    %v4287 = vadd.f32 %v4283, %v4284
    %v4288 = vmax.f32 %v4285, 0.0
    %v4289 = vmax.f32 %v4286, 0.0
    %v4290 = vmax.f32 %v4287, 0.0
    %v4291 = vstv %s194
    %v4292 = vmul.f32 %v4288, %v4291
    %v4293 = vmul.f32 %v4289, %v4291
    %v4294 = vmul.f32 %v4290, %v4291
    %v4295 = vadd.f32 %v4172, %v4292
    %v4296 = vadd.f32 %v4173, %v4293
    %v4297 = vadd.f32 %v4174, %v4294
    %v4298 = vstv %s226
    %v4299 = vmul.f32 %v4288, %v4298
    %v4300 = vmul.f32 %v4289, %v4298
    %v4301 = vmul.f32 %v4290, %v4298
    %v4302 = vadd.f32 %v4179, %v4299
    %v4303 = vadd.f32 %v4180, %v4300
    %v4304 = vadd.f32 %v4181, %v4301
    %v4305 = vstv %s258
    %v4306 = vmul.f32 %v4288, %v4305
    %v4307 = vmul.f32 %v4289, %v4305
    %v4308 = vmul.f32 %v4290, %v4305
    %v4309 = vadd.f32 %v4186, %v4306
    %v4310 = vadd.f32 %v4187, %v4307
    %v4311 = vadd.f32 %v4188, %v4308
    %v4312 = vstv %s290
    %v4313 = vmul.f32 %v4288, %v4312
    %v4314 = vmul.f32 %v4289, %v4312
    %v4315 = vmul.f32 %v4290, %v4312
    %v4316 = vadd.f32 %v4193, %v4313
    %v4317 = vadd.f32 %v4194, %v4314
    %v4318 = vadd.f32 %v4195, %v4315
    %v4319 = vstv %s322
    %v4320 = vmul.f32 %v4288, %v4319
    %v4321 = vmul.f32 %v4289, %v4319
    %v4322 = vmul.f32 %v4290, %v4319
    %v4323 = vadd.f32 %v4200, %v4320
    %v4324 = vadd.f32 %v4201, %v4321
    %v4325 = vadd.f32 %v4202, %v4322
    %v4326 = vstv %s354
    %v4327 = vmul.f32 %v4288, %v4326
    %v4328 = vmul.f32 %v4289, %v4326
    %v4329 = vmul.f32 %v4290, %v4326
    %v4330 = vadd.f32 %v4207, %v4327
    %v4331 = vadd.f32 %v4208, %v4328
    %v4332 = vadd.f32 %v4209, %v4329
    %v4333 = vstv %s386
    %v4334 = vmul.f32 %v4288, %v4333
    %v4335 = vmul.f32 %v4289, %v4333
    %v4336 = vmul.f32 %v4290, %v4333
    %v4337 = vadd.f32 %v4214, %v4334
    %v4338 = vadd.f32 %v4215, %v4335
    %v4339 = vadd.f32 %v4216, %v4336
    %v4340 = vstv %s418
    %v4341 = vmul.f32 %v4288, %v4340
    %v4342 = vmul.f32 %v4289, %v4340
    %v4343 = vmul.f32 %v4290, %v4340
    %v4344 = vadd.f32 %v4221, %v4341
    %v4345 = vadd.f32 %v4222, %v4342
    %v4346 = vadd.f32 %v4223, %v4343
    %v4347 = vstv %s450
    %v4348 = vmul.f32 %v4288, %v4347
    %v4349 = vmul.f32 %v4289, %v4347
    %v4350 = vmul.f32 %v4290, %v4347
    %v4351 = vadd.f32 %v4228, %v4348
    %v4352 = vadd.f32 %v4229, %v4349
    %v4353 = vadd.f32 %v4230, %v4350
    %v4354 = vstv %s482
    %v4355 = vmul.f32 %v4288, %v4354
    %v4356 = vmul.f32 %v4289, %v4354
    %v4357 = vmul.f32 %v4290, %v4354
    %v4358 = vadd.f32 %v4235, %v4355
    %v4359 = vadd.f32 %v4236, %v4356
    %v4360 = vadd.f32 %v4237, %v4357
    %v4361 = vstv %s514
    %v4362 = vmul.f32 %v4288, %v4361
    %v4363 = vmul.f32 %v4289, %v4361
    %v4364 = vmul.f32 %v4290, %v4361
    %v4365 = vadd.f32 %v4242, %v4362
    %v4366 = vadd.f32 %v4243, %v4363
    %v4367 = vadd.f32 %v4244, %v4364
    %v4368 = vstv %s546
    %v4369 = vmul.f32 %v4288, %v4368
    %v4370 = vmul.f32 %v4289, %v4368
    %v4371 = vmul.f32 %v4290, %v4368
    %v4372 = vadd.f32 %v4249, %v4369
    %v4373 = vadd.f32 %v4250, %v4370
    %v4374 = vadd.f32 %v4251, %v4371
    %v4375 = vstv %s578
    %v4376 = vmul.f32 %v4288, %v4375
    %v4377 = vmul.f32 %v4289, %v4375
    %v4378 = vmul.f32 %v4290, %v4375
    %v4379 = vadd.f32 %v4256, %v4376
    %v4380 = vadd.f32 %v4257, %v4377
    %v4381 = vadd.f32 %v4258, %v4378
    %v4382 = vstv %s610
    %v4383 = vmul.f32 %v4288, %v4382
    %v4384 = vmul.f32 %v4289, %v4382
    %v4385 = vmul.f32 %v4290, %v4382
    %v4386 = vadd.f32 %v4263, %v4383
    %v4387 = vadd.f32 %v4264, %v4384
    %v4388 = vadd.f32 %v4265, %v4385
    %v4389 = vstv %s642
    %v4390 = vmul.f32 %v4288, %v4389
    %v4391 = vmul.f32 %v4289, %v4389
    %v4392 = vmul.f32 %v4290, %v4389
    %v4393 = vadd.f32 %v4270, %v4390
    %v4394 = vadd.f32 %v4271, %v4391
    %v4395 = vadd.f32 %v4272, %v4392
    %v4396 = vstv %s674
    %v4397 = vmul.f32 %v4288, %v4396
    %v4398 = vmul.f32 %v4289, %v4396
    %v4399 = vmul.f32 %v4290, %v4396
    %v4400 = vadd.f32 %v4277, %v4397
    %v4401 = vadd.f32 %v4278, %v4398
    %v4402 = vadd.f32 %v4279, %v4399
    %v4403 = vstv %s131
    %v4404 = vmul.f32 %v4403, %v710
    %v4405 = vmul.f32 %v4403, %v711
    %v4406 = vmul.f32 %v4403, %v712
    %v4407 = vstv %s163
    %v4408 = vadd.f32 %v4404, %v4407
    %v4409 = vadd.f32 %v4405, %v4407
    %v4410 = vadd.f32 %v4406, %v4407
    %v4411 = vmax.f32 %v4408, 0.0
    %v4412 = vmax.f32 %v4409, 0.0
    %v4413 = vmax.f32 %v4410, 0.0
    %v4414 = vstv %s195
    %v4415 = vmul.f32 %v4411, %v4414
    %v4416 = vmul.f32 %v4412, %v4414
    %v4417 = vmul.f32 %v4413, %v4414
    %v4418 = vadd.f32 %v4295, %v4415
    %v4419 = vadd.f32 %v4296, %v4416
    %v4420 = vadd.f32 %v4297, %v4417
    %v4421 = vstv %s227
    %v4422 = vmul.f32 %v4411, %v4421
    %v4423 = vmul.f32 %v4412, %v4421
    %v4424 = vmul.f32 %v4413, %v4421
    %v4425 = vadd.f32 %v4302, %v4422
    %v4426 = vadd.f32 %v4303, %v4423
    %v4427 = vadd.f32 %v4304, %v4424
    %v4428 = vstv %s259
    %v4429 = vmul.f32 %v4411, %v4428
    %v4430 = vmul.f32 %v4412, %v4428
    %v4431 = vmul.f32 %v4413, %v4428
    %v4432 = vadd.f32 %v4309, %v4429
    %v4433 = vadd.f32 %v4310, %v4430
    %v4434 = vadd.f32 %v4311, %v4431
    %v4435 = vstv %s291
    %v4436 = vmul.f32 %v4411, %v4435
    %v4437 = vmul.f32 %v4412, %v4435
    %v4438 = vmul.f32 %v4413, %v4435
    %v4439 = vadd.f32 %v4316, %v4436
    %v4440 = vadd.f32 %v4317, %v4437
    %v4441 = vadd.f32 %v4318, %v4438
    %v4442 = vstv %s323
    %v4443 = vmul.f32 %v4411, %v4442
    %v4444 = vmul.f32 %v4412, %v4442
    %v4445 = vmul.f32 %v4413, %v4442
    %v4446 = vadd.f32 %v4323, %v4443
    %v4447 = vadd.f32 %v4324, %v4444
    %v4448 = vadd.f32 %v4325, %v4445
    %v4449 = vstv %s355
    %v4450 = vmul.f32 %v4411, %v4449
    %v4451 = vmul.f32 %v4412, %v4449
    %v4452 = vmul.f32 %v4413, %v4449
    %v4453 = vadd.f32 %v4330, %v4450
    %v4454 = vadd.f32 %v4331, %v4451
    %v4455 = vadd.f32 %v4332, %v4452
    %v4456 = vstv %s387
    %v4457 = vmul.f32 %v4411, %v4456
    %v4458 = vmul.f32 %v4412, %v4456
    %v4459 = vmul.f32 %v4413, %v4456
    %v4460 = vadd.f32 %v4337, %v4457
    %v4461 = vadd.f32 %v4338, %v4458
    %v4462 = vadd.f32 %v4339, %v4459
    %v4463 = vstv %s419
    %v4464 = vmul.f32 %v4411, %v4463
    %v4465 = vmul.f32 %v4412, %v4463
    %v4466 = vmul.f32 %v4413, %v4463
    %v4467 = vadd.f32 %v4344, %v4464
    %v4468 = vadd.f32 %v4345, %v4465
    %v4469 = vadd.f32 %v4346, %v4466
    %v4470 = vstv %s451
    %v4471 = vmul.f32 %v4411, %v4470
    %v4472 = vmul.f32 %v4412, %v4470
    %v4473 = vmul.f32 %v4413, %v4470
    %v4474 = vadd.f32 %v4351, %v4471
    %v4475 = vadd.f32 %v4352, %v4472
    %v4476 = vadd.f32 %v4353, %v4473
    %v4477 = vstv %s483
    %v4478 = vmul.f32 %v4411, %v4477
    %v4479 = vmul.f32 %v4412, %v4477
    %v4480 = vmul.f32 %v4413, %v4477
    %v4481 = vadd.f32 %v4358, %v4478
    %v4482 = vadd.f32 %v4359, %v4479
    %v4483 = vadd.f32 %v4360, %v4480
    %v4484 = vstv %s515
    %v4485 = vmul.f32 %v4411, %v4484
    %v4486 = vmul.f32 %v4412, %v4484
    %v4487 = vmul.f32 %v4413, %v4484
    %v4488 = vadd.f32 %v4365, %v4485
    %v4489 = vadd.f32 %v4366, %v4486
    %v4490 = vadd.f32 %v4367, %v4487
    %v4491 = vstv %s547
    %v4492 = vmul.f32 %v4411, %v4491
    %v4493 = vmul.f32 %v4412, %v4491
    %v4494 = vmul.f32 %v4413, %v4491
    %v4495 = vadd.f32 %v4372, %v4492
    %v4496 = vadd.f32 %v4373, %v4493
    %v4497 = vadd.f32 %v4374, %v4494
    %v4498 = vstv %s579
    %v4499 = vmul.f32 %v4411, %v4498
    %v4500 = vmul.f32 %v4412, %v4498
    %v4501 = vmul.f32 %v4413, %v4498
    %v4502 = vadd.f32 %v4379, %v4499
    %v4503 = vadd.f32 %v4380, %v4500
    %v4504 = vadd.f32 %v4381, %v4501
    %v4505 = vstv %s611
    %v4506 = vmul.f32 %v4411, %v4505
    %v4507 = vmul.f32 %v4412, %v4505
    %v4508 = vmul.f32 %v4413, %v4505
    %v4509 = vadd.f32 %v4386, %v4506
    %v4510 = vadd.f32 %v4387, %v4507
    %v4511 = vadd.f32 %v4388, %v4508
    %v4512 = vstv %s643
    %v4513 = vmul.f32 %v4411, %v4512
    %v4514 = vmul.f32 %v4412, %v4512
    %v4515 = vmul.f32 %v4413, %v4512
    %v4516 = vadd.f32 %v4393, %v4513
    %v4517 = vadd.f32 %v4394, %v4514
    %v4518 = vadd.f32 %v4395, %v4515
    %v4519 = vstv %s675
    %v4520 = vmul.f32 %v4411, %v4519
    %v4521 = vmul.f32 %v4412, %v4519
    %v4522 = vmul.f32 %v4413, %v4519
    %v4523 = vadd.f32 %v4400, %v4520
    %v4524 = vadd.f32 %v4401, %v4521
    %v4525 = vadd.f32 %v4402, %v4522
    %v4526 = vstv %s132
    %v4527 = vmul.f32 %v4526, %v710
    %v4528 = vmul.f32 %v4526, %v711
    %v4529 = vmul.f32 %v4526, %v712
    %v4530 = vstv %s164
    %v4531 = vadd.f32 %v4527, %v4530
    %v4532 = vadd.f32 %v4528, %v4530
    %v4533 = vadd.f32 %v4529, %v4530
    %v4534 = vmax.f32 %v4531, 0.0
    %v4535 = vmax.f32 %v4532, 0.0
    %v4536 = vmax.f32 %v4533, 0.0
    %v4537 = vstv %s196
    %v4538 = vmul.f32 %v4534, %v4537
    %v4539 = vmul.f32 %v4535, %v4537
    %v4540 = vmul.f32 %v4536, %v4537
    %v4541 = vadd.f32 %v4418, %v4538
    %v4542 = vadd.f32 %v4419, %v4539
    %v4543 = vadd.f32 %v4420, %v4540
    %v4544 = vstv %s228
    %v4545 = vmul.f32 %v4534, %v4544
    %v4546 = vmul.f32 %v4535, %v4544
    %v4547 = vmul.f32 %v4536, %v4544
    %v4548 = vadd.f32 %v4425, %v4545
    %v4549 = vadd.f32 %v4426, %v4546
    %v4550 = vadd.f32 %v4427, %v4547
    %v4551 = vstv %s260
    %v4552 = vmul.f32 %v4534, %v4551
    %v4553 = vmul.f32 %v4535, %v4551
    %v4554 = vmul.f32 %v4536, %v4551
    %v4555 = vadd.f32 %v4432, %v4552
    %v4556 = vadd.f32 %v4433, %v4553
    %v4557 = vadd.f32 %v4434, %v4554
    %v4558 = vstv %s292
    %v4559 = vmul.f32 %v4534, %v4558
    %v4560 = vmul.f32 %v4535, %v4558
    %v4561 = vmul.f32 %v4536, %v4558
    %v4562 = vadd.f32 %v4439, %v4559
    %v4563 = vadd.f32 %v4440, %v4560
    %v4564 = vadd.f32 %v4441, %v4561
    %v4565 = vstv %s324
    %v4566 = vmul.f32 %v4534, %v4565
    %v4567 = vmul.f32 %v4535, %v4565
    %v4568 = vmul.f32 %v4536, %v4565
    %v4569 = vadd.f32 %v4446, %v4566
    %v4570 = vadd.f32 %v4447, %v4567
    %v4571 = vadd.f32 %v4448, %v4568
    %v4572 = vstv %s356
    %v4573 = vmul.f32 %v4534, %v4572
    %v4574 = vmul.f32 %v4535, %v4572
    %v4575 = vmul.f32 %v4536, %v4572
    %v4576 = vadd.f32 %v4453, %v4573
    %v4577 = vadd.f32 %v4454, %v4574
    %v4578 = vadd.f32 %v4455, %v4575
    %v4579 = vstv %s388
    %v4580 = vmul.f32 %v4534, %v4579
    %v4581 = vmul.f32 %v4535, %v4579
    %v4582 = vmul.f32 %v4536, %v4579
    %v4583 = vadd.f32 %v4460, %v4580
    %v4584 = vadd.f32 %v4461, %v4581
    %v4585 = vadd.f32 %v4462, %v4582
    %v4586 = vstv %s420
    %v4587 = vmul.f32 %v4534, %v4586
    %v4588 = vmul.f32 %v4535, %v4586
    %v4589 = vmul.f32 %v4536, %v4586
    %v4590 = vadd.f32 %v4467, %v4587
    %v4591 = vadd.f32 %v4468, %v4588
    %v4592 = vadd.f32 %v4469, %v4589
    %v4593 = vstv %s452
    %v4594 = vmul.f32 %v4534, %v4593
    %v4595 = vmul.f32 %v4535, %v4593
    %v4596 = vmul.f32 %v4536, %v4593
    %v4597 = vadd.f32 %v4474, %v4594
    %v4598 = vadd.f32 %v4475, %v4595
    %v4599 = vadd.f32 %v4476, %v4596
    %v4600 = vstv %s484
    %v4601 = vmul.f32 %v4534, %v4600
    %v4602 = vmul.f32 %v4535, %v4600
    %v4603 = vmul.f32 %v4536, %v4600
    %v4604 = vadd.f32 %v4481, %v4601
    %v4605 = vadd.f32 %v4482, %v4602
    %v4606 = vadd.f32 %v4483, %v4603
    %v4607 = vstv %s516
    %v4608 = vmul.f32 %v4534, %v4607
    %v4609 = vmul.f32 %v4535, %v4607
    %v4610 = vmul.f32 %v4536, %v4607
    %v4611 = vadd.f32 %v4488, %v4608
    %v4612 = vadd.f32 %v4489, %v4609
    %v4613 = vadd.f32 %v4490, %v4610
    %v4614 = vstv %s548
    %v4615 = vmul.f32 %v4534, %v4614
    %v4616 = vmul.f32 %v4535, %v4614
    %v4617 = vmul.f32 %v4536, %v4614
    %v4618 = vadd.f32 %v4495, %v4615
    %v4619 = vadd.f32 %v4496, %v4616
    %v4620 = vadd.f32 %v4497, %v4617
    %v4621 = vstv %s580
    %v4622 = vmul.f32 %v4534, %v4621
    %v4623 = vmul.f32 %v4535, %v4621
    %v4624 = vmul.f32 %v4536, %v4621
    %v4625 = vadd.f32 %v4502, %v4622
    %v4626 = vadd.f32 %v4503, %v4623
    %v4627 = vadd.f32 %v4504, %v4624
    %v4628 = vstv %s612
    %v4629 = vmul.f32 %v4534, %v4628
    %v4630 = vmul.f32 %v4535, %v4628
    %v4631 = vmul.f32 %v4536, %v4628
    %v4632 = vadd.f32 %v4509, %v4629
    %v4633 = vadd.f32 %v4510, %v4630
    %v4634 = vadd.f32 %v4511, %v4631
    %v4635 = vstv %s644
    %v4636 = vmul.f32 %v4534, %v4635
    %v4637 = vmul.f32 %v4535, %v4635
    %v4638 = vmul.f32 %v4536, %v4635
    %v4639 = vadd.f32 %v4516, %v4636
    %v4640 = vadd.f32 %v4517, %v4637
    %v4641 = vadd.f32 %v4518, %v4638
    %v4642 = vstv %s676
    %v4643 = vmul.f32 %v4534, %v4642
    %v4644 = vmul.f32 %v4535, %v4642
    %v4645 = vmul.f32 %v4536, %v4642
    %v4646 = vadd.f32 %v4523, %v4643
    %v4647 = vadd.f32 %v4524, %v4644
    %v4648 = vadd.f32 %v4525, %v4645
    %v4649 = vstv %s677
    %v4650 = vadd.f32 %v4541, %v4649
    %v4651 = vadd.f32 %v4542, %v4649
    %v4652 = vadd.f32 %v4543, %v4649
    %v4653 = vmax.f32 %v4650, 0.0
    %v4654 = vmax.f32 %v4651, 0.0
    %v4655 = vmax.f32 %v4652, 0.0
    %v4656 = vstv %s693
    %v4657 = vmul.f32 %v4653, %v4656
    %v4658 = vmul.f32 %v4654, %v4656
    %v4659 = vmul.f32 %v4655, %v4656
    %v4660 = vstv %s678
    %v4661 = vadd.f32 %v4548, %v4660
    %v4662 = vadd.f32 %v4549, %v4660
    %v4663 = vadd.f32 %v4550, %v4660
    %v4664 = vmax.f32 %v4661, 0.0
    %v4665 = vmax.f32 %v4662, 0.0
    %v4666 = vmax.f32 %v4663, 0.0
    %v4667 = vstv %s694
    %v4668 = vmul.f32 %v4664, %v4667
    %v4669 = vmul.f32 %v4665, %v4667
    %v4670 = vmul.f32 %v4666, %v4667
    %v4671 = vadd.f32 %v4657, %v4668
    %v4672 = vadd.f32 %v4658, %v4669
    %v4673 = vadd.f32 %v4659, %v4670
    %v4674 = vstv %s679
    %v4675 = vadd.f32 %v4555, %v4674
    %v4676 = vadd.f32 %v4556, %v4674
    %v4677 = vadd.f32 %v4557, %v4674
    %v4678 = vmax.f32 %v4675, 0.0
    %v4679 = vmax.f32 %v4676, 0.0
    %v4680 = vmax.f32 %v4677, 0.0
    %v4681 = vstv %s695
    %v4682 = vmul.f32 %v4678, %v4681
    %v4683 = vmul.f32 %v4679, %v4681
    %v4684 = vmul.f32 %v4680, %v4681
    %v4685 = vadd.f32 %v4671, %v4682
    %v4686 = vadd.f32 %v4672, %v4683
    %v4687 = vadd.f32 %v4673, %v4684
    %v4688 = vstv %s680
    %v4689 = vadd.f32 %v4562, %v4688
    %v4690 = vadd.f32 %v4563, %v4688
    %v4691 = vadd.f32 %v4564, %v4688
    %v4692 = vmax.f32 %v4689, 0.0
    %v4693 = vmax.f32 %v4690, 0.0
    %v4694 = vmax.f32 %v4691, 0.0
    %v4695 = vstv %s696
    %v4696 = vmul.f32 %v4692, %v4695
    %v4697 = vmul.f32 %v4693, %v4695
    %v4698 = vmul.f32 %v4694, %v4695
    %v4699 = vadd.f32 %v4685, %v4696
    %v4700 = vadd.f32 %v4686, %v4697
    %v4701 = vadd.f32 %v4687, %v4698
    %v4702 = vstv %s681
    %v4703 = vadd.f32 %v4569, %v4702
    %v4704 = vadd.f32 %v4570, %v4702
    %v4705 = vadd.f32 %v4571, %v4702
    %v4706 = vmax.f32 %v4703, 0.0
    %v4707 = vmax.f32 %v4704, 0.0
    %v4708 = vmax.f32 %v4705, 0.0
    %v4709 = vstv %s697
    %v4710 = vmul.f32 %v4706, %v4709
    %v4711 = vmul.f32 %v4707, %v4709
    %v4712 = vmul.f32 %v4708, %v4709
    %v4713 = vadd.f32 %v4699, %v4710
    %v4714 = vadd.f32 %v4700, %v4711
    %v4715 = vadd.f32 %v4701, %v4712
    %v4716 = vstv %s682
    %v4717 = vadd.f32 %v4576, %v4716
    %v4718 = vadd.f32 %v4577, %v4716
    %v4719 = vadd.f32 %v4578, %v4716
    %v4720 = vmax.f32 %v4717, 0.0
    %v4721 = vmax.f32 %v4718, 0.0
    %v4722 = vmax.f32 %v4719, 0.0
    %v4723 = vstv %s698
    %v4724 = vmul.f32 %v4720, %v4723
    %v4725 = vmul.f32 %v4721, %v4723
    %v4726 = vmul.f32 %v4722, %v4723
    %v4727 = vadd.f32 %v4713, %v4724
    %v4728 = vadd.f32 %v4714, %v4725
    %v4729 = vadd.f32 %v4715, %v4726
    %v4730 = vstv %s683
    %v4731 = vadd.f32 %v4583, %v4730
    %v4732 = vadd.f32 %v4584, %v4730
    %v4733 = vadd.f32 %v4585, %v4730
    %v4734 = vmax.f32 %v4731, 0.0
    %v4735 = vmax.f32 %v4732, 0.0
    %v4736 = vmax.f32 %v4733, 0.0
    %v4737 = vstv %s699
    %v4738 = vmul.f32 %v4734, %v4737
    %v4739 = vmul.f32 %v4735, %v4737
    %v4740 = vmul.f32 %v4736, %v4737
    %v4741 = vadd.f32 %v4727, %v4738
    %v4742 = vadd.f32 %v4728, %v4739
    %v4743 = vadd.f32 %v4729, %v4740
    %v4744 = vstv %s684
    %v4745 = vadd.f32 %v4590, %v4744
    %v4746 = vadd.f32 %v4591, %v4744
    %v4747 = vadd.f32 %v4592, %v4744
    %v4748 = vmax.f32 %v4745, 0.0
    %v4749 = vmax.f32 %v4746, 0.0
    %v4750 = vmax.f32 %v4747, 0.0
    %v4751 = vstv %s700
    %v4752 = vmul.f32 %v4748, %v4751
    %v4753 = vmul.f32 %v4749, %v4751
    %v4754 = vmul.f32 %v4750, %v4751
    %v4755 = vadd.f32 %v4741, %v4752
    %v4756 = vadd.f32 %v4742, %v4753
    %v4757 = vadd.f32 %v4743, %v4754
    %v4758 = vstv %s685
    %v4759 = vadd.f32 %v4597, %v4758
    %v4760 = vadd.f32 %v4598, %v4758
    %v4761 = vadd.f32 %v4599, %v4758
    %v4762 = vmax.f32 %v4759, 0.0
    %v4763 = vmax.f32 %v4760, 0.0
    %v4764 = vmax.f32 %v4761, 0.0
    %v4765 = vstv %s701
    %v4766 = vmul.f32 %v4762, %v4765
    %v4767 = vmul.f32 %v4763, %v4765
    %v4768 = vmul.f32 %v4764, %v4765
    %v4769 = vadd.f32 %v4755, %v4766
    %v4770 = vadd.f32 %v4756, %v4767
    %v4771 = vadd.f32 %v4757, %v4768
    %v4772 = vstv %s686
    %v4773 = vadd.f32 %v4604, %v4772
    %v4774 = vadd.f32 %v4605, %v4772
    %v4775 = vadd.f32 %v4606, %v4772
    %v4776 = vmax.f32 %v4773, 0.0
    %v4777 = vmax.f32 %v4774, 0.0
    %v4778 = vmax.f32 %v4775, 0.0
    %v4779 = vstv %s702
    %v4780 = vmul.f32 %v4776, %v4779
    %v4781 = vmul.f32 %v4777, %v4779
    %v4782 = vmul.f32 %v4778, %v4779
    %v4783 = vadd.f32 %v4769, %v4780
    %v4784 = vadd.f32 %v4770, %v4781
    %v4785 = vadd.f32 %v4771, %v4782
    %v4786 = vstv %s687
    %v4787 = vadd.f32 %v4611, %v4786
    %v4788 = vadd.f32 %v4612, %v4786
    %v4789 = vadd.f32 %v4613, %v4786
    %v4790 = vmax.f32 %v4787, 0.0
    %v4791 = vmax.f32 %v4788, 0.0
    %v4792 = vmax.f32 %v4789, 0.0
    %v4793 = vstv %s703
    %v4794 = vmul.f32 %v4790, %v4793
    %v4795 = vmul.f32 %v4791, %v4793
    %v4796 = vmul.f32 %v4792, %v4793
    %v4797 = vadd.f32 %v4783, %v4794
    %v4798 = vadd.f32 %v4784, %v4795
    %v4799 = vadd.f32 %v4785, %v4796
    %v4800 = vstv %s688
    %v4801 = vadd.f32 %v4618, %v4800
    %v4802 = vadd.f32 %v4619, %v4800
    %v4803 = vadd.f32 %v4620, %v4800
    %v4804 = vmax.f32 %v4801, 0.0
    %v4805 = vmax.f32 %v4802, 0.0
    %v4806 = vmax.f32 %v4803, 0.0
    %v4807 = vstv %s704
    %v4808 = vmul.f32 %v4804, %v4807
    %v4809 = vmul.f32 %v4805, %v4807
    %v4810 = vmul.f32 %v4806, %v4807
    %v4811 = vadd.f32 %v4797, %v4808
    %v4812 = vadd.f32 %v4798, %v4809
    %v4813 = vadd.f32 %v4799, %v4810
    %v4814 = vstv %s689
    %v4815 = vadd.f32 %v4625, %v4814
    %v4816 = vadd.f32 %v4626, %v4814
    %v4817 = vadd.f32 %v4627, %v4814
    %v4818 = vmax.f32 %v4815, 0.0
    %v4819 = vmax.f32 %v4816, 0.0
    %v4820 = vmax.f32 %v4817, 0.0
    %v4821 = vstv %s705
    %v4822 = vmul.f32 %v4818, %v4821
    %v4823 = vmul.f32 %v4819, %v4821
    %v4824 = vmul.f32 %v4820, %v4821
    %v4825 = vadd.f32 %v4811, %v4822
    %v4826 = vadd.f32 %v4812, %v4823
    %v4827 = vadd.f32 %v4813, %v4824
    %v4828 = vstv %s690
    %v4829 = vadd.f32 %v4632, %v4828
    %v4830 = vadd.f32 %v4633, %v4828
    %v4831 = vadd.f32 %v4634, %v4828
    %v4832 = vmax.f32 %v4829, 0.0
    %v4833 = vmax.f32 %v4830, 0.0
    %v4834 = vmax.f32 %v4831, 0.0
    %v4835 = vstv %s706
    %v4836 = vmul.f32 %v4832, %v4835
    %v4837 = vmul.f32 %v4833, %v4835
    %v4838 = vmul.f32 %v4834, %v4835
    %v4839 = vadd.f32 %v4825, %v4836
    %v4840 = vadd.f32 %v4826, %v4837
    %v4841 = vadd.f32 %v4827, %v4838
    %v4842 = vstv %s691
    %v4843 = vadd.f32 %v4639, %v4842
    %v4844 = vadd.f32 %v4640, %v4842
    %v4845 = vadd.f32 %v4641, %v4842
    %v4846 = vmax.f32 %v4843, 0.0
    %v4847 = vmax.f32 %v4844, 0.0
    %v4848 = vmax.f32 %v4845, 0.0
    %v4849 = vstv %s707
    %v4850 = vmul.f32 %v4846, %v4849
    %v4851 = vmul.f32 %v4847, %v4849
    %v4852 = vmul.f32 %v4848, %v4849
    %v4853 = vadd.f32 %v4839, %v4850
    %v4854 = vadd.f32 %v4840, %v4851
    %v4855 = vadd.f32 %v4841, %v4852
    %v4856 = vstv %s692
    %v4857 = vadd.f32 %v4646, %v4856
    %v4858 = vadd.f32 %v4647, %v4856
    %v4859 = vadd.f32 %v4648, %v4856
    %v4860 = vmax.f32 %v4857, 0.0
    %v4861 = vmax.f32 %v4858, 0.0
    %v4862 = vmax.f32 %v4859, 0.0
    %v4863 = vstv %s708
    %v4864 = vmul.f32 %v4860, %v4863
    %v4865 = vmul.f32 %v4861, %v4863
    %v4866 = vmul.f32 %v4862, %v4863
    %v4867 = vadd.f32 %v4853, %v4864
    %v4868 = vadd.f32 %v4854, %v4865
    %v4869 = vadd.f32 %v4855, %v4866
    %v4870 = vstv %s709
    %v4871 = vadd.f32 %v4867, %v4870
    %v4872 = vadd.f32 %v4868, %v4870
    %v4873 = vadd.f32 %v4869, %v4870
    %v4874 = vxor.u32 %v4871, 2147483648
    %v4875 = vxor.u32 %v4872, 2147483648
    %v4876 = vxor.u32 %v4873, 2147483648
    %v4877 = vmul.f32 %v4874, 1.442695
    %v4878 = vpow.pop %v4877
    %v4879 = vmul.f32 %v4875, 1.442695
    %v4880 = vpow.pop %v4879
    %v4881 = vmul.f32 %v4876, 1.442695
    %v4882 = vpow.pop %v4881
    %v4883 = vadd.f32 %v4878, 1.0
    %v4884 = vadd.f32 %v4880, 1.0
    %v4885 = vadd.f32 %v4882, 1.0
    %v4886 = vrcp.pop %v4883
    %v4887 = vmul.f32 1.0, %v4886
    %v4888 = vrcp.pop %v4884
    %v4889 = vmul.f32 1.0, %v4888
    %v4890 = vrcp.pop %v4885
    %v4891 = vmul.f32 1.0, %v4890
    %v4892 = vmul.f32 %v4887, 115.0
    %v4893 = vmul.f32 %v4889, 115.0
    %v4894 = vmul.f32 %v4891, 115.0
    %4895 = vst [vmem:[#allocation14] sm:$0xff] %v4892
    %4896 = vst [vmem:[#allocation14 + $0x8] sm:$0xff] %v4893
    %4897 = vst [vmem:[#allocation14 + $0x10] sm:$0xff] %v4894
    // Predicated region
    $region54: #{tpu_custom_call.1} parent=1 // pred_check
      _
    $region55: #{tpu_custom_call.1} parent=1 // pred_check_branch
      %4899 = sbr.rel (0) target = $region57
    $region56: #{tpu_custom_call.1} parent=1 // pred_region
      %s4901 = ssub.s32 384, 384
      %4902 = vsyncadd [#allocation5], %s4901
      %s4903 = sshll.u32 [#allocation14], 4
      %s4904 = int_to_ptr.vmem [resolvable:$true] %s4903
      %4909 = dma.vmem_to_hbm [thread:$0]  %s4904, 384, %s7, [#allocation5], 128, 128, 8
    $region57: #{tpu_custom_call.1} parent=1 // pred_fallthru
      _
    // Predicated region
    $region58: #{tpu_custom_call.1} parent=1 // pred_check
      _
    $region59: #{tpu_custom_call.1} parent=1 // pred_check_branch
      %4911 = sbr.rel (0) target = $region61
    $region60: #{tpu_custom_call.1} parent=1 // pred_region
      %4912 = dma.done [#allocation5], 384
    $region61: #{tpu_custom_call.1} parent=1 // pred_fallthru
      _
    %4913 = vsyncpa [#allocation4], 1
    %4914 = vsyncpa [#allocation5], 1
    %4915 = vsyncpa [#allocation6], 1
    %4916 = vsyncpa [#allocation9], 1
    %4917 = vsyncpa [#allocation12], 1

</llo_original>
